<compile_context>
chip_gen: v5e
topology: v5e:2x2
jax: 0.10.0
libtpu: 0.0.40
codegen_flags: <defaults>
</compile_context>

<pallas_src>
import functools
import math
import numpy as np

import jax
import jax.numpy as jnp
from jax.experimental import pallas as pl
from jax.experimental.pallas import tpu as pltpu

KS = 3                      # unfold kernel size
T = KS * KS                 # kernel positions per pixel
LN_EPS = 1e-5               # torch.nn.LayerNorm default
ATTN_EPS = 1e-8             # Performer epsilon

# Set to jnp.bfloat16 on v6e / v7x for ~2x MXU rate (accumulation stays f32 via
# preferred_element_type).  Kept at f32 here to preserve the module's exact
# numerics within the 1e-2 check (v5e: keep elementwise math f32 either way).
MXU_INPUT_DTYPE = jnp.float32


def _dot(a, b):
    return jnp.dot(a.astype(MXU_INPUT_DTYPE), b.astype(MXU_INPUT_DTYPE),
                   preferred_element_type=jnp.float32)


# ----------------------------------------------------------------------------
# fused Pallas kernel: one grid step == one image of one batch element
# ----------------------------------------------------------------------------
def _sa_fused_kernel(x_ref, row_ref, col_ref,
                     w1_ref, b1_ref, g1_ref, be1_ref,
                     wf_ref, bf_ref, pad_ref,
                     wproj_ref, bproj_ref, g2_ref, be2_ref,
                     wm1_ref, bm1_ref, wm2_ref, bm2_ref,
                     w2_ref, b2_ref,
                     o_ref, *, H, W, E, m):
    N = H * W
    inv_sqrt_m = 1.0 / math.sqrt(m)

    x_in = x_ref[...].astype(jnp.float32)                             # (Cin, N)

    # ---- proj1 (1x1 conv): channel-major matmul, tokens on lanes ----
    y1 = _dot(w1_ref[...], x_in) + b1_ref[...]                        # (C, N)

    # ---- norm1 (LayerNorm over channels); per-token -> hoisted before unfold
    mu = jnp.mean(y1, axis=0, keepdims=True)
    var = jnp.mean(jnp.square(y1 - mu), axis=0, keepdims=True)
    xn = (y1 - mu) * jax.lax.rsqrt(var + LN_EPS)
    xn = xn * g1_ref[...] + be1_ref[...]                              # (C, N)

    # ---- fused [k | q | v | k@w_prm^T | q@w_prm^T]: ONE (3E+2m, C) matmul ----
    z = _dot(wf_ref[...], xn) + bf_ref[...]                           # (3E+2m, N)
    k = z[0:E]
    q = z[E:2 * E]
    v = z[2 * E:3 * E]
    kw = z[3 * E:3 * E + m]
    qw = z[3 * E + m:3 * E + 2 * m]

    # prm_exp (also per-token, hoisted before the unfold)
    kp = jnp.exp(kw - 0.5 * jnp.sum(k * k, axis=0, keepdims=True)) * inv_sqrt_m  # (m, N)
    qp = jnp.exp(qw - 0.5 * jnp.sum(q * q, axis=0, keepdims=True)) * inv_sqrt_m  # (m, N)
    u = jnp.concatenate([kp, qp, v], axis=0)                          # (2m+E, N)
    u_pad = pad_ref[...]                                              # (2m+E, 1) zero-pad token

    # ---- 3x3 unfold in-register: lane shift + boundary mask per position ----
    h_idx = row_ref[...]                                              # (1, N) int32
    w_idx = col_ref[...]                                              # (1, N) int32
    kp_ts, qp_ts, v_ts = [], [], []
    for dy in range(KS):
        for dx in range(KS):
            off = (dy - 1) * W + (dx - 1)     # flat-token offset of this neighbor
            valid = ((h_idx >= 1 - dy) & (h_idx <= H - dy) &
                     (w_idx >= 1 - dx) & (w_idx <= W - dx))
            shifted = jnp.roll(u, -off, axis=1) if off != 0 else u
            u_t = jnp.where(valid, shifted, u_pad)                    # (2m+E, N)
            kp_ts.append(u_t[0:m])
            qp_ts.append(u_t[m:2 * m])
            v_ts.append(u_t[2 * m:2 * m + E])

    # ---- Performer attention, token-in-lane.  Re-associated as (qp kp^T) v:
    #      for T=9 < m*E this is fewer MACs and D[t] = sum_s A[t,s] comes free.
    y_ts = []
    for ti in range(T):
        a_ts = [jnp.sum(qp_ts[ti] * kp_ts[si], axis=0, keepdims=True)  # (1, N)
                for si in range(T)]
        d_t = a_ts[0]
        for si in range(1, T):
            d_t = d_t + a_ts[si]                                       # (1, N) == qp . ksum
        num = a_ts[0] * v_ts[0]
        for si in range(1, T):
            num = num + a_ts[si] * v_ts[si]                            # (E, N)
        y_ts.append(num / (d_t + ATTN_EPS))

    # Concatenate kernel positions along lanes -> proj / MLP matmuls lane-dense.
    y_all = jnp.concatenate(y_ts, axis=1)                              # (E, T*N)
    v_all = jnp.concatenate(v_ts, axis=1)                              # (E, T*N)

    # ---- proj + residual with v (dropout dp1 == identity) ----
    xa = v_all + _dot(wproj_ref[...], y_all) + bproj_ref[...]          # (E, T*N)

    # ---- norm2 + MLP + residual (dropout dp2 == identity) ----
    mu2 = jnp.mean(xa, axis=0, keepdims=True)
    var2 = jnp.mean(jnp.square(xa - mu2), axis=0, keepdims=True)
    xn2 = (xa - mu2) * jax.lax.rsqrt(var2 + LN_EPS)
    xn2 = xn2 * g2_ref[...] + be2_ref[...]
    h1 = jnp.maximum(_dot(wm1_ref[...], xn2) + bm1_ref[...], 0.0)
    h2 = _dot(wm2_ref[...], h1) + bm2_ref[...]
    att = xa + h2                                                      # (E, T*N)

    # ---- regroup (E, T*N) -> (T*E, N): t-major rows == torch unfold order ----
    feat = jnp.concatenate([att[:, ti * N:(ti + 1) * N] for ti in range(T)], axis=0)

    # ---- proj2 (1x1 conv) + input skip; channel-major output == NCHW ----
    out = _dot(w2_ref[...], feat) + b2_ref[...] + x_in                 # (Cin, N)
    o_ref[...] = out.astype(o_ref.dtype)


# ----------------------------------------------------------------------------
# wrapper: parameter fusion / reorientation + pallas_call
# ----------------------------------------------------------------------------
def _prepare_kernel_params(p):
    """Channel-major (out, in) weights, fused kqv+prm weight, pad-token value."""
    E = p['wproj'].shape[0]
    m = p['wprm_t'].shape[1]
    inv_sqrt_m = 1.0 / math.sqrt(m)

    wf = jnp.concatenate([p['wk'].T, p['wq'].T, p['wv'].T,
                          (p['wk'] @ p['wprm_t']).T,
                          (p['wq'] @ p['wprm_t']).T], axis=0)          # (3E+2m, C)
    bf = jnp.concatenate([p['bk'], p['bq'], p['bv'],
                          p['bk'] @ p['wprm_t'],
                          p['bq'] @ p['wprm_t']], axis=1).T            # (3E+2m, 1)

    # nn.Unfold's zero-padding tokens: LayerNorm(0) == beta1, then kqv / prm_exp.
    z_pad = wf @ p['be1'].T + bf                                       # (3E+2m, 1)
    k_pad, q_pad = z_pad[0:E], z_pad[E:2 * E]
    v_pad = z_pad[2 * E:3 * E]
    kw_pad, qw_pad = z_pad[3 * E:3 * E + m], z_pad[3 * E + m:3 * E + 2 * m]
    kp_pad = jnp.exp(kw_pad - 0.5 * jnp.sum(k_pad * k_pad)) * inv_sqrt_m
    qp_pad = jnp.exp(qw_pad - 0.5 * jnp.sum(q_pad * q_pad)) * inv_sqrt_m
    pad_u = jnp.concatenate([kp_pad, qp_pad, v_pad], axis=0)           # (2m+E, 1)

    return [p['w1'].T, p['b1'].T, p['g1'].T, p['be1'].T,
            wf, bf, pad_u,
            p['wproj'].T, p['bproj'].T, p['g2'].T, p['be2'].T,
            p['wm1'].T, p['bm1'].T, p['wm2'].T, p['bm2'].T,
            p['w2'].T, p['b2'].T]


def sa_forward(x_nchw, p):
    B, Cin, H, W = x_nchw.shape
    N = H * W
    E = p['wproj'].shape[0]
    m = p['wprm_t'].shape[1]

    x_flat = x_nchw.reshape(B, Cin, N)           # NCHW is already channel-major
    rows = jnp.asarray(np.repeat(np.arange(H), W)[None, :], dtype=jnp.int32)  # (1, N)
    cols = jnp.asarray(np.tile(np.arange(W), H)[None, :], dtype=jnp.int32)    # (1, N)
    consts = [rows, cols] + _prepare_kernel_params(p)

    kernel = functools.partial(_sa_fused_kernel, H=H, W=W, E=E, m=m)
    out = pl.pallas_call(
        kernel,
        out_shape=jax.ShapeDtypeStruct((B, Cin, N), jnp.float32),
        grid=(B,),                                # >= 2 parallel steps (v7x megacore)
        in_specs=[pl.BlockSpec((None, Cin, N), lambda b: (b, 0, 0))] +
                 [pl.BlockSpec(a.shape, lambda b, nd=a.ndim: (0,) * nd)
                  for a in consts],
        out_specs=pl.BlockSpec((None, Cin, N), lambda b: (b, 0, 0)),
        compiler_params=pltpu.CompilerParams(dimension_semantics=("parallel",)),
    )(x_flat, *consts)
    return out.reshape(B, Cin, H, W)


# ----------------------------------------------------------------------------
# pure-JAX reference (mirrors the PyTorch module op-for-op)
# ----------------------------------------------------------------------------
def unfold3x3(x_bhwc):
    """nn.Unfold(kernel_size=3, stride=1, padding=1), reordered to (T, N, C)."""
    B, H, W, C = x_bhwc.shape
    xp = jnp.pad(x_bhwc, ((0, 0), (1, 1), (1, 1), (0, 0)))
    patches = []
    for dy in range(3):            # t = dy*3 + dx  (matches torch unfold ordering)
        for dx in range(3):
            patches.append(xp[:, dy:dy + H, dx:dx + W, :])
    return jnp.stack(patches, axis=0).reshape(9, B * H * W, C)


def sa_reference(x_nchw, p):
    B, Cin, H, W = x_nchw.shape
    N = B * H * W
    xf = jnp.transpose(x_nchw, (0, 2, 3, 1)).reshape(N, Cin)
    y1 = xf @ p['w1'] + p['b1']
    xu = unfold3x3(y1.reshape(B, H, W, -1))
    Tk, _, C = xu.shape
    E = p['wproj'].shape[0]
    m = p['wprm_t'].shape[1]

    mu = xu.mean(-1, keepdims=True)
    var = ((xu - mu) ** 2).mean(-1, keepdims=True)
    xn = (xu - mu) / jnp.sqrt(var + 1e-5) * p['g1'][None] + p['be1'][None]
    x2 = xn.reshape(Tk * N, C)
    k = x2 @ p['wk'] + p['bk']
    q = x2 @ p['wq'] + p['bq']
    v = x2 @ p['wv'] + p['bv']

    def prm(z):
        xd = 0.5 * jnp.sum(z * z, -1, keepdims=True)
        return jnp.exp(z @ p['wprm_t'] - xd) / math.sqrt(m)

    kp = prm(k).reshape(Tk, N, m)
    qp = prm(q).reshape(Tk, N, m)
    v3 = v.reshape(Tk, N, E)
    ksum = kp.sum(0)
    D = jnp.einsum('tnm,nm->tn', qp, ksum)[..., None]
    kptv = jnp.einsum('tne,tnm->nem', v3, kp)
    y = jnp.einsum('tnm,nem->tne', qp, kptv) / (D + 1e-8)
    y2 = y.reshape(Tk * N, E) @ p['wproj'] + p['bproj']
    xa = v + y2
    mu2 = xa.mean(-1, keepdims=True)
    var2 = ((xa - mu2) ** 2).mean(-1, keepdims=True)
    xn2 = (xa - mu2) / jnp.sqrt(var2 + 1e-5) * p['g2'] + p['be2']
    h = jnp.maximum(xn2 @ p['wm1'] + p['bm1'], 0.0) @ p['wm2'] + p['bm2']
    att = (xa + h).reshape(Tk, N, E)
    feat = jnp.transpose(att, (1, 0, 2)).reshape(N, Tk * E)
    out = feat @ p['w2'] + p['b2'] + xf
    return jnp.transpose(out.reshape(B, H, W, Cin), (0, 3, 1, 2))


# ----------------------------------------------------------------------------
# deterministic synthetic parameters (shapes follow the module __init__)
# ----------------------------------------------------------------------------
def init_params(key, in_ch, attn_ch, emb, ks2, kernel_ratio=0.5):
    m = int(emb * kernel_ratio)
    keys = jax.random.split(key, 20)

    def nrm(k, shape, s=0.1):
        return (jax.random.normal(k, shape) * s).astype(jnp.float32)

    p = {}
    p['w1'] = nrm(keys[0], (in_ch, attn_ch))          # proj1 1x1 conv weight
    p['b1'] = nrm(keys[1], (1, attn_ch), 0.01)
    p['g1'] = jnp.ones((1, attn_ch), jnp.float32)     # norm1
    p['be1'] = jnp.zeros((1, attn_ch), jnp.float32)
    p['wk'] = nrm(keys[2], (attn_ch, emb)); p['bk'] = nrm(keys[3], (1, emb), 0.01)
    p['wq'] = nrm(keys[4], (attn_ch, emb)); p['bq'] = nrm(keys[5], (1, emb), 0.01)
    p['wv'] = nrm(keys[6], (attn_ch, emb)); p['bv'] = nrm(keys[7], (1, emb), 0.01)
    # Performer random-feature matrix w: (m, emb), orthonormal rows, * sqrt(m).
    a = jax.random.normal(keys[8], (emb, m))
    qmat, _ = jnp.linalg.qr(a)                        # (emb, m) orthonormal columns
    p['wprm_t'] = (qmat * math.sqrt(m)).astype(jnp.float32)   # == w.T
    p['wproj'] = nrm(keys[9], (emb, emb)); p['bproj'] = nrm(keys[10], (1, emb), 0.01)
    p['g2'] = jnp.ones((1, emb), jnp.float32)         # norm2
    p['be2'] = jnp.zeros((1, emb), jnp.float32)
    p['wm1'] = nrm(keys[11], (emb, emb)); p['bm1'] = nrm(keys[12], (1, emb), 0.01)
    p['wm2'] = nrm(keys[13], (emb, emb)); p['bm2'] = nrm(keys[14], (1, emb), 0.01)
    p['w2'] = nrm(keys[15], (ks2 * emb, in_ch))       # proj2 1x1 conv weight
    p['b2'] = nrm(keys[16], (1, in_ch), 0.01)
    return p


# ----------------------------------------------------------------------------
if __name__ == "__main__":
    B, in_ch, H, W = 2, 32, 16, 16
    attn_ch, emb_ch, ks = 32, 16, 3

    key = jax.random.PRNGKey(0)
    kx, kparams = jax.random.split(key)
    x = jax.random.normal(kx, (B, in_ch, H, W), dtype=jnp.float32)
    params = init_params(kparams, in_ch, attn_ch, emb_ch, ks * ks)

    out = jax.block_until_ready(sa_forward(x, params))
    ref = jax.block_until_ready(sa_reference(x, params))

    assert out.shape == (B, in_ch, H, W)
    np.testing.assert_allclose(np.asarray(out), np.asarray(ref), rtol=1e-2, atol=1e-2)
    print("KERNEL_OK")
</pallas_src>

<mosaic_0001>
module attributes {stable_mosaic.version = 11 : i64} {
  func.func @_sa_fused_kernel(%arg0: i32, %arg1: memref<1x32x256xf32, #tpu.memory_space<vmem>>, %arg2: memref<1x256xi32, #tpu.memory_space<vmem>>, %arg3: memref<1x256xi32, #tpu.memory_space<vmem>>, %arg4: memref<32x32xf32, #tpu.memory_space<vmem>>, %arg5: memref<32x1xf32, #tpu.memory_space<vmem>>, %arg6: memref<32x1xf32, #tpu.memory_space<vmem>>, %arg7: memref<32x1xf32, #tpu.memory_space<vmem>>, %arg8: memref<64x32xf32, #tpu.memory_space<vmem>>, %arg9: memref<64x1xf32, #tpu.memory_space<vmem>>, %arg10: memref<32x1xf32, #tpu.memory_space<vmem>>, %arg11: memref<16x16xf32, #tpu.memory_space<vmem>>, %arg12: memref<16x1xf32, #tpu.memory_space<vmem>>, %arg13: memref<16x1xf32, #tpu.memory_space<vmem>>, %arg14: memref<16x1xf32, #tpu.memory_space<vmem>>, %arg15: memref<16x16xf32, #tpu.memory_space<vmem>>, %arg16: memref<16x1xf32, #tpu.memory_space<vmem>>, %arg17: memref<16x16xf32, #tpu.memory_space<vmem>>, %arg18: memref<16x1xf32, #tpu.memory_space<vmem>>, %arg19: memref<32x144xf32, #tpu.memory_space<vmem>>, %arg20: memref<32x1xf32, #tpu.memory_space<vmem>>, %arg21: memref<1x32x256xf32, #tpu.memory_space<vmem>>) attributes {dimension_semantics = [#tpu.dimension_semantics<parallel>], iteration_bounds = array<i64: 2>, scalar_prefetch = 0 : i64, scratch_operands = 0 : i64, tpu.core_type = #tpu.core_type<tc>, window_params = [{transform_indices = @transform_0, window_bounds = array<i64: 1, 32, 256>}, {pipeline_mode = #tpu.pipeline_mode<synchronous>, transform_indices = @transform_1, window_bounds = array<i64: 1, 256>}, {pipeline_mode = #tpu.pipeline_mode<synchronous>, transform_indices = @transform_2, window_bounds = array<i64: 1, 256>}, {pipeline_mode = #tpu.pipeline_mode<synchronous>, transform_indices = @transform_3, window_bounds = array<i64: 32, 32>}, {pipeline_mode = #tpu.pipeline_mode<synchronous>, transform_indices = @transform_4, window_bounds = array<i64: 32, 1>}, {pipeline_mode = #tpu.pipeline_mode<synchronous>, transform_indices = @transform_5, window_bounds = array<i64: 32, 1>}, {pipeline_mode = #tpu.pipeline_mode<synchronous>, transform_indices = @transform_6, window_bounds = array<i64: 32, 1>}, {pipeline_mode = #tpu.pipeline_mode<synchronous>, transform_indices = @transform_7, window_bounds = array<i64: 64, 32>}, {pipeline_mode = #tpu.pipeline_mode<synchronous>, transform_indices = @transform_8, window_bounds = array<i64: 64, 1>}, {pipeline_mode = #tpu.pipeline_mode<synchronous>, transform_indices = @transform_9, window_bounds = array<i64: 32, 1>}, {pipeline_mode = #tpu.pipeline_mode<synchronous>, transform_indices = @transform_10, window_bounds = array<i64: 16, 16>}, {pipeline_mode = #tpu.pipeline_mode<synchronous>, transform_indices = @transform_11, window_bounds = array<i64: 16, 1>}, {pipeline_mode = #tpu.pipeline_mode<synchronous>, transform_indices = @transform_12, window_bounds = array<i64: 16, 1>}, {pipeline_mode = #tpu.pipeline_mode<synchronous>, transform_indices = @transform_13, window_bounds = array<i64: 16, 1>}, {pipeline_mode = #tpu.pipeline_mode<synchronous>, transform_indices = @transform_14, window_bounds = array<i64: 16, 16>}, {pipeline_mode = #tpu.pipeline_mode<synchronous>, transform_indices = @transform_15, window_bounds = array<i64: 16, 1>}, {pipeline_mode = #tpu.pipeline_mode<synchronous>, transform_indices = @transform_16, window_bounds = array<i64: 16, 16>}, {pipeline_mode = #tpu.pipeline_mode<synchronous>, transform_indices = @transform_17, window_bounds = array<i64: 16, 1>}, {pipeline_mode = #tpu.pipeline_mode<synchronous>, transform_indices = @transform_18, window_bounds = array<i64: 32, 144>}, {pipeline_mode = #tpu.pipeline_mode<synchronous>, transform_indices = @transform_19, window_bounds = array<i64: 32, 1>}, {transform_indices = @transform_20, window_bounds = array<i64: 1, 32, 256>}]} {
    %c0 = arith.constant 0 : index
    %c0_0 = arith.constant 0 : index
    %c0_1 = arith.constant 0 : index
    %0 = vector.load %arg1[%c0, %c0_0, %c0_1] : memref<1x32x256xf32, #tpu.memory_space<vmem>>, vector<1x32x256xf32>
    %1 = vector.shape_cast %0 : vector<1x32x256xf32> to vector<32x256xf32>
    %c0_2 = arith.constant 0 : index
    %c0_3 = arith.constant 0 : index
    %2 = vector.load %arg4[%c0_2, %c0_3] : memref<32x32xf32, #tpu.memory_space<vmem>>, vector<32x32xf32>
    %cst = arith.constant dense<0.000000e+00> : vector<32x256xf32>
    %3 = tpu.matmul %2, %1, %cst {dimension_numbers = #tpu.dot_dimension_numbers<[1], [0], [0], [1], [0, 0, 1, 1], [], []>} : vector<32x32xf32>, vector<32x256xf32>, vector<32x256xf32> -> vector<32x256xf32>
    %c0_4 = arith.constant 0 : index
    %c0_5 = arith.constant 0 : index
    %4 = vector.load %arg5[%c0_4, %c0_5] : memref<32x1xf32, #tpu.memory_space<vmem>>, vector<32x1xf32>
    %5 = vector.broadcast %4 : vector<32x1xf32> to vector<32x256xf32>
    %6 = arith.addf %3, %5 : vector<32x256xf32>
    %cst_6 = arith.constant dense<0.000000e+00> : vector<256xf32>
    %7 = vector.multi_reduction <add>, %6, %cst_6 [0] : vector<32x256xf32> to vector<256xf32>
    %8 = vector.shape_cast %7 : vector<256xf32> to vector<1x256xf32>
    %cst_7 = arith.constant 3.200000e+01 : f32
    %9 = vector.broadcast %cst_7 : f32 to vector<1x256xf32>
    %10 = arith.divf %8, %9 : vector<1x256xf32>
    %11 = vector.broadcast %10 : vector<1x256xf32> to vector<32x256xf32>
    %12 = arith.subf %6, %11 : vector<32x256xf32>
    %13 = arith.mulf %12, %12 : vector<32x256xf32>
    %cst_8 = arith.constant dense<0.000000e+00> : vector<256xf32>
    %14 = vector.multi_reduction <add>, %13, %cst_8 [0] : vector<32x256xf32> to vector<256xf32>
    %15 = vector.shape_cast %14 : vector<256xf32> to vector<1x256xf32>
    %cst_9 = arith.constant 3.200000e+01 : f32
    %16 = vector.broadcast %cst_9 : f32 to vector<1x256xf32>
    %17 = arith.divf %15, %16 : vector<1x256xf32>
    %18 = vector.broadcast %10 : vector<1x256xf32> to vector<32x256xf32>
    %19 = arith.subf %6, %18 : vector<32x256xf32>
    %cst_10 = arith.constant 9.99999974E-6 : f32
    %20 = vector.broadcast %cst_10 : f32 to vector<1x256xf32>
    %21 = arith.addf %17, %20 : vector<1x256xf32>
    %22 = math.rsqrt %21 : vector<1x256xf32>
    %23 = vector.broadcast %22 : vector<1x256xf32> to vector<32x256xf32>
    %24 = arith.mulf %19, %23 : vector<32x256xf32>
    %c0_11 = arith.constant 0 : index
    %c0_12 = arith.constant 0 : index
    %25 = vector.load %arg6[%c0_11, %c0_12] : memref<32x1xf32, #tpu.memory_space<vmem>>, vector<32x1xf32>
    %26 = vector.broadcast %25 : vector<32x1xf32> to vector<32x256xf32>
    %27 = arith.mulf %24, %26 : vector<32x256xf32>
    %c0_13 = arith.constant 0 : index
    %c0_14 = arith.constant 0 : index
    %28 = vector.load %arg7[%c0_13, %c0_14] : memref<32x1xf32, #tpu.memory_space<vmem>>, vector<32x1xf32>
    %29 = vector.broadcast %28 : vector<32x1xf32> to vector<32x256xf32>
    %30 = arith.addf %27, %29 : vector<32x256xf32>
    %c0_15 = arith.constant 0 : index
    %c0_16 = arith.constant 0 : index
    %31 = vector.load %arg8[%c0_15, %c0_16] : memref<64x32xf32, #tpu.memory_space<vmem>>, vector<64x32xf32>
    %cst_17 = arith.constant dense<0.000000e+00> : vector<64x256xf32>
    %32 = tpu.matmul %31, %30, %cst_17 {dimension_numbers = #tpu.dot_dimension_numbers<[1], [0], [0], [1], [0, 0, 1, 1], [], []>} : vector<64x32xf32>, vector<32x256xf32>, vector<64x256xf32> -> vector<64x256xf32>
    %c0_18 = arith.constant 0 : index
    %c0_19 = arith.constant 0 : index
    %33 = vector.load %arg9[%c0_18, %c0_19] : memref<64x1xf32, #tpu.memory_space<vmem>>, vector<64x1xf32>
    %34 = vector.broadcast %33 : vector<64x1xf32> to vector<64x256xf32>
    %35 = arith.addf %32, %34 : vector<64x256xf32>
    %36 = vector.extract_strided_slice %35 {offsets = [0, 0], sizes = [16, 256], strides = [1, 1]} : vector<64x256xf32> to vector<16x256xf32>
    %37 = vector.extract_strided_slice %35 {offsets = [16, 0], sizes = [16, 256], strides = [1, 1]} : vector<64x256xf32> to vector<16x256xf32>
    %38 = vector.extract_strided_slice %35 {offsets = [32, 0], sizes = [16, 256], strides = [1, 1]} : vector<64x256xf32> to vector<16x256xf32>
    %39 = vector.extract_strided_slice %35 {offsets = [48, 0], sizes = [8, 256], strides = [1, 1]} : vector<64x256xf32> to vector<8x256xf32>
    %40 = vector.extract_strided_slice %35 {offsets = [56, 0], sizes = [8, 256], strides = [1, 1]} : vector<64x256xf32> to vector<8x256xf32>
    %41 = arith.mulf %36, %36 : vector<16x256xf32>
    %cst_20 = arith.constant dense<0.000000e+00> : vector<256xf32>
    %42 = vector.multi_reduction <add>, %41, %cst_20 [0] : vector<16x256xf32> to vector<256xf32>
    %43 = vector.shape_cast %42 : vector<256xf32> to vector<1x256xf32>
    %cst_21 = arith.constant 5.000000e-01 : f32
    %44 = vector.broadcast %cst_21 : f32 to vector<1x256xf32>
    %45 = arith.mulf %44, %43 : vector<1x256xf32>
    %46 = vector.broadcast %45 : vector<1x256xf32> to vector<8x256xf32>
    %47 = arith.subf %39, %46 : vector<8x256xf32>
    %48 = math.exp %47 : vector<8x256xf32>
    %cst_22 = arith.constant 0.353553385 : f32
    %49 = vector.broadcast %cst_22 : f32 to vector<8x256xf32>
    %50 = arith.mulf %48, %49 : vector<8x256xf32>
    %51 = arith.mulf %37, %37 : vector<16x256xf32>
    %cst_23 = arith.constant dense<0.000000e+00> : vector<256xf32>
    %52 = vector.multi_reduction <add>, %51, %cst_23 [0] : vector<16x256xf32> to vector<256xf32>
    %53 = vector.shape_cast %52 : vector<256xf32> to vector<1x256xf32>
    %cst_24 = arith.constant 5.000000e-01 : f32
    %54 = vector.broadcast %cst_24 : f32 to vector<1x256xf32>
    %55 = arith.mulf %54, %53 : vector<1x256xf32>
    %56 = vector.broadcast %55 : vector<1x256xf32> to vector<8x256xf32>
    %57 = arith.subf %40, %56 : vector<8x256xf32>
    %58 = math.exp %57 : vector<8x256xf32>
    %cst_25 = arith.constant 0.353553385 : f32
    %59 = vector.broadcast %cst_25 : f32 to vector<8x256xf32>
    %60 = arith.mulf %58, %59 : vector<8x256xf32>
    %61 = tpu.concatenate %50, %60, %38 in 0 : vector<8x256xf32>, vector<8x256xf32>, vector<16x256xf32> -> vector<32x256xf32>
    %c0_26 = arith.constant 0 : index
    %c0_27 = arith.constant 0 : index
    %62 = vector.load %arg10[%c0_26, %c0_27] : memref<32x1xf32, #tpu.memory_space<vmem>>, vector<32x1xf32>
    %c0_28 = arith.constant 0 : index
    %c0_29 = arith.constant 0 : index
    %63 = vector.load %arg2[%c0_28, %c0_29] : memref<1x256xi32, #tpu.memory_space<vmem>>, vector<1x256xi32>
    %c0_30 = arith.constant 0 : index
    %c0_31 = arith.constant 0 : index
    %64 = vector.load %arg3[%c0_30, %c0_31] : memref<1x256xi32, #tpu.memory_space<vmem>>, vector<1x256xi32>
    %c1_i32 = arith.constant 1 : i32
    %65 = vector.broadcast %c1_i32 : i32 to vector<1x256xi32>
    %66 = arith.cmpi sge, %63, %65 : vector<1x256xi32>
    %c16_i32 = arith.constant 16 : i32
    %67 = vector.broadcast %c16_i32 : i32 to vector<1x256xi32>
    %68 = arith.cmpi sle, %63, %67 : vector<1x256xi32>
    %69 = arith.andi %66, %68 : vector<1x256xi1>
    %c1_i32_32 = arith.constant 1 : i32
    %70 = vector.broadcast %c1_i32_32 : i32 to vector<1x256xi32>
    %71 = arith.cmpi sge, %64, %70 : vector<1x256xi32>
    %72 = arith.andi %69, %71 : vector<1x256xi1>
    %c16_i32_33 = arith.constant 16 : i32
    %73 = vector.broadcast %c16_i32_33 : i32 to vector<1x256xi32>
    %74 = arith.cmpi sle, %64, %73 : vector<1x256xi32>
    %75 = arith.andi %72, %74 : vector<1x256xi1>
    %76 = vector.extract_strided_slice %61 {offsets = [0, 239], sizes = [32, 17], strides = [1, 1]} : vector<32x256xf32> to vector<32x17xf32>
    %77 = vector.extract_strided_slice %61 {offsets = [0, 0], sizes = [32, 239], strides = [1, 1]} : vector<32x256xf32> to vector<32x239xf32>
    %78 = tpu.concatenate %76, %77 in 1 : vector<32x17xf32>, vector<32x239xf32> -> vector<32x256xf32>
    %79 = vector.shape_cast %75 : vector<1x256xi1> to vector<1x256xi1>
    %80 = vector.broadcast %79 : vector<1x256xi1> to vector<32x256xi1>
    %81 = vector.shape_cast %62 : vector<32x1xf32> to vector<32x1xf32>
    %82 = vector.broadcast %81 : vector<32x1xf32> to vector<32x256xf32>
    %83 = arith.select %80, %78, %82 : vector<32x256xi1>, vector<32x256xf32>
    %84 = vector.extract_strided_slice %83 {offsets = [0, 0], sizes = [8, 256], strides = [1, 1]} : vector<32x256xf32> to vector<8x256xf32>
    %85 = vector.extract_strided_slice %83 {offsets = [8, 0], sizes = [8, 256], strides = [1, 1]} : vector<32x256xf32> to vector<8x256xf32>
    %86 = vector.extract_strided_slice %83 {offsets = [16, 0], sizes = [16, 256], strides = [1, 1]} : vector<32x256xf32> to vector<16x256xf32>
    %c1_i32_34 = arith.constant 1 : i32
    %87 = vector.broadcast %c1_i32_34 : i32 to vector<1x256xi32>
    %88 = arith.cmpi sge, %63, %87 : vector<1x256xi32>
    %c16_i32_35 = arith.constant 16 : i32
    %89 = vector.broadcast %c16_i32_35 : i32 to vector<1x256xi32>
    %90 = arith.cmpi sle, %63, %89 : vector<1x256xi32>
    %91 = arith.andi %88, %90 : vector<1x256xi1>
    %c0_i32 = arith.constant 0 : i32
    %92 = vector.broadcast %c0_i32 : i32 to vector<1x256xi32>
    %93 = arith.cmpi sge, %64, %92 : vector<1x256xi32>
    %94 = arith.andi %91, %93 : vector<1x256xi1>
    %c15_i32 = arith.constant 15 : i32
    %95 = vector.broadcast %c15_i32 : i32 to vector<1x256xi32>
    %96 = arith.cmpi sle, %64, %95 : vector<1x256xi32>
    %97 = arith.andi %94, %96 : vector<1x256xi1>
    %98 = vector.extract_strided_slice %61 {offsets = [0, 240], sizes = [32, 16], strides = [1, 1]} : vector<32x256xf32> to vector<32x16xf32>
    %99 = vector.extract_strided_slice %61 {offsets = [0, 0], sizes = [32, 240], strides = [1, 1]} : vector<32x256xf32> to vector<32x240xf32>
    %100 = tpu.concatenate %98, %99 in 1 : vector<32x16xf32>, vector<32x240xf32> -> vector<32x256xf32>
    %101 = vector.shape_cast %97 : vector<1x256xi1> to vector<1x256xi1>
    %102 = vector.broadcast %101 : vector<1x256xi1> to vector<32x256xi1>
    %103 = vector.shape_cast %62 : vector<32x1xf32> to vector<32x1xf32>
    %104 = vector.broadcast %103 : vector<32x1xf32> to vector<32x256xf32>
    %105 = arith.select %102, %100, %104 : vector<32x256xi1>, vector<32x256xf32>
    %106 = vector.extract_strided_slice %105 {offsets = [0, 0], sizes = [8, 256], strides = [1, 1]} : vector<32x256xf32> to vector<8x256xf32>
    %107 = vector.extract_strided_slice %105 {offsets = [8, 0], sizes = [8, 256], strides = [1, 1]} : vector<32x256xf32> to vector<8x256xf32>
    %108 = vector.extract_strided_slice %105 {offsets = [16, 0], sizes = [16, 256], strides = [1, 1]} : vector<32x256xf32> to vector<16x256xf32>
    %c1_i32_36 = arith.constant 1 : i32
    %109 = vector.broadcast %c1_i32_36 : i32 to vector<1x256xi32>
    %110 = arith.cmpi sge, %63, %109 : vector<1x256xi32>
    %c16_i32_37 = arith.constant 16 : i32
    %111 = vector.broadcast %c16_i32_37 : i32 to vector<1x256xi32>
    %112 = arith.cmpi sle, %63, %111 : vector<1x256xi32>
    %113 = arith.andi %110, %112 : vector<1x256xi1>
    %c-1_i32 = arith.constant -1 : i32
    %114 = vector.broadcast %c-1_i32 : i32 to vector<1x256xi32>
    %115 = arith.cmpi sge, %64, %114 : vector<1x256xi32>
    %116 = arith.andi %113, %115 : vector<1x256xi1>
    %c14_i32 = arith.constant 14 : i32
    %117 = vector.broadcast %c14_i32 : i32 to vector<1x256xi32>
    %118 = arith.cmpi sle, %64, %117 : vector<1x256xi32>
    %119 = arith.andi %116, %118 : vector<1x256xi1>
    %120 = vector.extract_strided_slice %61 {offsets = [0, 241], sizes = [32, 15], strides = [1, 1]} : vector<32x256xf32> to vector<32x15xf32>
    %121 = vector.extract_strided_slice %61 {offsets = [0, 0], sizes = [32, 241], strides = [1, 1]} : vector<32x256xf32> to vector<32x241xf32>
    %122 = tpu.concatenate %120, %121 in 1 : vector<32x15xf32>, vector<32x241xf32> -> vector<32x256xf32>
    %123 = vector.shape_cast %119 : vector<1x256xi1> to vector<1x256xi1>
    %124 = vector.broadcast %123 : vector<1x256xi1> to vector<32x256xi1>
    %125 = vector.shape_cast %62 : vector<32x1xf32> to vector<32x1xf32>
    %126 = vector.broadcast %125 : vector<32x1xf32> to vector<32x256xf32>
    %127 = arith.select %124, %122, %126 : vector<32x256xi1>, vector<32x256xf32>
    %128 = vector.extract_strided_slice %127 {offsets = [0, 0], sizes = [8, 256], strides = [1, 1]} : vector<32x256xf32> to vector<8x256xf32>
    %129 = vector.extract_strided_slice %127 {offsets = [8, 0], sizes = [8, 256], strides = [1, 1]} : vector<32x256xf32> to vector<8x256xf32>
    %130 = vector.extract_strided_slice %127 {offsets = [16, 0], sizes = [16, 256], strides = [1, 1]} : vector<32x256xf32> to vector<16x256xf32>
    %c0_i32_38 = arith.constant 0 : i32
    %131 = vector.broadcast %c0_i32_38 : i32 to vector<1x256xi32>
    %132 = arith.cmpi sge, %63, %131 : vector<1x256xi32>
    %c15_i32_39 = arith.constant 15 : i32
    %133 = vector.broadcast %c15_i32_39 : i32 to vector<1x256xi32>
    %134 = arith.cmpi sle, %63, %133 : vector<1x256xi32>
    %135 = arith.andi %132, %134 : vector<1x256xi1>
    %c1_i32_40 = arith.constant 1 : i32
    %136 = vector.broadcast %c1_i32_40 : i32 to vector<1x256xi32>
    %137 = arith.cmpi sge, %64, %136 : vector<1x256xi32>
    %138 = arith.andi %135, %137 : vector<1x256xi1>
    %c16_i32_41 = arith.constant 16 : i32
    %139 = vector.broadcast %c16_i32_41 : i32 to vector<1x256xi32>
    %140 = arith.cmpi sle, %64, %139 : vector<1x256xi32>
    %141 = arith.andi %138, %140 : vector<1x256xi1>
    %142 = vector.extract_strided_slice %61 {offsets = [0, 255], sizes = [32, 1], strides = [1, 1]} : vector<32x256xf32> to vector<32x1xf32>
    %143 = vector.extract_strided_slice %61 {offsets = [0, 0], sizes = [32, 255], strides = [1, 1]} : vector<32x256xf32> to vector<32x255xf32>
    %144 = tpu.concatenate %142, %143 in 1 : vector<32x1xf32>, vector<32x255xf32> -> vector<32x256xf32>
    %145 = vector.shape_cast %141 : vector<1x256xi1> to vector<1x256xi1>
    %146 = vector.broadcast %145 : vector<1x256xi1> to vector<32x256xi1>
    %147 = vector.shape_cast %62 : vector<32x1xf32> to vector<32x1xf32>
    %148 = vector.broadcast %147 : vector<32x1xf32> to vector<32x256xf32>
    %149 = arith.select %146, %144, %148 : vector<32x256xi1>, vector<32x256xf32>
    %150 = vector.extract_strided_slice %149 {offsets = [0, 0], sizes = [8, 256], strides = [1, 1]} : vector<32x256xf32> to vector<8x256xf32>
    %151 = vector.extract_strided_slice %149 {offsets = [8, 0], sizes = [8, 256], strides = [1, 1]} : vector<32x256xf32> to vector<8x256xf32>
    %152 = vector.extract_strided_slice %149 {offsets = [16, 0], sizes = [16, 256], strides = [1, 1]} : vector<32x256xf32> to vector<16x256xf32>
    %c0_i32_42 = arith.constant 0 : i32
    %153 = vector.broadcast %c0_i32_42 : i32 to vector<1x256xi32>
    %154 = arith.cmpi sge, %63, %153 : vector<1x256xi32>
    %c15_i32_43 = arith.constant 15 : i32
    %155 = vector.broadcast %c15_i32_43 : i32 to vector<1x256xi32>
    %156 = arith.cmpi sle, %63, %155 : vector<1x256xi32>
    %157 = arith.andi %154, %156 : vector<1x256xi1>
    %c0_i32_44 = arith.constant 0 : i32
    %158 = vector.broadcast %c0_i32_44 : i32 to vector<1x256xi32>
    %159 = arith.cmpi sge, %64, %158 : vector<1x256xi32>
    %160 = arith.andi %157, %159 : vector<1x256xi1>
    %c15_i32_45 = arith.constant 15 : i32
    %161 = vector.broadcast %c15_i32_45 : i32 to vector<1x256xi32>
    %162 = arith.cmpi sle, %64, %161 : vector<1x256xi32>
    %163 = arith.andi %160, %162 : vector<1x256xi1>
    %164 = vector.shape_cast %163 : vector<1x256xi1> to vector<1x256xi1>
    %165 = vector.broadcast %164 : vector<1x256xi1> to vector<32x256xi1>
    %166 = vector.shape_cast %62 : vector<32x1xf32> to vector<32x1xf32>
    %167 = vector.broadcast %166 : vector<32x1xf32> to vector<32x256xf32>
    %168 = arith.select %165, %61, %167 : vector<32x256xi1>, vector<32x256xf32>
    %169 = vector.extract_strided_slice %168 {offsets = [0, 0], sizes = [8, 256], strides = [1, 1]} : vector<32x256xf32> to vector<8x256xf32>
    %170 = vector.extract_strided_slice %168 {offsets = [8, 0], sizes = [8, 256], strides = [1, 1]} : vector<32x256xf32> to vector<8x256xf32>
    %171 = vector.extract_strided_slice %168 {offsets = [16, 0], sizes = [16, 256], strides = [1, 1]} : vector<32x256xf32> to vector<16x256xf32>
    %c0_i32_46 = arith.constant 0 : i32
    %172 = vector.broadcast %c0_i32_46 : i32 to vector<1x256xi32>
    %173 = arith.cmpi sge, %63, %172 : vector<1x256xi32>
    %c15_i32_47 = arith.constant 15 : i32
    %174 = vector.broadcast %c15_i32_47 : i32 to vector<1x256xi32>
    %175 = arith.cmpi sle, %63, %174 : vector<1x256xi32>
    %176 = arith.andi %173, %175 : vector<1x256xi1>
    %c-1_i32_48 = arith.constant -1 : i32
    %177 = vector.broadcast %c-1_i32_48 : i32 to vector<1x256xi32>
    %178 = arith.cmpi sge, %64, %177 : vector<1x256xi32>
    %179 = arith.andi %176, %178 : vector<1x256xi1>
    %c14_i32_49 = arith.constant 14 : i32
    %180 = vector.broadcast %c14_i32_49 : i32 to vector<1x256xi32>
    %181 = arith.cmpi sle, %64, %180 : vector<1x256xi32>
    %182 = arith.andi %179, %181 : vector<1x256xi1>
    %183 = vector.extract_strided_slice %61 {offsets = [0, 1], sizes = [32, 255], strides = [1, 1]} : vector<32x256xf32> to vector<32x255xf32>
    %184 = vector.extract_strided_slice %61 {offsets = [0, 0], sizes = [32, 1], strides = [1, 1]} : vector<32x256xf32> to vector<32x1xf32>
    %185 = tpu.concatenate %183, %184 in 1 : vector<32x255xf32>, vector<32x1xf32> -> vector<32x256xf32>
    %186 = vector.shape_cast %182 : vector<1x256xi1> to vector<1x256xi1>
    %187 = vector.broadcast %186 : vector<1x256xi1> to vector<32x256xi1>
    %188 = vector.shape_cast %62 : vector<32x1xf32> to vector<32x1xf32>
    %189 = vector.broadcast %188 : vector<32x1xf32> to vector<32x256xf32>
    %190 = arith.select %187, %185, %189 : vector<32x256xi1>, vector<32x256xf32>
    %191 = vector.extract_strided_slice %190 {offsets = [0, 0], sizes = [8, 256], strides = [1, 1]} : vector<32x256xf32> to vector<8x256xf32>
    %192 = vector.extract_strided_slice %190 {offsets = [8, 0], sizes = [8, 256], strides = [1, 1]} : vector<32x256xf32> to vector<8x256xf32>
    %193 = vector.extract_strided_slice %190 {offsets = [16, 0], sizes = [16, 256], strides = [1, 1]} : vector<32x256xf32> to vector<16x256xf32>
    %c-1_i32_50 = arith.constant -1 : i32
    %194 = vector.broadcast %c-1_i32_50 : i32 to vector<1x256xi32>
    %195 = arith.cmpi sge, %63, %194 : vector<1x256xi32>
    %c14_i32_51 = arith.constant 14 : i32
    %196 = vector.broadcast %c14_i32_51 : i32 to vector<1x256xi32>
    %197 = arith.cmpi sle, %63, %196 : vector<1x256xi32>
    %198 = arith.andi %195, %197 : vector<1x256xi1>
    %c1_i32_52 = arith.constant 1 : i32
    %199 = vector.broadcast %c1_i32_52 : i32 to vector<1x256xi32>
    %200 = arith.cmpi sge, %64, %199 : vector<1x256xi32>
    %201 = arith.andi %198, %200 : vector<1x256xi1>
    %c16_i32_53 = arith.constant 16 : i32
    %202 = vector.broadcast %c16_i32_53 : i32 to vector<1x256xi32>
    %203 = arith.cmpi sle, %64, %202 : vector<1x256xi32>
    %204 = arith.andi %201, %203 : vector<1x256xi1>
    %205 = vector.extract_strided_slice %61 {offsets = [0, 15], sizes = [32, 241], strides = [1, 1]} : vector<32x256xf32> to vector<32x241xf32>
    %206 = vector.extract_strided_slice %61 {offsets = [0, 0], sizes = [32, 15], strides = [1, 1]} : vector<32x256xf32> to vector<32x15xf32>
    %207 = tpu.concatenate %205, %206 in 1 : vector<32x241xf32>, vector<32x15xf32> -> vector<32x256xf32>
    %208 = vector.shape_cast %204 : vector<1x256xi1> to vector<1x256xi1>
    %209 = vector.broadcast %208 : vector<1x256xi1> to vector<32x256xi1>
    %210 = vector.shape_cast %62 : vector<32x1xf32> to vector<32x1xf32>
    %211 = vector.broadcast %210 : vector<32x1xf32> to vector<32x256xf32>
    %212 = arith.select %209, %207, %211 : vector<32x256xi1>, vector<32x256xf32>
    %213 = vector.extract_strided_slice %212 {offsets = [0, 0], sizes = [8, 256], strides = [1, 1]} : vector<32x256xf32> to vector<8x256xf32>
    %214 = vector.extract_strided_slice %212 {offsets = [8, 0], sizes = [8, 256], strides = [1, 1]} : vector<32x256xf32> to vector<8x256xf32>
    %215 = vector.extract_strided_slice %212 {offsets = [16, 0], sizes = [16, 256], strides = [1, 1]} : vector<32x256xf32> to vector<16x256xf32>
    %c-1_i32_54 = arith.constant -1 : i32
    %216 = vector.broadcast %c-1_i32_54 : i32 to vector<1x256xi32>
    %217 = arith.cmpi sge, %63, %216 : vector<1x256xi32>
    %c14_i32_55 = arith.constant 14 : i32
    %218 = vector.broadcast %c14_i32_55 : i32 to vector<1x256xi32>
    %219 = arith.cmpi sle, %63, %218 : vector<1x256xi32>
    %220 = arith.andi %217, %219 : vector<1x256xi1>
    %c0_i32_56 = arith.constant 0 : i32
    %221 = vector.broadcast %c0_i32_56 : i32 to vector<1x256xi32>
    %222 = arith.cmpi sge, %64, %221 : vector<1x256xi32>
    %223 = arith.andi %220, %222 : vector<1x256xi1>
    %c15_i32_57 = arith.constant 15 : i32
    %224 = vector.broadcast %c15_i32_57 : i32 to vector<1x256xi32>
    %225 = arith.cmpi sle, %64, %224 : vector<1x256xi32>
    %226 = arith.andi %223, %225 : vector<1x256xi1>
    %227 = vector.extract_strided_slice %61 {offsets = [0, 16], sizes = [32, 240], strides = [1, 1]} : vector<32x256xf32> to vector<32x240xf32>
    %228 = vector.extract_strided_slice %61 {offsets = [0, 0], sizes = [32, 16], strides = [1, 1]} : vector<32x256xf32> to vector<32x16xf32>
    %229 = tpu.concatenate %227, %228 in 1 : vector<32x240xf32>, vector<32x16xf32> -> vector<32x256xf32>
    %230 = vector.shape_cast %226 : vector<1x256xi1> to vector<1x256xi1>
    %231 = vector.broadcast %230 : vector<1x256xi1> to vector<32x256xi1>
    %232 = vector.shape_cast %62 : vector<32x1xf32> to vector<32x1xf32>
    %233 = vector.broadcast %232 : vector<32x1xf32> to vector<32x256xf32>
    %234 = arith.select %231, %229, %233 : vector<32x256xi1>, vector<32x256xf32>
    %235 = vector.extract_strided_slice %234 {offsets = [0, 0], sizes = [8, 256], strides = [1, 1]} : vector<32x256xf32> to vector<8x256xf32>
    %236 = vector.extract_strided_slice %234 {offsets = [8, 0], sizes = [8, 256], strides = [1, 1]} : vector<32x256xf32> to vector<8x256xf32>
    %237 = vector.extract_strided_slice %234 {offsets = [16, 0], sizes = [16, 256], strides = [1, 1]} : vector<32x256xf32> to vector<16x256xf32>
    %c-1_i32_58 = arith.constant -1 : i32
    %238 = vector.broadcast %c-1_i32_58 : i32 to vector<1x256xi32>
    %239 = arith.cmpi sge, %63, %238 : vector<1x256xi32>
    %c14_i32_59 = arith.constant 14 : i32
    %240 = vector.broadcast %c14_i32_59 : i32 to vector<1x256xi32>
    %241 = arith.cmpi sle, %63, %240 : vector<1x256xi32>
    %242 = arith.andi %239, %241 : vector<1x256xi1>
    %c-1_i32_60 = arith.constant -1 : i32
    %243 = vector.broadcast %c-1_i32_60 : i32 to vector<1x256xi32>
    %244 = arith.cmpi sge, %64, %243 : vector<1x256xi32>
    %245 = arith.andi %242, %244 : vector<1x256xi1>
    %c14_i32_61 = arith.constant 14 : i32
    %246 = vector.broadcast %c14_i32_61 : i32 to vector<1x256xi32>
    %247 = arith.cmpi sle, %64, %246 : vector<1x256xi32>
    %248 = arith.andi %245, %247 : vector<1x256xi1>
    %249 = vector.extract_strided_slice %61 {offsets = [0, 17], sizes = [32, 239], strides = [1, 1]} : vector<32x256xf32> to vector<32x239xf32>
    %250 = vector.extract_strided_slice %61 {offsets = [0, 0], sizes = [32, 17], strides = [1, 1]} : vector<32x256xf32> to vector<32x17xf32>
    %251 = tpu.concatenate %249, %250 in 1 : vector<32x239xf32>, vector<32x17xf32> -> vector<32x256xf32>
    %252 = vector.shape_cast %248 : vector<1x256xi1> to vector<1x256xi1>
    %253 = vector.broadcast %252 : vector<1x256xi1> to vector<32x256xi1>
    %254 = vector.shape_cast %62 : vector<32x1xf32> to vector<32x1xf32>
    %255 = vector.broadcast %254 : vector<32x1xf32> to vector<32x256xf32>
    %256 = arith.select %253, %251, %255 : vector<32x256xi1>, vector<32x256xf32>
    %257 = vector.extract_strided_slice %256 {offsets = [0, 0], sizes = [8, 256], strides = [1, 1]} : vector<32x256xf32> to vector<8x256xf32>
    %258 = vector.extract_strided_slice %256 {offsets = [8, 0], sizes = [8, 256], strides = [1, 1]} : vector<32x256xf32> to vector<8x256xf32>
    %259 = vector.extract_strided_slice %256 {offsets = [16, 0], sizes = [16, 256], strides = [1, 1]} : vector<32x256xf32> to vector<16x256xf32>
    %260 = arith.mulf %85, %84 : vector<8x256xf32>
    %cst_62 = arith.constant dense<0.000000e+00> : vector<256xf32>
    %261 = vector.multi_reduction <add>, %260, %cst_62 [0] : vector<8x256xf32> to vector<256xf32>
    %262 = vector.shape_cast %261 : vector<256xf32> to vector<1x256xf32>
    %263 = arith.mulf %85, %106 : vector<8x256xf32>
    %cst_63 = arith.constant dense<0.000000e+00> : vector<256xf32>
    %264 = vector.multi_reduction <add>, %263, %cst_63 [0] : vector<8x256xf32> to vector<256xf32>
    %265 = vector.shape_cast %264 : vector<256xf32> to vector<1x256xf32>
    %266 = arith.mulf %85, %128 : vector<8x256xf32>
    %cst_64 = arith.constant dense<0.000000e+00> : vector<256xf32>
    %267 = vector.multi_reduction <add>, %266, %cst_64 [0] : vector<8x256xf32> to vector<256xf32>
    %268 = vector.shape_cast %267 : vector<256xf32> to vector<1x256xf32>
    %269 = arith.mulf %85, %150 : vector<8x256xf32>
    %cst_65 = arith.constant dense<0.000000e+00> : vector<256xf32>
    %270 = vector.multi_reduction <add>, %269, %cst_65 [0] : vector<8x256xf32> to vector<256xf32>
    %271 = vector.shape_cast %270 : vector<256xf32> to vector<1x256xf32>
    %272 = arith.mulf %85, %169 : vector<8x256xf32>
    %cst_66 = arith.constant dense<0.000000e+00> : vector<256xf32>
    %273 = vector.multi_reduction <add>, %272, %cst_66 [0] : vector<8x256xf32> to vector<256xf32>
    %274 = vector.shape_cast %273 : vector<256xf32> to vector<1x256xf32>
    %275 = arith.mulf %85, %191 : vector<8x256xf32>
    %cst_67 = arith.constant dense<0.000000e+00> : vector<256xf32>
    %276 = vector.multi_reduction <add>, %275, %cst_67 [0] : vector<8x256xf32> to vector<256xf32>
    %277 = vector.shape_cast %276 : vector<256xf32> to vector<1x256xf32>
    %278 = arith.mulf %85, %213 : vector<8x256xf32>
    %cst_68 = arith.constant dense<0.000000e+00> : vector<256xf32>
    %279 = vector.multi_reduction <add>, %278, %cst_68 [0] : vector<8x256xf32> to vector<256xf32>
    %280 = vector.shape_cast %279 : vector<256xf32> to vector<1x256xf32>
    %281 = arith.mulf %85, %235 : vector<8x256xf32>
    %cst_69 = arith.constant dense<0.000000e+00> : vector<256xf32>
    %282 = vector.multi_reduction <add>, %281, %cst_69 [0] : vector<8x256xf32> to vector<256xf32>
    %283 = vector.shape_cast %282 : vector<256xf32> to vector<1x256xf32>
    %284 = arith.mulf %85, %257 : vector<8x256xf32>
    %cst_70 = arith.constant dense<0.000000e+00> : vector<256xf32>
    %285 = vector.multi_reduction <add>, %284, %cst_70 [0] : vector<8x256xf32> to vector<256xf32>
    %286 = vector.shape_cast %285 : vector<256xf32> to vector<1x256xf32>
    %287 = arith.addf %262, %265 : vector<1x256xf32>
    %288 = arith.addf %287, %268 : vector<1x256xf32>
    %289 = arith.addf %288, %271 : vector<1x256xf32>
    %290 = arith.addf %289, %274 : vector<1x256xf32>
    %291 = arith.addf %290, %277 : vector<1x256xf32>
    %292 = arith.addf %291, %280 : vector<1x256xf32>
    %293 = arith.addf %292, %283 : vector<1x256xf32>
    %294 = arith.addf %293, %286 : vector<1x256xf32>
    %295 = vector.broadcast %262 : vector<1x256xf32> to vector<16x256xf32>
    %296 = arith.mulf %295, %86 : vector<16x256xf32>
    %297 = vector.broadcast %265 : vector<1x256xf32> to vector<16x256xf32>
    %298 = arith.mulf %297, %108 : vector<16x256xf32>
    %299 = arith.addf %296, %298 : vector<16x256xf32>
    %300 = vector.broadcast %268 : vector<1x256xf32> to vector<16x256xf32>
    %301 = arith.mulf %300, %130 : vector<16x256xf32>
    %302 = arith.addf %299, %301 : vector<16x256xf32>
    %303 = vector.broadcast %271 : vector<1x256xf32> to vector<16x256xf32>
    %304 = arith.mulf %303, %152 : vector<16x256xf32>
    %305 = arith.addf %302, %304 : vector<16x256xf32>
    %306 = vector.broadcast %274 : vector<1x256xf32> to vector<16x256xf32>
    %307 = arith.mulf %306, %171 : vector<16x256xf32>
    %308 = arith.addf %305, %307 : vector<16x256xf32>
    %309 = vector.broadcast %277 : vector<1x256xf32> to vector<16x256xf32>
    %310 = arith.mulf %309, %193 : vector<16x256xf32>
    %311 = arith.addf %308, %310 : vector<16x256xf32>
    %312 = vector.broadcast %280 : vector<1x256xf32> to vector<16x256xf32>
    %313 = arith.mulf %312, %215 : vector<16x256xf32>
    %314 = arith.addf %311, %313 : vector<16x256xf32>
    %315 = vector.broadcast %283 : vector<1x256xf32> to vector<16x256xf32>
    %316 = arith.mulf %315, %237 : vector<16x256xf32>
    %317 = arith.addf %314, %316 : vector<16x256xf32>
    %318 = vector.broadcast %286 : vector<1x256xf32> to vector<16x256xf32>
    %319 = arith.mulf %318, %259 : vector<16x256xf32>
    %320 = arith.addf %317, %319 : vector<16x256xf32>
    %cst_71 = arith.constant 9.99999993E-9 : f32
    %321 = vector.broadcast %cst_71 : f32 to vector<1x256xf32>
    %322 = arith.addf %294, %321 : vector<1x256xf32>
    %323 = vector.broadcast %322 : vector<1x256xf32> to vector<16x256xf32>
    %324 = arith.divf %320, %323 : vector<16x256xf32>
    %325 = arith.mulf %107, %84 : vector<8x256xf32>
    %cst_72 = arith.constant dense<0.000000e+00> : vector<256xf32>
    %326 = vector.multi_reduction <add>, %325, %cst_72 [0] : vector<8x256xf32> to vector<256xf32>
    %327 = vector.shape_cast %326 : vector<256xf32> to vector<1x256xf32>
    %328 = arith.mulf %107, %106 : vector<8x256xf32>
    %cst_73 = arith.constant dense<0.000000e+00> : vector<256xf32>
    %329 = vector.multi_reduction <add>, %328, %cst_73 [0] : vector<8x256xf32> to vector<256xf32>
    %330 = vector.shape_cast %329 : vector<256xf32> to vector<1x256xf32>
    %331 = arith.mulf %107, %128 : vector<8x256xf32>
    %cst_74 = arith.constant dense<0.000000e+00> : vector<256xf32>
    %332 = vector.multi_reduction <add>, %331, %cst_74 [0] : vector<8x256xf32> to vector<256xf32>
    %333 = vector.shape_cast %332 : vector<256xf32> to vector<1x256xf32>
    %334 = arith.mulf %107, %150 : vector<8x256xf32>
    %cst_75 = arith.constant dense<0.000000e+00> : vector<256xf32>
    %335 = vector.multi_reduction <add>, %334, %cst_75 [0] : vector<8x256xf32> to vector<256xf32>
    %336 = vector.shape_cast %335 : vector<256xf32> to vector<1x256xf32>
    %337 = arith.mulf %107, %169 : vector<8x256xf32>
    %cst_76 = arith.constant dense<0.000000e+00> : vector<256xf32>
    %338 = vector.multi_reduction <add>, %337, %cst_76 [0] : vector<8x256xf32> to vector<256xf32>
    %339 = vector.shape_cast %338 : vector<256xf32> to vector<1x256xf32>
    %340 = arith.mulf %107, %191 : vector<8x256xf32>
    %cst_77 = arith.constant dense<0.000000e+00> : vector<256xf32>
    %341 = vector.multi_reduction <add>, %340, %cst_77 [0] : vector<8x256xf32> to vector<256xf32>
    %342 = vector.shape_cast %341 : vector<256xf32> to vector<1x256xf32>
    %343 = arith.mulf %107, %213 : vector<8x256xf32>
    %cst_78 = arith.constant dense<0.000000e+00> : vector<256xf32>
    %344 = vector.multi_reduction <add>, %343, %cst_78 [0] : vector<8x256xf32> to vector<256xf32>
    %345 = vector.shape_cast %344 : vector<256xf32> to vector<1x256xf32>
    %346 = arith.mulf %107, %235 : vector<8x256xf32>
    %cst_79 = arith.constant dense<0.000000e+00> : vector<256xf32>
    %347 = vector.multi_reduction <add>, %346, %cst_79 [0] : vector<8x256xf32> to vector<256xf32>
    %348 = vector.shape_cast %347 : vector<256xf32> to vector<1x256xf32>
    %349 = arith.mulf %107, %257 : vector<8x256xf32>
    %cst_80 = arith.constant dense<0.000000e+00> : vector<256xf32>
    %350 = vector.multi_reduction <add>, %349, %cst_80 [0] : vector<8x256xf32> to vector<256xf32>
    %351 = vector.shape_cast %350 : vector<256xf32> to vector<1x256xf32>
    %352 = arith.addf %327, %330 : vector<1x256xf32>
    %353 = arith.addf %352, %333 : vector<1x256xf32>
    %354 = arith.addf %353, %336 : vector<1x256xf32>
    %355 = arith.addf %354, %339 : vector<1x256xf32>
    %356 = arith.addf %355, %342 : vector<1x256xf32>
    %357 = arith.addf %356, %345 : vector<1x256xf32>
    %358 = arith.addf %357, %348 : vector<1x256xf32>
    %359 = arith.addf %358, %351 : vector<1x256xf32>
    %360 = vector.broadcast %327 : vector<1x256xf32> to vector<16x256xf32>
    %361 = arith.mulf %360, %86 : vector<16x256xf32>
    %362 = vector.broadcast %330 : vector<1x256xf32> to vector<16x256xf32>
    %363 = arith.mulf %362, %108 : vector<16x256xf32>
    %364 = arith.addf %361, %363 : vector<16x256xf32>
    %365 = vector.broadcast %333 : vector<1x256xf32> to vector<16x256xf32>
    %366 = arith.mulf %365, %130 : vector<16x256xf32>
    %367 = arith.addf %364, %366 : vector<16x256xf32>
    %368 = vector.broadcast %336 : vector<1x256xf32> to vector<16x256xf32>
    %369 = arith.mulf %368, %152 : vector<16x256xf32>
    %370 = arith.addf %367, %369 : vector<16x256xf32>
    %371 = vector.broadcast %339 : vector<1x256xf32> to vector<16x256xf32>
    %372 = arith.mulf %371, %171 : vector<16x256xf32>
    %373 = arith.addf %370, %372 : vector<16x256xf32>
    %374 = vector.broadcast %342 : vector<1x256xf32> to vector<16x256xf32>
    %375 = arith.mulf %374, %193 : vector<16x256xf32>
    %376 = arith.addf %373, %375 : vector<16x256xf32>
    %377 = vector.broadcast %345 : vector<1x256xf32> to vector<16x256xf32>
    %378 = arith.mulf %377, %215 : vector<16x256xf32>
    %379 = arith.addf %376, %378 : vector<16x256xf32>
    %380 = vector.broadcast %348 : vector<1x256xf32> to vector<16x256xf32>
    %381 = arith.mulf %380, %237 : vector<16x256xf32>
    %382 = arith.addf %379, %381 : vector<16x256xf32>
    %383 = vector.broadcast %351 : vector<1x256xf32> to vector<16x256xf32>
    %384 = arith.mulf %383, %259 : vector<16x256xf32>
    %385 = arith.addf %382, %384 : vector<16x256xf32>
    %cst_81 = arith.constant 9.99999993E-9 : f32
    %386 = vector.broadcast %cst_81 : f32 to vector<1x256xf32>
    %387 = arith.addf %359, %386 : vector<1x256xf32>
    %388 = vector.broadcast %387 : vector<1x256xf32> to vector<16x256xf32>
    %389 = arith.divf %385, %388 : vector<16x256xf32>
    %390 = arith.mulf %129, %84 : vector<8x256xf32>
    %cst_82 = arith.constant dense<0.000000e+00> : vector<256xf32>
    %391 = vector.multi_reduction <add>, %390, %cst_82 [0] : vector<8x256xf32> to vector<256xf32>
    %392 = vector.shape_cast %391 : vector<256xf32> to vector<1x256xf32>
    %393 = arith.mulf %129, %106 : vector<8x256xf32>
    %cst_83 = arith.constant dense<0.000000e+00> : vector<256xf32>
    %394 = vector.multi_reduction <add>, %393, %cst_83 [0] : vector<8x256xf32> to vector<256xf32>
    %395 = vector.shape_cast %394 : vector<256xf32> to vector<1x256xf32>
    %396 = arith.mulf %129, %128 : vector<8x256xf32>
    %cst_84 = arith.constant dense<0.000000e+00> : vector<256xf32>
    %397 = vector.multi_reduction <add>, %396, %cst_84 [0] : vector<8x256xf32> to vector<256xf32>
    %398 = vector.shape_cast %397 : vector<256xf32> to vector<1x256xf32>
    %399 = arith.mulf %129, %150 : vector<8x256xf32>
    %cst_85 = arith.constant dense<0.000000e+00> : vector<256xf32>
    %400 = vector.multi_reduction <add>, %399, %cst_85 [0] : vector<8x256xf32> to vector<256xf32>
    %401 = vector.shape_cast %400 : vector<256xf32> to vector<1x256xf32>
    %402 = arith.mulf %129, %169 : vector<8x256xf32>
    %cst_86 = arith.constant dense<0.000000e+00> : vector<256xf32>
    %403 = vector.multi_reduction <add>, %402, %cst_86 [0] : vector<8x256xf32> to vector<256xf32>
    %404 = vector.shape_cast %403 : vector<256xf32> to vector<1x256xf32>
    %405 = arith.mulf %129, %191 : vector<8x256xf32>
    %cst_87 = arith.constant dense<0.000000e+00> : vector<256xf32>
    %406 = vector.multi_reduction <add>, %405, %cst_87 [0] : vector<8x256xf32> to vector<256xf32>
    %407 = vector.shape_cast %406 : vector<256xf32> to vector<1x256xf32>
    %408 = arith.mulf %129, %213 : vector<8x256xf32>
    %cst_88 = arith.constant dense<0.000000e+00> : vector<256xf32>
    %409 = vector.multi_reduction <add>, %408, %cst_88 [0] : vector<8x256xf32> to vector<256xf32>
    %410 = vector.shape_cast %409 : vector<256xf32> to vector<1x256xf32>
    %411 = arith.mulf %129, %235 : vector<8x256xf32>
    %cst_89 = arith.constant dense<0.000000e+00> : vector<256xf32>
    %412 = vector.multi_reduction <add>, %411, %cst_89 [0] : vector<8x256xf32> to vector<256xf32>
    %413 = vector.shape_cast %412 : vector<256xf32> to vector<1x256xf32>
    %414 = arith.mulf %129, %257 : vector<8x256xf32>
    %cst_90 = arith.constant dense<0.000000e+00> : vector<256xf32>
    %415 = vector.multi_reduction <add>, %414, %cst_90 [0] : vector<8x256xf32> to vector<256xf32>
    %416 = vector.shape_cast %415 : vector<256xf32> to vector<1x256xf32>
    %417 = arith.addf %392, %395 : vector<1x256xf32>
    %418 = arith.addf %417, %398 : vector<1x256xf32>
    %419 = arith.addf %418, %401 : vector<1x256xf32>
    %420 = arith.addf %419, %404 : vector<1x256xf32>
    %421 = arith.addf %420, %407 : vector<1x256xf32>
    %422 = arith.addf %421, %410 : vector<1x256xf32>
    %423 = arith.addf %422, %413 : vector<1x256xf32>
    %424 = arith.addf %423, %416 : vector<1x256xf32>
    %425 = vector.broadcast %392 : vector<1x256xf32> to vector<16x256xf32>
    %426 = arith.mulf %425, %86 : vector<16x256xf32>
    %427 = vector.broadcast %395 : vector<1x256xf32> to vector<16x256xf32>
    %428 = arith.mulf %427, %108 : vector<16x256xf32>
    %429 = arith.addf %426, %428 : vector<16x256xf32>
    %430 = vector.broadcast %398 : vector<1x256xf32> to vector<16x256xf32>
    %431 = arith.mulf %430, %130 : vector<16x256xf32>
    %432 = arith.addf %429, %431 : vector<16x256xf32>
    %433 = vector.broadcast %401 : vector<1x256xf32> to vector<16x256xf32>
    %434 = arith.mulf %433, %152 : vector<16x256xf32>
    %435 = arith.addf %432, %434 : vector<16x256xf32>
    %436 = vector.broadcast %404 : vector<1x256xf32> to vector<16x256xf32>
    %437 = arith.mulf %436, %171 : vector<16x256xf32>
    %438 = arith.addf %435, %437 : vector<16x256xf32>
    %439 = vector.broadcast %407 : vector<1x256xf32> to vector<16x256xf32>
    %440 = arith.mulf %439, %193 : vector<16x256xf32>
    %441 = arith.addf %438, %440 : vector<16x256xf32>
    %442 = vector.broadcast %410 : vector<1x256xf32> to vector<16x256xf32>
    %443 = arith.mulf %442, %215 : vector<16x256xf32>
    %444 = arith.addf %441, %443 : vector<16x256xf32>
    %445 = vector.broadcast %413 : vector<1x256xf32> to vector<16x256xf32>
    %446 = arith.mulf %445, %237 : vector<16x256xf32>
    %447 = arith.addf %444, %446 : vector<16x256xf32>
    %448 = vector.broadcast %416 : vector<1x256xf32> to vector<16x256xf32>
    %449 = arith.mulf %448, %259 : vector<16x256xf32>
    %450 = arith.addf %447, %449 : vector<16x256xf32>
    %cst_91 = arith.constant 9.99999993E-9 : f32
    %451 = vector.broadcast %cst_91 : f32 to vector<1x256xf32>
    %452 = arith.addf %424, %451 : vector<1x256xf32>
    %453 = vector.broadcast %452 : vector<1x256xf32> to vector<16x256xf32>
    %454 = arith.divf %450, %453 : vector<16x256xf32>
    %455 = arith.mulf %151, %84 : vector<8x256xf32>
    %cst_92 = arith.constant dense<0.000000e+00> : vector<256xf32>
    %456 = vector.multi_reduction <add>, %455, %cst_92 [0] : vector<8x256xf32> to vector<256xf32>
    %457 = vector.shape_cast %456 : vector<256xf32> to vector<1x256xf32>
    %458 = arith.mulf %151, %106 : vector<8x256xf32>
    %cst_93 = arith.constant dense<0.000000e+00> : vector<256xf32>
    %459 = vector.multi_reduction <add>, %458, %cst_93 [0] : vector<8x256xf32> to vector<256xf32>
    %460 = vector.shape_cast %459 : vector<256xf32> to vector<1x256xf32>
    %461 = arith.mulf %151, %128 : vector<8x256xf32>
    %cst_94 = arith.constant dense<0.000000e+00> : vector<256xf32>
    %462 = vector.multi_reduction <add>, %461, %cst_94 [0] : vector<8x256xf32> to vector<256xf32>
    %463 = vector.shape_cast %462 : vector<256xf32> to vector<1x256xf32>
    %464 = arith.mulf %151, %150 : vector<8x256xf32>
    %cst_95 = arith.constant dense<0.000000e+00> : vector<256xf32>
    %465 = vector.multi_reduction <add>, %464, %cst_95 [0] : vector<8x256xf32> to vector<256xf32>
    %466 = vector.shape_cast %465 : vector<256xf32> to vector<1x256xf32>
    %467 = arith.mulf %151, %169 : vector<8x256xf32>
    %cst_96 = arith.constant dense<0.000000e+00> : vector<256xf32>
    %468 = vector.multi_reduction <add>, %467, %cst_96 [0] : vector<8x256xf32> to vector<256xf32>
    %469 = vector.shape_cast %468 : vector<256xf32> to vector<1x256xf32>
    %470 = arith.mulf %151, %191 : vector<8x256xf32>
    %cst_97 = arith.constant dense<0.000000e+00> : vector<256xf32>
    %471 = vector.multi_reduction <add>, %470, %cst_97 [0] : vector<8x256xf32> to vector<256xf32>
    %472 = vector.shape_cast %471 : vector<256xf32> to vector<1x256xf32>
    %473 = arith.mulf %151, %213 : vector<8x256xf32>
    %cst_98 = arith.constant dense<0.000000e+00> : vector<256xf32>
    %474 = vector.multi_reduction <add>, %473, %cst_98 [0] : vector<8x256xf32> to vector<256xf32>
    %475 = vector.shape_cast %474 : vector<256xf32> to vector<1x256xf32>
    %476 = arith.mulf %151, %235 : vector<8x256xf32>
    %cst_99 = arith.constant dense<0.000000e+00> : vector<256xf32>
    %477 = vector.multi_reduction <add>, %476, %cst_99 [0] : vector<8x256xf32> to vector<256xf32>
    %478 = vector.shape_cast %477 : vector<256xf32> to vector<1x256xf32>
    %479 = arith.mulf %151, %257 : vector<8x256xf32>
    %cst_100 = arith.constant dense<0.000000e+00> : vector<256xf32>
    %480 = vector.multi_reduction <add>, %479, %cst_100 [0] : vector<8x256xf32> to vector<256xf32>
    %481 = vector.shape_cast %480 : vector<256xf32> to vector<1x256xf32>
    %482 = arith.addf %457, %460 : vector<1x256xf32>
    %483 = arith.addf %482, %463 : vector<1x256xf32>
    %484 = arith.addf %483, %466 : vector<1x256xf32>
    %485 = arith.addf %484, %469 : vector<1x256xf32>
    %486 = arith.addf %485, %472 : vector<1x256xf32>
    %487 = arith.addf %486, %475 : vector<1x256xf32>
    %488 = arith.addf %487, %478 : vector<1x256xf32>
    %489 = arith.addf %488, %481 : vector<1x256xf32>
    %490 = vector.broadcast %457 : vector<1x256xf32> to vector<16x256xf32>
    %491 = arith.mulf %490, %86 : vector<16x256xf32>
    %492 = vector.broadcast %460 : vector<1x256xf32> to vector<16x256xf32>
    %493 = arith.mulf %492, %108 : vector<16x256xf32>
    %494 = arith.addf %491, %493 : vector<16x256xf32>
    %495 = vector.broadcast %463 : vector<1x256xf32> to vector<16x256xf32>
    %496 = arith.mulf %495, %130 : vector<16x256xf32>
    %497 = arith.addf %494, %496 : vector<16x256xf32>
    %498 = vector.broadcast %466 : vector<1x256xf32> to vector<16x256xf32>
    %499 = arith.mulf %498, %152 : vector<16x256xf32>
    %500 = arith.addf %497, %499 : vector<16x256xf32>
    %501 = vector.broadcast %469 : vector<1x256xf32> to vector<16x256xf32>
    %502 = arith.mulf %501, %171 : vector<16x256xf32>
    %503 = arith.addf %500, %502 : vector<16x256xf32>
    %504 = vector.broadcast %472 : vector<1x256xf32> to vector<16x256xf32>
    %505 = arith.mulf %504, %193 : vector<16x256xf32>
    %506 = arith.addf %503, %505 : vector<16x256xf32>
    %507 = vector.broadcast %475 : vector<1x256xf32> to vector<16x256xf32>
    %508 = arith.mulf %507, %215 : vector<16x256xf32>
    %509 = arith.addf %506, %508 : vector<16x256xf32>
    %510 = vector.broadcast %478 : vector<1x256xf32> to vector<16x256xf32>
    %511 = arith.mulf %510, %237 : vector<16x256xf32>
    %512 = arith.addf %509, %511 : vector<16x256xf32>
    %513 = vector.broadcast %481 : vector<1x256xf32> to vector<16x256xf32>
    %514 = arith.mulf %513, %259 : vector<16x256xf32>
    %515 = arith.addf %512, %514 : vector<16x256xf32>
    %cst_101 = arith.constant 9.99999993E-9 : f32
    %516 = vector.broadcast %cst_101 : f32 to vector<1x256xf32>
    %517 = arith.addf %489, %516 : vector<1x256xf32>
    %518 = vector.broadcast %517 : vector<1x256xf32> to vector<16x256xf32>
    %519 = arith.divf %515, %518 : vector<16x256xf32>
    %520 = arith.mulf %170, %84 : vector<8x256xf32>
    %cst_102 = arith.constant dense<0.000000e+00> : vector<256xf32>
    %521 = vector.multi_reduction <add>, %520, %cst_102 [0] : vector<8x256xf32> to vector<256xf32>
    %522 = vector.shape_cast %521 : vector<256xf32> to vector<1x256xf32>
    %523 = arith.mulf %170, %106 : vector<8x256xf32>
    %cst_103 = arith.constant dense<0.000000e+00> : vector<256xf32>
    %524 = vector.multi_reduction <add>, %523, %cst_103 [0] : vector<8x256xf32> to vector<256xf32>
    %525 = vector.shape_cast %524 : vector<256xf32> to vector<1x256xf32>
    %526 = arith.mulf %170, %128 : vector<8x256xf32>
    %cst_104 = arith.constant dense<0.000000e+00> : vector<256xf32>
    %527 = vector.multi_reduction <add>, %526, %cst_104 [0] : vector<8x256xf32> to vector<256xf32>
    %528 = vector.shape_cast %527 : vector<256xf32> to vector<1x256xf32>
    %529 = arith.mulf %170, %150 : vector<8x256xf32>
    %cst_105 = arith.constant dense<0.000000e+00> : vector<256xf32>
    %530 = vector.multi_reduction <add>, %529, %cst_105 [0] : vector<8x256xf32> to vector<256xf32>
    %531 = vector.shape_cast %530 : vector<256xf32> to vector<1x256xf32>
    %532 = arith.mulf %170, %169 : vector<8x256xf32>
    %cst_106 = arith.constant dense<0.000000e+00> : vector<256xf32>
    %533 = vector.multi_reduction <add>, %532, %cst_106 [0] : vector<8x256xf32> to vector<256xf32>
    %534 = vector.shape_cast %533 : vector<256xf32> to vector<1x256xf32>
    %535 = arith.mulf %170, %191 : vector<8x256xf32>
    %cst_107 = arith.constant dense<0.000000e+00> : vector<256xf32>
    %536 = vector.multi_reduction <add>, %535, %cst_107 [0] : vector<8x256xf32> to vector<256xf32>
    %537 = vector.shape_cast %536 : vector<256xf32> to vector<1x256xf32>
    %538 = arith.mulf %170, %213 : vector<8x256xf32>
    %cst_108 = arith.constant dense<0.000000e+00> : vector<256xf32>
    %539 = vector.multi_reduction <add>, %538, %cst_108 [0] : vector<8x256xf32> to vector<256xf32>
    %540 = vector.shape_cast %539 : vector<256xf32> to vector<1x256xf32>
    %541 = arith.mulf %170, %235 : vector<8x256xf32>
    %cst_109 = arith.constant dense<0.000000e+00> : vector<256xf32>
    %542 = vector.multi_reduction <add>, %541, %cst_109 [0] : vector<8x256xf32> to vector<256xf32>
    %543 = vector.shape_cast %542 : vector<256xf32> to vector<1x256xf32>
    %544 = arith.mulf %170, %257 : vector<8x256xf32>
    %cst_110 = arith.constant dense<0.000000e+00> : vector<256xf32>
    %545 = vector.multi_reduction <add>, %544, %cst_110 [0] : vector<8x256xf32> to vector<256xf32>
    %546 = vector.shape_cast %545 : vector<256xf32> to vector<1x256xf32>
    %547 = arith.addf %522, %525 : vector<1x256xf32>
    %548 = arith.addf %547, %528 : vector<1x256xf32>
    %549 = arith.addf %548, %531 : vector<1x256xf32>
    %550 = arith.addf %549, %534 : vector<1x256xf32>
    %551 = arith.addf %550, %537 : vector<1x256xf32>
    %552 = arith.addf %551, %540 : vector<1x256xf32>
    %553 = arith.addf %552, %543 : vector<1x256xf32>
    %554 = arith.addf %553, %546 : vector<1x256xf32>
    %555 = vector.broadcast %522 : vector<1x256xf32> to vector<16x256xf32>
    %556 = arith.mulf %555, %86 : vector<16x256xf32>
    %557 = vector.broadcast %525 : vector<1x256xf32> to vector<16x256xf32>
    %558 = arith.mulf %557, %108 : vector<16x256xf32>
    %559 = arith.addf %556, %558 : vector<16x256xf32>
    %560 = vector.broadcast %528 : vector<1x256xf32> to vector<16x256xf32>
    %561 = arith.mulf %560, %130 : vector<16x256xf32>
    %562 = arith.addf %559, %561 : vector<16x256xf32>
    %563 = vector.broadcast %531 : vector<1x256xf32> to vector<16x256xf32>
    %564 = arith.mulf %563, %152 : vector<16x256xf32>
    %565 = arith.addf %562, %564 : vector<16x256xf32>
    %566 = vector.broadcast %534 : vector<1x256xf32> to vector<16x256xf32>
    %567 = arith.mulf %566, %171 : vector<16x256xf32>
    %568 = arith.addf %565, %567 : vector<16x256xf32>
    %569 = vector.broadcast %537 : vector<1x256xf32> to vector<16x256xf32>
    %570 = arith.mulf %569, %193 : vector<16x256xf32>
    %571 = arith.addf %568, %570 : vector<16x256xf32>
    %572 = vector.broadcast %540 : vector<1x256xf32> to vector<16x256xf32>
    %573 = arith.mulf %572, %215 : vector<16x256xf32>
    %574 = arith.addf %571, %573 : vector<16x256xf32>
    %575 = vector.broadcast %543 : vector<1x256xf32> to vector<16x256xf32>
    %576 = arith.mulf %575, %237 : vector<16x256xf32>
    %577 = arith.addf %574, %576 : vector<16x256xf32>
    %578 = vector.broadcast %546 : vector<1x256xf32> to vector<16x256xf32>
    %579 = arith.mulf %578, %259 : vector<16x256xf32>
    %580 = arith.addf %577, %579 : vector<16x256xf32>
    %cst_111 = arith.constant 9.99999993E-9 : f32
    %581 = vector.broadcast %cst_111 : f32 to vector<1x256xf32>
    %582 = arith.addf %554, %581 : vector<1x256xf32>
    %583 = vector.broadcast %582 : vector<1x256xf32> to vector<16x256xf32>
    %584 = arith.divf %580, %583 : vector<16x256xf32>
    %585 = arith.mulf %192, %84 : vector<8x256xf32>
    %cst_112 = arith.constant dense<0.000000e+00> : vector<256xf32>
    %586 = vector.multi_reduction <add>, %585, %cst_112 [0] : vector<8x256xf32> to vector<256xf32>
    %587 = vector.shape_cast %586 : vector<256xf32> to vector<1x256xf32>
    %588 = arith.mulf %192, %106 : vector<8x256xf32>
    %cst_113 = arith.constant dense<0.000000e+00> : vector<256xf32>
    %589 = vector.multi_reduction <add>, %588, %cst_113 [0] : vector<8x256xf32> to vector<256xf32>
    %590 = vector.shape_cast %589 : vector<256xf32> to vector<1x256xf32>
    %591 = arith.mulf %192, %128 : vector<8x256xf32>
    %cst_114 = arith.constant dense<0.000000e+00> : vector<256xf32>
    %592 = vector.multi_reduction <add>, %591, %cst_114 [0] : vector<8x256xf32> to vector<256xf32>
    %593 = vector.shape_cast %592 : vector<256xf32> to vector<1x256xf32>
    %594 = arith.mulf %192, %150 : vector<8x256xf32>
    %cst_115 = arith.constant dense<0.000000e+00> : vector<256xf32>
    %595 = vector.multi_reduction <add>, %594, %cst_115 [0] : vector<8x256xf32> to vector<256xf32>
    %596 = vector.shape_cast %595 : vector<256xf32> to vector<1x256xf32>
    %597 = arith.mulf %192, %169 : vector<8x256xf32>
    %cst_116 = arith.constant dense<0.000000e+00> : vector<256xf32>
    %598 = vector.multi_reduction <add>, %597, %cst_116 [0] : vector<8x256xf32> to vector<256xf32>
    %599 = vector.shape_cast %598 : vector<256xf32> to vector<1x256xf32>
    %600 = arith.mulf %192, %191 : vector<8x256xf32>
    %cst_117 = arith.constant dense<0.000000e+00> : vector<256xf32>
    %601 = vector.multi_reduction <add>, %600, %cst_117 [0] : vector<8x256xf32> to vector<256xf32>
    %602 = vector.shape_cast %601 : vector<256xf32> to vector<1x256xf32>
    %603 = arith.mulf %192, %213 : vector<8x256xf32>
    %cst_118 = arith.constant dense<0.000000e+00> : vector<256xf32>
    %604 = vector.multi_reduction <add>, %603, %cst_118 [0] : vector<8x256xf32> to vector<256xf32>
    %605 = vector.shape_cast %604 : vector<256xf32> to vector<1x256xf32>
    %606 = arith.mulf %192, %235 : vector<8x256xf32>
    %cst_119 = arith.constant dense<0.000000e+00> : vector<256xf32>
    %607 = vector.multi_reduction <add>, %606, %cst_119 [0] : vector<8x256xf32> to vector<256xf32>
    %608 = vector.shape_cast %607 : vector<256xf32> to vector<1x256xf32>
    %609 = arith.mulf %192, %257 : vector<8x256xf32>
    %cst_120 = arith.constant dense<0.000000e+00> : vector<256xf32>
    %610 = vector.multi_reduction <add>, %609, %cst_120 [0] : vector<8x256xf32> to vector<256xf32>
    %611 = vector.shape_cast %610 : vector<256xf32> to vector<1x256xf32>
    %612 = arith.addf %587, %590 : vector<1x256xf32>
    %613 = arith.addf %612, %593 : vector<1x256xf32>
    %614 = arith.addf %613, %596 : vector<1x256xf32>
    %615 = arith.addf %614, %599 : vector<1x256xf32>
    %616 = arith.addf %615, %602 : vector<1x256xf32>
    %617 = arith.addf %616, %605 : vector<1x256xf32>
    %618 = arith.addf %617, %608 : vector<1x256xf32>
    %619 = arith.addf %618, %611 : vector<1x256xf32>
    %620 = vector.broadcast %587 : vector<1x256xf32> to vector<16x256xf32>
    %621 = arith.mulf %620, %86 : vector<16x256xf32>
    %622 = vector.broadcast %590 : vector<1x256xf32> to vector<16x256xf32>
    %623 = arith.mulf %622, %108 : vector<16x256xf32>
    %624 = arith.addf %621, %623 : vector<16x256xf32>
    %625 = vector.broadcast %593 : vector<1x256xf32> to vector<16x256xf32>
    %626 = arith.mulf %625, %130 : vector<16x256xf32>
    %627 = arith.addf %624, %626 : vector<16x256xf32>
    %628 = vector.broadcast %596 : vector<1x256xf32> to vector<16x256xf32>
    %629 = arith.mulf %628, %152 : vector<16x256xf32>
    %630 = arith.addf %627, %629 : vector<16x256xf32>
    %631 = vector.broadcast %599 : vector<1x256xf32> to vector<16x256xf32>
    %632 = arith.mulf %631, %171 : vector<16x256xf32>
    %633 = arith.addf %630, %632 : vector<16x256xf32>
    %634 = vector.broadcast %602 : vector<1x256xf32> to vector<16x256xf32>
    %635 = arith.mulf %634, %193 : vector<16x256xf32>
    %636 = arith.addf %633, %635 : vector<16x256xf32>
    %637 = vector.broadcast %605 : vector<1x256xf32> to vector<16x256xf32>
    %638 = arith.mulf %637, %215 : vector<16x256xf32>
    %639 = arith.addf %636, %638 : vector<16x256xf32>
    %640 = vector.broadcast %608 : vector<1x256xf32> to vector<16x256xf32>
    %641 = arith.mulf %640, %237 : vector<16x256xf32>
    %642 = arith.addf %639, %641 : vector<16x256xf32>
    %643 = vector.broadcast %611 : vector<1x256xf32> to vector<16x256xf32>
    %644 = arith.mulf %643, %259 : vector<16x256xf32>
    %645 = arith.addf %642, %644 : vector<16x256xf32>
    %cst_121 = arith.constant 9.99999993E-9 : f32
    %646 = vector.broadcast %cst_121 : f32 to vector<1x256xf32>
    %647 = arith.addf %619, %646 : vector<1x256xf32>
    %648 = vector.broadcast %647 : vector<1x256xf32> to vector<16x256xf32>
    %649 = arith.divf %645, %648 : vector<16x256xf32>
    %650 = arith.mulf %214, %84 : vector<8x256xf32>
    %cst_122 = arith.constant dense<0.000000e+00> : vector<256xf32>
    %651 = vector.multi_reduction <add>, %650, %cst_122 [0] : vector<8x256xf32> to vector<256xf32>
    %652 = vector.shape_cast %651 : vector<256xf32> to vector<1x256xf32>
    %653 = arith.mulf %214, %106 : vector<8x256xf32>
    %cst_123 = arith.constant dense<0.000000e+00> : vector<256xf32>
    %654 = vector.multi_reduction <add>, %653, %cst_123 [0] : vector<8x256xf32> to vector<256xf32>
    %655 = vector.shape_cast %654 : vector<256xf32> to vector<1x256xf32>
    %656 = arith.mulf %214, %128 : vector<8x256xf32>
    %cst_124 = arith.constant dense<0.000000e+00> : vector<256xf32>
    %657 = vector.multi_reduction <add>, %656, %cst_124 [0] : vector<8x256xf32> to vector<256xf32>
    %658 = vector.shape_cast %657 : vector<256xf32> to vector<1x256xf32>
    %659 = arith.mulf %214, %150 : vector<8x256xf32>
    %cst_125 = arith.constant dense<0.000000e+00> : vector<256xf32>
    %660 = vector.multi_reduction <add>, %659, %cst_125 [0] : vector<8x256xf32> to vector<256xf32>
    %661 = vector.shape_cast %660 : vector<256xf32> to vector<1x256xf32>
    %662 = arith.mulf %214, %169 : vector<8x256xf32>
    %cst_126 = arith.constant dense<0.000000e+00> : vector<256xf32>
    %663 = vector.multi_reduction <add>, %662, %cst_126 [0] : vector<8x256xf32> to vector<256xf32>
    %664 = vector.shape_cast %663 : vector<256xf32> to vector<1x256xf32>
    %665 = arith.mulf %214, %191 : vector<8x256xf32>
    %cst_127 = arith.constant dense<0.000000e+00> : vector<256xf32>
    %666 = vector.multi_reduction <add>, %665, %cst_127 [0] : vector<8x256xf32> to vector<256xf32>
    %667 = vector.shape_cast %666 : vector<256xf32> to vector<1x256xf32>
    %668 = arith.mulf %214, %213 : vector<8x256xf32>
    %cst_128 = arith.constant dense<0.000000e+00> : vector<256xf32>
    %669 = vector.multi_reduction <add>, %668, %cst_128 [0] : vector<8x256xf32> to vector<256xf32>
    %670 = vector.shape_cast %669 : vector<256xf32> to vector<1x256xf32>
    %671 = arith.mulf %214, %235 : vector<8x256xf32>
    %cst_129 = arith.constant dense<0.000000e+00> : vector<256xf32>
    %672 = vector.multi_reduction <add>, %671, %cst_129 [0] : vector<8x256xf32> to vector<256xf32>
    %673 = vector.shape_cast %672 : vector<256xf32> to vector<1x256xf32>
    %674 = arith.mulf %214, %257 : vector<8x256xf32>
    %cst_130 = arith.constant dense<0.000000e+00> : vector<256xf32>
    %675 = vector.multi_reduction <add>, %674, %cst_130 [0] : vector<8x256xf32> to vector<256xf32>
    %676 = vector.shape_cast %675 : vector<256xf32> to vector<1x256xf32>
    %677 = arith.addf %652, %655 : vector<1x256xf32>
    %678 = arith.addf %677, %658 : vector<1x256xf32>
    %679 = arith.addf %678, %661 : vector<1x256xf32>
    %680 = arith.addf %679, %664 : vector<1x256xf32>
    %681 = arith.addf %680, %667 : vector<1x256xf32>
    %682 = arith.addf %681, %670 : vector<1x256xf32>
    %683 = arith.addf %682, %673 : vector<1x256xf32>
    %684 = arith.addf %683, %676 : vector<1x256xf32>
    %685 = vector.broadcast %652 : vector<1x256xf32> to vector<16x256xf32>
    %686 = arith.mulf %685, %86 : vector<16x256xf32>
    %687 = vector.broadcast %655 : vector<1x256xf32> to vector<16x256xf32>
    %688 = arith.mulf %687, %108 : vector<16x256xf32>
    %689 = arith.addf %686, %688 : vector<16x256xf32>
    %690 = vector.broadcast %658 : vector<1x256xf32> to vector<16x256xf32>
    %691 = arith.mulf %690, %130 : vector<16x256xf32>
    %692 = arith.addf %689, %691 : vector<16x256xf32>
    %693 = vector.broadcast %661 : vector<1x256xf32> to vector<16x256xf32>
    %694 = arith.mulf %693, %152 : vector<16x256xf32>
    %695 = arith.addf %692, %694 : vector<16x256xf32>
    %696 = vector.broadcast %664 : vector<1x256xf32> to vector<16x256xf32>
    %697 = arith.mulf %696, %171 : vector<16x256xf32>
    %698 = arith.addf %695, %697 : vector<16x256xf32>
    %699 = vector.broadcast %667 : vector<1x256xf32> to vector<16x256xf32>
    %700 = arith.mulf %699, %193 : vector<16x256xf32>
    %701 = arith.addf %698, %700 : vector<16x256xf32>
    %702 = vector.broadcast %670 : vector<1x256xf32> to vector<16x256xf32>
    %703 = arith.mulf %702, %215 : vector<16x256xf32>
    %704 = arith.addf %701, %703 : vector<16x256xf32>
    %705 = vector.broadcast %673 : vector<1x256xf32> to vector<16x256xf32>
    %706 = arith.mulf %705, %237 : vector<16x256xf32>
    %707 = arith.addf %704, %706 : vector<16x256xf32>
    %708 = vector.broadcast %676 : vector<1x256xf32> to vector<16x256xf32>
    %709 = arith.mulf %708, %259 : vector<16x256xf32>
    %710 = arith.addf %707, %709 : vector<16x256xf32>
    %cst_131 = arith.constant 9.99999993E-9 : f32
    %711 = vector.broadcast %cst_131 : f32 to vector<1x256xf32>
    %712 = arith.addf %684, %711 : vector<1x256xf32>
    %713 = vector.broadcast %712 : vector<1x256xf32> to vector<16x256xf32>
    %714 = arith.divf %710, %713 : vector<16x256xf32>
    %715 = arith.mulf %236, %84 : vector<8x256xf32>
    %cst_132 = arith.constant dense<0.000000e+00> : vector<256xf32>
    %716 = vector.multi_reduction <add>, %715, %cst_132 [0] : vector<8x256xf32> to vector<256xf32>
    %717 = vector.shape_cast %716 : vector<256xf32> to vector<1x256xf32>
    %718 = arith.mulf %236, %106 : vector<8x256xf32>
    %cst_133 = arith.constant dense<0.000000e+00> : vector<256xf32>
    %719 = vector.multi_reduction <add>, %718, %cst_133 [0] : vector<8x256xf32> to vector<256xf32>
    %720 = vector.shape_cast %719 : vector<256xf32> to vector<1x256xf32>
    %721 = arith.mulf %236, %128 : vector<8x256xf32>
    %cst_134 = arith.constant dense<0.000000e+00> : vector<256xf32>
    %722 = vector.multi_reduction <add>, %721, %cst_134 [0] : vector<8x256xf32> to vector<256xf32>
    %723 = vector.shape_cast %722 : vector<256xf32> to vector<1x256xf32>
    %724 = arith.mulf %236, %150 : vector<8x256xf32>
    %cst_135 = arith.constant dense<0.000000e+00> : vector<256xf32>
    %725 = vector.multi_reduction <add>, %724, %cst_135 [0] : vector<8x256xf32> to vector<256xf32>
    %726 = vector.shape_cast %725 : vector<256xf32> to vector<1x256xf32>
    %727 = arith.mulf %236, %169 : vector<8x256xf32>
    %cst_136 = arith.constant dense<0.000000e+00> : vector<256xf32>
    %728 = vector.multi_reduction <add>, %727, %cst_136 [0] : vector<8x256xf32> to vector<256xf32>
    %729 = vector.shape_cast %728 : vector<256xf32> to vector<1x256xf32>
    %730 = arith.mulf %236, %191 : vector<8x256xf32>
    %cst_137 = arith.constant dense<0.000000e+00> : vector<256xf32>
    %731 = vector.multi_reduction <add>, %730, %cst_137 [0] : vector<8x256xf32> to vector<256xf32>
    %732 = vector.shape_cast %731 : vector<256xf32> to vector<1x256xf32>
    %733 = arith.mulf %236, %213 : vector<8x256xf32>
    %cst_138 = arith.constant dense<0.000000e+00> : vector<256xf32>
    %734 = vector.multi_reduction <add>, %733, %cst_138 [0] : vector<8x256xf32> to vector<256xf32>
    %735 = vector.shape_cast %734 : vector<256xf32> to vector<1x256xf32>
    %736 = arith.mulf %236, %235 : vector<8x256xf32>
    %cst_139 = arith.constant dense<0.000000e+00> : vector<256xf32>
    %737 = vector.multi_reduction <add>, %736, %cst_139 [0] : vector<8x256xf32> to vector<256xf32>
    %738 = vector.shape_cast %737 : vector<256xf32> to vector<1x256xf32>
    %739 = arith.mulf %236, %257 : vector<8x256xf32>
    %cst_140 = arith.constant dense<0.000000e+00> : vector<256xf32>
    %740 = vector.multi_reduction <add>, %739, %cst_140 [0] : vector<8x256xf32> to vector<256xf32>
    %741 = vector.shape_cast %740 : vector<256xf32> to vector<1x256xf32>
    %742 = arith.addf %717, %720 : vector<1x256xf32>
    %743 = arith.addf %742, %723 : vector<1x256xf32>
    %744 = arith.addf %743, %726 : vector<1x256xf32>
    %745 = arith.addf %744, %729 : vector<1x256xf32>
    %746 = arith.addf %745, %732 : vector<1x256xf32>
    %747 = arith.addf %746, %735 : vector<1x256xf32>
    %748 = arith.addf %747, %738 : vector<1x256xf32>
    %749 = arith.addf %748, %741 : vector<1x256xf32>
    %750 = vector.broadcast %717 : vector<1x256xf32> to vector<16x256xf32>
    %751 = arith.mulf %750, %86 : vector<16x256xf32>
    %752 = vector.broadcast %720 : vector<1x256xf32> to vector<16x256xf32>
    %753 = arith.mulf %752, %108 : vector<16x256xf32>
    %754 = arith.addf %751, %753 : vector<16x256xf32>
    %755 = vector.broadcast %723 : vector<1x256xf32> to vector<16x256xf32>
    %756 = arith.mulf %755, %130 : vector<16x256xf32>
    %757 = arith.addf %754, %756 : vector<16x256xf32>
    %758 = vector.broadcast %726 : vector<1x256xf32> to vector<16x256xf32>
    %759 = arith.mulf %758, %152 : vector<16x256xf32>
    %760 = arith.addf %757, %759 : vector<16x256xf32>
    %761 = vector.broadcast %729 : vector<1x256xf32> to vector<16x256xf32>
    %762 = arith.mulf %761, %171 : vector<16x256xf32>
    %763 = arith.addf %760, %762 : vector<16x256xf32>
    %764 = vector.broadcast %732 : vector<1x256xf32> to vector<16x256xf32>
    %765 = arith.mulf %764, %193 : vector<16x256xf32>
    %766 = arith.addf %763, %765 : vector<16x256xf32>
    %767 = vector.broadcast %735 : vector<1x256xf32> to vector<16x256xf32>
    %768 = arith.mulf %767, %215 : vector<16x256xf32>
    %769 = arith.addf %766, %768 : vector<16x256xf32>
    %770 = vector.broadcast %738 : vector<1x256xf32> to vector<16x256xf32>
    %771 = arith.mulf %770, %237 : vector<16x256xf32>
    %772 = arith.addf %769, %771 : vector<16x256xf32>
    %773 = vector.broadcast %741 : vector<1x256xf32> to vector<16x256xf32>
    %774 = arith.mulf %773, %259 : vector<16x256xf32>
    %775 = arith.addf %772, %774 : vector<16x256xf32>
    %cst_141 = arith.constant 9.99999993E-9 : f32
    %776 = vector.broadcast %cst_141 : f32 to vector<1x256xf32>
    %777 = arith.addf %749, %776 : vector<1x256xf32>
    %778 = vector.broadcast %777 : vector<1x256xf32> to vector<16x256xf32>
    %779 = arith.divf %775, %778 : vector<16x256xf32>
    %780 = arith.mulf %258, %84 : vector<8x256xf32>
    %cst_142 = arith.constant dense<0.000000e+00> : vector<256xf32>
    %781 = vector.multi_reduction <add>, %780, %cst_142 [0] : vector<8x256xf32> to vector<256xf32>
    %782 = vector.shape_cast %781 : vector<256xf32> to vector<1x256xf32>
    %783 = arith.mulf %258, %106 : vector<8x256xf32>
    %cst_143 = arith.constant dense<0.000000e+00> : vector<256xf32>
    %784 = vector.multi_reduction <add>, %783, %cst_143 [0] : vector<8x256xf32> to vector<256xf32>
    %785 = vector.shape_cast %784 : vector<256xf32> to vector<1x256xf32>
    %786 = arith.mulf %258, %128 : vector<8x256xf32>
    %cst_144 = arith.constant dense<0.000000e+00> : vector<256xf32>
    %787 = vector.multi_reduction <add>, %786, %cst_144 [0] : vector<8x256xf32> to vector<256xf32>
    %788 = vector.shape_cast %787 : vector<256xf32> to vector<1x256xf32>
    %789 = arith.mulf %258, %150 : vector<8x256xf32>
    %cst_145 = arith.constant dense<0.000000e+00> : vector<256xf32>
    %790 = vector.multi_reduction <add>, %789, %cst_145 [0] : vector<8x256xf32> to vector<256xf32>
    %791 = vector.shape_cast %790 : vector<256xf32> to vector<1x256xf32>
    %792 = arith.mulf %258, %169 : vector<8x256xf32>
    %cst_146 = arith.constant dense<0.000000e+00> : vector<256xf32>
    %793 = vector.multi_reduction <add>, %792, %cst_146 [0] : vector<8x256xf32> to vector<256xf32>
    %794 = vector.shape_cast %793 : vector<256xf32> to vector<1x256xf32>
    %795 = arith.mulf %258, %191 : vector<8x256xf32>
    %cst_147 = arith.constant dense<0.000000e+00> : vector<256xf32>
    %796 = vector.multi_reduction <add>, %795, %cst_147 [0] : vector<8x256xf32> to vector<256xf32>
    %797 = vector.shape_cast %796 : vector<256xf32> to vector<1x256xf32>
    %798 = arith.mulf %258, %213 : vector<8x256xf32>
    %cst_148 = arith.constant dense<0.000000e+00> : vector<256xf32>
    %799 = vector.multi_reduction <add>, %798, %cst_148 [0] : vector<8x256xf32> to vector<256xf32>
    %800 = vector.shape_cast %799 : vector<256xf32> to vector<1x256xf32>
    %801 = arith.mulf %258, %235 : vector<8x256xf32>
    %cst_149 = arith.constant dense<0.000000e+00> : vector<256xf32>
    %802 = vector.multi_reduction <add>, %801, %cst_149 [0] : vector<8x256xf32> to vector<256xf32>
    %803 = vector.shape_cast %802 : vector<256xf32> to vector<1x256xf32>
    %804 = arith.mulf %258, %257 : vector<8x256xf32>
    %cst_150 = arith.constant dense<0.000000e+00> : vector<256xf32>
    %805 = vector.multi_reduction <add>, %804, %cst_150 [0] : vector<8x256xf32> to vector<256xf32>
    %806 = vector.shape_cast %805 : vector<256xf32> to vector<1x256xf32>
    %807 = arith.addf %782, %785 : vector<1x256xf32>
    %808 = arith.addf %807, %788 : vector<1x256xf32>
    %809 = arith.addf %808, %791 : vector<1x256xf32>
    %810 = arith.addf %809, %794 : vector<1x256xf32>
    %811 = arith.addf %810, %797 : vector<1x256xf32>
    %812 = arith.addf %811, %800 : vector<1x256xf32>
    %813 = arith.addf %812, %803 : vector<1x256xf32>
    %814 = arith.addf %813, %806 : vector<1x256xf32>
    %815 = vector.broadcast %782 : vector<1x256xf32> to vector<16x256xf32>
    %816 = arith.mulf %815, %86 : vector<16x256xf32>
    %817 = vector.broadcast %785 : vector<1x256xf32> to vector<16x256xf32>
    %818 = arith.mulf %817, %108 : vector<16x256xf32>
    %819 = arith.addf %816, %818 : vector<16x256xf32>
    %820 = vector.broadcast %788 : vector<1x256xf32> to vector<16x256xf32>
    %821 = arith.mulf %820, %130 : vector<16x256xf32>
    %822 = arith.addf %819, %821 : vector<16x256xf32>
    %823 = vector.broadcast %791 : vector<1x256xf32> to vector<16x256xf32>
    %824 = arith.mulf %823, %152 : vector<16x256xf32>
    %825 = arith.addf %822, %824 : vector<16x256xf32>
    %826 = vector.broadcast %794 : vector<1x256xf32> to vector<16x256xf32>
    %827 = arith.mulf %826, %171 : vector<16x256xf32>
    %828 = arith.addf %825, %827 : vector<16x256xf32>
    %829 = vector.broadcast %797 : vector<1x256xf32> to vector<16x256xf32>
    %830 = arith.mulf %829, %193 : vector<16x256xf32>
    %831 = arith.addf %828, %830 : vector<16x256xf32>
    %832 = vector.broadcast %800 : vector<1x256xf32> to vector<16x256xf32>
    %833 = arith.mulf %832, %215 : vector<16x256xf32>
    %834 = arith.addf %831, %833 : vector<16x256xf32>
    %835 = vector.broadcast %803 : vector<1x256xf32> to vector<16x256xf32>
    %836 = arith.mulf %835, %237 : vector<16x256xf32>
    %837 = arith.addf %834, %836 : vector<16x256xf32>
    %838 = vector.broadcast %806 : vector<1x256xf32> to vector<16x256xf32>
    %839 = arith.mulf %838, %259 : vector<16x256xf32>
    %840 = arith.addf %837, %839 : vector<16x256xf32>
    %cst_151 = arith.constant 9.99999993E-9 : f32
    %841 = vector.broadcast %cst_151 : f32 to vector<1x256xf32>
    %842 = arith.addf %814, %841 : vector<1x256xf32>
    %843 = vector.broadcast %842 : vector<1x256xf32> to vector<16x256xf32>
    %844 = arith.divf %840, %843 : vector<16x256xf32>
    %845 = tpu.concatenate %324, %389, %454, %519, %584, %649, %714, %779, %844 in 1 : vector<16x256xf32>, vector<16x256xf32>, vector<16x256xf32>, vector<16x256xf32>, vector<16x256xf32>, vector<16x256xf32>, vector<16x256xf32>, vector<16x256xf32>, vector<16x256xf32> -> vector<16x2304xf32>
    %846 = tpu.concatenate %86, %108, %130, %152, %171, %193, %215, %237, %259 in 1 : vector<16x256xf32>, vector<16x256xf32>, vector<16x256xf32>, vector<16x256xf32>, vector<16x256xf32>, vector<16x256xf32>, vector<16x256xf32>, vector<16x256xf32>, vector<16x256xf32> -> vector<16x2304xf32>
    %c0_152 = arith.constant 0 : index
    %c0_153 = arith.constant 0 : index
    %847 = vector.load %arg11[%c0_152, %c0_153] : memref<16x16xf32, #tpu.memory_space<vmem>>, vector<16x16xf32>
    %cst_154 = arith.constant dense<0.000000e+00> : vector<16x2304xf32>
    %848 = tpu.matmul %847, %845, %cst_154 {dimension_numbers = #tpu.dot_dimension_numbers<[1], [0], [0], [1], [0, 0, 1, 1], [], []>} : vector<16x16xf32>, vector<16x2304xf32>, vector<16x2304xf32> -> vector<16x2304xf32>
    %849 = arith.addf %846, %848 : vector<16x2304xf32>
    %c0_155 = arith.constant 0 : index
    %c0_156 = arith.constant 0 : index
    %850 = vector.load %arg12[%c0_155, %c0_156] : memref<16x1xf32, #tpu.memory_space<vmem>>, vector<16x1xf32>
    %851 = vector.broadcast %850 : vector<16x1xf32> to vector<16x2304xf32>
    %852 = arith.addf %849, %851 : vector<16x2304xf32>
    %cst_157 = arith.constant dense<0.000000e+00> : vector<2304xf32>
    %853 = vector.multi_reduction <add>, %852, %cst_157 [0] : vector<16x2304xf32> to vector<2304xf32>
    %854 = vector.shape_cast %853 : vector<2304xf32> to vector<1x2304xf32>
    %cst_158 = arith.constant 1.600000e+01 : f32
    %855 = vector.broadcast %cst_158 : f32 to vector<1x2304xf32>
    %856 = arith.divf %854, %855 : vector<1x2304xf32>
    %857 = vector.broadcast %856 : vector<1x2304xf32> to vector<16x2304xf32>
    %858 = arith.subf %852, %857 : vector<16x2304xf32>
    %859 = arith.mulf %858, %858 : vector<16x2304xf32>
    %cst_159 = arith.constant dense<0.000000e+00> : vector<2304xf32>
    %860 = vector.multi_reduction <add>, %859, %cst_159 [0] : vector<16x2304xf32> to vector<2304xf32>
    %861 = vector.shape_cast %860 : vector<2304xf32> to vector<1x2304xf32>
    %cst_160 = arith.constant 1.600000e+01 : f32
    %862 = vector.broadcast %cst_160 : f32 to vector<1x2304xf32>
    %863 = arith.divf %861, %862 : vector<1x2304xf32>
    %864 = vector.broadcast %856 : vector<1x2304xf32> to vector<16x2304xf32>
    %865 = arith.subf %852, %864 : vector<16x2304xf32>
    %cst_161 = arith.constant 9.99999974E-6 : f32
    %866 = vector.broadcast %cst_161 : f32 to vector<1x2304xf32>
    %867 = arith.addf %863, %866 : vector<1x2304xf32>
    %868 = math.rsqrt %867 : vector<1x2304xf32>
    %869 = vector.broadcast %868 : vector<1x2304xf32> to vector<16x2304xf32>
    %870 = arith.mulf %865, %869 : vector<16x2304xf32>
    %c0_162 = arith.constant 0 : index
    %c0_163 = arith.constant 0 : index
    %871 = vector.load %arg13[%c0_162, %c0_163] : memref<16x1xf32, #tpu.memory_space<vmem>>, vector<16x1xf32>
    %872 = vector.broadcast %871 : vector<16x1xf32> to vector<16x2304xf32>
    %873 = arith.mulf %870, %872 : vector<16x2304xf32>
    %c0_164 = arith.constant 0 : index
    %c0_165 = arith.constant 0 : index
    %874 = vector.load %arg14[%c0_164, %c0_165] : memref<16x1xf32, #tpu.memory_space<vmem>>, vector<16x1xf32>
    %875 = vector.broadcast %874 : vector<16x1xf32> to vector<16x2304xf32>
    %876 = arith.addf %873, %875 : vector<16x2304xf32>
    %c0_166 = arith.constant 0 : index
    %c0_167 = arith.constant 0 : index
    %877 = vector.load %arg15[%c0_166, %c0_167] : memref<16x16xf32, #tpu.memory_space<vmem>>, vector<16x16xf32>
    %cst_168 = arith.constant dense<0.000000e+00> : vector<16x2304xf32>
    %878 = tpu.matmul %877, %876, %cst_168 {dimension_numbers = #tpu.dot_dimension_numbers<[1], [0], [0], [1], [0, 0, 1, 1], [], []>} : vector<16x16xf32>, vector<16x2304xf32>, vector<16x2304xf32> -> vector<16x2304xf32>
    %c0_169 = arith.constant 0 : index
    %c0_170 = arith.constant 0 : index
    %879 = vector.load %arg16[%c0_169, %c0_170] : memref<16x1xf32, #tpu.memory_space<vmem>>, vector<16x1xf32>
    %880 = vector.broadcast %879 : vector<16x1xf32> to vector<16x2304xf32>
    %881 = arith.addf %878, %880 : vector<16x2304xf32>
    %cst_171 = arith.constant 0.000000e+00 : f32
    %882 = vector.broadcast %cst_171 : f32 to vector<16x2304xf32>
    %883 = arith.maximumf %881, %882 : vector<16x2304xf32>
    %c0_172 = arith.constant 0 : index
    %c0_173 = arith.constant 0 : index
    %884 = vector.load %arg17[%c0_172, %c0_173] : memref<16x16xf32, #tpu.memory_space<vmem>>, vector<16x16xf32>
    %cst_174 = arith.constant dense<0.000000e+00> : vector<16x2304xf32>
    %885 = tpu.matmul %884, %883, %cst_174 {dimension_numbers = #tpu.dot_dimension_numbers<[1], [0], [0], [1], [0, 0, 1, 1], [], []>} : vector<16x16xf32>, vector<16x2304xf32>, vector<16x2304xf32> -> vector<16x2304xf32>
    %c0_175 = arith.constant 0 : index
    %c0_176 = arith.constant 0 : index
    %886 = vector.load %arg18[%c0_175, %c0_176] : memref<16x1xf32, #tpu.memory_space<vmem>>, vector<16x1xf32>
    %887 = vector.broadcast %886 : vector<16x1xf32> to vector<16x2304xf32>
    %888 = arith.addf %885, %887 : vector<16x2304xf32>
    %889 = arith.addf %852, %888 : vector<16x2304xf32>
    %890 = vector.extract_strided_slice %889 {offsets = [0, 0], sizes = [16, 256], strides = [1, 1]} : vector<16x2304xf32> to vector<16x256xf32>
    %891 = vector.extract_strided_slice %889 {offsets = [0, 256], sizes = [16, 256], strides = [1, 1]} : vector<16x2304xf32> to vector<16x256xf32>
    %892 = vector.extract_strided_slice %889 {offsets = [0, 512], sizes = [16, 256], strides = [1, 1]} : vector<16x2304xf32> to vector<16x256xf32>
    %893 = vector.extract_strided_slice %889 {offsets = [0, 768], sizes = [16, 256], strides = [1, 1]} : vector<16x2304xf32> to vector<16x256xf32>
    %894 = vector.extract_strided_slice %889 {offsets = [0, 1024], sizes = [16, 256], strides = [1, 1]} : vector<16x2304xf32> to vector<16x256xf32>
    %895 = vector.extract_strided_slice %889 {offsets = [0, 1280], sizes = [16, 256], strides = [1, 1]} : vector<16x2304xf32> to vector<16x256xf32>
    %896 = vector.extract_strided_slice %889 {offsets = [0, 1536], sizes = [16, 256], strides = [1, 1]} : vector<16x2304xf32> to vector<16x256xf32>
    %897 = vector.extract_strided_slice %889 {offsets = [0, 1792], sizes = [16, 256], strides = [1, 1]} : vector<16x2304xf32> to vector<16x256xf32>
    %898 = vector.extract_strided_slice %889 {offsets = [0, 2048], sizes = [16, 256], strides = [1, 1]} : vector<16x2304xf32> to vector<16x256xf32>
    %899 = tpu.concatenate %890, %891, %892, %893, %894, %895, %896, %897, %898 in 0 : vector<16x256xf32>, vector<16x256xf32>, vector<16x256xf32>, vector<16x256xf32>, vector<16x256xf32>, vector<16x256xf32>, vector<16x256xf32>, vector<16x256xf32>, vector<16x256xf32> -> vector<144x256xf32>
    %c0_177 = arith.constant 0 : index
    %c0_178 = arith.constant 0 : index
    %900 = vector.load %arg19[%c0_177, %c0_178] : memref<32x144xf32, #tpu.memory_space<vmem>>, vector<32x144xf32>
    %cst_179 = arith.constant dense<0.000000e+00> : vector<32x256xf32>
    %901 = tpu.matmul %900, %899, %cst_179 {dimension_numbers = #tpu.dot_dimension_numbers<[1], [0], [0], [1], [0, 0, 1, 1], [], []>} : vector<32x144xf32>, vector<144x256xf32>, vector<32x256xf32> -> vector<32x256xf32>
    %c0_180 = arith.constant 0 : index
    %c0_181 = arith.constant 0 : index
    %902 = vector.load %arg20[%c0_180, %c0_181] : memref<32x1xf32, #tpu.memory_space<vmem>>, vector<32x1xf32>
    %903 = vector.broadcast %902 : vector<32x1xf32> to vector<32x256xf32>
    %904 = arith.addf %901, %903 : vector<32x256xf32>
    %905 = arith.addf %904, %1 : vector<32x256xf32>
    %c0_182 = arith.constant 0 : index
    %c0_183 = arith.constant 0 : index
    %c0_184 = arith.constant 0 : index
    %906 = vector.load %arg21[%c0_182, %c0_183, %c0_184] : memref<1x32x256xf32, #tpu.memory_space<vmem>>, vector<1x32x256xf32>
    %907 = vector.shape_cast %906 : vector<1x32x256xf32> to vector<32x256xf32>
    %908 = vector.shape_cast %905 : vector<32x256xf32> to vector<1x32x256xf32>
    tpu.vector_store %arg21[%c0_182, %c0_183, %c0_184], %908 {strides = array<i32>} : memref<1x32x256xf32, #tpu.memory_space<vmem>>, vector<1x32x256xf32>,
    return
  }
  func.func @transform_0(%arg0: i32) -> (i32, i32, i32) {
    %c0_i32 = arith.constant 0 : i32
    %c0_i32_0 = arith.constant 0 : i32
    %c0_i32_1 = arith.constant 0 : i32
    return %arg0, %c0_i32, %c0_i32_0 : i32, i32, i32
  }
  func.func @transform_1(%arg0: i32) -> (i32, i32) {
    %c0_i32 = arith.constant 0 : i32
    %c0_i32_0 = arith.constant 0 : i32
    %c0_i32_1 = arith.constant 0 : i32
    return %c0_i32, %c0_i32_0 : i32, i32
  }
  func.func @transform_2(%arg0: i32) -> (i32, i32) {
    %c0_i32 = arith.constant 0 : i32
    %c0_i32_0 = arith.constant 0 : i32
    %c0_i32_1 = arith.constant 0 : i32
    return %c0_i32, %c0_i32_0 : i32, i32
  }
  func.func @transform_3(%arg0: i32) -> (i32, i32) {
    %c0_i32 = arith.constant 0 : i32
    %c0_i32_0 = arith.constant 0 : i32
    %c0_i32_1 = arith.constant 0 : i32
    return %c0_i32, %c0_i32_0 : i32, i32
  }
  func.func @transform_4(%arg0: i32) -> (i32, i32) {
    %c0_i32 = arith.constant 0 : i32
    %c0_i32_0 = arith.constant 0 : i32
    %c0_i32_1 = arith.constant 0 : i32
    return %c0_i32, %c0_i32_0 : i32, i32
  }
  func.func @transform_5(%arg0: i32) -> (i32, i32) {
    %c0_i32 = arith.constant 0 : i32
    %c0_i32_0 = arith.constant 0 : i32
    %c0_i32_1 = arith.constant 0 : i32
    return %c0_i32, %c0_i32_0 : i32, i32
  }
  func.func @transform_6(%arg0: i32) -> (i32, i32) {
    %c0_i32 = arith.constant 0 : i32
    %c0_i32_0 = arith.constant 0 : i32
    %c0_i32_1 = arith.constant 0 : i32
    return %c0_i32, %c0_i32_0 : i32, i32
  }
  func.func @transform_7(%arg0: i32) -> (i32, i32) {
    %c0_i32 = arith.constant 0 : i32
    %c0_i32_0 = arith.constant 0 : i32
    %c0_i32_1 = arith.constant 0 : i32
    return %c0_i32, %c0_i32_0 : i32, i32
  }
  func.func @transform_8(%arg0: i32) -> (i32, i32) {
    %c0_i32 = arith.constant 0 : i32
    %c0_i32_0 = arith.constant 0 : i32
    %c0_i32_1 = arith.constant 0 : i32
    return %c0_i32, %c0_i32_0 : i32, i32
  }
  func.func @transform_9(%arg0: i32) -> (i32, i32) {
    %c0_i32 = arith.constant 0 : i32
    %c0_i32_0 = arith.constant 0 : i32
    %c0_i32_1 = arith.constant 0 : i32
    return %c0_i32, %c0_i32_0 : i32, i32
  }
  func.func @transform_10(%arg0: i32) -> (i32, i32) {
    %c0_i32 = arith.constant 0 : i32
    %c0_i32_0 = arith.constant 0 : i32
    %c0_i32_1 = arith.constant 0 : i32
    return %c0_i32, %c0_i32_0 : i32, i32
  }
  func.func @transform_11(%arg0: i32) -> (i32, i32) {
    %c0_i32 = arith.constant 0 : i32
    %c0_i32_0 = arith.constant 0 : i32
    %c0_i32_1 = arith.constant 0 : i32
    return %c0_i32, %c0_i32_0 : i32, i32
  }
  func.func @transform_12(%arg0: i32) -> (i32, i32) {
    %c0_i32 = arith.constant 0 : i32
    %c0_i32_0 = arith.constant 0 : i32
    %c0_i32_1 = arith.constant 0 : i32
    return %c0_i32, %c0_i32_0 : i32, i32
  }
  func.func @transform_13(%arg0: i32) -> (i32, i32) {
    %c0_i32 = arith.constant 0 : i32
    %c0_i32_0 = arith.constant 0 : i32
    %c0_i32_1 = arith.constant 0 : i32
    return %c0_i32, %c0_i32_0 : i32, i32
  }
  func.func @transform_14(%arg0: i32) -> (i32, i32) {
    %c0_i32 = arith.constant 0 : i32
    %c0_i32_0 = arith.constant 0 : i32
    %c0_i32_1 = arith.constant 0 : i32
    return %c0_i32, %c0_i32_0 : i32, i32
  }
  func.func @transform_15(%arg0: i32) -> (i32, i32) {
    %c0_i32 = arith.constant 0 : i32
    %c0_i32_0 = arith.constant 0 : i32
    %c0_i32_1 = arith.constant 0 : i32
    return %c0_i32, %c0_i32_0 : i32, i32
  }
  func.func @transform_16(%arg0: i32) -> (i32, i32) {
    %c0_i32 = arith.constant 0 : i32
    %c0_i32_0 = arith.constant 0 : i32
    %c0_i32_1 = arith.constant 0 : i32
    return %c0_i32, %c0_i32_0 : i32, i32
  }
  func.func @transform_17(%arg0: i32) -> (i32, i32) {
    %c0_i32 = arith.constant 0 : i32
    %c0_i32_0 = arith.constant 0 : i32
    %c0_i32_1 = arith.constant 0 : i32
    return %c0_i32, %c0_i32_0 : i32, i32
  }
  func.func @transform_18(%arg0: i32) -> (i32, i32) {
    %c0_i32 = arith.constant 0 : i32
    %c0_i32_0 = arith.constant 0 : i32
    %c0_i32_1 = arith.constant 0 : i32
    return %c0_i32, %c0_i32_0 : i32, i32
  }
  func.func @transform_19(%arg0: i32) -> (i32, i32) {
    %c0_i32 = arith.constant 0 : i32
    %c0_i32_0 = arith.constant 0 : i32
    %c0_i32_1 = arith.constant 0 : i32
    return %c0_i32, %c0_i32_0 : i32, i32
  }
  func.func @transform_20(%arg0: i32) -> (i32, i32, i32) {
    %c0_i32 = arith.constant 0 : i32
    %c0_i32_0 = arith.constant 0 : i32
    %c0_i32_1 = arith.constant 0 : i32
    return %arg0, %c0_i32, %c0_i32_0 : i32, i32, i32
  }
}

</mosaic_0001>

<llo_original>
// kernel: tpu_custom_call.1
$region0: #{tpu_custom_call.1}
  #allocation0 [shape = 'u32[]', space=smem, size = 0x4, offset = 0x4, fixed_abs, tag = 'smem constant byte address 0x4 - core index']
  #allocation1 [shape = 'u32[72,128]{1,0:T(1,128)}', space=vmem, size = 0x9000, scoped, tag = 'internal scratch']
  %s0 = inlined_call_operand.vmem [shape: f32[2,32,256], index: 0, kind: input, shape index: {}]
  %s1 = inlined_call_operand.vmem [shape: s32[1,256], index: 1, kind: input, shape index: {}]
  %s2 = inlined_call_operand.vmem [shape: s32[1,256], index: 2, kind: input, shape index: {}]
  %s3 = inlined_call_operand.vmem [shape: f32[32,32], index: 3, kind: input, shape index: {}]
  %s4 = inlined_call_operand.vmem [shape: f32[32,1], index: 4, kind: input, shape index: {}]
  %s5 = inlined_call_operand.vmem [shape: f32[32,1], index: 5, kind: input, shape index: {}]
  %s6 = inlined_call_operand.vmem [shape: f32[32,1], index: 6, kind: input, shape index: {}]
  %s7 = inlined_call_operand.vmem [shape: f32[64,32], index: 7, kind: input, shape index: {}]
  %s8 = inlined_call_operand.vmem [shape: f32[64,1], index: 8, kind: input, shape index: {}]
  %s9 = inlined_call_operand.vmem [shape: f32[32,1], index: 9, kind: input, shape index: {}]
  %s10 = inlined_call_operand.vmem [shape: f32[16,16], index: 10, kind: input, shape index: {}]
  %s11 = inlined_call_operand.vmem [shape: f32[16,1], index: 11, kind: input, shape index: {}]
  %s12 = inlined_call_operand.vmem [shape: f32[16,1], index: 12, kind: input, shape index: {}]
  %s13 = inlined_call_operand.vmem [shape: f32[16,1], index: 13, kind: input, shape index: {}]
  %s14 = inlined_call_operand.vmem [shape: f32[16,16], index: 14, kind: input, shape index: {}]
  %s15 = inlined_call_operand.vmem [shape: f32[16,1], index: 15, kind: input, shape index: {}]
  %s16 = inlined_call_operand.vmem [shape: f32[16,16], index: 16, kind: input, shape index: {}]
  %s17 = inlined_call_operand.vmem [shape: f32[16,1], index: 17, kind: input, shape index: {}]
  %s18 = inlined_call_operand.vmem [shape: f32[32,144], index: 18, kind: input, shape index: {}]
  %s19 = inlined_call_operand.vmem [shape: f32[32,1], index: 19, kind: input, shape index: {}]
  %s20 = inlined_call_operand.hbm [shape: f32[2,32,256], index: 20, kind: output, shape index: {}]
  %s21 = sld [smem:[#allocation0]]
  $region113: #{tpu_custom_call.1} parent=0
    _
  %s23 = ssub.s32 1, %s21
  %s24 = scalar_select 0, %s23, %s21
  $region1: #{tpu_custom_call.1} parent=0
    #allocation2 [shape = 'u8[65536]{0}', space=vmem, size = 0x10000, scoped, tag = 'output window, operand 0']
    #allocation3 [shape = 's32[2]{0}', space=sflag, size = 0x8, scoped, tag = 'scoped memory for tpu_custom_call.1']
    %25 = vsyncpa [#allocation3], 0
    %s26 = scalar_lea.sflag [#allocation3], 1
    %27 = vsyncpa %s26, 0
    loop: start=0, step=1, limit=4
    $region2: #{tpu_custom_call.1} parent=1 // loop_pre_header
      _
    $region3: #{tpu_custom_call.1} parent=1 // loop_header
      %s29 = sphi 0, %s33
      %p30 = scmp.ge.s32.totalorder %s29, 4
      %s39 = sphi 0, %s41
      %s42 = sphi 0, %s39
      %s43 = sphi 0, %s42
      %s59 = sphi 0, %s43
      %s63 = sphi 0, %s63
      %s65 = sphi 0, %s63
      %s66 = sphi 0, %s65
      %s80 = sphi 0, %s66
      %s84 = sphi 0, %s84
      %s86 = sphi 0, %s84
      %s87 = sphi 0, %s86
      %s101 = sphi 0, %s87
      %s105 = sphi 0, %s105
      %s107 = sphi 0, %s105
      %s108 = sphi 0, %s107
      %s122 = sphi 0, %s108
      %s126 = sphi 0, %s126
      %s128 = sphi 0, %s126
      %s129 = sphi 0, %s128
      %s143 = sphi 0, %s129
      %s147 = sphi 0, %s147
      %s149 = sphi 0, %s147
      %s150 = sphi 0, %s149
      %s164 = sphi 0, %s150
      %s168 = sphi 0, %s168
      %s170 = sphi 0, %s168
      %s171 = sphi 0, %s170
      %s185 = sphi 0, %s171
      %s189 = sphi 0, %s189
      %s191 = sphi 0, %s189
      %s192 = sphi 0, %s191
      %s206 = sphi 0, %s192
      %s210 = sphi 0, %s210
      %s212 = sphi 0, %s210
      %s213 = sphi 0, %s212
      %s227 = sphi 0, %s213
      %s231 = sphi 0, %s231
      %s233 = sphi 0, %s231
      %s234 = sphi 0, %s233
      %s248 = sphi 0, %s234
      %s252 = sphi 0, %s252
      %s254 = sphi 0, %s252
      %s255 = sphi 0, %s254
      %s269 = sphi 0, %s255
      %s273 = sphi 0, %s273
      %s275 = sphi 0, %s273
      %s276 = sphi 0, %s275
      %s290 = sphi 0, %s276
      %s294 = sphi 0, %s294
      %s296 = sphi 0, %s294
      %s297 = sphi 0, %s296
      %s311 = sphi 0, %s297
      %s315 = sphi 0, %s315
      %s317 = sphi 0, %s315
      %s318 = sphi 0, %s317
      %s332 = sphi 0, %s318
      %s336 = sphi 0, %s336
      %s338 = sphi 0, %s336
      %s339 = sphi 0, %s338
      %s353 = sphi 0, %s339
      %s357 = sphi 0, %s357
      %s359 = sphi 0, %s357
      %s360 = sphi 0, %s359
      %s374 = sphi 0, %s360
      %s378 = sphi 0, %s378
      %s380 = sphi 0, %s378
      %s381 = sphi 0, %s380
      %s395 = sphi 0, %s381
      %s399 = sphi 0, %s399
      %s401 = sphi 0, %s399
      %s402 = sphi 0, %s401
      %s416 = sphi 0, %s402
      %s420 = sphi 0, %s420
      %s422 = sphi 0, %s420
      %s423 = sphi 0, %s422
      %s437 = sphi 0, %s423
      %s441 = sphi 0, %s441
      %s443 = sphi 0, %s441
      %s444 = sphi 0, %s443
      %s458 = sphi 0, %s444
      %s464 = sphi 0, %s466
      %s467 = sphi 0, %s464
      %s468 = sphi 0, %s467
      %s484 = sphi 0, %s468
    $region4: #{tpu_custom_call.1} parent=1 // loop_header_branch
      %32 = sbr.rel (%p30) target = $region8
    $region5: #{tpu_custom_call.1} parent=1 // loop_body
      %s34 = ssub.s32 %s29, 1
      %s35 = ssub.s32 %s29, 2
      %s36 = sadd.s32 %s29, 1
      %s37 = ssub.s32 %s29, %s36
      %p38 = scmp.eq.s32.totalorder %s37, 0
      %s40 = sadd.s32 %s39, 1
      %s41 = scalar_select %p38, %s39, %s40
      %p44 = pneg %p38
      %p45 = scmp.eq.s32.totalorder %s29, 1
      %p46 = por %p44, %p45
      %p47 = scmp.ne.s32.totalorder %s39, %s42
      %p48 = scmp.eq.s32.totalorder %s29, 0
      %p49 = por %p47, %p48
      %p50 = scmp.ne.s32.totalorder %s39, %s42
      %p51 = scmp.eq.s32.totalorder %s34, 1
      %p52 = por %p50, %p51
      %p53 = scmp.ne.s32.totalorder %s42, %s43
      %p54 = scmp.eq.s32.totalorder %s34, 0
      %p55 = por %p53, %p54
      %p56 = scmp.ne.s32.totalorder %s42, %s43
      %p57 = scmp.eq.s32.totalorder %s35, 1
      %p58 = por %p56, %p57
      %p60 = scmp.ne.s32.totalorder %s43, %s59
      %p61 = scmp.eq.s32.totalorder %s35, 0
      %p62 = por %p60, %p61
      %s64 = sadd.s32 %s63, 1
      %p67 = scmp.eq.s32.totalorder %s29, 1
      %p68 = scmp.ne.s32.totalorder %s63, %s65
      %p69 = scmp.eq.s32.totalorder %s29, 0
      %p70 = por %p68, %p69
      %p71 = scmp.ne.s32.totalorder %s63, %s65
      %p72 = scmp.eq.s32.totalorder %s34, 1
      %p73 = por %p71, %p72
      %p74 = scmp.ne.s32.totalorder %s65, %s66
      %p75 = scmp.eq.s32.totalorder %s34, 0
      %p76 = por %p74, %p75
      %p77 = scmp.ne.s32.totalorder %s65, %s66
      %p78 = scmp.eq.s32.totalorder %s35, 1
      %p79 = por %p77, %p78
      %p81 = scmp.ne.s32.totalorder %s66, %s80
      %p82 = scmp.eq.s32.totalorder %s35, 0
      %p83 = por %p81, %p82
      %s85 = sadd.s32 %s84, 1
      %p88 = scmp.eq.s32.totalorder %s29, 1
      %p89 = scmp.ne.s32.totalorder %s84, %s86
      %p90 = scmp.eq.s32.totalorder %s29, 0
      %p91 = por %p89, %p90
      %p92 = scmp.ne.s32.totalorder %s84, %s86
      %p93 = scmp.eq.s32.totalorder %s34, 1
      %p94 = por %p92, %p93
      %p95 = scmp.ne.s32.totalorder %s86, %s87
      %p96 = scmp.eq.s32.totalorder %s34, 0
      %p97 = por %p95, %p96
      %p98 = scmp.ne.s32.totalorder %s86, %s87
      %p99 = scmp.eq.s32.totalorder %s35, 1
      %p100 = por %p98, %p99
      %p102 = scmp.ne.s32.totalorder %s87, %s101
      %p103 = scmp.eq.s32.totalorder %s35, 0
      %p104 = por %p102, %p103
      %s106 = sadd.s32 %s105, 1
      %p109 = scmp.eq.s32.totalorder %s29, 1
      %p110 = scmp.ne.s32.totalorder %s105, %s107
      %p111 = scmp.eq.s32.totalorder %s29, 0
      %p112 = por %p110, %p111
      %p113 = scmp.ne.s32.totalorder %s105, %s107
      %p114 = scmp.eq.s32.totalorder %s34, 1
      %p115 = por %p113, %p114
      %p116 = scmp.ne.s32.totalorder %s107, %s108
      %p117 = scmp.eq.s32.totalorder %s34, 0
      %p118 = por %p116, %p117
      %p119 = scmp.ne.s32.totalorder %s107, %s108
      %p120 = scmp.eq.s32.totalorder %s35, 1
      %p121 = por %p119, %p120
      %p123 = scmp.ne.s32.totalorder %s108, %s122
      %p124 = scmp.eq.s32.totalorder %s35, 0
      %p125 = por %p123, %p124
      %s127 = sadd.s32 %s126, 1
      %p130 = scmp.eq.s32.totalorder %s29, 1
      %p131 = scmp.ne.s32.totalorder %s126, %s128
      %p132 = scmp.eq.s32.totalorder %s29, 0
      %p133 = por %p131, %p132
      %p134 = scmp.ne.s32.totalorder %s126, %s128
      %p135 = scmp.eq.s32.totalorder %s34, 1
      %p136 = por %p134, %p135
      %p137 = scmp.ne.s32.totalorder %s128, %s129
      %p138 = scmp.eq.s32.totalorder %s34, 0
      %p139 = por %p137, %p138
      %p140 = scmp.ne.s32.totalorder %s128, %s129
      %p141 = scmp.eq.s32.totalorder %s35, 1
      %p142 = por %p140, %p141
      %p144 = scmp.ne.s32.totalorder %s129, %s143
      %p145 = scmp.eq.s32.totalorder %s35, 0
      %p146 = por %p144, %p145
      %s148 = sadd.s32 %s147, 1
      %p151 = scmp.eq.s32.totalorder %s29, 1
      %p152 = scmp.ne.s32.totalorder %s147, %s149
      %p153 = scmp.eq.s32.totalorder %s29, 0
      %p154 = por %p152, %p153
      %p155 = scmp.ne.s32.totalorder %s147, %s149
      %p156 = scmp.eq.s32.totalorder %s34, 1
      %p157 = por %p155, %p156
      %p158 = scmp.ne.s32.totalorder %s149, %s150
      %p159 = scmp.eq.s32.totalorder %s34, 0
      %p160 = por %p158, %p159
      %p161 = scmp.ne.s32.totalorder %s149, %s150
      %p162 = scmp.eq.s32.totalorder %s35, 1
      %p163 = por %p161, %p162
      %p165 = scmp.ne.s32.totalorder %s150, %s164
      %p166 = scmp.eq.s32.totalorder %s35, 0
      %p167 = por %p165, %p166
      %s169 = sadd.s32 %s168, 1
      %p172 = scmp.eq.s32.totalorder %s29, 1
      %p173 = scmp.ne.s32.totalorder %s168, %s170
      %p174 = scmp.eq.s32.totalorder %s29, 0
      %p175 = por %p173, %p174
      %p176 = scmp.ne.s32.totalorder %s168, %s170
      %p177 = scmp.eq.s32.totalorder %s34, 1
      %p178 = por %p176, %p177
      %p179 = scmp.ne.s32.totalorder %s170, %s171
      %p180 = scmp.eq.s32.totalorder %s34, 0
      %p181 = por %p179, %p180
      %p182 = scmp.ne.s32.totalorder %s170, %s171
      %p183 = scmp.eq.s32.totalorder %s35, 1
      %p184 = por %p182, %p183
      %p186 = scmp.ne.s32.totalorder %s171, %s185
      %p187 = scmp.eq.s32.totalorder %s35, 0
      %p188 = por %p186, %p187
      %s190 = sadd.s32 %s189, 1
      %p193 = scmp.eq.s32.totalorder %s29, 1
      %p194 = scmp.ne.s32.totalorder %s189, %s191
      %p195 = scmp.eq.s32.totalorder %s29, 0
      %p196 = por %p194, %p195
      %p197 = scmp.ne.s32.totalorder %s189, %s191
      %p198 = scmp.eq.s32.totalorder %s34, 1
      %p199 = por %p197, %p198
      %p200 = scmp.ne.s32.totalorder %s191, %s192
      %p201 = scmp.eq.s32.totalorder %s34, 0
      %p202 = por %p200, %p201
      %p203 = scmp.ne.s32.totalorder %s191, %s192
      %p204 = scmp.eq.s32.totalorder %s35, 1
      %p205 = por %p203, %p204
      %p207 = scmp.ne.s32.totalorder %s192, %s206
      %p208 = scmp.eq.s32.totalorder %s35, 0
      %p209 = por %p207, %p208
      %s211 = sadd.s32 %s210, 1
      %p214 = scmp.eq.s32.totalorder %s29, 1
      %p215 = scmp.ne.s32.totalorder %s210, %s212
      %p216 = scmp.eq.s32.totalorder %s29, 0
      %p217 = por %p215, %p216
      %p218 = scmp.ne.s32.totalorder %s210, %s212
      %p219 = scmp.eq.s32.totalorder %s34, 1
      %p220 = por %p218, %p219
      %p221 = scmp.ne.s32.totalorder %s212, %s213
      %p222 = scmp.eq.s32.totalorder %s34, 0
      %p223 = por %p221, %p222
      %p224 = scmp.ne.s32.totalorder %s212, %s213
      %p225 = scmp.eq.s32.totalorder %s35, 1
      %p226 = por %p224, %p225
      %p228 = scmp.ne.s32.totalorder %s213, %s227
      %p229 = scmp.eq.s32.totalorder %s35, 0
      %p230 = por %p228, %p229
      %s232 = sadd.s32 %s231, 1
      %p235 = scmp.eq.s32.totalorder %s29, 1
      %p236 = scmp.ne.s32.totalorder %s231, %s233
      %p237 = scmp.eq.s32.totalorder %s29, 0
      %p238 = por %p236, %p237
      %p239 = scmp.ne.s32.totalorder %s231, %s233
      %p240 = scmp.eq.s32.totalorder %s34, 1
      %p241 = por %p239, %p240
      %p242 = scmp.ne.s32.totalorder %s233, %s234
      %p243 = scmp.eq.s32.totalorder %s34, 0
      %p244 = por %p242, %p243
      %p245 = scmp.ne.s32.totalorder %s233, %s234
      %p246 = scmp.eq.s32.totalorder %s35, 1
      %p247 = por %p245, %p246
      %p249 = scmp.ne.s32.totalorder %s234, %s248
      %p250 = scmp.eq.s32.totalorder %s35, 0
      %p251 = por %p249, %p250
      %s253 = sadd.s32 %s252, 1
      %p256 = scmp.eq.s32.totalorder %s29, 1
      %p257 = scmp.ne.s32.totalorder %s252, %s254
      %p258 = scmp.eq.s32.totalorder %s29, 0
      %p259 = por %p257, %p258
      %p260 = scmp.ne.s32.totalorder %s252, %s254
      %p261 = scmp.eq.s32.totalorder %s34, 1
      %p262 = por %p260, %p261
      %p263 = scmp.ne.s32.totalorder %s254, %s255
      %p264 = scmp.eq.s32.totalorder %s34, 0
      %p265 = por %p263, %p264
      %p266 = scmp.ne.s32.totalorder %s254, %s255
      %p267 = scmp.eq.s32.totalorder %s35, 1
      %p268 = por %p266, %p267
      %p270 = scmp.ne.s32.totalorder %s255, %s269
      %p271 = scmp.eq.s32.totalorder %s35, 0
      %p272 = por %p270, %p271
      %s274 = sadd.s32 %s273, 1
      %p277 = scmp.eq.s32.totalorder %s29, 1
      %p278 = scmp.ne.s32.totalorder %s273, %s275
      %p279 = scmp.eq.s32.totalorder %s29, 0
      %p280 = por %p278, %p279
      %p281 = scmp.ne.s32.totalorder %s273, %s275
      %p282 = scmp.eq.s32.totalorder %s34, 1
      %p283 = por %p281, %p282
      %p284 = scmp.ne.s32.totalorder %s275, %s276
      %p285 = scmp.eq.s32.totalorder %s34, 0
      %p286 = por %p284, %p285
      %p287 = scmp.ne.s32.totalorder %s275, %s276
      %p288 = scmp.eq.s32.totalorder %s35, 1
      %p289 = por %p287, %p288
      %p291 = scmp.ne.s32.totalorder %s276, %s290
      %p292 = scmp.eq.s32.totalorder %s35, 0
      %p293 = por %p291, %p292
      %s295 = sadd.s32 %s294, 1
      %p298 = scmp.eq.s32.totalorder %s29, 1
      %p299 = scmp.ne.s32.totalorder %s294, %s296
      %p300 = scmp.eq.s32.totalorder %s29, 0
      %p301 = por %p299, %p300
      %p302 = scmp.ne.s32.totalorder %s294, %s296
      %p303 = scmp.eq.s32.totalorder %s34, 1
      %p304 = por %p302, %p303
      %p305 = scmp.ne.s32.totalorder %s296, %s297
      %p306 = scmp.eq.s32.totalorder %s34, 0
      %p307 = por %p305, %p306
      %p308 = scmp.ne.s32.totalorder %s296, %s297
      %p309 = scmp.eq.s32.totalorder %s35, 1
      %p310 = por %p308, %p309
      %p312 = scmp.ne.s32.totalorder %s297, %s311
      %p313 = scmp.eq.s32.totalorder %s35, 0
      %p314 = por %p312, %p313
      %s316 = sadd.s32 %s315, 1
      %p319 = scmp.eq.s32.totalorder %s29, 1
      %p320 = scmp.ne.s32.totalorder %s315, %s317
      %p321 = scmp.eq.s32.totalorder %s29, 0
      %p322 = por %p320, %p321
      %p323 = scmp.ne.s32.totalorder %s315, %s317
      %p324 = scmp.eq.s32.totalorder %s34, 1
      %p325 = por %p323, %p324
      %p326 = scmp.ne.s32.totalorder %s317, %s318
      %p327 = scmp.eq.s32.totalorder %s34, 0
      %p328 = por %p326, %p327
      %p329 = scmp.ne.s32.totalorder %s317, %s318
      %p330 = scmp.eq.s32.totalorder %s35, 1
      %p331 = por %p329, %p330
      %p333 = scmp.ne.s32.totalorder %s318, %s332
      %p334 = scmp.eq.s32.totalorder %s35, 0
      %p335 = por %p333, %p334
      %s337 = sadd.s32 %s336, 1
      %p340 = scmp.eq.s32.totalorder %s29, 1
      %p341 = scmp.ne.s32.totalorder %s336, %s338
      %p342 = scmp.eq.s32.totalorder %s29, 0
      %p343 = por %p341, %p342
      %p344 = scmp.ne.s32.totalorder %s336, %s338
      %p345 = scmp.eq.s32.totalorder %s34, 1
      %p346 = por %p344, %p345
      %p347 = scmp.ne.s32.totalorder %s338, %s339
      %p348 = scmp.eq.s32.totalorder %s34, 0
      %p349 = por %p347, %p348
      %p350 = scmp.ne.s32.totalorder %s338, %s339
      %p351 = scmp.eq.s32.totalorder %s35, 1
      %p352 = por %p350, %p351
      %p354 = scmp.ne.s32.totalorder %s339, %s353
      %p355 = scmp.eq.s32.totalorder %s35, 0
      %p356 = por %p354, %p355
      %s358 = sadd.s32 %s357, 1
      %p361 = scmp.eq.s32.totalorder %s29, 1
      %p362 = scmp.ne.s32.totalorder %s357, %s359
      %p363 = scmp.eq.s32.totalorder %s29, 0
      %p364 = por %p362, %p363
      %p365 = scmp.ne.s32.totalorder %s357, %s359
      %p366 = scmp.eq.s32.totalorder %s34, 1
      %p367 = por %p365, %p366
      %p368 = scmp.ne.s32.totalorder %s359, %s360
      %p369 = scmp.eq.s32.totalorder %s34, 0
      %p370 = por %p368, %p369
      %p371 = scmp.ne.s32.totalorder %s359, %s360
      %p372 = scmp.eq.s32.totalorder %s35, 1
      %p373 = por %p371, %p372
      %p375 = scmp.ne.s32.totalorder %s360, %s374
      %p376 = scmp.eq.s32.totalorder %s35, 0
      %p377 = por %p375, %p376
      %s379 = sadd.s32 %s378, 1
      %p382 = scmp.eq.s32.totalorder %s29, 1
      %p383 = scmp.ne.s32.totalorder %s378, %s380
      %p384 = scmp.eq.s32.totalorder %s29, 0
      %p385 = por %p383, %p384
      %p386 = scmp.ne.s32.totalorder %s378, %s380
      %p387 = scmp.eq.s32.totalorder %s34, 1
      %p388 = por %p386, %p387
      %p389 = scmp.ne.s32.totalorder %s380, %s381
      %p390 = scmp.eq.s32.totalorder %s34, 0
      %p391 = por %p389, %p390
      %p392 = scmp.ne.s32.totalorder %s380, %s381
      %p393 = scmp.eq.s32.totalorder %s35, 1
      %p394 = por %p392, %p393
      %p396 = scmp.ne.s32.totalorder %s381, %s395
      %p397 = scmp.eq.s32.totalorder %s35, 0
      %p398 = por %p396, %p397
      %s400 = sadd.s32 %s399, 1
      %p403 = scmp.eq.s32.totalorder %s29, 1
      %p404 = scmp.ne.s32.totalorder %s399, %s401
      %p405 = scmp.eq.s32.totalorder %s29, 0
      %p406 = por %p404, %p405
      %p407 = scmp.ne.s32.totalorder %s399, %s401
      %p408 = scmp.eq.s32.totalorder %s34, 1
      %p409 = por %p407, %p408
      %p410 = scmp.ne.s32.totalorder %s401, %s402
      %p411 = scmp.eq.s32.totalorder %s34, 0
      %p412 = por %p410, %p411
      %p413 = scmp.ne.s32.totalorder %s401, %s402
      %p414 = scmp.eq.s32.totalorder %s35, 1
      %p415 = por %p413, %p414
      %p417 = scmp.ne.s32.totalorder %s402, %s416
      %p418 = scmp.eq.s32.totalorder %s35, 0
      %p419 = por %p417, %p418
      %s421 = sadd.s32 %s420, 1
      %p424 = scmp.eq.s32.totalorder %s29, 1
      %p425 = scmp.ne.s32.totalorder %s420, %s422
      %p426 = scmp.eq.s32.totalorder %s29, 0
      %p427 = por %p425, %p426
      %p428 = scmp.ne.s32.totalorder %s420, %s422
      %p429 = scmp.eq.s32.totalorder %s34, 1
      %p430 = por %p428, %p429
      %p431 = scmp.ne.s32.totalorder %s422, %s423
      %p432 = scmp.eq.s32.totalorder %s34, 0
      %p433 = por %p431, %p432
      %p434 = scmp.ne.s32.totalorder %s422, %s423
      %p435 = scmp.eq.s32.totalorder %s35, 1
      %p436 = por %p434, %p435
      %p438 = scmp.ne.s32.totalorder %s423, %s437
      %p439 = scmp.eq.s32.totalorder %s35, 0
      %p440 = por %p438, %p439
      %s442 = sadd.s32 %s441, 1
      %p445 = scmp.eq.s32.totalorder %s29, 1
      %p446 = scmp.ne.s32.totalorder %s441, %s443
      %p447 = scmp.eq.s32.totalorder %s29, 0
      %p448 = por %p446, %p447
      %p449 = scmp.ne.s32.totalorder %s441, %s443
      %p450 = scmp.eq.s32.totalorder %s34, 1
      %p451 = por %p449, %p450
      %p452 = scmp.ne.s32.totalorder %s443, %s444
      %p453 = scmp.eq.s32.totalorder %s34, 0
      %p454 = por %p452, %p453
      %p455 = scmp.ne.s32.totalorder %s443, %s444
      %p456 = scmp.eq.s32.totalorder %s35, 1
      %p457 = por %p455, %p456
      %p459 = scmp.ne.s32.totalorder %s444, %s458
      %p460 = scmp.eq.s32.totalorder %s35, 0
      %p461 = por %p459, %p460
      %s462 = ssub.s32 %s29, %s36
      %p463 = scmp.eq.s32.totalorder %s462, 0
      %s465 = sadd.s32 %s464, 1
      %s466 = scalar_select %p463, %s464, %s465
      %p469 = pneg %p463
      %p470 = scmp.eq.s32.totalorder %s29, 1
      %p471 = por %p469, %p470
      %p472 = scmp.ne.s32.totalorder %s464, %s467
      %p473 = scmp.eq.s32.totalorder %s29, 0
      %p474 = por %p472, %p473
      %p475 = scmp.ne.s32.totalorder %s464, %s467
      %p476 = scmp.eq.s32.totalorder %s34, 1
      %p477 = por %p475, %p476
      %p478 = scmp.ne.s32.totalorder %s467, %s468
      %p479 = scmp.eq.s32.totalorder %s34, 0
      %p480 = por %p478, %p479
      %p481 = scmp.ne.s32.totalorder %s467, %s468
      %p482 = scmp.eq.s32.totalorder %s35, 1
      %p483 = por %p481, %p482
      %p485 = scmp.ne.s32.totalorder %s468, %s484
      %p486 = scmp.eq.s32.totalorder %s35, 0
      %p487 = por %p485, %p486
      %p488 = scmp.le.s32.totalorder 1, %s29
      %p489 = scmp.lt.s32.totalorder %s29, 3
      %p490 = pnand %p488, %p489
      %p491 = pneg %p490
      // Predicated region
      $region9: #{tpu_custom_call.1} parent=5 // pred_check
        _
      $region10: #{tpu_custom_call.1} parent=5 // pred_check_branch
        %493 = sbr.rel (%p490) target = $region12
      $region11: #{tpu_custom_call.1} parent=5 // pred_region
        %s494 = ssub.s32 %s29, 1
        // Predicated region
        $region13: #{tpu_custom_call.1} parent=11 // pred_check
          %p495 = pneg %p76
        $region14: #{tpu_custom_call.1} parent=11 // pred_check_branch
          %497 = sbr.rel (%p495) target = $region16
        $region15: #{tpu_custom_call.1} parent=11 // pred_region
          _
        $region16: #{tpu_custom_call.1} parent=11 // pred_fallthru
          _
        // Predicated region
        $region17: #{tpu_custom_call.1} parent=11 // pred_check
          %p498 = pneg %p97
        $region18: #{tpu_custom_call.1} parent=11 // pred_check_branch
          %500 = sbr.rel (%p498) target = $region20
        $region19: #{tpu_custom_call.1} parent=11 // pred_region
          _
        $region20: #{tpu_custom_call.1} parent=11 // pred_fallthru
          _
        // Predicated region
        $region21: #{tpu_custom_call.1} parent=11 // pred_check
          %p501 = pneg %p118
        $region22: #{tpu_custom_call.1} parent=11 // pred_check_branch
          %503 = sbr.rel (%p501) target = $region24
        $region23: #{tpu_custom_call.1} parent=11 // pred_region
          _
        $region24: #{tpu_custom_call.1} parent=11 // pred_fallthru
          _
        // Predicated region
        $region25: #{tpu_custom_call.1} parent=11 // pred_check
          %p504 = pneg %p139
        $region26: #{tpu_custom_call.1} parent=11 // pred_check_branch
          %506 = sbr.rel (%p504) target = $region28
        $region27: #{tpu_custom_call.1} parent=11 // pred_region
          _
        $region28: #{tpu_custom_call.1} parent=11 // pred_fallthru
          _
        // Predicated region
        $region29: #{tpu_custom_call.1} parent=11 // pred_check
          %p507 = pneg %p160
        $region30: #{tpu_custom_call.1} parent=11 // pred_check_branch
          %509 = sbr.rel (%p507) target = $region32
        $region31: #{tpu_custom_call.1} parent=11 // pred_region
          _
        $region32: #{tpu_custom_call.1} parent=11 // pred_fallthru
          _
        // Predicated region
        $region33: #{tpu_custom_call.1} parent=11 // pred_check
          %p510 = pneg %p181
        $region34: #{tpu_custom_call.1} parent=11 // pred_check_branch
          %512 = sbr.rel (%p510) target = $region36
        $region35: #{tpu_custom_call.1} parent=11 // pred_region
          _
        $region36: #{tpu_custom_call.1} parent=11 // pred_fallthru
          _
        // Predicated region
        $region37: #{tpu_custom_call.1} parent=11 // pred_check
          %p513 = pneg %p202
        $region38: #{tpu_custom_call.1} parent=11 // pred_check_branch
          %515 = sbr.rel (%p513) target = $region40
        $region39: #{tpu_custom_call.1} parent=11 // pred_region
          _
        $region40: #{tpu_custom_call.1} parent=11 // pred_fallthru
          _
        // Predicated region
        $region41: #{tpu_custom_call.1} parent=11 // pred_check
          %p516 = pneg %p223
        $region42: #{tpu_custom_call.1} parent=11 // pred_check_branch
          %518 = sbr.rel (%p516) target = $region44
        $region43: #{tpu_custom_call.1} parent=11 // pred_region
          _
        $region44: #{tpu_custom_call.1} parent=11 // pred_fallthru
          _
        // Predicated region
        $region45: #{tpu_custom_call.1} parent=11 // pred_check
          %p519 = pneg %p244
        $region46: #{tpu_custom_call.1} parent=11 // pred_check_branch
          %521 = sbr.rel (%p519) target = $region48
        $region47: #{tpu_custom_call.1} parent=11 // pred_region
          _
        $region48: #{tpu_custom_call.1} parent=11 // pred_fallthru
          _
        // Predicated region
        $region49: #{tpu_custom_call.1} parent=11 // pred_check
          %p522 = pneg %p265
        $region50: #{tpu_custom_call.1} parent=11 // pred_check_branch
          %524 = sbr.rel (%p522) target = $region52
        $region51: #{tpu_custom_call.1} parent=11 // pred_region
          _
        $region52: #{tpu_custom_call.1} parent=11 // pred_fallthru
          _
        // Predicated region
        $region53: #{tpu_custom_call.1} parent=11 // pred_check
          %p525 = pneg %p286
        $region54: #{tpu_custom_call.1} parent=11 // pred_check_branch
          %527 = sbr.rel (%p525) target = $region56
        $region55: #{tpu_custom_call.1} parent=11 // pred_region
          _
        $region56: #{tpu_custom_call.1} parent=11 // pred_fallthru
          _
        // Predicated region
        $region57: #{tpu_custom_call.1} parent=11 // pred_check
          %p528 = pneg %p307
        $region58: #{tpu_custom_call.1} parent=11 // pred_check_branch
          %530 = sbr.rel (%p528) target = $region60
        $region59: #{tpu_custom_call.1} parent=11 // pred_region
          _
        $region60: #{tpu_custom_call.1} parent=11 // pred_fallthru
          _
        // Predicated region
        $region61: #{tpu_custom_call.1} parent=11 // pred_check
          %p531 = pneg %p328
        $region62: #{tpu_custom_call.1} parent=11 // pred_check_branch
          %533 = sbr.rel (%p531) target = $region64
        $region63: #{tpu_custom_call.1} parent=11 // pred_region
          _
        $region64: #{tpu_custom_call.1} parent=11 // pred_fallthru
          _
        // Predicated region
        $region65: #{tpu_custom_call.1} parent=11 // pred_check
          %p534 = pneg %p349
        $region66: #{tpu_custom_call.1} parent=11 // pred_check_branch
          %536 = sbr.rel (%p534) target = $region68
        $region67: #{tpu_custom_call.1} parent=11 // pred_region
          _
        $region68: #{tpu_custom_call.1} parent=11 // pred_fallthru
          _
        // Predicated region
        $region69: #{tpu_custom_call.1} parent=11 // pred_check
          %p537 = pneg %p370
        $region70: #{tpu_custom_call.1} parent=11 // pred_check_branch
          %539 = sbr.rel (%p537) target = $region72
        $region71: #{tpu_custom_call.1} parent=11 // pred_region
          _
        $region72: #{tpu_custom_call.1} parent=11 // pred_fallthru
          _
        // Predicated region
        $region73: #{tpu_custom_call.1} parent=11 // pred_check
          %p540 = pneg %p391
        $region74: #{tpu_custom_call.1} parent=11 // pred_check_branch
          %542 = sbr.rel (%p540) target = $region76
        $region75: #{tpu_custom_call.1} parent=11 // pred_region
          _
        $region76: #{tpu_custom_call.1} parent=11 // pred_fallthru
          _
        // Predicated region
        $region77: #{tpu_custom_call.1} parent=11 // pred_check
          %p543 = pneg %p412
        $region78: #{tpu_custom_call.1} parent=11 // pred_check_branch
          %545 = sbr.rel (%p543) target = $region80
        $region79: #{tpu_custom_call.1} parent=11 // pred_region
          _
        $region80: #{tpu_custom_call.1} parent=11 // pred_fallthru
          _
        // Predicated region
        $region81: #{tpu_custom_call.1} parent=11 // pred_check
          %p546 = pneg %p433
        $region82: #{tpu_custom_call.1} parent=11 // pred_check_branch
          %548 = sbr.rel (%p546) target = $region84
        $region83: #{tpu_custom_call.1} parent=11 // pred_region
          _
        $region84: #{tpu_custom_call.1} parent=11 // pred_fallthru
          _
        // Predicated region
        $region85: #{tpu_custom_call.1} parent=11 // pred_check
          %p549 = pneg %p454
        $region86: #{tpu_custom_call.1} parent=11 // pred_check_branch
          %551 = sbr.rel (%p549) target = $region88
        $region87: #{tpu_custom_call.1} parent=11 // pred_region
          _
        $region88: #{tpu_custom_call.1} parent=11 // pred_fallthru
          _
      $region12: #{tpu_custom_call.1} parent=5 // pred_fallthru
        _
      %p552 = scmp.lt.s32.totalorder %s29, 2
      // Predicated region
      $region89: #{tpu_custom_call.1} parent=5 // pred_check
        %p553 = pneg %p552
      $region90: #{tpu_custom_call.1} parent=5 // pred_check_branch
        %555 = sbr.rel (%p553) target = $region92
      $region91: #{tpu_custom_call.1} parent=5 // pred_region
        // Predicated region
        $region93: #{tpu_custom_call.1} parent=91 // pred_check
          %p556 = pneg %p49
        $region94: #{tpu_custom_call.1} parent=91 // pred_check_branch
          %558 = sbr.rel (%p556) target = $region96
        $region95: #{tpu_custom_call.1} parent=91 // pred_region
          %p559 = scmp.lt.s32.totalorder %s29, 1
          %s560 = scalar_select %p559, %s29, 1
          %s561 = smul.addr %s560, 8
          %s562 = smul.addr %s561, 8
          %s563 = scalar_lea.vmem %s0, %s562
        $region96: #{tpu_custom_call.1} parent=91 // pred_fallthru
          _
      $region92: #{tpu_custom_call.1} parent=5 // pred_fallthru
        _
      %p564 = scmp.le.s32.totalorder 1, %s29
      %p565 = scmp.lt.s32.totalorder %s29, 3
      %p566 = pnand %p564, %p565
      %p567 = pneg %p566
      // Predicated region
      $region97: #{tpu_custom_call.1} parent=5 // pred_check
        _
      $region98: #{tpu_custom_call.1} parent=5 // pred_check_branch
        %569 = sbr.rel (%p566) target = $region100
      $region99: #{tpu_custom_call.1} parent=5 // pred_region
        %s570 = ssub.s32 %s29, 1
        %p571 = scmp.lt.s32.totalorder %s34, 1
        %s572 = scalar_select %p571, %s34, 1
        %s573 = smul.addr %s572, 8
        %s574 = smul.addr %s573, 8
        %s575 = scalar_lea.vmem %s0, %s574
        %p576 = pneg %p55
        %p577 = pneg %p52
        %p578 = pneg %p76
        %p579 = pneg %p73
        %p580 = pneg %p97
        %p581 = pneg %p94
        %p582 = pneg %p118
        %p583 = pneg %p115
        %p584 = pneg %p139
        %p585 = pneg %p136
        %p586 = pneg %p160
        %p587 = pneg %p157
        %p588 = pneg %p181
        %p589 = pneg %p178
        %p590 = pneg %p202
        %p591 = pneg %p199
        %p592 = pneg %p223
        %p593 = pneg %p220
        %p594 = pneg %p244
        %p595 = pneg %p241
        %p596 = pneg %p265
        %p597 = pneg %p262
        %p598 = pneg %p286
        %p599 = pneg %p283
        %p600 = pneg %p307
        %p601 = pneg %p304
        %p602 = pneg %p328
        %p603 = pneg %p325
        %p604 = pneg %p349
        %p605 = pneg %p346
        %p606 = pneg %p370
        %p607 = pneg %p367
        %p608 = pneg %p391
        %p609 = pneg %p388
        %p610 = pneg %p412
        %p611 = pneg %p409
        %p612 = pneg %p433
        %p613 = pneg %p430
        %p614 = pneg %p454
        %p615 = pneg %p451
        %p616 = pneg %p480
        %p617 = pneg %p477
        %s618 = sand.u32 %s467, 1
        %s619 = scalar_lea.sflag [#allocation3], %s618
        %s620 = sand.u32 %s467, 1
        %s621 = smul.addr %s620, 64
        %s622 = scalar_lea.vmem [#allocation2], %s621
        %p623 = scmp.lt.s32.totalorder %s34, 1
        %s624 = scalar_select %p623, %s34, 1
        %s625 = smul.addr %s624, 8
        %s626 = smul.addr %s625, 8
        %s627 = scalar_lea.vmem %s0, %s626
        %v628 = vld [vmem:[%s627] sm:$0xff]
        %v629 = vld [vmem:[%s627 + $0x8] sm:$0xff]
        %v630 = vld [vmem:[%s627 + $0x10] sm:$0xff]
        %v631 = vld [vmem:[%s627 + $0x18] sm:$0xff]
        %v632 = vld [vmem:[%s627 + $0x20] sm:$0xff]
        %v633 = vld [vmem:[%s627 + $0x28] sm:$0xff]
        %v634 = vld [vmem:[%s627 + $0x30] sm:$0xff]
        %v635 = vld [vmem:[%s627 + $0x38] sm:$0xff]
        %v636 = vld [vmem:[%s3] sm:$0xff]
        %v637 = vld [vmem:[%s3 + $0x8] sm:$0xff]
        %v638 = vld [vmem:[%s3 + $0x10] sm:$0xff]
        %v639 = vld [vmem:[%s3 + $0x18] sm:$0xff]
        %v640 = vld [vmem:[%s4] sm:$0xff]
        %v641 = vld [vmem:[%s4 + $0x8] sm:$0xff]
        %v642 = vld [vmem:[%s4 + $0x10] sm:$0xff]
        %v643 = vld [vmem:[%s4 + $0x18] sm:$0xff]
        %645 = vset.pattern.permute.xlu0 0
        %646 = vperm.xlu0 %645, %v640
        %v647 = vpop.permute.xlu0 %646
        %650 = vset.pattern.permute.xlu0 0
        %651 = vperm.xlu0 %650, %v641
        %v652 = vpop.permute.xlu0 %651
        %655 = vset.pattern.permute.xlu0 0
        %656 = vperm.xlu0 %655, %v642
        %v657 = vpop.permute.xlu0 %656
        %660 = vset.pattern.permute.xlu0 0
        %661 = vperm.xlu0 %660, %v643
        %v662 = vpop.permute.xlu0 %661
        %vm664 = vcmask 261120
        %v666 = vsel %vm664, %v636, 0
        %v669 = vsel %vm664, %v637, 0
        %v672 = vsel %vm664, %v638, 0
        %v675 = vsel %vm664, %v639, 0
        %677 = vmatpush.msra.mxu0 0.0
        %678 = vmatpush.msra.mxu0 0.0
        %679 = vmatpush.msra.mxu0 0.0
        %680 = vmatpush.msra.mxu0 0.0
        %681 = vmatpush.msra.mxu0 0.0
        %682 = vmatpush.msra.mxu0 0.0
        %683 = vmatpush.msra.mxu0 0.0
        %684 = vmatpush.msra.mxu0 0.0
        %685 = vmatpush.msra.mxu0 0.0
        %686 = vmatpush.msra.mxu0 0.0
        %687 = vmatpush.msra.mxu0 0.0
        %688 = vmatpush.msra.mxu0 0.0
        %689 = vmatpush.msra.mxu0 %v634
        %690 = vmatpush.msra.mxu0 %v632
        %691 = vmatpush.msra.mxu0 %v630
        %692 = vmatpush.msra.mxu0 %v628
        %693 = vmatmul.f32.gmra.mxu0 %v666
        %v694 = vpop.f32.mrf.mxu0
        %v695 = vadd.f32 %v647, %v694
        %696 = vmatmul.f32.gmra.mxu0 %v669
        %v697 = vpop.f32.mrf.mxu0
        %v698 = vadd.f32 %v652, %v697
        %699 = vmatmul.f32.gmra.mxu0 %v672
        %v700 = vpop.f32.mrf.mxu0
        %v701 = vadd.f32 %v657, %v700
        %702 = vmatmul.f32.gmra.mxu0 %v675
        %v703 = vpop.f32.mrf.mxu0
        %v704 = vadd.f32 %v662, %v703
        %705 = vdwg.mxu0
        %706 = vmatpush.msra.mxu0 0.0
        %707 = vmatpush.msra.mxu0 0.0
        %708 = vmatpush.msra.mxu0 0.0
        %709 = vmatpush.msra.mxu0 0.0
        %710 = vmatpush.msra.mxu0 0.0
        %711 = vmatpush.msra.mxu0 0.0
        %712 = vmatpush.msra.mxu0 0.0
        %713 = vmatpush.msra.mxu0 0.0
        %714 = vmatpush.msra.mxu0 0.0
        %715 = vmatpush.msra.mxu0 0.0
        %716 = vmatpush.msra.mxu0 0.0
        %717 = vmatpush.msra.mxu0 0.0
        %718 = vmatpush.msra.mxu0 %v635
        %719 = vmatpush.msra.mxu0 %v633
        %720 = vmatpush.msra.mxu0 %v631
        %721 = vmatpush.msra.mxu0 %v629
        %722 = vmatmul.f32.gmra.mxu0 %v666
        %v723 = vpop.f32.mrf.mxu0
        %v724 = vadd.f32 %v647, %v723
        %725 = vmatmul.f32.gmra.mxu0 %v669
        %v726 = vpop.f32.mrf.mxu0
        %v727 = vadd.f32 %v652, %v726
        %728 = vmatmul.f32.gmra.mxu0 %v672
        %v729 = vpop.f32.mrf.mxu0
        %v730 = vadd.f32 %v657, %v729
        %731 = vmatmul.f32.gmra.mxu0 %v675
        %v732 = vpop.f32.mrf.mxu0
        %v733 = vadd.f32 %v662, %v732
        %734 = vdwg.mxu0
        %v735 = vadd.f32 %v695, %v698
        %v736 = vadd.f32 %v735, %v701
        %v737 = vadd.f32 %v736, %v704
        %v738 = vrot.slane %v737, 4
        %v739 = vadd.f32 %v737, %v738
        %v740 = vrot.slane %v739, 2
        %v741 = vadd.f32 %v739, %v740
        %v742 = vrot.slane %v741, 1
        %v743 = vadd.f32 %v741, %v742
        %v744 = vadd.f32 %v724, %v727
        %v745 = vadd.f32 %v744, %v730
        %v746 = vadd.f32 %v745, %v733
        %v747 = vrot.slane %v746, 4
        %v748 = vadd.f32 %v746, %v747
        %v749 = vrot.slane %v748, 2
        %v750 = vadd.f32 %v748, %v749
        %v751 = vrot.slane %v750, 1
        %v752 = vadd.f32 %v750, %v751
        %v753 = vrcp.pop 32.0
        %v754 = vmul.f32 32.0, %v753
        %v755 = vsub.f32 1.0, %v754
        %v756 = vmul.f32 %v753, %v755
        %v757 = vadd.f32 %v753, %v756
        %vm758 = vweird.f32 %v753
        %v759 = vsel %vm758, %v753, %v757
        %v760 = vmul.f32 %v743, %v759
        %v761 = vmul.f32 %v752, %v759
        %v762 = vsub.f32 %v695, %v760
        %v763 = vsub.f32 %v724, %v761
        %v764 = vsub.f32 %v698, %v760
        %v765 = vsub.f32 %v727, %v761
        %v766 = vsub.f32 %v701, %v760
        %v767 = vsub.f32 %v730, %v761
        %v768 = vsub.f32 %v704, %v760
        %v769 = vsub.f32 %v733, %v761
        %v770 = vmul.f32 %v762, %v762
        %v771 = vmul.f32 %v763, %v763
        %v772 = vmul.f32 %v764, %v764
        %v773 = vmul.f32 %v765, %v765
        %v774 = vmul.f32 %v766, %v766
        %v775 = vmul.f32 %v767, %v767
        %v776 = vmul.f32 %v768, %v768
        %v777 = vmul.f32 %v769, %v769
        %v778 = vadd.f32 %v770, %v772
        %v779 = vadd.f32 %v778, %v774
        %v780 = vadd.f32 %v779, %v776
        %v781 = vrot.slane %v780, 4
        %v782 = vadd.f32 %v780, %v781
        %v783 = vrot.slane %v782, 2
        %v784 = vadd.f32 %v782, %v783
        %v785 = vrot.slane %v784, 1
        %v786 = vadd.f32 %v784, %v785
        %v787 = vadd.f32 %v771, %v773
        %v788 = vadd.f32 %v787, %v775
        %v789 = vadd.f32 %v788, %v777
        %v790 = vrot.slane %v789, 4
        %v791 = vadd.f32 %v789, %v790
        %v792 = vrot.slane %v791, 2
        %v793 = vadd.f32 %v791, %v792
        %v794 = vrot.slane %v793, 1
        %v795 = vadd.f32 %v793, %v794
        %v796 = vmul.f32 %v786, %v759
        %v797 = vmul.f32 %v795, %v759
        %v798 = vadd.f32 %v796, 1e-05
        %v799 = vadd.f32 %v797, 1e-05
        %v800 = vrsqrt.pop %v798
        %v801 = vmul.f32 %v800, %v798
        %v802 = vmul.f32 %v801, %v800
        %v803 = vmul.f32 0.5, %v802
        %v804 = vsub.f32 1.5, %v803
        %v805 = vmul.f32 %v800, %v804
        %vm806 = vweird.f32 %v798
        %vm807 = vweird.f32 %v800
        %vm808 = vmor %vm806, %vm807
        %v809 = vsel %vm808, %v800, %v805
        %v810 = vrsqrt.pop %v799
        %v811 = vmul.f32 %v810, %v799
        %v812 = vmul.f32 %v811, %v810
        %v813 = vmul.f32 0.5, %v812
        %v814 = vsub.f32 1.5, %v813
        %v815 = vmul.f32 %v810, %v814
        %vm816 = vweird.f32 %v799
        %vm817 = vweird.f32 %v810
        %vm818 = vmor %vm816, %vm817
        %v819 = vsel %vm818, %v810, %v815
        %v820 = vmul.f32 %v762, %v809
        %v821 = vmul.f32 %v763, %v819
        %v822 = vmul.f32 %v764, %v809
        %v823 = vmul.f32 %v765, %v819
        %v824 = vmul.f32 %v766, %v809
        %v825 = vmul.f32 %v767, %v819
        %v826 = vmul.f32 %v768, %v809
        %v827 = vmul.f32 %v769, %v819
        %v828 = vld [vmem:[%s5] sm:$0xff]
        %v829 = vld [vmem:[%s5 + $0x8] sm:$0xff]
        %v830 = vld [vmem:[%s5 + $0x10] sm:$0xff]
        %v831 = vld [vmem:[%s5 + $0x18] sm:$0xff]
        %833 = vset.pattern.permute.xlu0 0
        %834 = vperm.xlu0 %833, %v828
        %v835 = vpop.permute.xlu0 %834
        %838 = vset.pattern.permute.xlu0 0
        %839 = vperm.xlu0 %838, %v829
        %v840 = vpop.permute.xlu0 %839
        %843 = vset.pattern.permute.xlu0 0
        %844 = vperm.xlu0 %843, %v830
        %v845 = vpop.permute.xlu0 %844
        %848 = vset.pattern.permute.xlu0 0
        %849 = vperm.xlu0 %848, %v831
        %v850 = vpop.permute.xlu0 %849
        %v852 = vmul.f32 %v820, %v835
        %v853 = vmul.f32 %v821, %v835
        %v854 = vmul.f32 %v822, %v840
        %v855 = vmul.f32 %v823, %v840
        %v856 = vmul.f32 %v824, %v845
        %v857 = vmul.f32 %v825, %v845
        %v858 = vmul.f32 %v826, %v850
        %v859 = vmul.f32 %v827, %v850
        %v860 = vld [vmem:[%s6] sm:$0xff]
        %v861 = vld [vmem:[%s6 + $0x8] sm:$0xff]
        %v862 = vld [vmem:[%s6 + $0x10] sm:$0xff]
        %v863 = vld [vmem:[%s6 + $0x18] sm:$0xff]
        %865 = vset.pattern.permute.xlu0 0
        %866 = vperm.xlu0 %865, %v860
        %v867 = vpop.permute.xlu0 %866
        %870 = vset.pattern.permute.xlu0 0
        %871 = vperm.xlu0 %870, %v861
        %v872 = vpop.permute.xlu0 %871
        %875 = vset.pattern.permute.xlu0 0
        %876 = vperm.xlu0 %875, %v862
        %v877 = vpop.permute.xlu0 %876
        %880 = vset.pattern.permute.xlu0 0
        %881 = vperm.xlu0 %880, %v863
        %v882 = vpop.permute.xlu0 %881
        %v884 = vadd.f32 %v852, %v867
        %v885 = vadd.f32 %v853, %v867
        %v886 = vadd.f32 %v854, %v872
        %v887 = vadd.f32 %v855, %v872
        %v888 = vadd.f32 %v856, %v877
        %v889 = vadd.f32 %v857, %v877
        %v890 = vadd.f32 %v858, %v882
        %v891 = vadd.f32 %v859, %v882
        %v892 = vld [vmem:[%s7] sm:$0xff]
        %v893 = vld [vmem:[%s7 + $0x8] sm:$0xff]
        %v894 = vld [vmem:[%s7 + $0x10] sm:$0xff]
        %v895 = vld [vmem:[%s7 + $0x18] sm:$0xff]
        %v896 = vld [vmem:[%s7 + $0x20] sm:$0xff]
        %v897 = vld [vmem:[%s7 + $0x28] sm:$0xff]
        %v898 = vld [vmem:[%s7 + $0x30] sm:$0xff]
        %v899 = vld [vmem:[%s7 + $0x38] sm:$0xff]
        %v900 = vld [vmem:[%s8] sm:$0xff]
        %v901 = vld [vmem:[%s8 + $0x8] sm:$0xff]
        %v902 = vld [vmem:[%s8 + $0x10] sm:$0xff]
        %v903 = vld [vmem:[%s8 + $0x18] sm:$0xff]
        %v904 = vld [vmem:[%s8 + $0x20] sm:$0xff]
        %v905 = vld [vmem:[%s8 + $0x28] sm:$0xff]
        %v906 = vld [vmem:[%s8 + $0x30] sm:$0xff]
        %v907 = vld [vmem:[%s8 + $0x38] sm:$0xff]
        %909 = vset.pattern.permute.xlu0 0
        %910 = vperm.xlu0 %909, %v900
        %v911 = vpop.permute.xlu0 %910
        %914 = vset.pattern.permute.xlu0 0
        %915 = vperm.xlu0 %914, %v901
        %v916 = vpop.permute.xlu0 %915
        %919 = vset.pattern.permute.xlu0 0
        %920 = vperm.xlu0 %919, %v902
        %v921 = vpop.permute.xlu0 %920
        %924 = vset.pattern.permute.xlu0 0
        %925 = vperm.xlu0 %924, %v903
        %v926 = vpop.permute.xlu0 %925
        %929 = vset.pattern.permute.xlu0 0
        %930 = vperm.xlu0 %929, %v904
        %v931 = vpop.permute.xlu0 %930
        %934 = vset.pattern.permute.xlu0 0
        %935 = vperm.xlu0 %934, %v905
        %v936 = vpop.permute.xlu0 %935
        %939 = vset.pattern.permute.xlu0 0
        %940 = vperm.xlu0 %939, %v906
        %v941 = vpop.permute.xlu0 %940
        %944 = vset.pattern.permute.xlu0 0
        %945 = vperm.xlu0 %944, %v907
        %v946 = vpop.permute.xlu0 %945
        %v949 = vsel %vm664, %v892, 0
        %v952 = vsel %vm664, %v893, 0
        %v955 = vsel %vm664, %v894, 0
        %v958 = vsel %vm664, %v895, 0
        %v961 = vsel %vm664, %v896, 0
        %v964 = vsel %vm664, %v897, 0
        %v967 = vsel %vm664, %v898, 0
        %v970 = vsel %vm664, %v899, 0
        %972 = vmatpush.msra.mxu0 0.0
        %973 = vmatpush.msra.mxu0 0.0
        %974 = vmatpush.msra.mxu0 0.0
        %975 = vmatpush.msra.mxu0 0.0
        %976 = vmatpush.msra.mxu0 0.0
        %977 = vmatpush.msra.mxu0 0.0
        %978 = vmatpush.msra.mxu0 0.0
        %979 = vmatpush.msra.mxu0 0.0
        %980 = vmatpush.msra.mxu0 0.0
        %981 = vmatpush.msra.mxu0 0.0
        %982 = vmatpush.msra.mxu0 0.0
        %983 = vmatpush.msra.mxu0 0.0
        %984 = vmatpush.msra.mxu0 %v890
        %985 = vmatpush.msra.mxu0 %v888
        %986 = vmatpush.msra.mxu0 %v886
        %987 = vmatpush.msra.mxu0 %v884
        %988 = vmatmul.f32.gmra.mxu0 %v949
        %v989 = vpop.f32.mrf.mxu0
        %v990 = vadd.f32 %v911, %v989
        %991 = vmatmul.f32.gmra.mxu0 %v952
        %v992 = vpop.f32.mrf.mxu0
        %v993 = vadd.f32 %v916, %v992
        %994 = vmatmul.f32.gmra.mxu0 %v955
        %v995 = vpop.f32.mrf.mxu0
        %v996 = vadd.f32 %v921, %v995
        %997 = vmatmul.f32.gmra.mxu0 %v958
        %v998 = vpop.f32.mrf.mxu0
        %v999 = vadd.f32 %v926, %v998
        %1000 = vmatmul.f32.gmra.mxu0 %v961
        %v1001 = vpop.f32.mrf.mxu0
        %v1002 = vadd.f32 %v931, %v1001
        %1003 = vmatmul.f32.gmra.mxu0 %v964
        %v1004 = vpop.f32.mrf.mxu0
        %v1005 = vadd.f32 %v936, %v1004
        %1006 = vmatmul.f32.gmra.mxu0 %v967
        %v1007 = vpop.f32.mrf.mxu0
        %v1008 = vadd.f32 %v941, %v1007
        %1009 = vmatmul.f32.gmra.mxu0 %v970
        %v1010 = vpop.f32.mrf.mxu0
        %v1011 = vadd.f32 %v946, %v1010
        %1012 = vdwg.mxu0
        %1013 = vmatpush.msra.mxu0 0.0
        %1014 = vmatpush.msra.mxu0 0.0
        %1015 = vmatpush.msra.mxu0 0.0
        %1016 = vmatpush.msra.mxu0 0.0
        %1017 = vmatpush.msra.mxu0 0.0
        %1018 = vmatpush.msra.mxu0 0.0
        %1019 = vmatpush.msra.mxu0 0.0
        %1020 = vmatpush.msra.mxu0 0.0
        %1021 = vmatpush.msra.mxu0 0.0
        %1022 = vmatpush.msra.mxu0 0.0
        %1023 = vmatpush.msra.mxu0 0.0
        %1024 = vmatpush.msra.mxu0 0.0
        %1025 = vmatpush.msra.mxu0 %v891
        %1026 = vmatpush.msra.mxu0 %v889
        %1027 = vmatpush.msra.mxu0 %v887
        %1028 = vmatpush.msra.mxu0 %v885
        %1029 = vmatmul.f32.gmra.mxu0 %v949
        %v1030 = vpop.f32.mrf.mxu0
        %v1031 = vadd.f32 %v911, %v1030
        %1032 = vmatmul.f32.gmra.mxu0 %v952
        %v1033 = vpop.f32.mrf.mxu0
        %v1034 = vadd.f32 %v916, %v1033
        %1035 = vmatmul.f32.gmra.mxu0 %v955
        %v1036 = vpop.f32.mrf.mxu0
        %v1037 = vadd.f32 %v921, %v1036
        %1038 = vmatmul.f32.gmra.mxu0 %v958
        %v1039 = vpop.f32.mrf.mxu0
        %v1040 = vadd.f32 %v926, %v1039
        %1041 = vmatmul.f32.gmra.mxu0 %v961
        %v1042 = vpop.f32.mrf.mxu0
        %v1043 = vadd.f32 %v931, %v1042
        %1044 = vmatmul.f32.gmra.mxu0 %v964
        %v1045 = vpop.f32.mrf.mxu0
        %v1046 = vadd.f32 %v936, %v1045
        %1047 = vmatmul.f32.gmra.mxu0 %v967
        %v1048 = vpop.f32.mrf.mxu0
        %v1049 = vadd.f32 %v941, %v1048
        %1050 = vmatmul.f32.gmra.mxu0 %v970
        %v1051 = vpop.f32.mrf.mxu0
        %v1052 = vadd.f32 %v946, %v1051
        %1053 = vdwg.mxu0
        %v1054 = vmul.f32 %v990, %v990
        %v1055 = vmul.f32 %v1031, %v1031
        %v1056 = vmul.f32 %v993, %v993
        %v1057 = vmul.f32 %v1034, %v1034
        %v1058 = vadd.f32 %v1054, %v1056
        %v1059 = vrot.slane %v1058, 4
        %v1060 = vadd.f32 %v1058, %v1059
        %v1061 = vrot.slane %v1060, 2
        %v1062 = vadd.f32 %v1060, %v1061
        %v1063 = vrot.slane %v1062, 1
        %v1064 = vadd.f32 %v1062, %v1063
        %v1065 = vadd.f32 %v1055, %v1057
        %v1066 = vrot.slane %v1065, 4
        %v1067 = vadd.f32 %v1065, %v1066
        %v1068 = vrot.slane %v1067, 2
        %v1069 = vadd.f32 %v1067, %v1068
        %v1070 = vrot.slane %v1069, 1
        %v1071 = vadd.f32 %v1069, %v1070
        %v1072 = vmul.f32 %v1064, 0.5
        %v1073 = vmul.f32 %v1071, 0.5
        %v1074 = vsub.f32 %v1008, %v1072
        %v1075 = vsub.f32 %v1049, %v1073
        %v1076 = vmul.f32 %v1074, 1.442695
        %v1077 = vpow.pop %v1076
        %v1078 = vmul.f32 %v1075, 1.442695
        %v1079 = vpow.pop %v1078
        %v1080 = vmul.f32 %v1077, 0.35355338
        %v1081 = vmul.f32 %v1079, 0.35355338
        %v1082 = vmul.f32 %v996, %v996
        %v1083 = vmul.f32 %v1037, %v1037
        %v1084 = vmul.f32 %v999, %v999
        %v1085 = vmul.f32 %v1040, %v1040
        %v1086 = vadd.f32 %v1082, %v1084
        %v1087 = vrot.slane %v1086, 4
        %v1088 = vadd.f32 %v1086, %v1087
        %v1089 = vrot.slane %v1088, 2
        %v1090 = vadd.f32 %v1088, %v1089
        %v1091 = vrot.slane %v1090, 1
        %v1092 = vadd.f32 %v1090, %v1091
        %v1093 = vadd.f32 %v1083, %v1085
        %v1094 = vrot.slane %v1093, 4
        %v1095 = vadd.f32 %v1093, %v1094
        %v1096 = vrot.slane %v1095, 2
        %v1097 = vadd.f32 %v1095, %v1096
        %v1098 = vrot.slane %v1097, 1
        %v1099 = vadd.f32 %v1097, %v1098
        %v1100 = vmul.f32 %v1092, 0.5
        %v1101 = vmul.f32 %v1099, 0.5
        %v1102 = vsub.f32 %v1011, %v1100
        %v1103 = vsub.f32 %v1052, %v1101
        %v1104 = vmul.f32 %v1102, 1.442695
        %v1105 = vpow.pop %v1104
        %v1106 = vmul.f32 %v1103, 1.442695
        %v1107 = vpow.pop %v1106
        %v1108 = vmul.f32 %v1105, 0.35355338
        %v1109 = vmul.f32 %v1107, 0.35355338
        %v1110 = vld [vmem:[%s9] sm:$0xff]
        %v1111 = vld [vmem:[%s9 + $0x8] sm:$0xff]
        %v1112 = vld [vmem:[%s9 + $0x10] sm:$0xff]
        %v1113 = vld [vmem:[%s9 + $0x18] sm:$0xff]
        %v1114 = vld [vmem:[%s1] sm:$0x3]
        %v1115 = vld [vmem:[%s2] sm:$0x3]
        %vm1116 = vcmp.ge.s32.totalorder %v1114, 1
        %vm1117 = vcmp.le.s32.totalorder %v1114, 16
        %vm1118 = vmand %vm1116, %vm1117
        %vm1119 = vcmp.ge.s32.totalorder %v1115, 1
        %vm1120 = vmand %vm1118, %vm1119
        %vm1121 = vcmp.le.s32.totalorder %v1115, 16
        %vm1122 = vmand %vm1120, %vm1121
        %1127 = vrot.lane.b32.xlu0 %v1081, 17
        %v1128 = vpop.permute.xlu0 %1127
        %1129 = vrot.lane.b32.xlu0 %v1109, 17
        %v1130 = vpop.permute.xlu0 %1129
        %1131 = vrot.lane.b32.xlu0 %v1043, 17
        %v1132 = vpop.permute.xlu0 %1131
        %1133 = vrot.lane.b32.xlu0 %v1046, 17
        %v1134 = vpop.permute.xlu0 %1133
        %1143 = vrot.lane.b32.xlu0 %v1080, 17
        %v1144 = vpop.permute.xlu0 %1143
        %1145 = vrot.lane.b32.xlu0 %v1108, 17
        %v1146 = vpop.permute.xlu0 %1145
        %1147 = vrot.lane.b32.xlu0 %v1002, 17
        %v1148 = vpop.permute.xlu0 %1147
        %1149 = vrot.lane.b32.xlu0 %v1005, 17
        %v1150 = vpop.permute.xlu0 %1149
        %vm1151 = vcmask 138240
        %v1152 = vsel %vm1151, %v1144, %v1128
        %v1153 = vsel %vm1151, %v1146, %v1130
        %v1154 = vsel %vm1151, %v1148, %v1132
        %v1155 = vsel %vm1151, %v1150, %v1134
        %v1164 = vsel %vm1151, %v1128, %v1144
        %v1165 = vsel %vm1151, %v1130, %v1146
        %v1166 = vsel %vm1151, %v1132, %v1148
        %v1167 = vsel %vm1151, %v1134, %v1150
        %v1168 = vsel %vm1122, 1, 0
        %v1169 = vperm.slane %v1168, 0
        %v1170 = vperm.slane %v1168, 1
        %vm1171 = vcmp.eq.s32.totalorder %v1169, 1
        %vm1172 = vcmp.eq.s32.totalorder %v1170, 1
        %1174 = vset.pattern.permute.xlu0 0
        %1175 = vperm.xlu0 %1174, %v1110
        %v1176 = vpop.permute.xlu0 %1175
        %1179 = vset.pattern.permute.xlu0 0
        %1180 = vperm.xlu0 %1179, %v1111
        %v1181 = vpop.permute.xlu0 %1180
        %1184 = vset.pattern.permute.xlu0 0
        %1185 = vperm.xlu0 %1184, %v1112
        %v1186 = vpop.permute.xlu0 %1185
        %1189 = vset.pattern.permute.xlu0 0
        %1190 = vperm.xlu0 %1189, %v1113
        %v1191 = vpop.permute.xlu0 %1190
        %v1193 = vsel %vm1171, %v1164, %v1176
        %v1194 = vsel %vm1172, %v1152, %v1176
        %v1195 = vsel %vm1171, %v1165, %v1181
        %v1196 = vsel %vm1172, %v1153, %v1181
        %v1197 = vsel %vm1171, %v1166, %v1186
        %v1198 = vsel %vm1172, %v1154, %v1186
        %v1199 = vsel %vm1171, %v1167, %v1191
        %v1200 = vsel %vm1172, %v1155, %v1191
        %vm1201 = vcmp.ge.s32.totalorder %v1115, 0
        %vm1202 = vmand %vm1118, %vm1201
        %vm1203 = vcmp.le.s32.totalorder %v1115, 15
        %vm1204 = vmand %vm1202, %vm1203
        %1205 = vrot.lane.b32.xlu0 %v1081, 16
        %v1206 = vpop.permute.xlu0 %1205
        %1207 = vrot.lane.b32.xlu0 %v1109, 16
        %v1208 = vpop.permute.xlu0 %1207
        %1209 = vrot.lane.b32.xlu0 %v1043, 16
        %v1210 = vpop.permute.xlu0 %1209
        %1211 = vrot.lane.b32.xlu0 %v1046, 16
        %v1212 = vpop.permute.xlu0 %1211
        %1217 = vrot.lane.b32.xlu0 %v1080, 16
        %v1218 = vpop.permute.xlu0 %1217
        %1219 = vrot.lane.b32.xlu0 %v1108, 16
        %v1220 = vpop.permute.xlu0 %1219
        %1221 = vrot.lane.b32.xlu0 %v1002, 16
        %v1222 = vpop.permute.xlu0 %1221
        %1223 = vrot.lane.b32.xlu0 %v1005, 16
        %v1224 = vpop.permute.xlu0 %1223
        %vm1225 = vcmask 130048
        %v1226 = vsel %vm1225, %v1218, %v1206
        %v1227 = vsel %vm1225, %v1220, %v1208
        %v1228 = vsel %vm1225, %v1222, %v1210
        %v1229 = vsel %vm1225, %v1224, %v1212
        %v1238 = vsel %vm1225, %v1206, %v1218
        %v1239 = vsel %vm1225, %v1208, %v1220
        %v1240 = vsel %vm1225, %v1210, %v1222
        %v1241 = vsel %vm1225, %v1212, %v1224
        %v1242 = vsel %vm1204, 1, 0
        %v1243 = vperm.slane %v1242, 0
        %v1244 = vperm.slane %v1242, 1
        %vm1245 = vcmp.eq.s32.totalorder %v1243, 1
        %vm1246 = vcmp.eq.s32.totalorder %v1244, 1
        %v1247 = vsel %vm1245, %v1238, %v1176
        %v1248 = vsel %vm1246, %v1226, %v1176
        %v1249 = vsel %vm1245, %v1239, %v1181
        %v1250 = vsel %vm1246, %v1227, %v1181
        %v1251 = vsel %vm1245, %v1240, %v1186
        %v1252 = vsel %vm1246, %v1228, %v1186
        %v1253 = vsel %vm1245, %v1241, %v1191
        %v1254 = vsel %vm1246, %v1229, %v1191
        %vm1255 = vcmp.ge.s32.totalorder %v1115, 4294967295
        %vm1256 = vmand %vm1118, %vm1255
        %vm1257 = vcmp.le.s32.totalorder %v1115, 14
        %vm1258 = vmand %vm1256, %vm1257
        %1259 = vrot.lane.b32.xlu0 %v1081, 15
        %v1260 = vpop.permute.xlu0 %1259
        %1261 = vrot.lane.b32.xlu0 %v1109, 15
        %v1262 = vpop.permute.xlu0 %1261
        %1263 = vrot.lane.b32.xlu0 %v1043, 15
        %v1264 = vpop.permute.xlu0 %1263
        %1265 = vrot.lane.b32.xlu0 %v1046, 15
        %v1266 = vpop.permute.xlu0 %1265
        %1271 = vrot.lane.b32.xlu0 %v1080, 15
        %v1272 = vpop.permute.xlu0 %1271
        %1273 = vrot.lane.b32.xlu0 %v1108, 15
        %v1274 = vpop.permute.xlu0 %1273
        %1275 = vrot.lane.b32.xlu0 %v1002, 15
        %v1276 = vpop.permute.xlu0 %1275
        %1277 = vrot.lane.b32.xlu0 %v1005, 15
        %v1278 = vpop.permute.xlu0 %1277
        %vm1279 = vcmask 121856
        %v1280 = vsel %vm1279, %v1272, %v1260
        %v1281 = vsel %vm1279, %v1274, %v1262
        %v1282 = vsel %vm1279, %v1276, %v1264
        %v1283 = vsel %vm1279, %v1278, %v1266
        %v1292 = vsel %vm1279, %v1260, %v1272
        %v1293 = vsel %vm1279, %v1262, %v1274
        %v1294 = vsel %vm1279, %v1264, %v1276
        %v1295 = vsel %vm1279, %v1266, %v1278
        %v1296 = vsel %vm1258, 1, 0
        %v1297 = vperm.slane %v1296, 0
        %v1298 = vperm.slane %v1296, 1
        %vm1299 = vcmp.eq.s32.totalorder %v1297, 1
        %vm1300 = vcmp.eq.s32.totalorder %v1298, 1
        %v1301 = vsel %vm1299, %v1292, %v1176
        %v1302 = vsel %vm1300, %v1280, %v1176
        %v1303 = vsel %vm1299, %v1293, %v1181
        %v1304 = vsel %vm1300, %v1281, %v1181
        %v1305 = vsel %vm1299, %v1294, %v1186
        %v1306 = vsel %vm1300, %v1282, %v1186
        %v1307 = vsel %vm1299, %v1295, %v1191
        %v1308 = vsel %vm1300, %v1283, %v1191
        %vm1309 = vcmp.ge.s32.totalorder %v1114, 0
        %vm1310 = vcmp.le.s32.totalorder %v1114, 15
        %vm1311 = vmand %vm1309, %vm1310
        %vm1312 = vmand %vm1311, %vm1119
        %vm1313 = vmand %vm1312, %vm1121
        %1314 = vrot.lane.b32.xlu0 %v1081, 1
        %v1315 = vpop.permute.xlu0 %1314
        %1316 = vrot.lane.b32.xlu0 %v1109, 1
        %v1317 = vpop.permute.xlu0 %1316
        %1318 = vrot.lane.b32.xlu0 %v1043, 1
        %v1319 = vpop.permute.xlu0 %1318
        %1320 = vrot.lane.b32.xlu0 %v1046, 1
        %v1321 = vpop.permute.xlu0 %1320
        %1326 = vrot.lane.b32.xlu0 %v1080, 1
        %v1327 = vpop.permute.xlu0 %1326
        %1328 = vrot.lane.b32.xlu0 %v1108, 1
        %v1329 = vpop.permute.xlu0 %1328
        %1330 = vrot.lane.b32.xlu0 %v1002, 1
        %v1331 = vpop.permute.xlu0 %1330
        %1332 = vrot.lane.b32.xlu0 %v1005, 1
        %v1333 = vpop.permute.xlu0 %1332
        %vm1334 = vcmask 7168
        %v1335 = vsel %vm1334, %v1327, %v1315
        %v1336 = vsel %vm1334, %v1329, %v1317
        %v1337 = vsel %vm1334, %v1331, %v1319
        %v1338 = vsel %vm1334, %v1333, %v1321
        %v1347 = vsel %vm1334, %v1315, %v1327
        %v1348 = vsel %vm1334, %v1317, %v1329
        %v1349 = vsel %vm1334, %v1319, %v1331
        %v1350 = vsel %vm1334, %v1321, %v1333
        %v1351 = vsel %vm1313, 1, 0
        %v1352 = vperm.slane %v1351, 0
        %v1353 = vperm.slane %v1351, 1
        %vm1354 = vcmp.eq.s32.totalorder %v1352, 1
        %vm1355 = vcmp.eq.s32.totalorder %v1353, 1
        %v1356 = vsel %vm1354, %v1347, %v1176
        %v1357 = vsel %vm1355, %v1335, %v1176
        %v1358 = vsel %vm1354, %v1348, %v1181
        %v1359 = vsel %vm1355, %v1336, %v1181
        %v1360 = vsel %vm1354, %v1349, %v1186
        %v1361 = vsel %vm1355, %v1337, %v1186
        %v1362 = vsel %vm1354, %v1350, %v1191
        %v1363 = vsel %vm1355, %v1338, %v1191
        %vm1364 = vmand %vm1311, %vm1201
        %vm1365 = vmand %vm1364, %vm1203
        %v1366 = vsel %vm1365, 1, 0
        %v1367 = vperm.slane %v1366, 0
        %v1368 = vperm.slane %v1366, 1
        %vm1369 = vcmp.eq.s32.totalorder %v1367, 1
        %vm1370 = vcmp.eq.s32.totalorder %v1368, 1
        %v1371 = vsel %vm1369, %v1080, %v1176
        %v1372 = vsel %vm1370, %v1081, %v1176
        %v1373 = vsel %vm1369, %v1108, %v1181
        %v1374 = vsel %vm1370, %v1109, %v1181
        %v1375 = vsel %vm1369, %v1002, %v1186
        %v1376 = vsel %vm1370, %v1043, %v1186
        %v1377 = vsel %vm1369, %v1005, %v1191
        %v1378 = vsel %vm1370, %v1046, %v1191
        %vm1379 = vmand %vm1311, %vm1255
        %vm1380 = vmand %vm1379, %vm1257
        %1381 = vrot.lane.b32.xlu0 %v1080, 127
        %v1382 = vpop.permute.xlu0 %1381
        %1383 = vrot.lane.b32.xlu0 %v1081, 127
        %v1384 = vpop.permute.xlu0 %1383
        %1385 = vrot.lane.b32.xlu0 %v1108, 127
        %v1386 = vpop.permute.xlu0 %1385
        %1387 = vrot.lane.b32.xlu0 %v1109, 127
        %v1388 = vpop.permute.xlu0 %1387
        %1389 = vrot.lane.b32.xlu0 %v1002, 127
        %v1390 = vpop.permute.xlu0 %1389
        %1391 = vrot.lane.b32.xlu0 %v1043, 127
        %v1392 = vpop.permute.xlu0 %1391
        %1393 = vrot.lane.b32.xlu0 %v1005, 127
        %v1394 = vpop.permute.xlu0 %1393
        %1395 = vrot.lane.b32.xlu0 %v1046, 127
        %v1396 = vpop.permute.xlu0 %1395
        %vm1397 = vcmask 1039360
        %v1398 = vsel %vm1397, %v1382, %v1384
        %v1399 = vsel %vm1397, %v1386, %v1388
        %v1400 = vsel %vm1397, %v1390, %v1392
        %v1401 = vsel %vm1397, %v1394, %v1396
        %v1414 = vsel %vm1397, %v1384, %v1382
        %v1415 = vsel %vm1397, %v1388, %v1386
        %v1416 = vsel %vm1397, %v1392, %v1390
        %v1417 = vsel %vm1397, %v1396, %v1394
        %v1418 = vsel %vm1380, 1, 0
        %v1419 = vperm.slane %v1418, 0
        %v1420 = vperm.slane %v1418, 1
        %vm1421 = vcmp.eq.s32.totalorder %v1419, 1
        %vm1422 = vcmp.eq.s32.totalorder %v1420, 1
        %v1423 = vsel %vm1421, %v1398, %v1176
        %v1424 = vsel %vm1422, %v1414, %v1176
        %v1425 = vsel %vm1421, %v1399, %v1181
        %v1426 = vsel %vm1422, %v1415, %v1181
        %v1427 = vsel %vm1421, %v1400, %v1186
        %v1428 = vsel %vm1422, %v1416, %v1186
        %v1429 = vsel %vm1421, %v1401, %v1191
        %v1430 = vsel %vm1422, %v1417, %v1191
        %vm1431 = vcmp.ge.s32.totalorder %v1114, 4294967295
        %vm1432 = vcmp.le.s32.totalorder %v1114, 14
        %vm1433 = vmand %vm1431, %vm1432
        %vm1434 = vmand %vm1433, %vm1119
        %vm1435 = vmand %vm1434, %vm1121
        %1436 = vrot.lane.b32.xlu0 %v1080, 113
        %v1437 = vpop.permute.xlu0 %1436
        %1438 = vrot.lane.b32.xlu0 %v1081, 113
        %v1439 = vpop.permute.xlu0 %1438
        %1440 = vrot.lane.b32.xlu0 %v1108, 113
        %v1441 = vpop.permute.xlu0 %1440
        %1442 = vrot.lane.b32.xlu0 %v1109, 113
        %v1443 = vpop.permute.xlu0 %1442
        %1444 = vrot.lane.b32.xlu0 %v1002, 113
        %v1445 = vpop.permute.xlu0 %1444
        %1446 = vrot.lane.b32.xlu0 %v1043, 113
        %v1447 = vpop.permute.xlu0 %1446
        %1448 = vrot.lane.b32.xlu0 %v1005, 113
        %v1449 = vpop.permute.xlu0 %1448
        %1450 = vrot.lane.b32.xlu0 %v1046, 113
        %v1451 = vpop.permute.xlu0 %1450
        %vm1452 = vcmask 924672
        %v1453 = vsel %vm1452, %v1437, %v1439
        %v1454 = vsel %vm1452, %v1441, %v1443
        %v1455 = vsel %vm1452, %v1445, %v1447
        %v1456 = vsel %vm1452, %v1449, %v1451
        %v1469 = vsel %vm1452, %v1439, %v1437
        %v1470 = vsel %vm1452, %v1443, %v1441
        %v1471 = vsel %vm1452, %v1447, %v1445
        %v1472 = vsel %vm1452, %v1451, %v1449
        %v1473 = vsel %vm1435, 1, 0
        %v1474 = vperm.slane %v1473, 0
        %v1475 = vperm.slane %v1473, 1
        %vm1476 = vcmp.eq.s32.totalorder %v1474, 1
        %vm1477 = vcmp.eq.s32.totalorder %v1475, 1
        %v1478 = vsel %vm1476, %v1453, %v1176
        %v1479 = vsel %vm1477, %v1469, %v1176
        %v1480 = vsel %vm1476, %v1454, %v1181
        %v1481 = vsel %vm1477, %v1470, %v1181
        %v1482 = vsel %vm1476, %v1455, %v1186
        %v1483 = vsel %vm1477, %v1471, %v1186
        %v1484 = vsel %vm1476, %v1456, %v1191
        %v1485 = vsel %vm1477, %v1472, %v1191
        %vm1486 = vmand %vm1433, %vm1201
        %vm1487 = vmand %vm1486, %vm1203
        %1488 = vrot.lane.b32.xlu0 %v1080, 112
        %v1489 = vpop.permute.xlu0 %1488
        %1490 = vrot.lane.b32.xlu0 %v1081, 112
        %v1491 = vpop.permute.xlu0 %1490
        %1492 = vrot.lane.b32.xlu0 %v1108, 112
        %v1493 = vpop.permute.xlu0 %1492
        %1494 = vrot.lane.b32.xlu0 %v1109, 112
        %v1495 = vpop.permute.xlu0 %1494
        %1496 = vrot.lane.b32.xlu0 %v1002, 112
        %v1497 = vpop.permute.xlu0 %1496
        %1498 = vrot.lane.b32.xlu0 %v1043, 112
        %v1499 = vpop.permute.xlu0 %1498
        %1500 = vrot.lane.b32.xlu0 %v1005, 112
        %v1501 = vpop.permute.xlu0 %1500
        %1502 = vrot.lane.b32.xlu0 %v1046, 112
        %v1503 = vpop.permute.xlu0 %1502
        %vm1504 = vcmask 916480
        %v1505 = vsel %vm1504, %v1489, %v1491
        %v1506 = vsel %vm1504, %v1493, %v1495
        %v1507 = vsel %vm1504, %v1497, %v1499
        %v1508 = vsel %vm1504, %v1501, %v1503
        %v1521 = vsel %vm1504, %v1491, %v1489
        %v1522 = vsel %vm1504, %v1495, %v1493
        %v1523 = vsel %vm1504, %v1499, %v1497
        %v1524 = vsel %vm1504, %v1503, %v1501
        %v1525 = vsel %vm1487, 1, 0
        %v1526 = vperm.slane %v1525, 0
        %v1527 = vperm.slane %v1525, 1
        %vm1528 = vcmp.eq.s32.totalorder %v1526, 1
        %vm1529 = vcmp.eq.s32.totalorder %v1527, 1
        %v1530 = vsel %vm1528, %v1505, %v1176
        %v1531 = vsel %vm1529, %v1521, %v1176
        %v1532 = vsel %vm1528, %v1506, %v1181
        %v1533 = vsel %vm1529, %v1522, %v1181
        %v1534 = vsel %vm1528, %v1507, %v1186
        %v1535 = vsel %vm1529, %v1523, %v1186
        %v1536 = vsel %vm1528, %v1508, %v1191
        %v1537 = vsel %vm1529, %v1524, %v1191
        %vm1538 = vmand %vm1433, %vm1255
        %vm1539 = vmand %vm1538, %vm1257
        %1540 = vrot.lane.b32.xlu0 %v1080, 111
        %v1541 = vpop.permute.xlu0 %1540
        %1542 = vrot.lane.b32.xlu0 %v1081, 111
        %v1543 = vpop.permute.xlu0 %1542
        %1544 = vrot.lane.b32.xlu0 %v1108, 111
        %v1545 = vpop.permute.xlu0 %1544
        %1546 = vrot.lane.b32.xlu0 %v1109, 111
        %v1547 = vpop.permute.xlu0 %1546
        %1548 = vrot.lane.b32.xlu0 %v1002, 111
        %v1549 = vpop.permute.xlu0 %1548
        %1550 = vrot.lane.b32.xlu0 %v1043, 111
        %v1551 = vpop.permute.xlu0 %1550
        %1552 = vrot.lane.b32.xlu0 %v1005, 111
        %v1553 = vpop.permute.xlu0 %1552
        %1554 = vrot.lane.b32.xlu0 %v1046, 111
        %v1555 = vpop.permute.xlu0 %1554
        %vm1556 = vcmask 908288
        %v1557 = vsel %vm1556, %v1541, %v1543
        %v1558 = vsel %vm1556, %v1545, %v1547
        %v1559 = vsel %vm1556, %v1549, %v1551
        %v1560 = vsel %vm1556, %v1553, %v1555
        %v1573 = vsel %vm1556, %v1543, %v1541
        %v1574 = vsel %vm1556, %v1547, %v1545
        %v1575 = vsel %vm1556, %v1551, %v1549
        %v1576 = vsel %vm1556, %v1555, %v1553
        %v1577 = vsel %vm1539, 1, 0
        %v1578 = vperm.slane %v1577, 0
        %v1579 = vperm.slane %v1577, 1
        %vm1580 = vcmp.eq.s32.totalorder %v1578, 1
        %vm1581 = vcmp.eq.s32.totalorder %v1579, 1
        %v1582 = vsel %vm1580, %v1557, %v1176
        %v1583 = vsel %vm1581, %v1573, %v1176
        %v1584 = vsel %vm1580, %v1558, %v1181
        %v1585 = vsel %vm1581, %v1574, %v1181
        %v1586 = vsel %vm1580, %v1559, %v1186
        %v1587 = vsel %vm1581, %v1575, %v1186
        %v1588 = vsel %vm1580, %v1560, %v1191
        %v1589 = vsel %vm1581, %v1576, %v1191
        %v1590 = vmul.f32 %v1195, %v1193
        %v1591 = vmul.f32 %v1196, %v1194
        %v1592 = vrot.slane %v1590, 4
        %v1593 = vadd.f32 %v1590, %v1592
        %v1594 = vrot.slane %v1593, 2
        %v1595 = vadd.f32 %v1593, %v1594
        %v1596 = vrot.slane %v1595, 1
        %v1597 = vadd.f32 %v1595, %v1596
        %v1598 = vrot.slane %v1591, 4
        %v1599 = vadd.f32 %v1591, %v1598
        %v1600 = vrot.slane %v1599, 2
        %v1601 = vadd.f32 %v1599, %v1600
        %v1602 = vrot.slane %v1601, 1
        %v1603 = vadd.f32 %v1601, %v1602
        %v1604 = vmul.f32 %v1195, %v1247
        %v1605 = vmul.f32 %v1196, %v1248
        %v1606 = vrot.slane %v1604, 4
        %v1607 = vadd.f32 %v1604, %v1606
        %v1608 = vrot.slane %v1607, 2
        %v1609 = vadd.f32 %v1607, %v1608
        %v1610 = vrot.slane %v1609, 1
        %v1611 = vadd.f32 %v1609, %v1610
        %v1612 = vrot.slane %v1605, 4
        %v1613 = vadd.f32 %v1605, %v1612
        %v1614 = vrot.slane %v1613, 2
        %v1615 = vadd.f32 %v1613, %v1614
        %v1616 = vrot.slane %v1615, 1
        %v1617 = vadd.f32 %v1615, %v1616
        %v1618 = vmul.f32 %v1195, %v1301
        %v1619 = vmul.f32 %v1196, %v1302
        %v1620 = vrot.slane %v1618, 4
        %v1621 = vadd.f32 %v1618, %v1620
        %v1622 = vrot.slane %v1621, 2
        %v1623 = vadd.f32 %v1621, %v1622
        %v1624 = vrot.slane %v1623, 1
        %v1625 = vadd.f32 %v1623, %v1624
        %v1626 = vrot.slane %v1619, 4
        %v1627 = vadd.f32 %v1619, %v1626
        %v1628 = vrot.slane %v1627, 2
        %v1629 = vadd.f32 %v1627, %v1628
        %v1630 = vrot.slane %v1629, 1
        %v1631 = vadd.f32 %v1629, %v1630
        %v1632 = vmul.f32 %v1195, %v1356
        %v1633 = vmul.f32 %v1196, %v1357
        %v1634 = vrot.slane %v1632, 4
        %v1635 = vadd.f32 %v1632, %v1634
        %v1636 = vrot.slane %v1635, 2
        %v1637 = vadd.f32 %v1635, %v1636
        %v1638 = vrot.slane %v1637, 1
        %v1639 = vadd.f32 %v1637, %v1638
        %v1640 = vrot.slane %v1633, 4
        %v1641 = vadd.f32 %v1633, %v1640
        %v1642 = vrot.slane %v1641, 2
        %v1643 = vadd.f32 %v1641, %v1642
        %v1644 = vrot.slane %v1643, 1
        %v1645 = vadd.f32 %v1643, %v1644
        %v1646 = vmul.f32 %v1195, %v1371
        %v1647 = vmul.f32 %v1196, %v1372
        %v1648 = vrot.slane %v1646, 4
        %v1649 = vadd.f32 %v1646, %v1648
        %v1650 = vrot.slane %v1649, 2
        %v1651 = vadd.f32 %v1649, %v1650
        %v1652 = vrot.slane %v1651, 1
        %v1653 = vadd.f32 %v1651, %v1652
        %v1654 = vrot.slane %v1647, 4
        %v1655 = vadd.f32 %v1647, %v1654
        %v1656 = vrot.slane %v1655, 2
        %v1657 = vadd.f32 %v1655, %v1656
        %v1658 = vrot.slane %v1657, 1
        %v1659 = vadd.f32 %v1657, %v1658
        %v1660 = vmul.f32 %v1195, %v1423
        %v1661 = vmul.f32 %v1196, %v1424
        %v1662 = vrot.slane %v1660, 4
        %v1663 = vadd.f32 %v1660, %v1662
        %v1664 = vrot.slane %v1663, 2
        %v1665 = vadd.f32 %v1663, %v1664
        %v1666 = vrot.slane %v1665, 1
        %v1667 = vadd.f32 %v1665, %v1666
        %v1668 = vrot.slane %v1661, 4
        %v1669 = vadd.f32 %v1661, %v1668
        %v1670 = vrot.slane %v1669, 2
        %v1671 = vadd.f32 %v1669, %v1670
        %v1672 = vrot.slane %v1671, 1
        %v1673 = vadd.f32 %v1671, %v1672
        %v1674 = vmul.f32 %v1195, %v1478
        %v1675 = vmul.f32 %v1196, %v1479
        %v1676 = vrot.slane %v1674, 4
        %v1677 = vadd.f32 %v1674, %v1676
        %v1678 = vrot.slane %v1677, 2
        %v1679 = vadd.f32 %v1677, %v1678
        %v1680 = vrot.slane %v1679, 1
        %v1681 = vadd.f32 %v1679, %v1680
        %v1682 = vrot.slane %v1675, 4
        %v1683 = vadd.f32 %v1675, %v1682
        %v1684 = vrot.slane %v1683, 2
        %v1685 = vadd.f32 %v1683, %v1684
        %v1686 = vrot.slane %v1685, 1
        %v1687 = vadd.f32 %v1685, %v1686
        %v1688 = vmul.f32 %v1195, %v1530
        %v1689 = vmul.f32 %v1196, %v1531
        %v1690 = vrot.slane %v1688, 4
        %v1691 = vadd.f32 %v1688, %v1690
        %v1692 = vrot.slane %v1691, 2
        %v1693 = vadd.f32 %v1691, %v1692
        %v1694 = vrot.slane %v1693, 1
        %v1695 = vadd.f32 %v1693, %v1694
        %v1696 = vrot.slane %v1689, 4
        %v1697 = vadd.f32 %v1689, %v1696
        %v1698 = vrot.slane %v1697, 2
        %v1699 = vadd.f32 %v1697, %v1698
        %v1700 = vrot.slane %v1699, 1
        %v1701 = vadd.f32 %v1699, %v1700
        %v1702 = vmul.f32 %v1195, %v1582
        %v1703 = vmul.f32 %v1196, %v1583
        %v1704 = vrot.slane %v1702, 4
        %v1705 = vadd.f32 %v1702, %v1704
        %v1706 = vrot.slane %v1705, 2
        %v1707 = vadd.f32 %v1705, %v1706
        %v1708 = vrot.slane %v1707, 1
        %v1709 = vadd.f32 %v1707, %v1708
        %v1710 = vrot.slane %v1703, 4
        %v1711 = vadd.f32 %v1703, %v1710
        %v1712 = vrot.slane %v1711, 2
        %v1713 = vadd.f32 %v1711, %v1712
        %v1714 = vrot.slane %v1713, 1
        %v1715 = vadd.f32 %v1713, %v1714
        %v1716 = vadd.f32 %v1597, %v1611
        %v1717 = vadd.f32 %v1603, %v1617
        %v1718 = vadd.f32 %v1716, %v1625
        %v1719 = vadd.f32 %v1717, %v1631
        %v1720 = vadd.f32 %v1718, %v1639
        %v1721 = vadd.f32 %v1719, %v1645
        %v1722 = vadd.f32 %v1720, %v1653
        %v1723 = vadd.f32 %v1721, %v1659
        %v1724 = vadd.f32 %v1722, %v1667
        %v1725 = vadd.f32 %v1723, %v1673
        %v1726 = vadd.f32 %v1724, %v1681
        %v1727 = vadd.f32 %v1725, %v1687
        %v1728 = vadd.f32 %v1726, %v1695
        %v1729 = vadd.f32 %v1727, %v1701
        %v1730 = vadd.f32 %v1728, %v1709
        %v1731 = vadd.f32 %v1729, %v1715
        %v1732 = vmul.f32 %v1597, %v1197
        %v1733 = vmul.f32 %v1603, %v1198
        %v1734 = vmul.f32 %v1597, %v1199
        %v1735 = vmul.f32 %v1603, %v1200
        %v1736 = vmul.f32 %v1611, %v1251
        %v1737 = vmul.f32 %v1617, %v1252
        %v1738 = vmul.f32 %v1611, %v1253
        %v1739 = vmul.f32 %v1617, %v1254
        %v1740 = vadd.f32 %v1732, %v1736
        %v1741 = vadd.f32 %v1733, %v1737
        %v1742 = vadd.f32 %v1734, %v1738
        %v1743 = vadd.f32 %v1735, %v1739
        %v1744 = vmul.f32 %v1625, %v1305
        %v1745 = vmul.f32 %v1631, %v1306
        %v1746 = vmul.f32 %v1625, %v1307
        %v1747 = vmul.f32 %v1631, %v1308
        %v1748 = vadd.f32 %v1740, %v1744
        %v1749 = vadd.f32 %v1741, %v1745
        %v1750 = vadd.f32 %v1742, %v1746
        %v1751 = vadd.f32 %v1743, %v1747
        %v1752 = vmul.f32 %v1639, %v1360
        %v1753 = vmul.f32 %v1645, %v1361
        %v1754 = vmul.f32 %v1639, %v1362
        %v1755 = vmul.f32 %v1645, %v1363
        %v1756 = vadd.f32 %v1748, %v1752
        %v1757 = vadd.f32 %v1749, %v1753
        %v1758 = vadd.f32 %v1750, %v1754
        %v1759 = vadd.f32 %v1751, %v1755
        %v1760 = vmul.f32 %v1653, %v1375
        %v1761 = vmul.f32 %v1659, %v1376
        %v1762 = vmul.f32 %v1653, %v1377
        %v1763 = vmul.f32 %v1659, %v1378
        %v1764 = vadd.f32 %v1756, %v1760
        %v1765 = vadd.f32 %v1757, %v1761
        %v1766 = vadd.f32 %v1758, %v1762
        %v1767 = vadd.f32 %v1759, %v1763
        %v1768 = vmul.f32 %v1667, %v1427
        %v1769 = vmul.f32 %v1673, %v1428
        %v1770 = vmul.f32 %v1667, %v1429
        %v1771 = vmul.f32 %v1673, %v1430
        %v1772 = vadd.f32 %v1764, %v1768
        %v1773 = vadd.f32 %v1765, %v1769
        %v1774 = vadd.f32 %v1766, %v1770
        %v1775 = vadd.f32 %v1767, %v1771
        %v1776 = vmul.f32 %v1681, %v1482
        %v1777 = vmul.f32 %v1687, %v1483
        %v1778 = vmul.f32 %v1681, %v1484
        %v1779 = vmul.f32 %v1687, %v1485
        %v1780 = vadd.f32 %v1772, %v1776
        %v1781 = vadd.f32 %v1773, %v1777
        %v1782 = vadd.f32 %v1774, %v1778
        %v1783 = vadd.f32 %v1775, %v1779
        %v1784 = vmul.f32 %v1695, %v1534
        %v1785 = vmul.f32 %v1701, %v1535
        %v1786 = vmul.f32 %v1695, %v1536
        %v1787 = vmul.f32 %v1701, %v1537
        %v1788 = vadd.f32 %v1780, %v1784
        %v1789 = vadd.f32 %v1781, %v1785
        %v1790 = vadd.f32 %v1782, %v1786
        %v1791 = vadd.f32 %v1783, %v1787
        %v1792 = vmul.f32 %v1709, %v1586
        %v1793 = vmul.f32 %v1715, %v1587
        %v1794 = vmul.f32 %v1709, %v1588
        %v1795 = vmul.f32 %v1715, %v1589
        %v1796 = vadd.f32 %v1788, %v1792
        %v1797 = vadd.f32 %v1789, %v1793
        %v1798 = vadd.f32 %v1790, %v1794
        %v1799 = vadd.f32 %v1791, %v1795
        %v1800 = vadd.f32 %v1730, 1e-08
        %v1801 = vadd.f32 %v1731, 1e-08
        %v1802 = vrcp.pop %v1800
        %v1803 = vmul.f32 %v1800, %v1802
        %v1804 = vsub.f32 1.0, %v1803
        %v1805 = vmul.f32 %v1802, %v1804
        %v1806 = vadd.f32 %v1802, %v1805
        %vm1807 = vweird.f32 %v1800
        %vm1808 = vweird.f32 %v1802
        %vm1809 = vmor %vm1807, %vm1808
        %v1810 = vsel %vm1809, %v1802, %v1806
        %v1811 = vand.u32 2147483647, %v1800
        %vm1812 = vcmp.eq.f32.partialorder %v1811, 8.507059e+37
        %v1813 = vand.u32 %v1800, 2147483648
        %v1814 = vor.u32 1.1754944e-38, %v1813
        %v1815 = vsel %vm1812, %v1814, %v1810
        %v1816 = vmul.f32 %v1796, %v1815
        %v1817 = vrcp.pop %v1801
        %v1818 = vmul.f32 %v1801, %v1817
        %v1819 = vsub.f32 1.0, %v1818
        %v1820 = vmul.f32 %v1817, %v1819
        %v1821 = vadd.f32 %v1817, %v1820
        %vm1822 = vweird.f32 %v1801
        %vm1823 = vweird.f32 %v1817
        %vm1824 = vmor %vm1822, %vm1823
        %v1825 = vsel %vm1824, %v1817, %v1821
        %v1826 = vand.u32 2147483647, %v1801
        %vm1827 = vcmp.eq.f32.partialorder %v1826, 8.507059e+37
        %v1828 = vand.u32 %v1801, 2147483648
        %v1829 = vor.u32 1.1754944e-38, %v1828
        %v1830 = vsel %vm1827, %v1829, %v1825
        %v1831 = vmul.f32 %v1797, %v1830
        %v1832 = vmul.f32 %v1798, %v1815
        %v1833 = vmul.f32 %v1799, %v1830
        %v1834 = vmul.f32 %v1249, %v1193
        %v1835 = vmul.f32 %v1250, %v1194
        %v1836 = vrot.slane %v1834, 4
        %v1837 = vadd.f32 %v1834, %v1836
        %v1838 = vrot.slane %v1837, 2
        %v1839 = vadd.f32 %v1837, %v1838
        %v1840 = vrot.slane %v1839, 1
        %v1841 = vadd.f32 %v1839, %v1840
        %v1842 = vrot.slane %v1835, 4
        %v1843 = vadd.f32 %v1835, %v1842
        %v1844 = vrot.slane %v1843, 2
        %v1845 = vadd.f32 %v1843, %v1844
        %v1846 = vrot.slane %v1845, 1
        %v1847 = vadd.f32 %v1845, %v1846
        %v1848 = vmul.f32 %v1249, %v1247
        %v1849 = vmul.f32 %v1250, %v1248
        %v1850 = vrot.slane %v1848, 4
        %v1851 = vadd.f32 %v1848, %v1850
        %v1852 = vrot.slane %v1851, 2
        %v1853 = vadd.f32 %v1851, %v1852
        %v1854 = vrot.slane %v1853, 1
        %v1855 = vadd.f32 %v1853, %v1854
        %v1856 = vrot.slane %v1849, 4
        %v1857 = vadd.f32 %v1849, %v1856
        %v1858 = vrot.slane %v1857, 2
        %v1859 = vadd.f32 %v1857, %v1858
        %v1860 = vrot.slane %v1859, 1
        %v1861 = vadd.f32 %v1859, %v1860
        %v1862 = vmul.f32 %v1249, %v1301
        %v1863 = vmul.f32 %v1250, %v1302
        %v1864 = vrot.slane %v1862, 4
        %v1865 = vadd.f32 %v1862, %v1864
        %v1866 = vrot.slane %v1865, 2
        %v1867 = vadd.f32 %v1865, %v1866
        %v1868 = vrot.slane %v1867, 1
        %v1869 = vadd.f32 %v1867, %v1868
        %v1870 = vrot.slane %v1863, 4
        %v1871 = vadd.f32 %v1863, %v1870
        %v1872 = vrot.slane %v1871, 2
        %v1873 = vadd.f32 %v1871, %v1872
        %v1874 = vrot.slane %v1873, 1
        %v1875 = vadd.f32 %v1873, %v1874
        %v1876 = vmul.f32 %v1249, %v1356
        %v1877 = vmul.f32 %v1250, %v1357
        %v1878 = vrot.slane %v1876, 4
        %v1879 = vadd.f32 %v1876, %v1878
        %v1880 = vrot.slane %v1879, 2
        %v1881 = vadd.f32 %v1879, %v1880
        %v1882 = vrot.slane %v1881, 1
        %v1883 = vadd.f32 %v1881, %v1882
        %v1884 = vrot.slane %v1877, 4
        %v1885 = vadd.f32 %v1877, %v1884
        %v1886 = vrot.slane %v1885, 2
        %v1887 = vadd.f32 %v1885, %v1886
        %v1888 = vrot.slane %v1887, 1
        %v1889 = vadd.f32 %v1887, %v1888
        %v1890 = vmul.f32 %v1249, %v1371
        %v1891 = vmul.f32 %v1250, %v1372
        %v1892 = vrot.slane %v1890, 4
        %v1893 = vadd.f32 %v1890, %v1892
        %v1894 = vrot.slane %v1893, 2
        %v1895 = vadd.f32 %v1893, %v1894
        %v1896 = vrot.slane %v1895, 1
        %v1897 = vadd.f32 %v1895, %v1896
        %v1898 = vrot.slane %v1891, 4
        %v1899 = vadd.f32 %v1891, %v1898
        %v1900 = vrot.slane %v1899, 2
        %v1901 = vadd.f32 %v1899, %v1900
        %v1902 = vrot.slane %v1901, 1
        %v1903 = vadd.f32 %v1901, %v1902
        %v1904 = vmul.f32 %v1249, %v1423
        %v1905 = vmul.f32 %v1250, %v1424
        %v1906 = vrot.slane %v1904, 4
        %v1907 = vadd.f32 %v1904, %v1906
        %v1908 = vrot.slane %v1907, 2
        %v1909 = vadd.f32 %v1907, %v1908
        %v1910 = vrot.slane %v1909, 1
        %v1911 = vadd.f32 %v1909, %v1910
        %v1912 = vrot.slane %v1905, 4
        %v1913 = vadd.f32 %v1905, %v1912
        %v1914 = vrot.slane %v1913, 2
        %v1915 = vadd.f32 %v1913, %v1914
        %v1916 = vrot.slane %v1915, 1
        %v1917 = vadd.f32 %v1915, %v1916
        %v1918 = vmul.f32 %v1249, %v1478
        %v1919 = vmul.f32 %v1250, %v1479
        %v1920 = vrot.slane %v1918, 4
        %v1921 = vadd.f32 %v1918, %v1920
        %v1922 = vrot.slane %v1921, 2
        %v1923 = vadd.f32 %v1921, %v1922
        %v1924 = vrot.slane %v1923, 1
        %v1925 = vadd.f32 %v1923, %v1924
        %v1926 = vrot.slane %v1919, 4
        %v1927 = vadd.f32 %v1919, %v1926
        %v1928 = vrot.slane %v1927, 2
        %v1929 = vadd.f32 %v1927, %v1928
        %v1930 = vrot.slane %v1929, 1
        %v1931 = vadd.f32 %v1929, %v1930
        %v1932 = vmul.f32 %v1249, %v1530
        %v1933 = vmul.f32 %v1250, %v1531
        %v1934 = vrot.slane %v1932, 4
        %v1935 = vadd.f32 %v1932, %v1934
        %v1936 = vrot.slane %v1935, 2
        %v1937 = vadd.f32 %v1935, %v1936
        %v1938 = vrot.slane %v1937, 1
        %v1939 = vadd.f32 %v1937, %v1938
        %v1940 = vrot.slane %v1933, 4
        %v1941 = vadd.f32 %v1933, %v1940
        %v1942 = vrot.slane %v1941, 2
        %v1943 = vadd.f32 %v1941, %v1942
        %v1944 = vrot.slane %v1943, 1
        %v1945 = vadd.f32 %v1943, %v1944
        %v1946 = vmul.f32 %v1249, %v1582
        %v1947 = vmul.f32 %v1250, %v1583
        %v1948 = vrot.slane %v1946, 4
        %v1949 = vadd.f32 %v1946, %v1948
        %v1950 = vrot.slane %v1949, 2
        %v1951 = vadd.f32 %v1949, %v1950
        %v1952 = vrot.slane %v1951, 1
        %v1953 = vadd.f32 %v1951, %v1952
        %v1954 = vrot.slane %v1947, 4
        %v1955 = vadd.f32 %v1947, %v1954
        %v1956 = vrot.slane %v1955, 2
        %v1957 = vadd.f32 %v1955, %v1956
        %v1958 = vrot.slane %v1957, 1
        %v1959 = vadd.f32 %v1957, %v1958
        %v1960 = vadd.f32 %v1841, %v1855
        %v1961 = vadd.f32 %v1847, %v1861
        %v1962 = vadd.f32 %v1960, %v1869
        %v1963 = vadd.f32 %v1961, %v1875
        %v1964 = vadd.f32 %v1962, %v1883
        %v1965 = vadd.f32 %v1963, %v1889
        %v1966 = vadd.f32 %v1964, %v1897
        %v1967 = vadd.f32 %v1965, %v1903
        %v1968 = vadd.f32 %v1966, %v1911
        %v1969 = vadd.f32 %v1967, %v1917
        %v1970 = vadd.f32 %v1968, %v1925
        %v1971 = vadd.f32 %v1969, %v1931
        %v1972 = vadd.f32 %v1970, %v1939
        %v1973 = vadd.f32 %v1971, %v1945
        %v1974 = vadd.f32 %v1972, %v1953
        %v1975 = vadd.f32 %v1973, %v1959
        %v1976 = vmul.f32 %v1841, %v1197
        %v1977 = vmul.f32 %v1847, %v1198
        %v1978 = vmul.f32 %v1841, %v1199
        %v1979 = vmul.f32 %v1847, %v1200
        %v1980 = vmul.f32 %v1855, %v1251
        %v1981 = vmul.f32 %v1861, %v1252
        %v1982 = vmul.f32 %v1855, %v1253
        %v1983 = vmul.f32 %v1861, %v1254
        %v1984 = vadd.f32 %v1976, %v1980
        %v1985 = vadd.f32 %v1977, %v1981
        %v1986 = vadd.f32 %v1978, %v1982
        %v1987 = vadd.f32 %v1979, %v1983
        %v1988 = vmul.f32 %v1869, %v1305
        %v1989 = vmul.f32 %v1875, %v1306
        %v1990 = vmul.f32 %v1869, %v1307
        %v1991 = vmul.f32 %v1875, %v1308
        %v1992 = vadd.f32 %v1984, %v1988
        %v1993 = vadd.f32 %v1985, %v1989
        %v1994 = vadd.f32 %v1986, %v1990
        %v1995 = vadd.f32 %v1987, %v1991
        %v1996 = vmul.f32 %v1883, %v1360
        %v1997 = vmul.f32 %v1889, %v1361
        %v1998 = vmul.f32 %v1883, %v1362
        %v1999 = vmul.f32 %v1889, %v1363
        %v2000 = vadd.f32 %v1992, %v1996
        %v2001 = vadd.f32 %v1993, %v1997
        %v2002 = vadd.f32 %v1994, %v1998
        %v2003 = vadd.f32 %v1995, %v1999
        %v2004 = vmul.f32 %v1897, %v1375
        %v2005 = vmul.f32 %v1903, %v1376
        %v2006 = vmul.f32 %v1897, %v1377
        %v2007 = vmul.f32 %v1903, %v1378
        %v2008 = vadd.f32 %v2000, %v2004
        %v2009 = vadd.f32 %v2001, %v2005
        %v2010 = vadd.f32 %v2002, %v2006
        %v2011 = vadd.f32 %v2003, %v2007
        %v2012 = vmul.f32 %v1911, %v1427
        %v2013 = vmul.f32 %v1917, %v1428
        %v2014 = vmul.f32 %v1911, %v1429
        %v2015 = vmul.f32 %v1917, %v1430
        %v2016 = vadd.f32 %v2008, %v2012
        %v2017 = vadd.f32 %v2009, %v2013
        %v2018 = vadd.f32 %v2010, %v2014
        %v2019 = vadd.f32 %v2011, %v2015
        %v2020 = vmul.f32 %v1925, %v1482
        %v2021 = vmul.f32 %v1931, %v1483
        %v2022 = vmul.f32 %v1925, %v1484
        %v2023 = vmul.f32 %v1931, %v1485
        %v2024 = vadd.f32 %v2016, %v2020
        %v2025 = vadd.f32 %v2017, %v2021
        %v2026 = vadd.f32 %v2018, %v2022
        %v2027 = vadd.f32 %v2019, %v2023
        %v2028 = vmul.f32 %v1939, %v1534
        %v2029 = vmul.f32 %v1945, %v1535
        %v2030 = vmul.f32 %v1939, %v1536
        %v2031 = vmul.f32 %v1945, %v1537
        %v2032 = vadd.f32 %v2024, %v2028
        %v2033 = vadd.f32 %v2025, %v2029
        %v2034 = vadd.f32 %v2026, %v2030
        %v2035 = vadd.f32 %v2027, %v2031
        %v2036 = vmul.f32 %v1953, %v1586
        %v2037 = vmul.f32 %v1959, %v1587
        %v2038 = vmul.f32 %v1953, %v1588
        %v2039 = vmul.f32 %v1959, %v1589
        %v2040 = vadd.f32 %v2032, %v2036
        %v2041 = vadd.f32 %v2033, %v2037
        %v2042 = vadd.f32 %v2034, %v2038
        %v2043 = vadd.f32 %v2035, %v2039
        %v2044 = vadd.f32 %v1974, 1e-08
        %v2045 = vadd.f32 %v1975, 1e-08
        %v2046 = vrcp.pop %v2044
        %v2047 = vmul.f32 %v2044, %v2046
        %v2048 = vsub.f32 1.0, %v2047
        %v2049 = vmul.f32 %v2046, %v2048
        %v2050 = vadd.f32 %v2046, %v2049
        %vm2051 = vweird.f32 %v2044
        %vm2052 = vweird.f32 %v2046
        %vm2053 = vmor %vm2051, %vm2052
        %v2054 = vsel %vm2053, %v2046, %v2050
        %v2055 = vand.u32 2147483647, %v2044
        %vm2056 = vcmp.eq.f32.partialorder %v2055, 8.507059e+37
        %v2057 = vand.u32 %v2044, 2147483648
        %v2058 = vor.u32 1.1754944e-38, %v2057
        %v2059 = vsel %vm2056, %v2058, %v2054
        %v2060 = vmul.f32 %v2040, %v2059
        %v2061 = vrcp.pop %v2045
        %v2062 = vmul.f32 %v2045, %v2061
        %v2063 = vsub.f32 1.0, %v2062
        %v2064 = vmul.f32 %v2061, %v2063
        %v2065 = vadd.f32 %v2061, %v2064
        %vm2066 = vweird.f32 %v2045
        %vm2067 = vweird.f32 %v2061
        %vm2068 = vmor %vm2066, %vm2067
        %v2069 = vsel %vm2068, %v2061, %v2065
        %v2070 = vand.u32 2147483647, %v2045
        %vm2071 = vcmp.eq.f32.partialorder %v2070, 8.507059e+37
        %v2072 = vand.u32 %v2045, 2147483648
        %v2073 = vor.u32 1.1754944e-38, %v2072
        %v2074 = vsel %vm2071, %v2073, %v2069
        %v2075 = vmul.f32 %v2041, %v2074
        %v2076 = vmul.f32 %v2042, %v2059
        %v2077 = vmul.f32 %v2043, %v2074
        %v2078 = vmul.f32 %v1303, %v1193
        %v2079 = vmul.f32 %v1304, %v1194
        %v2080 = vrot.slane %v2078, 4
        %v2081 = vadd.f32 %v2078, %v2080
        %v2082 = vrot.slane %v2081, 2
        %v2083 = vadd.f32 %v2081, %v2082
        %v2084 = vrot.slane %v2083, 1
        %v2085 = vadd.f32 %v2083, %v2084
        %v2086 = vrot.slane %v2079, 4
        %v2087 = vadd.f32 %v2079, %v2086
        %v2088 = vrot.slane %v2087, 2
        %v2089 = vadd.f32 %v2087, %v2088
        %v2090 = vrot.slane %v2089, 1
        %v2091 = vadd.f32 %v2089, %v2090
        %v2092 = vmul.f32 %v1303, %v1247
        %v2093 = vmul.f32 %v1304, %v1248
        %v2094 = vrot.slane %v2092, 4
        %v2095 = vadd.f32 %v2092, %v2094
        %v2096 = vrot.slane %v2095, 2
        %v2097 = vadd.f32 %v2095, %v2096
        %v2098 = vrot.slane %v2097, 1
        %v2099 = vadd.f32 %v2097, %v2098
        %v2100 = vrot.slane %v2093, 4
        %v2101 = vadd.f32 %v2093, %v2100
        %v2102 = vrot.slane %v2101, 2
        %v2103 = vadd.f32 %v2101, %v2102
        %v2104 = vrot.slane %v2103, 1
        %v2105 = vadd.f32 %v2103, %v2104
        %v2106 = vmul.f32 %v1303, %v1301
        %v2107 = vmul.f32 %v1304, %v1302
        %v2108 = vrot.slane %v2106, 4
        %v2109 = vadd.f32 %v2106, %v2108
        %v2110 = vrot.slane %v2109, 2
        %v2111 = vadd.f32 %v2109, %v2110
        %v2112 = vrot.slane %v2111, 1
        %v2113 = vadd.f32 %v2111, %v2112
        %v2114 = vrot.slane %v2107, 4
        %v2115 = vadd.f32 %v2107, %v2114
        %v2116 = vrot.slane %v2115, 2
        %v2117 = vadd.f32 %v2115, %v2116
        %v2118 = vrot.slane %v2117, 1
        %v2119 = vadd.f32 %v2117, %v2118
        %v2120 = vmul.f32 %v1303, %v1356
        %v2121 = vmul.f32 %v1304, %v1357
        %v2122 = vrot.slane %v2120, 4
        %v2123 = vadd.f32 %v2120, %v2122
        %v2124 = vrot.slane %v2123, 2
        %v2125 = vadd.f32 %v2123, %v2124
        %v2126 = vrot.slane %v2125, 1
        %v2127 = vadd.f32 %v2125, %v2126
        %v2128 = vrot.slane %v2121, 4
        %v2129 = vadd.f32 %v2121, %v2128
        %v2130 = vrot.slane %v2129, 2
        %v2131 = vadd.f32 %v2129, %v2130
        %v2132 = vrot.slane %v2131, 1
        %v2133 = vadd.f32 %v2131, %v2132
        %v2134 = vmul.f32 %v1303, %v1371
        %v2135 = vmul.f32 %v1304, %v1372
        %v2136 = vrot.slane %v2134, 4
        %v2137 = vadd.f32 %v2134, %v2136
        %v2138 = vrot.slane %v2137, 2
        %v2139 = vadd.f32 %v2137, %v2138
        %v2140 = vrot.slane %v2139, 1
        %v2141 = vadd.f32 %v2139, %v2140
        %v2142 = vrot.slane %v2135, 4
        %v2143 = vadd.f32 %v2135, %v2142
        %v2144 = vrot.slane %v2143, 2
        %v2145 = vadd.f32 %v2143, %v2144
        %v2146 = vrot.slane %v2145, 1
        %v2147 = vadd.f32 %v2145, %v2146
        %v2148 = vmul.f32 %v1303, %v1423
        %v2149 = vmul.f32 %v1304, %v1424
        %v2150 = vrot.slane %v2148, 4
        %v2151 = vadd.f32 %v2148, %v2150
        %v2152 = vrot.slane %v2151, 2
        %v2153 = vadd.f32 %v2151, %v2152
        %v2154 = vrot.slane %v2153, 1
        %v2155 = vadd.f32 %v2153, %v2154
        %v2156 = vrot.slane %v2149, 4
        %v2157 = vadd.f32 %v2149, %v2156
        %v2158 = vrot.slane %v2157, 2
        %v2159 = vadd.f32 %v2157, %v2158
        %v2160 = vrot.slane %v2159, 1
        %v2161 = vadd.f32 %v2159, %v2160
        %v2162 = vmul.f32 %v1303, %v1478
        %v2163 = vmul.f32 %v1304, %v1479
        %v2164 = vrot.slane %v2162, 4
        %v2165 = vadd.f32 %v2162, %v2164
        %v2166 = vrot.slane %v2165, 2
        %v2167 = vadd.f32 %v2165, %v2166
        %v2168 = vrot.slane %v2167, 1
        %v2169 = vadd.f32 %v2167, %v2168
        %v2170 = vrot.slane %v2163, 4
        %v2171 = vadd.f32 %v2163, %v2170
        %v2172 = vrot.slane %v2171, 2
        %v2173 = vadd.f32 %v2171, %v2172
        %v2174 = vrot.slane %v2173, 1
        %v2175 = vadd.f32 %v2173, %v2174
        %v2176 = vmul.f32 %v1303, %v1530
        %v2177 = vmul.f32 %v1304, %v1531
        %v2178 = vrot.slane %v2176, 4
        %v2179 = vadd.f32 %v2176, %v2178
        %v2180 = vrot.slane %v2179, 2
        %v2181 = vadd.f32 %v2179, %v2180
        %v2182 = vrot.slane %v2181, 1
        %v2183 = vadd.f32 %v2181, %v2182
        %v2184 = vrot.slane %v2177, 4
        %v2185 = vadd.f32 %v2177, %v2184
        %v2186 = vrot.slane %v2185, 2
        %v2187 = vadd.f32 %v2185, %v2186
        %v2188 = vrot.slane %v2187, 1
        %v2189 = vadd.f32 %v2187, %v2188
        %v2190 = vmul.f32 %v1303, %v1582
        %v2191 = vmul.f32 %v1304, %v1583
        %v2192 = vrot.slane %v2190, 4
        %v2193 = vadd.f32 %v2190, %v2192
        %v2194 = vrot.slane %v2193, 2
        %v2195 = vadd.f32 %v2193, %v2194
        %v2196 = vrot.slane %v2195, 1
        %v2197 = vadd.f32 %v2195, %v2196
        %v2198 = vrot.slane %v2191, 4
        %v2199 = vadd.f32 %v2191, %v2198
        %v2200 = vrot.slane %v2199, 2
        %v2201 = vadd.f32 %v2199, %v2200
        %v2202 = vrot.slane %v2201, 1
        %v2203 = vadd.f32 %v2201, %v2202
        %v2204 = vadd.f32 %v2085, %v2099
        %v2205 = vadd.f32 %v2091, %v2105
        %v2206 = vadd.f32 %v2204, %v2113
        %v2207 = vadd.f32 %v2205, %v2119
        %v2208 = vadd.f32 %v2206, %v2127
        %v2209 = vadd.f32 %v2207, %v2133
        %v2210 = vadd.f32 %v2208, %v2141
        %v2211 = vadd.f32 %v2209, %v2147
        %v2212 = vadd.f32 %v2210, %v2155
        %v2213 = vadd.f32 %v2211, %v2161
        %v2214 = vadd.f32 %v2212, %v2169
        %v2215 = vadd.f32 %v2213, %v2175
        %v2216 = vadd.f32 %v2214, %v2183
        %v2217 = vadd.f32 %v2215, %v2189
        %v2218 = vadd.f32 %v2216, %v2197
        %v2219 = vadd.f32 %v2217, %v2203
        %v2220 = vmul.f32 %v2085, %v1197
        %v2221 = vmul.f32 %v2091, %v1198
        %v2222 = vmul.f32 %v2085, %v1199
        %v2223 = vmul.f32 %v2091, %v1200
        %v2224 = vmul.f32 %v2099, %v1251
        %v2225 = vmul.f32 %v2105, %v1252
        %v2226 = vmul.f32 %v2099, %v1253
        %v2227 = vmul.f32 %v2105, %v1254
        %v2228 = vadd.f32 %v2220, %v2224
        %v2229 = vadd.f32 %v2221, %v2225
        %v2230 = vadd.f32 %v2222, %v2226
        %v2231 = vadd.f32 %v2223, %v2227
        %v2232 = vmul.f32 %v2113, %v1305
        %v2233 = vmul.f32 %v2119, %v1306
        %v2234 = vmul.f32 %v2113, %v1307
        %v2235 = vmul.f32 %v2119, %v1308
        %v2236 = vadd.f32 %v2228, %v2232
        %v2237 = vadd.f32 %v2229, %v2233
        %v2238 = vadd.f32 %v2230, %v2234
        %v2239 = vadd.f32 %v2231, %v2235
        %v2240 = vmul.f32 %v2127, %v1360
        %v2241 = vmul.f32 %v2133, %v1361
        %v2242 = vmul.f32 %v2127, %v1362
        %v2243 = vmul.f32 %v2133, %v1363
        %v2244 = vadd.f32 %v2236, %v2240
        %v2245 = vadd.f32 %v2237, %v2241
        %v2246 = vadd.f32 %v2238, %v2242
        %v2247 = vadd.f32 %v2239, %v2243
        %v2248 = vmul.f32 %v2141, %v1375
        %v2249 = vmul.f32 %v2147, %v1376
        %v2250 = vmul.f32 %v2141, %v1377
        %v2251 = vmul.f32 %v2147, %v1378
        %v2252 = vadd.f32 %v2244, %v2248
        %v2253 = vadd.f32 %v2245, %v2249
        %v2254 = vadd.f32 %v2246, %v2250
        %v2255 = vadd.f32 %v2247, %v2251
        %v2256 = vmul.f32 %v2155, %v1427
        %v2257 = vmul.f32 %v2161, %v1428
        %v2258 = vmul.f32 %v2155, %v1429
        %v2259 = vmul.f32 %v2161, %v1430
        %v2260 = vadd.f32 %v2252, %v2256
        %v2261 = vadd.f32 %v2253, %v2257
        %v2262 = vadd.f32 %v2254, %v2258
        %v2263 = vadd.f32 %v2255, %v2259
        %v2264 = vmul.f32 %v2169, %v1482
        %v2265 = vmul.f32 %v2175, %v1483
        %v2266 = vmul.f32 %v2169, %v1484
        %v2267 = vmul.f32 %v2175, %v1485
        %v2268 = vadd.f32 %v2260, %v2264
        %v2269 = vadd.f32 %v2261, %v2265
        %v2270 = vadd.f32 %v2262, %v2266
        %v2271 = vadd.f32 %v2263, %v2267
        %v2272 = vmul.f32 %v2183, %v1534
        %v2273 = vmul.f32 %v2189, %v1535
        %v2274 = vmul.f32 %v2183, %v1536
        %v2275 = vmul.f32 %v2189, %v1537
        %v2276 = vadd.f32 %v2268, %v2272
        %v2277 = vadd.f32 %v2269, %v2273
        %v2278 = vadd.f32 %v2270, %v2274
        %v2279 = vadd.f32 %v2271, %v2275
        %v2280 = vmul.f32 %v2197, %v1586
        %v2281 = vmul.f32 %v2203, %v1587
        %v2282 = vmul.f32 %v2197, %v1588
        %v2283 = vmul.f32 %v2203, %v1589
        %v2284 = vadd.f32 %v2276, %v2280
        %v2285 = vadd.f32 %v2277, %v2281
        %v2286 = vadd.f32 %v2278, %v2282
        %v2287 = vadd.f32 %v2279, %v2283
        %v2288 = vadd.f32 %v2218, 1e-08
        %v2289 = vadd.f32 %v2219, 1e-08
        %v2290 = vrcp.pop %v2288
        %v2291 = vmul.f32 %v2288, %v2290
        %v2292 = vsub.f32 1.0, %v2291
        %v2293 = vmul.f32 %v2290, %v2292
        %v2294 = vadd.f32 %v2290, %v2293
        %vm2295 = vweird.f32 %v2288
        %vm2296 = vweird.f32 %v2290
        %vm2297 = vmor %vm2295, %vm2296
        %v2298 = vsel %vm2297, %v2290, %v2294
        %v2299 = vand.u32 2147483647, %v2288
        %vm2300 = vcmp.eq.f32.partialorder %v2299, 8.507059e+37
        %v2301 = vand.u32 %v2288, 2147483648
        %v2302 = vor.u32 1.1754944e-38, %v2301
        %v2303 = vsel %vm2300, %v2302, %v2298
        %v2304 = vmul.f32 %v2284, %v2303
        %v2305 = vrcp.pop %v2289
        %v2306 = vmul.f32 %v2289, %v2305
        %v2307 = vsub.f32 1.0, %v2306
        %v2308 = vmul.f32 %v2305, %v2307
        %v2309 = vadd.f32 %v2305, %v2308
        %vm2310 = vweird.f32 %v2289
        %vm2311 = vweird.f32 %v2305
        %vm2312 = vmor %vm2310, %vm2311
        %v2313 = vsel %vm2312, %v2305, %v2309
        %v2314 = vand.u32 2147483647, %v2289
        %vm2315 = vcmp.eq.f32.partialorder %v2314, 8.507059e+37
        %v2316 = vand.u32 %v2289, 2147483648
        %v2317 = vor.u32 1.1754944e-38, %v2316
        %v2318 = vsel %vm2315, %v2317, %v2313
        %v2319 = vmul.f32 %v2285, %v2318
        %v2320 = vmul.f32 %v2286, %v2303
        %v2321 = vmul.f32 %v2287, %v2318
        %v2322 = vmul.f32 %v1358, %v1193
        %v2323 = vmul.f32 %v1359, %v1194
        %v2324 = vrot.slane %v2322, 4
        %v2325 = vadd.f32 %v2322, %v2324
        %v2326 = vrot.slane %v2325, 2
        %v2327 = vadd.f32 %v2325, %v2326
        %v2328 = vrot.slane %v2327, 1
        %v2329 = vadd.f32 %v2327, %v2328
        %v2330 = vrot.slane %v2323, 4
        %v2331 = vadd.f32 %v2323, %v2330
        %v2332 = vrot.slane %v2331, 2
        %v2333 = vadd.f32 %v2331, %v2332
        %v2334 = vrot.slane %v2333, 1
        %v2335 = vadd.f32 %v2333, %v2334
        %v2336 = vmul.f32 %v1358, %v1247
        %v2337 = vmul.f32 %v1359, %v1248
        %v2338 = vrot.slane %v2336, 4
        %v2339 = vadd.f32 %v2336, %v2338
        %v2340 = vrot.slane %v2339, 2
        %v2341 = vadd.f32 %v2339, %v2340
        %v2342 = vrot.slane %v2341, 1
        %v2343 = vadd.f32 %v2341, %v2342
        %v2344 = vrot.slane %v2337, 4
        %v2345 = vadd.f32 %v2337, %v2344
        %v2346 = vrot.slane %v2345, 2
        %v2347 = vadd.f32 %v2345, %v2346
        %v2348 = vrot.slane %v2347, 1
        %v2349 = vadd.f32 %v2347, %v2348
        %v2350 = vmul.f32 %v1358, %v1301
        %v2351 = vmul.f32 %v1359, %v1302
        %v2352 = vrot.slane %v2350, 4
        %v2353 = vadd.f32 %v2350, %v2352
        %v2354 = vrot.slane %v2353, 2
        %v2355 = vadd.f32 %v2353, %v2354
        %v2356 = vrot.slane %v2355, 1
        %v2357 = vadd.f32 %v2355, %v2356
        %v2358 = vrot.slane %v2351, 4
        %v2359 = vadd.f32 %v2351, %v2358
        %v2360 = vrot.slane %v2359, 2
        %v2361 = vadd.f32 %v2359, %v2360
        %v2362 = vrot.slane %v2361, 1
        %v2363 = vadd.f32 %v2361, %v2362
        %v2364 = vmul.f32 %v1358, %v1356
        %v2365 = vmul.f32 %v1359, %v1357
        %v2366 = vrot.slane %v2364, 4
        %v2367 = vadd.f32 %v2364, %v2366
        %v2368 = vrot.slane %v2367, 2
        %v2369 = vadd.f32 %v2367, %v2368
        %v2370 = vrot.slane %v2369, 1
        %v2371 = vadd.f32 %v2369, %v2370
        %v2372 = vrot.slane %v2365, 4
        %v2373 = vadd.f32 %v2365, %v2372
        %v2374 = vrot.slane %v2373, 2
        %v2375 = vadd.f32 %v2373, %v2374
        %v2376 = vrot.slane %v2375, 1
        %v2377 = vadd.f32 %v2375, %v2376
        %v2378 = vmul.f32 %v1358, %v1371
        %v2379 = vmul.f32 %v1359, %v1372
        %v2380 = vrot.slane %v2378, 4
        %v2381 = vadd.f32 %v2378, %v2380
        %v2382 = vrot.slane %v2381, 2
        %v2383 = vadd.f32 %v2381, %v2382
        %v2384 = vrot.slane %v2383, 1
        %v2385 = vadd.f32 %v2383, %v2384
        %v2386 = vrot.slane %v2379, 4
        %v2387 = vadd.f32 %v2379, %v2386
        %v2388 = vrot.slane %v2387, 2
        %v2389 = vadd.f32 %v2387, %v2388
        %v2390 = vrot.slane %v2389, 1
        %v2391 = vadd.f32 %v2389, %v2390
        %v2392 = vmul.f32 %v1358, %v1423
        %v2393 = vmul.f32 %v1359, %v1424
        %v2394 = vrot.slane %v2392, 4
        %v2395 = vadd.f32 %v2392, %v2394
        %v2396 = vrot.slane %v2395, 2
        %v2397 = vadd.f32 %v2395, %v2396
        %v2398 = vrot.slane %v2397, 1
        %v2399 = vadd.f32 %v2397, %v2398
        %v2400 = vrot.slane %v2393, 4
        %v2401 = vadd.f32 %v2393, %v2400
        %v2402 = vrot.slane %v2401, 2
        %v2403 = vadd.f32 %v2401, %v2402
        %v2404 = vrot.slane %v2403, 1
        %v2405 = vadd.f32 %v2403, %v2404
        %v2406 = vmul.f32 %v1358, %v1478
        %v2407 = vmul.f32 %v1359, %v1479
        %v2408 = vrot.slane %v2406, 4
        %v2409 = vadd.f32 %v2406, %v2408
        %v2410 = vrot.slane %v2409, 2
        %v2411 = vadd.f32 %v2409, %v2410
        %v2412 = vrot.slane %v2411, 1
        %v2413 = vadd.f32 %v2411, %v2412
        %v2414 = vrot.slane %v2407, 4
        %v2415 = vadd.f32 %v2407, %v2414
        %v2416 = vrot.slane %v2415, 2
        %v2417 = vadd.f32 %v2415, %v2416
        %v2418 = vrot.slane %v2417, 1
        %v2419 = vadd.f32 %v2417, %v2418
        %v2420 = vmul.f32 %v1358, %v1530
        %v2421 = vmul.f32 %v1359, %v1531
        %v2422 = vrot.slane %v2420, 4
        %v2423 = vadd.f32 %v2420, %v2422
        %v2424 = vrot.slane %v2423, 2
        %v2425 = vadd.f32 %v2423, %v2424
        %v2426 = vrot.slane %v2425, 1
        %v2427 = vadd.f32 %v2425, %v2426
        %v2428 = vrot.slane %v2421, 4
        %v2429 = vadd.f32 %v2421, %v2428
        %v2430 = vrot.slane %v2429, 2
        %v2431 = vadd.f32 %v2429, %v2430
        %v2432 = vrot.slane %v2431, 1
        %v2433 = vadd.f32 %v2431, %v2432
        %v2434 = vmul.f32 %v1358, %v1582
        %v2435 = vmul.f32 %v1359, %v1583
        %v2436 = vrot.slane %v2434, 4
        %v2437 = vadd.f32 %v2434, %v2436
        %v2438 = vrot.slane %v2437, 2
        %v2439 = vadd.f32 %v2437, %v2438
        %v2440 = vrot.slane %v2439, 1
        %v2441 = vadd.f32 %v2439, %v2440
        %v2442 = vrot.slane %v2435, 4
        %v2443 = vadd.f32 %v2435, %v2442
        %v2444 = vrot.slane %v2443, 2
        %v2445 = vadd.f32 %v2443, %v2444
        %v2446 = vrot.slane %v2445, 1
        %v2447 = vadd.f32 %v2445, %v2446
        %v2448 = vadd.f32 %v2329, %v2343
        %v2449 = vadd.f32 %v2335, %v2349
        %v2450 = vadd.f32 %v2448, %v2357
        %v2451 = vadd.f32 %v2449, %v2363
        %v2452 = vadd.f32 %v2450, %v2371
        %v2453 = vadd.f32 %v2451, %v2377
        %v2454 = vadd.f32 %v2452, %v2385
        %v2455 = vadd.f32 %v2453, %v2391
        %v2456 = vadd.f32 %v2454, %v2399
        %v2457 = vadd.f32 %v2455, %v2405
        %v2458 = vadd.f32 %v2456, %v2413
        %v2459 = vadd.f32 %v2457, %v2419
        %v2460 = vadd.f32 %v2458, %v2427
        %v2461 = vadd.f32 %v2459, %v2433
        %v2462 = vadd.f32 %v2460, %v2441
        %v2463 = vadd.f32 %v2461, %v2447
        %v2464 = vmul.f32 %v2329, %v1197
        %v2465 = vmul.f32 %v2335, %v1198
        %v2466 = vmul.f32 %v2329, %v1199
        %v2467 = vmul.f32 %v2335, %v1200
        %v2468 = vmul.f32 %v2343, %v1251
        %v2469 = vmul.f32 %v2349, %v1252
        %v2470 = vmul.f32 %v2343, %v1253
        %v2471 = vmul.f32 %v2349, %v1254
        %v2472 = vadd.f32 %v2464, %v2468
        %v2473 = vadd.f32 %v2465, %v2469
        %v2474 = vadd.f32 %v2466, %v2470
        %v2475 = vadd.f32 %v2467, %v2471
        %v2476 = vmul.f32 %v2357, %v1305
        %v2477 = vmul.f32 %v2363, %v1306
        %v2478 = vmul.f32 %v2357, %v1307
        %v2479 = vmul.f32 %v2363, %v1308
        %v2480 = vadd.f32 %v2472, %v2476
        %v2481 = vadd.f32 %v2473, %v2477
        %v2482 = vadd.f32 %v2474, %v2478
        %v2483 = vadd.f32 %v2475, %v2479
        %v2484 = vmul.f32 %v2371, %v1360
        %v2485 = vmul.f32 %v2377, %v1361
        %v2486 = vmul.f32 %v2371, %v1362
        %v2487 = vmul.f32 %v2377, %v1363
        %v2488 = vadd.f32 %v2480, %v2484
        %v2489 = vadd.f32 %v2481, %v2485
        %v2490 = vadd.f32 %v2482, %v2486
        %v2491 = vadd.f32 %v2483, %v2487
        %v2492 = vmul.f32 %v2385, %v1375
        %v2493 = vmul.f32 %v2391, %v1376
        %v2494 = vmul.f32 %v2385, %v1377
        %v2495 = vmul.f32 %v2391, %v1378
        %v2496 = vadd.f32 %v2488, %v2492
        %v2497 = vadd.f32 %v2489, %v2493
        %v2498 = vadd.f32 %v2490, %v2494
        %v2499 = vadd.f32 %v2491, %v2495
        %v2500 = vmul.f32 %v2399, %v1427
        %v2501 = vmul.f32 %v2405, %v1428
        %v2502 = vmul.f32 %v2399, %v1429
        %v2503 = vmul.f32 %v2405, %v1430
        %v2504 = vadd.f32 %v2496, %v2500
        %v2505 = vadd.f32 %v2497, %v2501
        %v2506 = vadd.f32 %v2498, %v2502
        %v2507 = vadd.f32 %v2499, %v2503
        %v2508 = vmul.f32 %v2413, %v1482
        %v2509 = vmul.f32 %v2419, %v1483
        %v2510 = vmul.f32 %v2413, %v1484
        %v2511 = vmul.f32 %v2419, %v1485
        %v2512 = vadd.f32 %v2504, %v2508
        %v2513 = vadd.f32 %v2505, %v2509
        %v2514 = vadd.f32 %v2506, %v2510
        %v2515 = vadd.f32 %v2507, %v2511
        %v2516 = vmul.f32 %v2427, %v1534
        %v2517 = vmul.f32 %v2433, %v1535
        %v2518 = vmul.f32 %v2427, %v1536
        %v2519 = vmul.f32 %v2433, %v1537
        %v2520 = vadd.f32 %v2512, %v2516
        %v2521 = vadd.f32 %v2513, %v2517
        %v2522 = vadd.f32 %v2514, %v2518
        %v2523 = vadd.f32 %v2515, %v2519
        %v2524 = vmul.f32 %v2441, %v1586
        %v2525 = vmul.f32 %v2447, %v1587
        %v2526 = vmul.f32 %v2441, %v1588
        %v2527 = vmul.f32 %v2447, %v1589
        %v2528 = vadd.f32 %v2520, %v2524
        %v2529 = vadd.f32 %v2521, %v2525
        %v2530 = vadd.f32 %v2522, %v2526
        %v2531 = vadd.f32 %v2523, %v2527
        %v2532 = vadd.f32 %v2462, 1e-08
        %v2533 = vadd.f32 %v2463, 1e-08
        %v2534 = vrcp.pop %v2532
        %v2535 = vmul.f32 %v2532, %v2534
        %v2536 = vsub.f32 1.0, %v2535
        %v2537 = vmul.f32 %v2534, %v2536
        %v2538 = vadd.f32 %v2534, %v2537
        %vm2539 = vweird.f32 %v2532
        %vm2540 = vweird.f32 %v2534
        %vm2541 = vmor %vm2539, %vm2540
        %v2542 = vsel %vm2541, %v2534, %v2538
        %v2543 = vand.u32 2147483647, %v2532
        %vm2544 = vcmp.eq.f32.partialorder %v2543, 8.507059e+37
        %v2545 = vand.u32 %v2532, 2147483648
        %v2546 = vor.u32 1.1754944e-38, %v2545
        %v2547 = vsel %vm2544, %v2546, %v2542
        %v2548 = vmul.f32 %v2528, %v2547
        %v2549 = vrcp.pop %v2533
        %v2550 = vmul.f32 %v2533, %v2549
        %v2551 = vsub.f32 1.0, %v2550
        %v2552 = vmul.f32 %v2549, %v2551
        %v2553 = vadd.f32 %v2549, %v2552
        %vm2554 = vweird.f32 %v2533
        %vm2555 = vweird.f32 %v2549
        %vm2556 = vmor %vm2554, %vm2555
        %v2557 = vsel %vm2556, %v2549, %v2553
        %v2558 = vand.u32 2147483647, %v2533
        %vm2559 = vcmp.eq.f32.partialorder %v2558, 8.507059e+37
        %v2560 = vand.u32 %v2533, 2147483648
        %v2561 = vor.u32 1.1754944e-38, %v2560
        %v2562 = vsel %vm2559, %v2561, %v2557
        %v2563 = vmul.f32 %v2529, %v2562
        %v2564 = vmul.f32 %v2530, %v2547
        %v2565 = vmul.f32 %v2531, %v2562
        %v2566 = vmul.f32 %v1373, %v1193
        %v2567 = vmul.f32 %v1374, %v1194
        %v2568 = vrot.slane %v2566, 4
        %v2569 = vadd.f32 %v2566, %v2568
        %v2570 = vrot.slane %v2569, 2
        %v2571 = vadd.f32 %v2569, %v2570
        %v2572 = vrot.slane %v2571, 1
        %v2573 = vadd.f32 %v2571, %v2572
        %v2574 = vrot.slane %v2567, 4
        %v2575 = vadd.f32 %v2567, %v2574
        %v2576 = vrot.slane %v2575, 2
        %v2577 = vadd.f32 %v2575, %v2576
        %v2578 = vrot.slane %v2577, 1
        %v2579 = vadd.f32 %v2577, %v2578
        %v2580 = vmul.f32 %v1373, %v1247
        %v2581 = vmul.f32 %v1374, %v1248
        %v2582 = vrot.slane %v2580, 4
        %v2583 = vadd.f32 %v2580, %v2582
        %v2584 = vrot.slane %v2583, 2
        %v2585 = vadd.f32 %v2583, %v2584
        %v2586 = vrot.slane %v2585, 1
        %v2587 = vadd.f32 %v2585, %v2586
        %v2588 = vrot.slane %v2581, 4
        %v2589 = vadd.f32 %v2581, %v2588
        %v2590 = vrot.slane %v2589, 2
        %v2591 = vadd.f32 %v2589, %v2590
        %v2592 = vrot.slane %v2591, 1
        %v2593 = vadd.f32 %v2591, %v2592
        %v2594 = vmul.f32 %v1373, %v1301
        %v2595 = vmul.f32 %v1374, %v1302
        %v2596 = vrot.slane %v2594, 4
        %v2597 = vadd.f32 %v2594, %v2596
        %v2598 = vrot.slane %v2597, 2
        %v2599 = vadd.f32 %v2597, %v2598
        %v2600 = vrot.slane %v2599, 1
        %v2601 = vadd.f32 %v2599, %v2600
        %v2602 = vrot.slane %v2595, 4
        %v2603 = vadd.f32 %v2595, %v2602
        %v2604 = vrot.slane %v2603, 2
        %v2605 = vadd.f32 %v2603, %v2604
        %v2606 = vrot.slane %v2605, 1
        %v2607 = vadd.f32 %v2605, %v2606
        %v2608 = vmul.f32 %v1373, %v1356
        %v2609 = vmul.f32 %v1374, %v1357
        %v2610 = vrot.slane %v2608, 4
        %v2611 = vadd.f32 %v2608, %v2610
        %v2612 = vrot.slane %v2611, 2
        %v2613 = vadd.f32 %v2611, %v2612
        %v2614 = vrot.slane %v2613, 1
        %v2615 = vadd.f32 %v2613, %v2614
        %v2616 = vrot.slane %v2609, 4
        %v2617 = vadd.f32 %v2609, %v2616
        %v2618 = vrot.slane %v2617, 2
        %v2619 = vadd.f32 %v2617, %v2618
        %v2620 = vrot.slane %v2619, 1
        %v2621 = vadd.f32 %v2619, %v2620
        %v2622 = vmul.f32 %v1373, %v1371
        %v2623 = vmul.f32 %v1374, %v1372
        %v2624 = vrot.slane %v2622, 4
        %v2625 = vadd.f32 %v2622, %v2624
        %v2626 = vrot.slane %v2625, 2
        %v2627 = vadd.f32 %v2625, %v2626
        %v2628 = vrot.slane %v2627, 1
        %v2629 = vadd.f32 %v2627, %v2628
        %v2630 = vrot.slane %v2623, 4
        %v2631 = vadd.f32 %v2623, %v2630
        %v2632 = vrot.slane %v2631, 2
        %v2633 = vadd.f32 %v2631, %v2632
        %v2634 = vrot.slane %v2633, 1
        %v2635 = vadd.f32 %v2633, %v2634
        %v2636 = vmul.f32 %v1373, %v1423
        %v2637 = vmul.f32 %v1374, %v1424
        %v2638 = vrot.slane %v2636, 4
        %v2639 = vadd.f32 %v2636, %v2638
        %v2640 = vrot.slane %v2639, 2
        %v2641 = vadd.f32 %v2639, %v2640
        %v2642 = vrot.slane %v2641, 1
        %v2643 = vadd.f32 %v2641, %v2642
        %v2644 = vrot.slane %v2637, 4
        %v2645 = vadd.f32 %v2637, %v2644
        %v2646 = vrot.slane %v2645, 2
        %v2647 = vadd.f32 %v2645, %v2646
        %v2648 = vrot.slane %v2647, 1
        %v2649 = vadd.f32 %v2647, %v2648
        %v2650 = vmul.f32 %v1373, %v1478
        %v2651 = vmul.f32 %v1374, %v1479
        %v2652 = vrot.slane %v2650, 4
        %v2653 = vadd.f32 %v2650, %v2652
        %v2654 = vrot.slane %v2653, 2
        %v2655 = vadd.f32 %v2653, %v2654
        %v2656 = vrot.slane %v2655, 1
        %v2657 = vadd.f32 %v2655, %v2656
        %v2658 = vrot.slane %v2651, 4
        %v2659 = vadd.f32 %v2651, %v2658
        %v2660 = vrot.slane %v2659, 2
        %v2661 = vadd.f32 %v2659, %v2660
        %v2662 = vrot.slane %v2661, 1
        %v2663 = vadd.f32 %v2661, %v2662
        %v2664 = vmul.f32 %v1373, %v1530
        %v2665 = vmul.f32 %v1374, %v1531
        %v2666 = vrot.slane %v2664, 4
        %v2667 = vadd.f32 %v2664, %v2666
        %v2668 = vrot.slane %v2667, 2
        %v2669 = vadd.f32 %v2667, %v2668
        %v2670 = vrot.slane %v2669, 1
        %v2671 = vadd.f32 %v2669, %v2670
        %v2672 = vrot.slane %v2665, 4
        %v2673 = vadd.f32 %v2665, %v2672
        %v2674 = vrot.slane %v2673, 2
        %v2675 = vadd.f32 %v2673, %v2674
        %v2676 = vrot.slane %v2675, 1
        %v2677 = vadd.f32 %v2675, %v2676
        %v2678 = vmul.f32 %v1373, %v1582
        %v2679 = vmul.f32 %v1374, %v1583
        %v2680 = vrot.slane %v2678, 4
        %v2681 = vadd.f32 %v2678, %v2680
        %v2682 = vrot.slane %v2681, 2
        %v2683 = vadd.f32 %v2681, %v2682
        %v2684 = vrot.slane %v2683, 1
        %v2685 = vadd.f32 %v2683, %v2684
        %v2686 = vrot.slane %v2679, 4
        %v2687 = vadd.f32 %v2679, %v2686
        %v2688 = vrot.slane %v2687, 2
        %v2689 = vadd.f32 %v2687, %v2688
        %v2690 = vrot.slane %v2689, 1
        %v2691 = vadd.f32 %v2689, %v2690
        %v2692 = vadd.f32 %v2573, %v2587
        %v2693 = vadd.f32 %v2579, %v2593
        %v2694 = vadd.f32 %v2692, %v2601
        %v2695 = vadd.f32 %v2693, %v2607
        %v2696 = vadd.f32 %v2694, %v2615
        %v2697 = vadd.f32 %v2695, %v2621
        %v2698 = vadd.f32 %v2696, %v2629
        %v2699 = vadd.f32 %v2697, %v2635
        %v2700 = vadd.f32 %v2698, %v2643
        %v2701 = vadd.f32 %v2699, %v2649
        %v2702 = vadd.f32 %v2700, %v2657
        %v2703 = vadd.f32 %v2701, %v2663
        %v2704 = vadd.f32 %v2702, %v2671
        %v2705 = vadd.f32 %v2703, %v2677
        %v2706 = vadd.f32 %v2704, %v2685
        %v2707 = vadd.f32 %v2705, %v2691
        %v2708 = vmul.f32 %v2573, %v1197
        %v2709 = vmul.f32 %v2579, %v1198
        %v2710 = vmul.f32 %v2573, %v1199
        %v2711 = vmul.f32 %v2579, %v1200
        %v2712 = vmul.f32 %v2587, %v1251
        %v2713 = vmul.f32 %v2593, %v1252
        %v2714 = vmul.f32 %v2587, %v1253
        %v2715 = vmul.f32 %v2593, %v1254
        %v2716 = vadd.f32 %v2708, %v2712
        %v2717 = vadd.f32 %v2709, %v2713
        %v2718 = vadd.f32 %v2710, %v2714
        %v2719 = vadd.f32 %v2711, %v2715
        %v2720 = vmul.f32 %v2601, %v1305
        %v2721 = vmul.f32 %v2607, %v1306
        %v2722 = vmul.f32 %v2601, %v1307
        %v2723 = vmul.f32 %v2607, %v1308
        %v2724 = vadd.f32 %v2716, %v2720
        %v2725 = vadd.f32 %v2717, %v2721
        %v2726 = vadd.f32 %v2718, %v2722
        %v2727 = vadd.f32 %v2719, %v2723
        %v2728 = vmul.f32 %v2615, %v1360
        %v2729 = vmul.f32 %v2621, %v1361
        %v2730 = vmul.f32 %v2615, %v1362
        %v2731 = vmul.f32 %v2621, %v1363
        %v2732 = vadd.f32 %v2724, %v2728
        %v2733 = vadd.f32 %v2725, %v2729
        %v2734 = vadd.f32 %v2726, %v2730
        %v2735 = vadd.f32 %v2727, %v2731
        %v2736 = vmul.f32 %v2629, %v1375
        %v2737 = vmul.f32 %v2635, %v1376
        %v2738 = vmul.f32 %v2629, %v1377
        %v2739 = vmul.f32 %v2635, %v1378
        %v2740 = vadd.f32 %v2732, %v2736
        %v2741 = vadd.f32 %v2733, %v2737
        %v2742 = vadd.f32 %v2734, %v2738
        %v2743 = vadd.f32 %v2735, %v2739
        %v2744 = vmul.f32 %v2643, %v1427
        %v2745 = vmul.f32 %v2649, %v1428
        %v2746 = vmul.f32 %v2643, %v1429
        %v2747 = vmul.f32 %v2649, %v1430
        %v2748 = vadd.f32 %v2740, %v2744
        %v2749 = vadd.f32 %v2741, %v2745
        %v2750 = vadd.f32 %v2742, %v2746
        %v2751 = vadd.f32 %v2743, %v2747
        %v2752 = vmul.f32 %v2657, %v1482
        %v2753 = vmul.f32 %v2663, %v1483
        %v2754 = vmul.f32 %v2657, %v1484
        %v2755 = vmul.f32 %v2663, %v1485
        %v2756 = vadd.f32 %v2748, %v2752
        %v2757 = vadd.f32 %v2749, %v2753
        %v2758 = vadd.f32 %v2750, %v2754
        %v2759 = vadd.f32 %v2751, %v2755
        %v2760 = vmul.f32 %v2671, %v1534
        %v2761 = vmul.f32 %v2677, %v1535
        %v2762 = vmul.f32 %v2671, %v1536
        %v2763 = vmul.f32 %v2677, %v1537
        %v2764 = vadd.f32 %v2756, %v2760
        %v2765 = vadd.f32 %v2757, %v2761
        %v2766 = vadd.f32 %v2758, %v2762
        %v2767 = vadd.f32 %v2759, %v2763
        %v2768 = vmul.f32 %v2685, %v1586
        %v2769 = vmul.f32 %v2691, %v1587
        %v2770 = vmul.f32 %v2685, %v1588
        %v2771 = vmul.f32 %v2691, %v1589
        %v2772 = vadd.f32 %v2764, %v2768
        %v2773 = vadd.f32 %v2765, %v2769
        %v2774 = vadd.f32 %v2766, %v2770
        %v2775 = vadd.f32 %v2767, %v2771
        %v2776 = vadd.f32 %v2706, 1e-08
        %v2777 = vadd.f32 %v2707, 1e-08
        %v2778 = vrcp.pop %v2776
        %v2779 = vmul.f32 %v2776, %v2778
        %v2780 = vsub.f32 1.0, %v2779
        %v2781 = vmul.f32 %v2778, %v2780
        %v2782 = vadd.f32 %v2778, %v2781
        %vm2783 = vweird.f32 %v2776
        %vm2784 = vweird.f32 %v2778
        %vm2785 = vmor %vm2783, %vm2784
        %v2786 = vsel %vm2785, %v2778, %v2782
        %v2787 = vand.u32 2147483647, %v2776
        %vm2788 = vcmp.eq.f32.partialorder %v2787, 8.507059e+37
        %v2789 = vand.u32 %v2776, 2147483648
        %v2790 = vor.u32 1.1754944e-38, %v2789
        %v2791 = vsel %vm2788, %v2790, %v2786
        %v2792 = vmul.f32 %v2772, %v2791
        %v2793 = vrcp.pop %v2777
        %v2794 = vmul.f32 %v2777, %v2793
        %v2795 = vsub.f32 1.0, %v2794
        %v2796 = vmul.f32 %v2793, %v2795
        %v2797 = vadd.f32 %v2793, %v2796
        %vm2798 = vweird.f32 %v2777
        %vm2799 = vweird.f32 %v2793
        %vm2800 = vmor %vm2798, %vm2799
        %v2801 = vsel %vm2800, %v2793, %v2797
        %v2802 = vand.u32 2147483647, %v2777
        %vm2803 = vcmp.eq.f32.partialorder %v2802, 8.507059e+37
        %v2804 = vand.u32 %v2777, 2147483648
        %v2805 = vor.u32 1.1754944e-38, %v2804
        %v2806 = vsel %vm2803, %v2805, %v2801
        %v2807 = vmul.f32 %v2773, %v2806
        %v2808 = vmul.f32 %v2774, %v2791
        %v2809 = vmul.f32 %v2775, %v2806
        %v2810 = vmul.f32 %v1425, %v1193
        %v2811 = vmul.f32 %v1426, %v1194
        %v2812 = vrot.slane %v2810, 4
        %v2813 = vadd.f32 %v2810, %v2812
        %v2814 = vrot.slane %v2813, 2
        %v2815 = vadd.f32 %v2813, %v2814
        %v2816 = vrot.slane %v2815, 1
        %v2817 = vadd.f32 %v2815, %v2816
        %v2818 = vrot.slane %v2811, 4
        %v2819 = vadd.f32 %v2811, %v2818
        %v2820 = vrot.slane %v2819, 2
        %v2821 = vadd.f32 %v2819, %v2820
        %v2822 = vrot.slane %v2821, 1
        %v2823 = vadd.f32 %v2821, %v2822
        %v2824 = vmul.f32 %v1425, %v1247
        %v2825 = vmul.f32 %v1426, %v1248
        %v2826 = vrot.slane %v2824, 4
        %v2827 = vadd.f32 %v2824, %v2826
        %v2828 = vrot.slane %v2827, 2
        %v2829 = vadd.f32 %v2827, %v2828
        %v2830 = vrot.slane %v2829, 1
        %v2831 = vadd.f32 %v2829, %v2830
        %v2832 = vrot.slane %v2825, 4
        %v2833 = vadd.f32 %v2825, %v2832
        %v2834 = vrot.slane %v2833, 2
        %v2835 = vadd.f32 %v2833, %v2834
        %v2836 = vrot.slane %v2835, 1
        %v2837 = vadd.f32 %v2835, %v2836
        %v2838 = vmul.f32 %v1425, %v1301
        %v2839 = vmul.f32 %v1426, %v1302
        %v2840 = vrot.slane %v2838, 4
        %v2841 = vadd.f32 %v2838, %v2840
        %v2842 = vrot.slane %v2841, 2
        %v2843 = vadd.f32 %v2841, %v2842
        %v2844 = vrot.slane %v2843, 1
        %v2845 = vadd.f32 %v2843, %v2844
        %v2846 = vrot.slane %v2839, 4
        %v2847 = vadd.f32 %v2839, %v2846
        %v2848 = vrot.slane %v2847, 2
        %v2849 = vadd.f32 %v2847, %v2848
        %v2850 = vrot.slane %v2849, 1
        %v2851 = vadd.f32 %v2849, %v2850
        %v2852 = vmul.f32 %v1425, %v1356
        %v2853 = vmul.f32 %v1426, %v1357
        %v2854 = vrot.slane %v2852, 4
        %v2855 = vadd.f32 %v2852, %v2854
        %v2856 = vrot.slane %v2855, 2
        %v2857 = vadd.f32 %v2855, %v2856
        %v2858 = vrot.slane %v2857, 1
        %v2859 = vadd.f32 %v2857, %v2858
        %v2860 = vrot.slane %v2853, 4
        %v2861 = vadd.f32 %v2853, %v2860
        %v2862 = vrot.slane %v2861, 2
        %v2863 = vadd.f32 %v2861, %v2862
        %v2864 = vrot.slane %v2863, 1
        %v2865 = vadd.f32 %v2863, %v2864
        %v2866 = vmul.f32 %v1425, %v1371
        %v2867 = vmul.f32 %v1426, %v1372
        %v2868 = vrot.slane %v2866, 4
        %v2869 = vadd.f32 %v2866, %v2868
        %v2870 = vrot.slane %v2869, 2
        %v2871 = vadd.f32 %v2869, %v2870
        %v2872 = vrot.slane %v2871, 1
        %v2873 = vadd.f32 %v2871, %v2872
        %v2874 = vrot.slane %v2867, 4
        %v2875 = vadd.f32 %v2867, %v2874
        %v2876 = vrot.slane %v2875, 2
        %v2877 = vadd.f32 %v2875, %v2876
        %v2878 = vrot.slane %v2877, 1
        %v2879 = vadd.f32 %v2877, %v2878
        %v2880 = vmul.f32 %v1425, %v1423
        %v2881 = vmul.f32 %v1426, %v1424
        %v2882 = vrot.slane %v2880, 4
        %v2883 = vadd.f32 %v2880, %v2882
        %v2884 = vrot.slane %v2883, 2
        %v2885 = vadd.f32 %v2883, %v2884
        %v2886 = vrot.slane %v2885, 1
        %v2887 = vadd.f32 %v2885, %v2886
        %v2888 = vrot.slane %v2881, 4
        %v2889 = vadd.f32 %v2881, %v2888
        %v2890 = vrot.slane %v2889, 2
        %v2891 = vadd.f32 %v2889, %v2890
        %v2892 = vrot.slane %v2891, 1
        %v2893 = vadd.f32 %v2891, %v2892
        %v2894 = vmul.f32 %v1425, %v1478
        %v2895 = vmul.f32 %v1426, %v1479
        %v2896 = vrot.slane %v2894, 4
        %v2897 = vadd.f32 %v2894, %v2896
        %v2898 = vrot.slane %v2897, 2
        %v2899 = vadd.f32 %v2897, %v2898
        %v2900 = vrot.slane %v2899, 1
        %v2901 = vadd.f32 %v2899, %v2900
        %v2902 = vrot.slane %v2895, 4
        %v2903 = vadd.f32 %v2895, %v2902
        %v2904 = vrot.slane %v2903, 2
        %v2905 = vadd.f32 %v2903, %v2904
        %v2906 = vrot.slane %v2905, 1
        %v2907 = vadd.f32 %v2905, %v2906
        %v2908 = vmul.f32 %v1425, %v1530
        %v2909 = vmul.f32 %v1426, %v1531
        %v2910 = vrot.slane %v2908, 4
        %v2911 = vadd.f32 %v2908, %v2910
        %v2912 = vrot.slane %v2911, 2
        %v2913 = vadd.f32 %v2911, %v2912
        %v2914 = vrot.slane %v2913, 1
        %v2915 = vadd.f32 %v2913, %v2914
        %v2916 = vrot.slane %v2909, 4
        %v2917 = vadd.f32 %v2909, %v2916
        %v2918 = vrot.slane %v2917, 2
        %v2919 = vadd.f32 %v2917, %v2918
        %v2920 = vrot.slane %v2919, 1
        %v2921 = vadd.f32 %v2919, %v2920
        %v2922 = vmul.f32 %v1425, %v1582
        %v2923 = vmul.f32 %v1426, %v1583
        %v2924 = vrot.slane %v2922, 4
        %v2925 = vadd.f32 %v2922, %v2924
        %v2926 = vrot.slane %v2925, 2
        %v2927 = vadd.f32 %v2925, %v2926
        %v2928 = vrot.slane %v2927, 1
        %v2929 = vadd.f32 %v2927, %v2928
        %v2930 = vrot.slane %v2923, 4
        %v2931 = vadd.f32 %v2923, %v2930
        %v2932 = vrot.slane %v2931, 2
        %v2933 = vadd.f32 %v2931, %v2932
        %v2934 = vrot.slane %v2933, 1
        %v2935 = vadd.f32 %v2933, %v2934
        %v2936 = vadd.f32 %v2817, %v2831
        %v2937 = vadd.f32 %v2823, %v2837
        %v2938 = vadd.f32 %v2936, %v2845
        %v2939 = vadd.f32 %v2937, %v2851
        %v2940 = vadd.f32 %v2938, %v2859
        %v2941 = vadd.f32 %v2939, %v2865
        %v2942 = vadd.f32 %v2940, %v2873
        %v2943 = vadd.f32 %v2941, %v2879
        %v2944 = vadd.f32 %v2942, %v2887
        %v2945 = vadd.f32 %v2943, %v2893
        %v2946 = vadd.f32 %v2944, %v2901
        %v2947 = vadd.f32 %v2945, %v2907
        %v2948 = vadd.f32 %v2946, %v2915
        %v2949 = vadd.f32 %v2947, %v2921
        %v2950 = vadd.f32 %v2948, %v2929
        %v2951 = vadd.f32 %v2949, %v2935
        %v2952 = vmul.f32 %v2817, %v1197
        %v2953 = vmul.f32 %v2823, %v1198
        %v2954 = vmul.f32 %v2817, %v1199
        %v2955 = vmul.f32 %v2823, %v1200
        %v2956 = vmul.f32 %v2831, %v1251
        %v2957 = vmul.f32 %v2837, %v1252
        %v2958 = vmul.f32 %v2831, %v1253
        %v2959 = vmul.f32 %v2837, %v1254
        %v2960 = vadd.f32 %v2952, %v2956
        %v2961 = vadd.f32 %v2953, %v2957
        %v2962 = vadd.f32 %v2954, %v2958
        %v2963 = vadd.f32 %v2955, %v2959
        %v2964 = vmul.f32 %v2845, %v1305
        %v2965 = vmul.f32 %v2851, %v1306
        %v2966 = vmul.f32 %v2845, %v1307
        %v2967 = vmul.f32 %v2851, %v1308
        %v2968 = vadd.f32 %v2960, %v2964
        %v2969 = vadd.f32 %v2961, %v2965
        %v2970 = vadd.f32 %v2962, %v2966
        %v2971 = vadd.f32 %v2963, %v2967
        %v2972 = vmul.f32 %v2859, %v1360
        %v2973 = vmul.f32 %v2865, %v1361
        %v2974 = vmul.f32 %v2859, %v1362
        %v2975 = vmul.f32 %v2865, %v1363
        %v2976 = vadd.f32 %v2968, %v2972
        %v2977 = vadd.f32 %v2969, %v2973
        %v2978 = vadd.f32 %v2970, %v2974
        %v2979 = vadd.f32 %v2971, %v2975
        %v2980 = vmul.f32 %v2873, %v1375
        %v2981 = vmul.f32 %v2879, %v1376
        %v2982 = vmul.f32 %v2873, %v1377
        %v2983 = vmul.f32 %v2879, %v1378
        %v2984 = vadd.f32 %v2976, %v2980
        %v2985 = vadd.f32 %v2977, %v2981
        %v2986 = vadd.f32 %v2978, %v2982
        %v2987 = vadd.f32 %v2979, %v2983
        %v2988 = vmul.f32 %v2887, %v1427
        %v2989 = vmul.f32 %v2893, %v1428
        %v2990 = vmul.f32 %v2887, %v1429
        %v2991 = vmul.f32 %v2893, %v1430
        %v2992 = vadd.f32 %v2984, %v2988
        %v2993 = vadd.f32 %v2985, %v2989
        %v2994 = vadd.f32 %v2986, %v2990
        %v2995 = vadd.f32 %v2987, %v2991
        %v2996 = vmul.f32 %v2901, %v1482
        %v2997 = vmul.f32 %v2907, %v1483
        %v2998 = vmul.f32 %v2901, %v1484
        %v2999 = vmul.f32 %v2907, %v1485
        %v3000 = vadd.f32 %v2992, %v2996
        %v3001 = vadd.f32 %v2993, %v2997
        %v3002 = vadd.f32 %v2994, %v2998
        %v3003 = vadd.f32 %v2995, %v2999
        %v3004 = vmul.f32 %v2915, %v1534
        %v3005 = vmul.f32 %v2921, %v1535
        %v3006 = vmul.f32 %v2915, %v1536
        %v3007 = vmul.f32 %v2921, %v1537
        %v3008 = vadd.f32 %v3000, %v3004
        %v3009 = vadd.f32 %v3001, %v3005
        %v3010 = vadd.f32 %v3002, %v3006
        %v3011 = vadd.f32 %v3003, %v3007
        %v3012 = vmul.f32 %v2929, %v1586
        %v3013 = vmul.f32 %v2935, %v1587
        %v3014 = vmul.f32 %v2929, %v1588
        %v3015 = vmul.f32 %v2935, %v1589
        %v3016 = vadd.f32 %v3008, %v3012
        %v3017 = vadd.f32 %v3009, %v3013
        %v3018 = vadd.f32 %v3010, %v3014
        %v3019 = vadd.f32 %v3011, %v3015
        %v3020 = vadd.f32 %v2950, 1e-08
        %v3021 = vadd.f32 %v2951, 1e-08
        %v3022 = vrcp.pop %v3020
        %v3023 = vmul.f32 %v3020, %v3022
        %v3024 = vsub.f32 1.0, %v3023
        %v3025 = vmul.f32 %v3022, %v3024
        %v3026 = vadd.f32 %v3022, %v3025
        %vm3027 = vweird.f32 %v3020
        %vm3028 = vweird.f32 %v3022
        %vm3029 = vmor %vm3027, %vm3028
        %v3030 = vsel %vm3029, %v3022, %v3026
        %v3031 = vand.u32 2147483647, %v3020
        %vm3032 = vcmp.eq.f32.partialorder %v3031, 8.507059e+37
        %v3033 = vand.u32 %v3020, 2147483648
        %v3034 = vor.u32 1.1754944e-38, %v3033
        %v3035 = vsel %vm3032, %v3034, %v3030
        %v3036 = vmul.f32 %v3016, %v3035
        %v3037 = vrcp.pop %v3021
        %v3038 = vmul.f32 %v3021, %v3037
        %v3039 = vsub.f32 1.0, %v3038
        %v3040 = vmul.f32 %v3037, %v3039
        %v3041 = vadd.f32 %v3037, %v3040
        %vm3042 = vweird.f32 %v3021
        %vm3043 = vweird.f32 %v3037
        %vm3044 = vmor %vm3042, %vm3043
        %v3045 = vsel %vm3044, %v3037, %v3041
        %v3046 = vand.u32 2147483647, %v3021
        %vm3047 = vcmp.eq.f32.partialorder %v3046, 8.507059e+37
        %v3048 = vand.u32 %v3021, 2147483648
        %v3049 = vor.u32 1.1754944e-38, %v3048
        %v3050 = vsel %vm3047, %v3049, %v3045
        %v3051 = vmul.f32 %v3017, %v3050
        %v3052 = vmul.f32 %v3018, %v3035
        %v3053 = vmul.f32 %v3019, %v3050
        %v3054 = vmul.f32 %v1480, %v1193
        %v3055 = vmul.f32 %v1481, %v1194
        %v3056 = vrot.slane %v3054, 4
        %v3057 = vadd.f32 %v3054, %v3056
        %v3058 = vrot.slane %v3057, 2
        %v3059 = vadd.f32 %v3057, %v3058
        %v3060 = vrot.slane %v3059, 1
        %v3061 = vadd.f32 %v3059, %v3060
        %v3062 = vrot.slane %v3055, 4
        %v3063 = vadd.f32 %v3055, %v3062
        %v3064 = vrot.slane %v3063, 2
        %v3065 = vadd.f32 %v3063, %v3064
        %v3066 = vrot.slane %v3065, 1
        %v3067 = vadd.f32 %v3065, %v3066
        %v3068 = vmul.f32 %v1480, %v1247
        %v3069 = vmul.f32 %v1481, %v1248
        %v3070 = vrot.slane %v3068, 4
        %v3071 = vadd.f32 %v3068, %v3070
        %v3072 = vrot.slane %v3071, 2
        %v3073 = vadd.f32 %v3071, %v3072
        %v3074 = vrot.slane %v3073, 1
        %v3075 = vadd.f32 %v3073, %v3074
        %v3076 = vrot.slane %v3069, 4
        %v3077 = vadd.f32 %v3069, %v3076
        %v3078 = vrot.slane %v3077, 2
        %v3079 = vadd.f32 %v3077, %v3078
        %v3080 = vrot.slane %v3079, 1
        %v3081 = vadd.f32 %v3079, %v3080
        %v3082 = vmul.f32 %v1480, %v1301
        %v3083 = vmul.f32 %v1481, %v1302
        %v3084 = vrot.slane %v3082, 4
        %v3085 = vadd.f32 %v3082, %v3084
        %v3086 = vrot.slane %v3085, 2
        %v3087 = vadd.f32 %v3085, %v3086
        %v3088 = vrot.slane %v3087, 1
        %v3089 = vadd.f32 %v3087, %v3088
        %v3090 = vrot.slane %v3083, 4
        %v3091 = vadd.f32 %v3083, %v3090
        %v3092 = vrot.slane %v3091, 2
        %v3093 = vadd.f32 %v3091, %v3092
        %v3094 = vrot.slane %v3093, 1
        %v3095 = vadd.f32 %v3093, %v3094
        %v3096 = vmul.f32 %v1480, %v1356
        %v3097 = vmul.f32 %v1481, %v1357
        %v3098 = vrot.slane %v3096, 4
        %v3099 = vadd.f32 %v3096, %v3098
        %v3100 = vrot.slane %v3099, 2
        %v3101 = vadd.f32 %v3099, %v3100
        %v3102 = vrot.slane %v3101, 1
        %v3103 = vadd.f32 %v3101, %v3102
        %v3104 = vrot.slane %v3097, 4
        %v3105 = vadd.f32 %v3097, %v3104
        %v3106 = vrot.slane %v3105, 2
        %v3107 = vadd.f32 %v3105, %v3106
        %v3108 = vrot.slane %v3107, 1
        %v3109 = vadd.f32 %v3107, %v3108
        %v3110 = vmul.f32 %v1480, %v1371
        %v3111 = vmul.f32 %v1481, %v1372
        %v3112 = vrot.slane %v3110, 4
        %v3113 = vadd.f32 %v3110, %v3112
        %v3114 = vrot.slane %v3113, 2
        %v3115 = vadd.f32 %v3113, %v3114
        %v3116 = vrot.slane %v3115, 1
        %v3117 = vadd.f32 %v3115, %v3116
        %v3118 = vrot.slane %v3111, 4
        %v3119 = vadd.f32 %v3111, %v3118
        %v3120 = vrot.slane %v3119, 2
        %v3121 = vadd.f32 %v3119, %v3120
        %v3122 = vrot.slane %v3121, 1
        %v3123 = vadd.f32 %v3121, %v3122
        %v3124 = vmul.f32 %v1480, %v1423
        %v3125 = vmul.f32 %v1481, %v1424
        %v3126 = vrot.slane %v3124, 4
        %v3127 = vadd.f32 %v3124, %v3126
        %v3128 = vrot.slane %v3127, 2
        %v3129 = vadd.f32 %v3127, %v3128
        %v3130 = vrot.slane %v3129, 1
        %v3131 = vadd.f32 %v3129, %v3130
        %v3132 = vrot.slane %v3125, 4
        %v3133 = vadd.f32 %v3125, %v3132
        %v3134 = vrot.slane %v3133, 2
        %v3135 = vadd.f32 %v3133, %v3134
        %v3136 = vrot.slane %v3135, 1
        %v3137 = vadd.f32 %v3135, %v3136
        %v3138 = vmul.f32 %v1480, %v1478
        %v3139 = vmul.f32 %v1481, %v1479
        %v3140 = vrot.slane %v3138, 4
        %v3141 = vadd.f32 %v3138, %v3140
        %v3142 = vrot.slane %v3141, 2
        %v3143 = vadd.f32 %v3141, %v3142
        %v3144 = vrot.slane %v3143, 1
        %v3145 = vadd.f32 %v3143, %v3144
        %v3146 = vrot.slane %v3139, 4
        %v3147 = vadd.f32 %v3139, %v3146
        %v3148 = vrot.slane %v3147, 2
        %v3149 = vadd.f32 %v3147, %v3148
        %v3150 = vrot.slane %v3149, 1
        %v3151 = vadd.f32 %v3149, %v3150
        %v3152 = vmul.f32 %v1480, %v1530
        %v3153 = vmul.f32 %v1481, %v1531
        %v3154 = vrot.slane %v3152, 4
        %v3155 = vadd.f32 %v3152, %v3154
        %v3156 = vrot.slane %v3155, 2
        %v3157 = vadd.f32 %v3155, %v3156
        %v3158 = vrot.slane %v3157, 1
        %v3159 = vadd.f32 %v3157, %v3158
        %v3160 = vrot.slane %v3153, 4
        %v3161 = vadd.f32 %v3153, %v3160
        %v3162 = vrot.slane %v3161, 2
        %v3163 = vadd.f32 %v3161, %v3162
        %v3164 = vrot.slane %v3163, 1
        %v3165 = vadd.f32 %v3163, %v3164
        %v3166 = vmul.f32 %v1480, %v1582
        %v3167 = vmul.f32 %v1481, %v1583
        %v3168 = vrot.slane %v3166, 4
        %v3169 = vadd.f32 %v3166, %v3168
        %v3170 = vrot.slane %v3169, 2
        %v3171 = vadd.f32 %v3169, %v3170
        %v3172 = vrot.slane %v3171, 1
        %v3173 = vadd.f32 %v3171, %v3172
        %v3174 = vrot.slane %v3167, 4
        %v3175 = vadd.f32 %v3167, %v3174
        %v3176 = vrot.slane %v3175, 2
        %v3177 = vadd.f32 %v3175, %v3176
        %v3178 = vrot.slane %v3177, 1
        %v3179 = vadd.f32 %v3177, %v3178
        %v3180 = vadd.f32 %v3061, %v3075
        %v3181 = vadd.f32 %v3067, %v3081
        %v3182 = vadd.f32 %v3180, %v3089
        %v3183 = vadd.f32 %v3181, %v3095
        %v3184 = vadd.f32 %v3182, %v3103
        %v3185 = vadd.f32 %v3183, %v3109
        %v3186 = vadd.f32 %v3184, %v3117
        %v3187 = vadd.f32 %v3185, %v3123
        %v3188 = vadd.f32 %v3186, %v3131
        %v3189 = vadd.f32 %v3187, %v3137
        %v3190 = vadd.f32 %v3188, %v3145
        %v3191 = vadd.f32 %v3189, %v3151
        %v3192 = vadd.f32 %v3190, %v3159
        %v3193 = vadd.f32 %v3191, %v3165
        %v3194 = vadd.f32 %v3192, %v3173
        %v3195 = vadd.f32 %v3193, %v3179
        %v3196 = vmul.f32 %v3061, %v1197
        %v3197 = vmul.f32 %v3067, %v1198
        %v3198 = vmul.f32 %v3061, %v1199
        %v3199 = vmul.f32 %v3067, %v1200
        %v3200 = vmul.f32 %v3075, %v1251
        %v3201 = vmul.f32 %v3081, %v1252
        %v3202 = vmul.f32 %v3075, %v1253
        %v3203 = vmul.f32 %v3081, %v1254
        %v3204 = vadd.f32 %v3196, %v3200
        %v3205 = vadd.f32 %v3197, %v3201
        %v3206 = vadd.f32 %v3198, %v3202
        %v3207 = vadd.f32 %v3199, %v3203
        %v3208 = vmul.f32 %v3089, %v1305
        %v3209 = vmul.f32 %v3095, %v1306
        %v3210 = vmul.f32 %v3089, %v1307
        %v3211 = vmul.f32 %v3095, %v1308
        %v3212 = vadd.f32 %v3204, %v3208
        %v3213 = vadd.f32 %v3205, %v3209
        %v3214 = vadd.f32 %v3206, %v3210
        %v3215 = vadd.f32 %v3207, %v3211
        %v3216 = vmul.f32 %v3103, %v1360
        %v3217 = vmul.f32 %v3109, %v1361
        %v3218 = vmul.f32 %v3103, %v1362
        %v3219 = vmul.f32 %v3109, %v1363
        %v3220 = vadd.f32 %v3212, %v3216
        %v3221 = vadd.f32 %v3213, %v3217
        %v3222 = vadd.f32 %v3214, %v3218
        %v3223 = vadd.f32 %v3215, %v3219
        %v3224 = vmul.f32 %v3117, %v1375
        %v3225 = vmul.f32 %v3123, %v1376
        %v3226 = vmul.f32 %v3117, %v1377
        %v3227 = vmul.f32 %v3123, %v1378
        %v3228 = vadd.f32 %v3220, %v3224
        %v3229 = vadd.f32 %v3221, %v3225
        %v3230 = vadd.f32 %v3222, %v3226
        %v3231 = vadd.f32 %v3223, %v3227
        %v3232 = vmul.f32 %v3131, %v1427
        %v3233 = vmul.f32 %v3137, %v1428
        %v3234 = vmul.f32 %v3131, %v1429
        %v3235 = vmul.f32 %v3137, %v1430
        %v3236 = vadd.f32 %v3228, %v3232
        %v3237 = vadd.f32 %v3229, %v3233
        %v3238 = vadd.f32 %v3230, %v3234
        %v3239 = vadd.f32 %v3231, %v3235
        %v3240 = vmul.f32 %v3145, %v1482
        %v3241 = vmul.f32 %v3151, %v1483
        %v3242 = vmul.f32 %v3145, %v1484
        %v3243 = vmul.f32 %v3151, %v1485
        %v3244 = vadd.f32 %v3236, %v3240
        %v3245 = vadd.f32 %v3237, %v3241
        %v3246 = vadd.f32 %v3238, %v3242
        %v3247 = vadd.f32 %v3239, %v3243
        %v3248 = vmul.f32 %v3159, %v1534
        %v3249 = vmul.f32 %v3165, %v1535
        %v3250 = vmul.f32 %v3159, %v1536
        %v3251 = vmul.f32 %v3165, %v1537
        %v3252 = vadd.f32 %v3244, %v3248
        %v3253 = vadd.f32 %v3245, %v3249
        %v3254 = vadd.f32 %v3246, %v3250
        %v3255 = vadd.f32 %v3247, %v3251
        %v3256 = vmul.f32 %v3173, %v1586
        %v3257 = vmul.f32 %v3179, %v1587
        %v3258 = vmul.f32 %v3173, %v1588
        %v3259 = vmul.f32 %v3179, %v1589
        %v3260 = vadd.f32 %v3252, %v3256
        %v3261 = vadd.f32 %v3253, %v3257
        %v3262 = vadd.f32 %v3254, %v3258
        %v3263 = vadd.f32 %v3255, %v3259
        %v3264 = vadd.f32 %v3194, 1e-08
        %v3265 = vadd.f32 %v3195, 1e-08
        %v3266 = vrcp.pop %v3264
        %v3267 = vmul.f32 %v3264, %v3266
        %v3268 = vsub.f32 1.0, %v3267
        %v3269 = vmul.f32 %v3266, %v3268
        %v3270 = vadd.f32 %v3266, %v3269
        %vm3271 = vweird.f32 %v3264
        %vm3272 = vweird.f32 %v3266
        %vm3273 = vmor %vm3271, %vm3272
        %v3274 = vsel %vm3273, %v3266, %v3270
        %v3275 = vand.u32 2147483647, %v3264
        %vm3276 = vcmp.eq.f32.partialorder %v3275, 8.507059e+37
        %v3277 = vand.u32 %v3264, 2147483648
        %v3278 = vor.u32 1.1754944e-38, %v3277
        %v3279 = vsel %vm3276, %v3278, %v3274
        %v3280 = vmul.f32 %v3260, %v3279
        %v3281 = vrcp.pop %v3265
        %v3282 = vmul.f32 %v3265, %v3281
        %v3283 = vsub.f32 1.0, %v3282
        %v3284 = vmul.f32 %v3281, %v3283
        %v3285 = vadd.f32 %v3281, %v3284
        %vm3286 = vweird.f32 %v3265
        %vm3287 = vweird.f32 %v3281
        %vm3288 = vmor %vm3286, %vm3287
        %v3289 = vsel %vm3288, %v3281, %v3285
        %v3290 = vand.u32 2147483647, %v3265
        %vm3291 = vcmp.eq.f32.partialorder %v3290, 8.507059e+37
        %v3292 = vand.u32 %v3265, 2147483648
        %v3293 = vor.u32 1.1754944e-38, %v3292
        %v3294 = vsel %vm3291, %v3293, %v3289
        %v3295 = vmul.f32 %v3261, %v3294
        %v3296 = vmul.f32 %v3262, %v3279
        %v3297 = vmul.f32 %v3263, %v3294
        %v3298 = vmul.f32 %v1532, %v1193
        %v3299 = vmul.f32 %v1533, %v1194
        %v3300 = vrot.slane %v3298, 4
        %v3301 = vadd.f32 %v3298, %v3300
        %v3302 = vrot.slane %v3301, 2
        %v3303 = vadd.f32 %v3301, %v3302
        %v3304 = vrot.slane %v3303, 1
        %v3305 = vadd.f32 %v3303, %v3304
        %v3306 = vrot.slane %v3299, 4
        %v3307 = vadd.f32 %v3299, %v3306
        %v3308 = vrot.slane %v3307, 2
        %v3309 = vadd.f32 %v3307, %v3308
        %v3310 = vrot.slane %v3309, 1
        %v3311 = vadd.f32 %v3309, %v3310
        %v3312 = vmul.f32 %v1532, %v1247
        %v3313 = vmul.f32 %v1533, %v1248
        %v3314 = vrot.slane %v3312, 4
        %v3315 = vadd.f32 %v3312, %v3314
        %v3316 = vrot.slane %v3315, 2
        %v3317 = vadd.f32 %v3315, %v3316
        %v3318 = vrot.slane %v3317, 1
        %v3319 = vadd.f32 %v3317, %v3318
        %v3320 = vrot.slane %v3313, 4
        %v3321 = vadd.f32 %v3313, %v3320
        %v3322 = vrot.slane %v3321, 2
        %v3323 = vadd.f32 %v3321, %v3322
        %v3324 = vrot.slane %v3323, 1
        %v3325 = vadd.f32 %v3323, %v3324
        %v3326 = vmul.f32 %v1532, %v1301
        %v3327 = vmul.f32 %v1533, %v1302
        %v3328 = vrot.slane %v3326, 4
        %v3329 = vadd.f32 %v3326, %v3328
        %v3330 = vrot.slane %v3329, 2
        %v3331 = vadd.f32 %v3329, %v3330
        %v3332 = vrot.slane %v3331, 1
        %v3333 = vadd.f32 %v3331, %v3332
        %v3334 = vrot.slane %v3327, 4
        %v3335 = vadd.f32 %v3327, %v3334
        %v3336 = vrot.slane %v3335, 2
        %v3337 = vadd.f32 %v3335, %v3336
        %v3338 = vrot.slane %v3337, 1
        %v3339 = vadd.f32 %v3337, %v3338
        %v3340 = vmul.f32 %v1532, %v1356
        %v3341 = vmul.f32 %v1533, %v1357
        %v3342 = vrot.slane %v3340, 4
        %v3343 = vadd.f32 %v3340, %v3342
        %v3344 = vrot.slane %v3343, 2
        %v3345 = vadd.f32 %v3343, %v3344
        %v3346 = vrot.slane %v3345, 1
        %v3347 = vadd.f32 %v3345, %v3346
        %v3348 = vrot.slane %v3341, 4
        %v3349 = vadd.f32 %v3341, %v3348
        %v3350 = vrot.slane %v3349, 2
        %v3351 = vadd.f32 %v3349, %v3350
        %v3352 = vrot.slane %v3351, 1
        %v3353 = vadd.f32 %v3351, %v3352
        %v3354 = vmul.f32 %v1532, %v1371
        %v3355 = vmul.f32 %v1533, %v1372
        %v3356 = vrot.slane %v3354, 4
        %v3357 = vadd.f32 %v3354, %v3356
        %v3358 = vrot.slane %v3357, 2
        %v3359 = vadd.f32 %v3357, %v3358
        %v3360 = vrot.slane %v3359, 1
        %v3361 = vadd.f32 %v3359, %v3360
        %v3362 = vrot.slane %v3355, 4
        %v3363 = vadd.f32 %v3355, %v3362
        %v3364 = vrot.slane %v3363, 2
        %v3365 = vadd.f32 %v3363, %v3364
        %v3366 = vrot.slane %v3365, 1
        %v3367 = vadd.f32 %v3365, %v3366
        %v3368 = vmul.f32 %v1532, %v1423
        %v3369 = vmul.f32 %v1533, %v1424
        %v3370 = vrot.slane %v3368, 4
        %v3371 = vadd.f32 %v3368, %v3370
        %v3372 = vrot.slane %v3371, 2
        %v3373 = vadd.f32 %v3371, %v3372
        %v3374 = vrot.slane %v3373, 1
        %v3375 = vadd.f32 %v3373, %v3374
        %v3376 = vrot.slane %v3369, 4
        %v3377 = vadd.f32 %v3369, %v3376
        %v3378 = vrot.slane %v3377, 2
        %v3379 = vadd.f32 %v3377, %v3378
        %v3380 = vrot.slane %v3379, 1
        %v3381 = vadd.f32 %v3379, %v3380
        %v3382 = vmul.f32 %v1532, %v1478
        %v3383 = vmul.f32 %v1533, %v1479
        %v3384 = vrot.slane %v3382, 4
        %v3385 = vadd.f32 %v3382, %v3384
        %v3386 = vrot.slane %v3385, 2
        %v3387 = vadd.f32 %v3385, %v3386
        %v3388 = vrot.slane %v3387, 1
        %v3389 = vadd.f32 %v3387, %v3388
        %v3390 = vrot.slane %v3383, 4
        %v3391 = vadd.f32 %v3383, %v3390
        %v3392 = vrot.slane %v3391, 2
        %v3393 = vadd.f32 %v3391, %v3392
        %v3394 = vrot.slane %v3393, 1
        %v3395 = vadd.f32 %v3393, %v3394
        %v3396 = vmul.f32 %v1532, %v1530
        %v3397 = vmul.f32 %v1533, %v1531
        %v3398 = vrot.slane %v3396, 4
        %v3399 = vadd.f32 %v3396, %v3398
        %v3400 = vrot.slane %v3399, 2
        %v3401 = vadd.f32 %v3399, %v3400
        %v3402 = vrot.slane %v3401, 1
        %v3403 = vadd.f32 %v3401, %v3402
        %v3404 = vrot.slane %v3397, 4
        %v3405 = vadd.f32 %v3397, %v3404
        %v3406 = vrot.slane %v3405, 2
        %v3407 = vadd.f32 %v3405, %v3406
        %v3408 = vrot.slane %v3407, 1
        %v3409 = vadd.f32 %v3407, %v3408
        %v3410 = vmul.f32 %v1532, %v1582
        %v3411 = vmul.f32 %v1533, %v1583
        %v3412 = vrot.slane %v3410, 4
        %v3413 = vadd.f32 %v3410, %v3412
        %v3414 = vrot.slane %v3413, 2
        %v3415 = vadd.f32 %v3413, %v3414
        %v3416 = vrot.slane %v3415, 1
        %v3417 = vadd.f32 %v3415, %v3416
        %v3418 = vrot.slane %v3411, 4
        %v3419 = vadd.f32 %v3411, %v3418
        %v3420 = vrot.slane %v3419, 2
        %v3421 = vadd.f32 %v3419, %v3420
        %v3422 = vrot.slane %v3421, 1
        %v3423 = vadd.f32 %v3421, %v3422
        %v3424 = vadd.f32 %v3305, %v3319
        %v3425 = vadd.f32 %v3311, %v3325
        %v3426 = vadd.f32 %v3424, %v3333
        %v3427 = vadd.f32 %v3425, %v3339
        %v3428 = vadd.f32 %v3426, %v3347
        %v3429 = vadd.f32 %v3427, %v3353
        %v3430 = vadd.f32 %v3428, %v3361
        %v3431 = vadd.f32 %v3429, %v3367
        %v3432 = vadd.f32 %v3430, %v3375
        %v3433 = vadd.f32 %v3431, %v3381
        %v3434 = vadd.f32 %v3432, %v3389
        %v3435 = vadd.f32 %v3433, %v3395
        %v3436 = vadd.f32 %v3434, %v3403
        %v3437 = vadd.f32 %v3435, %v3409
        %v3438 = vadd.f32 %v3436, %v3417
        %v3439 = vadd.f32 %v3437, %v3423
        %v3440 = vmul.f32 %v3305, %v1197
        %v3441 = vmul.f32 %v3311, %v1198
        %v3442 = vmul.f32 %v3305, %v1199
        %v3443 = vmul.f32 %v3311, %v1200
        %v3444 = vmul.f32 %v3319, %v1251
        %v3445 = vmul.f32 %v3325, %v1252
        %v3446 = vmul.f32 %v3319, %v1253
        %v3447 = vmul.f32 %v3325, %v1254
        %v3448 = vadd.f32 %v3440, %v3444
        %v3449 = vadd.f32 %v3441, %v3445
        %v3450 = vadd.f32 %v3442, %v3446
        %v3451 = vadd.f32 %v3443, %v3447
        %v3452 = vmul.f32 %v3333, %v1305
        %v3453 = vmul.f32 %v3339, %v1306
        %v3454 = vmul.f32 %v3333, %v1307
        %v3455 = vmul.f32 %v3339, %v1308
        %v3456 = vadd.f32 %v3448, %v3452
        %v3457 = vadd.f32 %v3449, %v3453
        %v3458 = vadd.f32 %v3450, %v3454
        %v3459 = vadd.f32 %v3451, %v3455
        %v3460 = vmul.f32 %v3347, %v1360
        %v3461 = vmul.f32 %v3353, %v1361
        %v3462 = vmul.f32 %v3347, %v1362
        %v3463 = vmul.f32 %v3353, %v1363
        %v3464 = vadd.f32 %v3456, %v3460
        %v3465 = vadd.f32 %v3457, %v3461
        %v3466 = vadd.f32 %v3458, %v3462
        %v3467 = vadd.f32 %v3459, %v3463
        %v3468 = vmul.f32 %v3361, %v1375
        %v3469 = vmul.f32 %v3367, %v1376
        %v3470 = vmul.f32 %v3361, %v1377
        %v3471 = vmul.f32 %v3367, %v1378
        %v3472 = vadd.f32 %v3464, %v3468
        %v3473 = vadd.f32 %v3465, %v3469
        %v3474 = vadd.f32 %v3466, %v3470
        %v3475 = vadd.f32 %v3467, %v3471
        %v3476 = vmul.f32 %v3375, %v1427
        %v3477 = vmul.f32 %v3381, %v1428
        %v3478 = vmul.f32 %v3375, %v1429
        %v3479 = vmul.f32 %v3381, %v1430
        %v3480 = vadd.f32 %v3472, %v3476
        %v3481 = vadd.f32 %v3473, %v3477
        %v3482 = vadd.f32 %v3474, %v3478
        %v3483 = vadd.f32 %v3475, %v3479
        %v3484 = vmul.f32 %v3389, %v1482
        %v3485 = vmul.f32 %v3395, %v1483
        %v3486 = vmul.f32 %v3389, %v1484
        %v3487 = vmul.f32 %v3395, %v1485
        %v3488 = vadd.f32 %v3480, %v3484
        %v3489 = vadd.f32 %v3481, %v3485
        %v3490 = vadd.f32 %v3482, %v3486
        %v3491 = vadd.f32 %v3483, %v3487
        %v3492 = vmul.f32 %v3403, %v1534
        %v3493 = vmul.f32 %v3409, %v1535
        %v3494 = vmul.f32 %v3403, %v1536
        %v3495 = vmul.f32 %v3409, %v1537
        %v3496 = vadd.f32 %v3488, %v3492
        %v3497 = vadd.f32 %v3489, %v3493
        %v3498 = vadd.f32 %v3490, %v3494
        %v3499 = vadd.f32 %v3491, %v3495
        %v3500 = vmul.f32 %v3417, %v1586
        %v3501 = vmul.f32 %v3423, %v1587
        %v3502 = vmul.f32 %v3417, %v1588
        %v3503 = vmul.f32 %v3423, %v1589
        %v3504 = vadd.f32 %v3496, %v3500
        %v3505 = vadd.f32 %v3497, %v3501
        %v3506 = vadd.f32 %v3498, %v3502
        %v3507 = vadd.f32 %v3499, %v3503
        %v3508 = vadd.f32 %v3438, 1e-08
        %v3509 = vadd.f32 %v3439, 1e-08
        %v3510 = vrcp.pop %v3508
        %v3511 = vmul.f32 %v3508, %v3510
        %v3512 = vsub.f32 1.0, %v3511
        %v3513 = vmul.f32 %v3510, %v3512
        %v3514 = vadd.f32 %v3510, %v3513
        %vm3515 = vweird.f32 %v3508
        %vm3516 = vweird.f32 %v3510
        %vm3517 = vmor %vm3515, %vm3516
        %v3518 = vsel %vm3517, %v3510, %v3514
        %v3519 = vand.u32 2147483647, %v3508
        %vm3520 = vcmp.eq.f32.partialorder %v3519, 8.507059e+37
        %v3521 = vand.u32 %v3508, 2147483648
        %v3522 = vor.u32 1.1754944e-38, %v3521
        %v3523 = vsel %vm3520, %v3522, %v3518
        %v3524 = vmul.f32 %v3504, %v3523
        %v3525 = vrcp.pop %v3509
        %v3526 = vmul.f32 %v3509, %v3525
        %v3527 = vsub.f32 1.0, %v3526
        %v3528 = vmul.f32 %v3525, %v3527
        %v3529 = vadd.f32 %v3525, %v3528
        %vm3530 = vweird.f32 %v3509
        %vm3531 = vweird.f32 %v3525
        %vm3532 = vmor %vm3530, %vm3531
        %v3533 = vsel %vm3532, %v3525, %v3529
        %v3534 = vand.u32 2147483647, %v3509
        %vm3535 = vcmp.eq.f32.partialorder %v3534, 8.507059e+37
        %v3536 = vand.u32 %v3509, 2147483648
        %v3537 = vor.u32 1.1754944e-38, %v3536
        %v3538 = vsel %vm3535, %v3537, %v3533
        %v3539 = vmul.f32 %v3505, %v3538
        %v3540 = vmul.f32 %v3506, %v3523
        %v3541 = vmul.f32 %v3507, %v3538
        %v3542 = vmul.f32 %v1584, %v1193
        %v3543 = vmul.f32 %v1585, %v1194
        %v3544 = vrot.slane %v3542, 4
        %v3545 = vadd.f32 %v3542, %v3544
        %v3546 = vrot.slane %v3545, 2
        %v3547 = vadd.f32 %v3545, %v3546
        %v3548 = vrot.slane %v3547, 1
        %v3549 = vadd.f32 %v3547, %v3548
        %v3550 = vrot.slane %v3543, 4
        %v3551 = vadd.f32 %v3543, %v3550
        %v3552 = vrot.slane %v3551, 2
        %v3553 = vadd.f32 %v3551, %v3552
        %v3554 = vrot.slane %v3553, 1
        %v3555 = vadd.f32 %v3553, %v3554
        %v3556 = vmul.f32 %v1584, %v1247
        %v3557 = vmul.f32 %v1585, %v1248
        %v3558 = vrot.slane %v3556, 4
        %v3559 = vadd.f32 %v3556, %v3558
        %v3560 = vrot.slane %v3559, 2
        %v3561 = vadd.f32 %v3559, %v3560
        %v3562 = vrot.slane %v3561, 1
        %v3563 = vadd.f32 %v3561, %v3562
        %v3564 = vrot.slane %v3557, 4
        %v3565 = vadd.f32 %v3557, %v3564
        %v3566 = vrot.slane %v3565, 2
        %v3567 = vadd.f32 %v3565, %v3566
        %v3568 = vrot.slane %v3567, 1
        %v3569 = vadd.f32 %v3567, %v3568
        %v3570 = vmul.f32 %v1584, %v1301
        %v3571 = vmul.f32 %v1585, %v1302
        %v3572 = vrot.slane %v3570, 4
        %v3573 = vadd.f32 %v3570, %v3572
        %v3574 = vrot.slane %v3573, 2
        %v3575 = vadd.f32 %v3573, %v3574
        %v3576 = vrot.slane %v3575, 1
        %v3577 = vadd.f32 %v3575, %v3576
        %v3578 = vrot.slane %v3571, 4
        %v3579 = vadd.f32 %v3571, %v3578
        %v3580 = vrot.slane %v3579, 2
        %v3581 = vadd.f32 %v3579, %v3580
        %v3582 = vrot.slane %v3581, 1
        %v3583 = vadd.f32 %v3581, %v3582
        %v3584 = vmul.f32 %v1584, %v1356
        %v3585 = vmul.f32 %v1585, %v1357
        %v3586 = vrot.slane %v3584, 4
        %v3587 = vadd.f32 %v3584, %v3586
        %v3588 = vrot.slane %v3587, 2
        %v3589 = vadd.f32 %v3587, %v3588
        %v3590 = vrot.slane %v3589, 1
        %v3591 = vadd.f32 %v3589, %v3590
        %v3592 = vrot.slane %v3585, 4
        %v3593 = vadd.f32 %v3585, %v3592
        %v3594 = vrot.slane %v3593, 2
        %v3595 = vadd.f32 %v3593, %v3594
        %v3596 = vrot.slane %v3595, 1
        %v3597 = vadd.f32 %v3595, %v3596
        %v3598 = vmul.f32 %v1584, %v1371
        %v3599 = vmul.f32 %v1585, %v1372
        %v3600 = vrot.slane %v3598, 4
        %v3601 = vadd.f32 %v3598, %v3600
        %v3602 = vrot.slane %v3601, 2
        %v3603 = vadd.f32 %v3601, %v3602
        %v3604 = vrot.slane %v3603, 1
        %v3605 = vadd.f32 %v3603, %v3604
        %v3606 = vrot.slane %v3599, 4
        %v3607 = vadd.f32 %v3599, %v3606
        %v3608 = vrot.slane %v3607, 2
        %v3609 = vadd.f32 %v3607, %v3608
        %v3610 = vrot.slane %v3609, 1
        %v3611 = vadd.f32 %v3609, %v3610
        %v3612 = vmul.f32 %v1584, %v1423
        %v3613 = vmul.f32 %v1585, %v1424
        %v3614 = vrot.slane %v3612, 4
        %v3615 = vadd.f32 %v3612, %v3614
        %v3616 = vrot.slane %v3615, 2
        %v3617 = vadd.f32 %v3615, %v3616
        %v3618 = vrot.slane %v3617, 1
        %v3619 = vadd.f32 %v3617, %v3618
        %v3620 = vrot.slane %v3613, 4
        %v3621 = vadd.f32 %v3613, %v3620
        %v3622 = vrot.slane %v3621, 2
        %v3623 = vadd.f32 %v3621, %v3622
        %v3624 = vrot.slane %v3623, 1
        %v3625 = vadd.f32 %v3623, %v3624
        %v3626 = vmul.f32 %v1584, %v1478
        %v3627 = vmul.f32 %v1585, %v1479
        %v3628 = vrot.slane %v3626, 4
        %v3629 = vadd.f32 %v3626, %v3628
        %v3630 = vrot.slane %v3629, 2
        %v3631 = vadd.f32 %v3629, %v3630
        %v3632 = vrot.slane %v3631, 1
        %v3633 = vadd.f32 %v3631, %v3632
        %v3634 = vrot.slane %v3627, 4
        %v3635 = vadd.f32 %v3627, %v3634
        %v3636 = vrot.slane %v3635, 2
        %v3637 = vadd.f32 %v3635, %v3636
        %v3638 = vrot.slane %v3637, 1
        %v3639 = vadd.f32 %v3637, %v3638
        %v3640 = vmul.f32 %v1584, %v1530
        %v3641 = vmul.f32 %v1585, %v1531
        %v3642 = vrot.slane %v3640, 4
        %v3643 = vadd.f32 %v3640, %v3642
        %v3644 = vrot.slane %v3643, 2
        %v3645 = vadd.f32 %v3643, %v3644
        %v3646 = vrot.slane %v3645, 1
        %v3647 = vadd.f32 %v3645, %v3646
        %v3648 = vrot.slane %v3641, 4
        %v3649 = vadd.f32 %v3641, %v3648
        %v3650 = vrot.slane %v3649, 2
        %v3651 = vadd.f32 %v3649, %v3650
        %v3652 = vrot.slane %v3651, 1
        %v3653 = vadd.f32 %v3651, %v3652
        %v3654 = vmul.f32 %v1584, %v1582
        %v3655 = vmul.f32 %v1585, %v1583
        %v3656 = vrot.slane %v3654, 4
        %v3657 = vadd.f32 %v3654, %v3656
        %v3658 = vrot.slane %v3657, 2
        %v3659 = vadd.f32 %v3657, %v3658
        %v3660 = vrot.slane %v3659, 1
        %v3661 = vadd.f32 %v3659, %v3660
        %v3662 = vrot.slane %v3655, 4
        %v3663 = vadd.f32 %v3655, %v3662
        %v3664 = vrot.slane %v3663, 2
        %v3665 = vadd.f32 %v3663, %v3664
        %v3666 = vrot.slane %v3665, 1
        %v3667 = vadd.f32 %v3665, %v3666
        %v3668 = vadd.f32 %v3549, %v3563
        %v3669 = vadd.f32 %v3555, %v3569
        %v3670 = vadd.f32 %v3668, %v3577
        %v3671 = vadd.f32 %v3669, %v3583
        %v3672 = vadd.f32 %v3670, %v3591
        %v3673 = vadd.f32 %v3671, %v3597
        %v3674 = vadd.f32 %v3672, %v3605
        %v3675 = vadd.f32 %v3673, %v3611
        %v3676 = vadd.f32 %v3674, %v3619
        %v3677 = vadd.f32 %v3675, %v3625
        %v3678 = vadd.f32 %v3676, %v3633
        %v3679 = vadd.f32 %v3677, %v3639
        %v3680 = vadd.f32 %v3678, %v3647
        %v3681 = vadd.f32 %v3679, %v3653
        %v3682 = vadd.f32 %v3680, %v3661
        %v3683 = vadd.f32 %v3681, %v3667
        %v3684 = vmul.f32 %v3549, %v1197
        %v3685 = vmul.f32 %v3555, %v1198
        %v3686 = vmul.f32 %v3549, %v1199
        %v3687 = vmul.f32 %v3555, %v1200
        %v3688 = vmul.f32 %v3563, %v1251
        %v3689 = vmul.f32 %v3569, %v1252
        %v3690 = vmul.f32 %v3563, %v1253
        %v3691 = vmul.f32 %v3569, %v1254
        %v3692 = vadd.f32 %v3684, %v3688
        %v3693 = vadd.f32 %v3685, %v3689
        %v3694 = vadd.f32 %v3686, %v3690
        %v3695 = vadd.f32 %v3687, %v3691
        %v3696 = vmul.f32 %v3577, %v1305
        %v3697 = vmul.f32 %v3583, %v1306
        %v3698 = vmul.f32 %v3577, %v1307
        %v3699 = vmul.f32 %v3583, %v1308
        %v3700 = vadd.f32 %v3692, %v3696
        %v3701 = vadd.f32 %v3693, %v3697
        %v3702 = vadd.f32 %v3694, %v3698
        %v3703 = vadd.f32 %v3695, %v3699
        %v3704 = vmul.f32 %v3591, %v1360
        %v3705 = vmul.f32 %v3597, %v1361
        %v3706 = vmul.f32 %v3591, %v1362
        %v3707 = vmul.f32 %v3597, %v1363
        %v3708 = vadd.f32 %v3700, %v3704
        %v3709 = vadd.f32 %v3701, %v3705
        %v3710 = vadd.f32 %v3702, %v3706
        %v3711 = vadd.f32 %v3703, %v3707
        %v3712 = vmul.f32 %v3605, %v1375
        %v3713 = vmul.f32 %v3611, %v1376
        %v3714 = vmul.f32 %v3605, %v1377
        %v3715 = vmul.f32 %v3611, %v1378
        %v3716 = vadd.f32 %v3708, %v3712
        %v3717 = vadd.f32 %v3709, %v3713
        %v3718 = vadd.f32 %v3710, %v3714
        %v3719 = vadd.f32 %v3711, %v3715
        %v3720 = vmul.f32 %v3619, %v1427
        %v3721 = vmul.f32 %v3625, %v1428
        %v3722 = vmul.f32 %v3619, %v1429
        %v3723 = vmul.f32 %v3625, %v1430
        %v3724 = vadd.f32 %v3716, %v3720
        %v3725 = vadd.f32 %v3717, %v3721
        %v3726 = vadd.f32 %v3718, %v3722
        %v3727 = vadd.f32 %v3719, %v3723
        %v3728 = vmul.f32 %v3633, %v1482
        %v3729 = vmul.f32 %v3639, %v1483
        %v3730 = vmul.f32 %v3633, %v1484
        %v3731 = vmul.f32 %v3639, %v1485
        %v3732 = vadd.f32 %v3724, %v3728
        %v3733 = vadd.f32 %v3725, %v3729
        %v3734 = vadd.f32 %v3726, %v3730
        %v3735 = vadd.f32 %v3727, %v3731
        %v3736 = vmul.f32 %v3647, %v1534
        %v3737 = vmul.f32 %v3653, %v1535
        %v3738 = vmul.f32 %v3647, %v1536
        %v3739 = vmul.f32 %v3653, %v1537
        %v3740 = vadd.f32 %v3732, %v3736
        %v3741 = vadd.f32 %v3733, %v3737
        %v3742 = vadd.f32 %v3734, %v3738
        %v3743 = vadd.f32 %v3735, %v3739
        %v3744 = vmul.f32 %v3661, %v1586
        %v3745 = vmul.f32 %v3667, %v1587
        %v3746 = vmul.f32 %v3661, %v1588
        %v3747 = vmul.f32 %v3667, %v1589
        %v3748 = vadd.f32 %v3740, %v3744
        %v3749 = vadd.f32 %v3741, %v3745
        %v3750 = vadd.f32 %v3742, %v3746
        %v3751 = vadd.f32 %v3743, %v3747
        %v3752 = vadd.f32 %v3682, 1e-08
        %v3753 = vadd.f32 %v3683, 1e-08
        %v3754 = vrcp.pop %v3752
        %v3755 = vmul.f32 %v3752, %v3754
        %v3756 = vsub.f32 1.0, %v3755
        %v3757 = vmul.f32 %v3754, %v3756
        %v3758 = vadd.f32 %v3754, %v3757
        %vm3759 = vweird.f32 %v3752
        %vm3760 = vweird.f32 %v3754
        %vm3761 = vmor %vm3759, %vm3760
        %v3762 = vsel %vm3761, %v3754, %v3758
        %v3763 = vand.u32 2147483647, %v3752
        %vm3764 = vcmp.eq.f32.partialorder %v3763, 8.507059e+37
        %v3765 = vand.u32 %v3752, 2147483648
        %v3766 = vor.u32 1.1754944e-38, %v3765
        %v3767 = vsel %vm3764, %v3766, %v3762
        %v3768 = vmul.f32 %v3748, %v3767
        %v3769 = vrcp.pop %v3753
        %v3770 = vmul.f32 %v3753, %v3769
        %v3771 = vsub.f32 1.0, %v3770
        %v3772 = vmul.f32 %v3769, %v3771
        %v3773 = vadd.f32 %v3769, %v3772
        %vm3774 = vweird.f32 %v3753
        %vm3775 = vweird.f32 %v3769
        %vm3776 = vmor %vm3774, %vm3775
        %v3777 = vsel %vm3776, %v3769, %v3773
        %v3778 = vand.u32 2147483647, %v3753
        %vm3779 = vcmp.eq.f32.partialorder %v3778, 8.507059e+37
        %v3780 = vand.u32 %v3753, 2147483648
        %v3781 = vor.u32 1.1754944e-38, %v3780
        %v3782 = vsel %vm3779, %v3781, %v3777
        %v3783 = vmul.f32 %v3749, %v3782
        %v3784 = vmul.f32 %v3750, %v3767
        %v3785 = vmul.f32 %v3751, %v3782
        %v3786 = vld [vmem:[%s10] sm:$0xff]
        %v3787 = vld [vmem:[%s10 + $0x8] sm:$0xff]
        %v3789 = vsel %vm1225, %v3786, 0
        %v3792 = vsel %vm1225, %v3787, 0
        %3794 = vmatpush.msra.mxu0 0.0
        %3795 = vmatpush.msra.mxu0 0.0
        %3796 = vmatpush.msra.mxu0 0.0
        %3797 = vmatpush.msra.mxu0 0.0
        %3798 = vmatpush.msra.mxu0 0.0
        %3799 = vmatpush.msra.mxu0 0.0
        %3800 = vmatpush.msra.mxu0 0.0
        %3801 = vmatpush.msra.mxu0 0.0
        %3802 = vmatpush.msra.mxu0 0.0
        %3803 = vmatpush.msra.mxu0 0.0
        %3804 = vmatpush.msra.mxu0 0.0
        %3805 = vmatpush.msra.mxu0 0.0
        %3806 = vmatpush.msra.mxu0 0.0
        %3807 = vmatpush.msra.mxu0 0.0
        %3808 = vmatpush.msra.mxu0 %v1832
        %3809 = vmatpush.msra.mxu0 %v1816
        %3810 = vmatmul.f32.gmra.mxu0 %v3789
        %v3811 = vpop.f32.mrf.mxu0
        %v3812 = vadd.f32 0.0, %v3811
        %3813 = vmatmul.f32.gmra.mxu0 %v3792
        %v3814 = vpop.f32.mrf.mxu0
        %v3815 = vadd.f32 0.0, %v3814
        %3816 = vdwg.mxu0
        %3817 = vmatpush.msra.mxu0 0.0
        %3818 = vmatpush.msra.mxu0 0.0
        %3819 = vmatpush.msra.mxu0 0.0
        %3820 = vmatpush.msra.mxu0 0.0
        %3821 = vmatpush.msra.mxu0 0.0
        %3822 = vmatpush.msra.mxu0 0.0
        %3823 = vmatpush.msra.mxu0 0.0
        %3824 = vmatpush.msra.mxu0 0.0
        %3825 = vmatpush.msra.mxu0 0.0
        %3826 = vmatpush.msra.mxu0 0.0
        %3827 = vmatpush.msra.mxu0 0.0
        %3828 = vmatpush.msra.mxu0 0.0
        %3829 = vmatpush.msra.mxu0 0.0
        %3830 = vmatpush.msra.mxu0 0.0
        %3831 = vmatpush.msra.mxu0 %v1833
        %3832 = vmatpush.msra.mxu0 %v1831
        %3833 = vmatmul.f32.gmra.mxu0 %v3789
        %v3834 = vpop.f32.mrf.mxu0
        %v3835 = vadd.f32 0.0, %v3834
        %3836 = vmatmul.f32.gmra.mxu0 %v3792
        %v3837 = vpop.f32.mrf.mxu0
        %v3838 = vadd.f32 0.0, %v3837
        %3839 = vdwg.mxu0
        %3840 = vmatpush.msra.mxu0 0.0
        %3841 = vmatpush.msra.mxu0 0.0
        %3842 = vmatpush.msra.mxu0 0.0
        %3843 = vmatpush.msra.mxu0 0.0
        %3844 = vmatpush.msra.mxu0 0.0
        %3845 = vmatpush.msra.mxu0 0.0
        %3846 = vmatpush.msra.mxu0 0.0
        %3847 = vmatpush.msra.mxu0 0.0
        %3848 = vmatpush.msra.mxu0 0.0
        %3849 = vmatpush.msra.mxu0 0.0
        %3850 = vmatpush.msra.mxu0 0.0
        %3851 = vmatpush.msra.mxu0 0.0
        %3852 = vmatpush.msra.mxu0 0.0
        %3853 = vmatpush.msra.mxu0 0.0
        %3854 = vmatpush.msra.mxu0 %v2076
        %3855 = vmatpush.msra.mxu0 %v2060
        %3856 = vmatmul.f32.gmra.mxu0 %v3789
        %v3857 = vpop.f32.mrf.mxu0
        %v3858 = vadd.f32 0.0, %v3857
        %3859 = vmatmul.f32.gmra.mxu0 %v3792
        %v3860 = vpop.f32.mrf.mxu0
        %v3861 = vadd.f32 0.0, %v3860
        %3862 = vdwg.mxu0
        %3863 = vmatpush.msra.mxu0 0.0
        %3864 = vmatpush.msra.mxu0 0.0
        %3865 = vmatpush.msra.mxu0 0.0
        %3866 = vmatpush.msra.mxu0 0.0
        %3867 = vmatpush.msra.mxu0 0.0
        %3868 = vmatpush.msra.mxu0 0.0
        %3869 = vmatpush.msra.mxu0 0.0
        %3870 = vmatpush.msra.mxu0 0.0
        %3871 = vmatpush.msra.mxu0 0.0
        %3872 = vmatpush.msra.mxu0 0.0
        %3873 = vmatpush.msra.mxu0 0.0
        %3874 = vmatpush.msra.mxu0 0.0
        %3875 = vmatpush.msra.mxu0 0.0
        %3876 = vmatpush.msra.mxu0 0.0
        %3877 = vmatpush.msra.mxu0 %v2077
        %3878 = vmatpush.msra.mxu0 %v2075
        %3879 = vmatmul.f32.gmra.mxu0 %v3789
        %v3880 = vpop.f32.mrf.mxu0
        %v3881 = vadd.f32 0.0, %v3880
        %3882 = vmatmul.f32.gmra.mxu0 %v3792
        %v3883 = vpop.f32.mrf.mxu0
        %v3884 = vadd.f32 0.0, %v3883
        %3885 = vdwg.mxu0
        %3886 = vmatpush.msra.mxu0 0.0
        %3887 = vmatpush.msra.mxu0 0.0
        %3888 = vmatpush.msra.mxu0 0.0
        %3889 = vmatpush.msra.mxu0 0.0
        %3890 = vmatpush.msra.mxu0 0.0
        %3891 = vmatpush.msra.mxu0 0.0
        %3892 = vmatpush.msra.mxu0 0.0
        %3893 = vmatpush.msra.mxu0 0.0
        %3894 = vmatpush.msra.mxu0 0.0
        %3895 = vmatpush.msra.mxu0 0.0
        %3896 = vmatpush.msra.mxu0 0.0
        %3897 = vmatpush.msra.mxu0 0.0
        %3898 = vmatpush.msra.mxu0 0.0
        %3899 = vmatpush.msra.mxu0 0.0
        %3900 = vmatpush.msra.mxu0 %v2320
        %3901 = vmatpush.msra.mxu0 %v2304
        %3902 = vmatmul.f32.gmra.mxu0 %v3789
        %v3903 = vpop.f32.mrf.mxu0
        %v3904 = vadd.f32 0.0, %v3903
        %3905 = vmatmul.f32.gmra.mxu0 %v3792
        %v3906 = vpop.f32.mrf.mxu0
        %v3907 = vadd.f32 0.0, %v3906
        %3908 = vdwg.mxu0
        %3909 = vmatpush.msra.mxu0 0.0
        %3910 = vmatpush.msra.mxu0 0.0
        %3911 = vmatpush.msra.mxu0 0.0
        %3912 = vmatpush.msra.mxu0 0.0
        %3913 = vmatpush.msra.mxu0 0.0
        %3914 = vmatpush.msra.mxu0 0.0
        %3915 = vmatpush.msra.mxu0 0.0
        %3916 = vmatpush.msra.mxu0 0.0
        %3917 = vmatpush.msra.mxu0 0.0
        %3918 = vmatpush.msra.mxu0 0.0
        %3919 = vmatpush.msra.mxu0 0.0
        %3920 = vmatpush.msra.mxu0 0.0
        %3921 = vmatpush.msra.mxu0 0.0
        %3922 = vmatpush.msra.mxu0 0.0
        %3923 = vmatpush.msra.mxu0 %v2321
        %3924 = vmatpush.msra.mxu0 %v2319
        %3925 = vmatmul.f32.gmra.mxu0 %v3789
        %v3926 = vpop.f32.mrf.mxu0
        %v3927 = vadd.f32 0.0, %v3926
        %3928 = vmatmul.f32.gmra.mxu0 %v3792
        %v3929 = vpop.f32.mrf.mxu0
        %v3930 = vadd.f32 0.0, %v3929
        %3931 = vdwg.mxu0
        %3932 = vmatpush.msra.mxu0 0.0
        %3933 = vmatpush.msra.mxu0 0.0
        %3934 = vmatpush.msra.mxu0 0.0
        %3935 = vmatpush.msra.mxu0 0.0
        %3936 = vmatpush.msra.mxu0 0.0
        %3937 = vmatpush.msra.mxu0 0.0
        %3938 = vmatpush.msra.mxu0 0.0
        %3939 = vmatpush.msra.mxu0 0.0
        %3940 = vmatpush.msra.mxu0 0.0
        %3941 = vmatpush.msra.mxu0 0.0
        %3942 = vmatpush.msra.mxu0 0.0
        %3943 = vmatpush.msra.mxu0 0.0
        %3944 = vmatpush.msra.mxu0 0.0
        %3945 = vmatpush.msra.mxu0 0.0
        %3946 = vmatpush.msra.mxu0 %v2564
        %3947 = vmatpush.msra.mxu0 %v2548
        %3948 = vmatmul.f32.gmra.mxu0 %v3789
        %v3949 = vpop.f32.mrf.mxu0
        %v3950 = vadd.f32 0.0, %v3949
        %3951 = vmatmul.f32.gmra.mxu0 %v3792
        %v3952 = vpop.f32.mrf.mxu0
        %v3953 = vadd.f32 0.0, %v3952
        %3954 = vdwg.mxu0
        %3955 = vmatpush.msra.mxu0 0.0
        %3956 = vmatpush.msra.mxu0 0.0
        %3957 = vmatpush.msra.mxu0 0.0
        %3958 = vmatpush.msra.mxu0 0.0
        %3959 = vmatpush.msra.mxu0 0.0
        %3960 = vmatpush.msra.mxu0 0.0
        %3961 = vmatpush.msra.mxu0 0.0
        %3962 = vmatpush.msra.mxu0 0.0
        %3963 = vmatpush.msra.mxu0 0.0
        %3964 = vmatpush.msra.mxu0 0.0
        %3965 = vmatpush.msra.mxu0 0.0
        %3966 = vmatpush.msra.mxu0 0.0
        %3967 = vmatpush.msra.mxu0 0.0
        %3968 = vmatpush.msra.mxu0 0.0
        %3969 = vmatpush.msra.mxu0 %v2565
        %3970 = vmatpush.msra.mxu0 %v2563
        %3971 = vmatmul.f32.gmra.mxu0 %v3789
        %v3972 = vpop.f32.mrf.mxu0
        %v3973 = vadd.f32 0.0, %v3972
        %3974 = vmatmul.f32.gmra.mxu0 %v3792
        %v3975 = vpop.f32.mrf.mxu0
        %v3976 = vadd.f32 0.0, %v3975
        %3977 = vdwg.mxu0
        %3978 = vmatpush.msra.mxu0 0.0
        %3979 = vmatpush.msra.mxu0 0.0
        %3980 = vmatpush.msra.mxu0 0.0
        %3981 = vmatpush.msra.mxu0 0.0
        %3982 = vmatpush.msra.mxu0 0.0
        %3983 = vmatpush.msra.mxu0 0.0
        %3984 = vmatpush.msra.mxu0 0.0
        %3985 = vmatpush.msra.mxu0 0.0
        %3986 = vmatpush.msra.mxu0 0.0
        %3987 = vmatpush.msra.mxu0 0.0
        %3988 = vmatpush.msra.mxu0 0.0
        %3989 = vmatpush.msra.mxu0 0.0
        %3990 = vmatpush.msra.mxu0 0.0
        %3991 = vmatpush.msra.mxu0 0.0
        %3992 = vmatpush.msra.mxu0 %v2808
        %3993 = vmatpush.msra.mxu0 %v2792
        %3994 = vmatmul.f32.gmra.mxu0 %v3789
        %v3995 = vpop.f32.mrf.mxu0
        %v3996 = vadd.f32 0.0, %v3995
        %3997 = vmatmul.f32.gmra.mxu0 %v3792
        %v3998 = vpop.f32.mrf.mxu0
        %v3999 = vadd.f32 0.0, %v3998
        %4000 = vdwg.mxu0
        %4001 = vmatpush.msra.mxu0 0.0
        %4002 = vmatpush.msra.mxu0 0.0
        %4003 = vmatpush.msra.mxu0 0.0
        %4004 = vmatpush.msra.mxu0 0.0
        %4005 = vmatpush.msra.mxu0 0.0
        %4006 = vmatpush.msra.mxu0 0.0
        %4007 = vmatpush.msra.mxu0 0.0
        %4008 = vmatpush.msra.mxu0 0.0
        %4009 = vmatpush.msra.mxu0 0.0
        %4010 = vmatpush.msra.mxu0 0.0
        %4011 = vmatpush.msra.mxu0 0.0
        %4012 = vmatpush.msra.mxu0 0.0
        %4013 = vmatpush.msra.mxu0 0.0
        %4014 = vmatpush.msra.mxu0 0.0
        %4015 = vmatpush.msra.mxu0 %v2809
        %4016 = vmatpush.msra.mxu0 %v2807
        %4017 = vmatmul.f32.gmra.mxu0 %v3789
        %v4018 = vpop.f32.mrf.mxu0
        %v4019 = vadd.f32 0.0, %v4018
        %4020 = vmatmul.f32.gmra.mxu0 %v3792
        %v4021 = vpop.f32.mrf.mxu0
        %v4022 = vadd.f32 0.0, %v4021
        %4023 = vdwg.mxu0
        %4024 = vmatpush.msra.mxu0 0.0
        %4025 = vmatpush.msra.mxu0 0.0
        %4026 = vmatpush.msra.mxu0 0.0
        %4027 = vmatpush.msra.mxu0 0.0
        %4028 = vmatpush.msra.mxu0 0.0
        %4029 = vmatpush.msra.mxu0 0.0
        %4030 = vmatpush.msra.mxu0 0.0
        %4031 = vmatpush.msra.mxu0 0.0
        %4032 = vmatpush.msra.mxu0 0.0
        %4033 = vmatpush.msra.mxu0 0.0
        %4034 = vmatpush.msra.mxu0 0.0
        %4035 = vmatpush.msra.mxu0 0.0
        %4036 = vmatpush.msra.mxu0 0.0
        %4037 = vmatpush.msra.mxu0 0.0
        %4038 = vmatpush.msra.mxu0 %v3052
        %4039 = vmatpush.msra.mxu0 %v3036
        %4040 = vmatmul.f32.gmra.mxu0 %v3789
        %v4041 = vpop.f32.mrf.mxu0
        %v4042 = vadd.f32 0.0, %v4041
        %4043 = vmatmul.f32.gmra.mxu0 %v3792
        %v4044 = vpop.f32.mrf.mxu0
        %v4045 = vadd.f32 0.0, %v4044
        %4046 = vdwg.mxu0
        %4047 = vmatpush.msra.mxu0 0.0
        %4048 = vmatpush.msra.mxu0 0.0
        %4049 = vmatpush.msra.mxu0 0.0
        %4050 = vmatpush.msra.mxu0 0.0
        %4051 = vmatpush.msra.mxu0 0.0
        %4052 = vmatpush.msra.mxu0 0.0
        %4053 = vmatpush.msra.mxu0 0.0
        %4054 = vmatpush.msra.mxu0 0.0
        %4055 = vmatpush.msra.mxu0 0.0
        %4056 = vmatpush.msra.mxu0 0.0
        %4057 = vmatpush.msra.mxu0 0.0
        %4058 = vmatpush.msra.mxu0 0.0
        %4059 = vmatpush.msra.mxu0 0.0
        %4060 = vmatpush.msra.mxu0 0.0
        %4061 = vmatpush.msra.mxu0 %v3053
        %4062 = vmatpush.msra.mxu0 %v3051
        %4063 = vmatmul.f32.gmra.mxu0 %v3789
        %v4064 = vpop.f32.mrf.mxu0
        %v4065 = vadd.f32 0.0, %v4064
        %4066 = vmatmul.f32.gmra.mxu0 %v3792
        %v4067 = vpop.f32.mrf.mxu0
        %v4068 = vadd.f32 0.0, %v4067
        %4069 = vdwg.mxu0
        %4070 = vmatpush.msra.mxu0 0.0
        %4071 = vmatpush.msra.mxu0 0.0
        %4072 = vmatpush.msra.mxu0 0.0
        %4073 = vmatpush.msra.mxu0 0.0
        %4074 = vmatpush.msra.mxu0 0.0
        %4075 = vmatpush.msra.mxu0 0.0
        %4076 = vmatpush.msra.mxu0 0.0
        %4077 = vmatpush.msra.mxu0 0.0
        %4078 = vmatpush.msra.mxu0 0.0
        %4079 = vmatpush.msra.mxu0 0.0
        %4080 = vmatpush.msra.mxu0 0.0
        %4081 = vmatpush.msra.mxu0 0.0
        %4082 = vmatpush.msra.mxu0 0.0
        %4083 = vmatpush.msra.mxu0 0.0
        %4084 = vmatpush.msra.mxu0 %v3296
        %4085 = vmatpush.msra.mxu0 %v3280
        %4086 = vmatmul.f32.gmra.mxu0 %v3789
        %v4087 = vpop.f32.mrf.mxu0
        %v4088 = vadd.f32 0.0, %v4087
        %4089 = vmatmul.f32.gmra.mxu0 %v3792
        %v4090 = vpop.f32.mrf.mxu0
        %v4091 = vadd.f32 0.0, %v4090
        %4092 = vdwg.mxu0
        %4093 = vmatpush.msra.mxu0 0.0
        %4094 = vmatpush.msra.mxu0 0.0
        %4095 = vmatpush.msra.mxu0 0.0
        %4096 = vmatpush.msra.mxu0 0.0
        %4097 = vmatpush.msra.mxu0 0.0
        %4098 = vmatpush.msra.mxu0 0.0
        %4099 = vmatpush.msra.mxu0 0.0
        %4100 = vmatpush.msra.mxu0 0.0
        %4101 = vmatpush.msra.mxu0 0.0
        %4102 = vmatpush.msra.mxu0 0.0
        %4103 = vmatpush.msra.mxu0 0.0
        %4104 = vmatpush.msra.mxu0 0.0
        %4105 = vmatpush.msra.mxu0 0.0
        %4106 = vmatpush.msra.mxu0 0.0
        %4107 = vmatpush.msra.mxu0 %v3297
        %4108 = vmatpush.msra.mxu0 %v3295
        %4109 = vmatmul.f32.gmra.mxu0 %v3789
        %v4110 = vpop.f32.mrf.mxu0
        %v4111 = vadd.f32 0.0, %v4110
        %4112 = vmatmul.f32.gmra.mxu0 %v3792
        %v4113 = vpop.f32.mrf.mxu0
        %v4114 = vadd.f32 0.0, %v4113
        %4115 = vdwg.mxu0
        %4116 = vmatpush.msra.mxu0 0.0
        %4117 = vmatpush.msra.mxu0 0.0
        %4118 = vmatpush.msra.mxu0 0.0
        %4119 = vmatpush.msra.mxu0 0.0
        %4120 = vmatpush.msra.mxu0 0.0
        %4121 = vmatpush.msra.mxu0 0.0
        %4122 = vmatpush.msra.mxu0 0.0
        %4123 = vmatpush.msra.mxu0 0.0
        %4124 = vmatpush.msra.mxu0 0.0
        %4125 = vmatpush.msra.mxu0 0.0
        %4126 = vmatpush.msra.mxu0 0.0
        %4127 = vmatpush.msra.mxu0 0.0
        %4128 = vmatpush.msra.mxu0 0.0
        %4129 = vmatpush.msra.mxu0 0.0
        %4130 = vmatpush.msra.mxu0 %v3540
        %4131 = vmatpush.msra.mxu0 %v3524
        %4132 = vmatmul.f32.gmra.mxu0 %v3789
        %v4133 = vpop.f32.mrf.mxu0
        %v4134 = vadd.f32 0.0, %v4133
        %4135 = vmatmul.f32.gmra.mxu0 %v3792
        %v4136 = vpop.f32.mrf.mxu0
        %v4137 = vadd.f32 0.0, %v4136
        %4138 = vdwg.mxu0
        %4139 = vmatpush.msra.mxu0 0.0
        %4140 = vmatpush.msra.mxu0 0.0
        %4141 = vmatpush.msra.mxu0 0.0
        %4142 = vmatpush.msra.mxu0 0.0
        %4143 = vmatpush.msra.mxu0 0.0
        %4144 = vmatpush.msra.mxu0 0.0
        %4145 = vmatpush.msra.mxu0 0.0
        %4146 = vmatpush.msra.mxu0 0.0
        %4147 = vmatpush.msra.mxu0 0.0
        %4148 = vmatpush.msra.mxu0 0.0
        %4149 = vmatpush.msra.mxu0 0.0
        %4150 = vmatpush.msra.mxu0 0.0
        %4151 = vmatpush.msra.mxu0 0.0
        %4152 = vmatpush.msra.mxu0 0.0
        %4153 = vmatpush.msra.mxu0 %v3541
        %4154 = vmatpush.msra.mxu0 %v3539
        %4155 = vmatmul.f32.gmra.mxu0 %v3789
        %v4156 = vpop.f32.mrf.mxu0
        %v4157 = vadd.f32 0.0, %v4156
        %4158 = vmatmul.f32.gmra.mxu0 %v3792
        %v4159 = vpop.f32.mrf.mxu0
        %v4160 = vadd.f32 0.0, %v4159
        %4161 = vdwg.mxu0
        %4162 = vmatpush.msra.mxu0 0.0
        %4163 = vmatpush.msra.mxu0 0.0
        %4164 = vmatpush.msra.mxu0 0.0
        %4165 = vmatpush.msra.mxu0 0.0
        %4166 = vmatpush.msra.mxu0 0.0
        %4167 = vmatpush.msra.mxu0 0.0
        %4168 = vmatpush.msra.mxu0 0.0
        %4169 = vmatpush.msra.mxu0 0.0
        %4170 = vmatpush.msra.mxu0 0.0
        %4171 = vmatpush.msra.mxu0 0.0
        %4172 = vmatpush.msra.mxu0 0.0
        %4173 = vmatpush.msra.mxu0 0.0
        %4174 = vmatpush.msra.mxu0 0.0
        %4175 = vmatpush.msra.mxu0 0.0
        %4176 = vmatpush.msra.mxu0 %v3784
        %4177 = vmatpush.msra.mxu0 %v3768
        %4178 = vmatmul.f32.gmra.mxu0 %v3789
        %v4179 = vpop.f32.mrf.mxu0
        %v4180 = vadd.f32 0.0, %v4179
        %4181 = vmatmul.f32.gmra.mxu0 %v3792
        %v4182 = vpop.f32.mrf.mxu0
        %v4183 = vadd.f32 0.0, %v4182
        %4184 = vdwg.mxu0
        %4185 = vmatpush.msra.mxu0 0.0
        %4186 = vmatpush.msra.mxu0 0.0
        %4187 = vmatpush.msra.mxu0 0.0
        %4188 = vmatpush.msra.mxu0 0.0
        %4189 = vmatpush.msra.mxu0 0.0
        %4190 = vmatpush.msra.mxu0 0.0
        %4191 = vmatpush.msra.mxu0 0.0
        %4192 = vmatpush.msra.mxu0 0.0
        %4193 = vmatpush.msra.mxu0 0.0
        %4194 = vmatpush.msra.mxu0 0.0
        %4195 = vmatpush.msra.mxu0 0.0
        %4196 = vmatpush.msra.mxu0 0.0
        %4197 = vmatpush.msra.mxu0 0.0
        %4198 = vmatpush.msra.mxu0 0.0
        %4199 = vmatpush.msra.mxu0 %v3785
        %4200 = vmatpush.msra.mxu0 %v3783
        %4201 = vmatmul.f32.gmra.mxu0 %v3789
        %v4202 = vpop.f32.mrf.mxu0
        %v4203 = vadd.f32 0.0, %v4202
        %4204 = vmatmul.f32.gmra.mxu0 %v3792
        %v4205 = vpop.f32.mrf.mxu0
        %v4206 = vadd.f32 0.0, %v4205
        %4207 = vdwg.mxu0
        %v4208 = vadd.f32 %v1197, %v3812
        %v4209 = vadd.f32 %v1198, %v3835
        %v4210 = vadd.f32 %v1251, %v3858
        %v4211 = vadd.f32 %v1252, %v3881
        %v4212 = vadd.f32 %v1305, %v3904
        %v4213 = vadd.f32 %v1306, %v3927
        %v4214 = vadd.f32 %v1360, %v3950
        %v4215 = vadd.f32 %v1361, %v3973
        %v4216 = vadd.f32 %v1375, %v3996
        %v4217 = vadd.f32 %v1376, %v4019
        %v4218 = vadd.f32 %v1427, %v4042
        %v4219 = vadd.f32 %v1428, %v4065
        %v4220 = vadd.f32 %v1482, %v4088
        %v4221 = vadd.f32 %v1483, %v4111
        %v4222 = vadd.f32 %v1534, %v4134
        %v4223 = vadd.f32 %v1535, %v4157
        %v4224 = vadd.f32 %v1586, %v4180
        %v4225 = vadd.f32 %v1587, %v4203
        %v4226 = vadd.f32 %v1199, %v3815
        %v4227 = vadd.f32 %v1200, %v3838
        %v4228 = vadd.f32 %v1253, %v3861
        %v4229 = vadd.f32 %v1254, %v3884
        %v4230 = vadd.f32 %v1307, %v3907
        %v4231 = vadd.f32 %v1308, %v3930
        %v4232 = vadd.f32 %v1362, %v3953
        %v4233 = vadd.f32 %v1363, %v3976
        %v4234 = vadd.f32 %v1377, %v3999
        %v4235 = vadd.f32 %v1378, %v4022
        %v4236 = vadd.f32 %v1429, %v4045
        %v4237 = vadd.f32 %v1430, %v4068
        %v4238 = vadd.f32 %v1484, %v4091
        %v4239 = vadd.f32 %v1485, %v4114
        %v4240 = vadd.f32 %v1536, %v4137
        %v4241 = vadd.f32 %v1537, %v4160
        %v4242 = vadd.f32 %v1588, %v4183
        %v4243 = vadd.f32 %v1589, %v4206
        %v4244 = vld [vmem:[%s11] sm:$0xff]
        %v4245 = vld [vmem:[%s11 + $0x8] sm:$0xff]
        %4247 = vset.pattern.permute.xlu0 0
        %4248 = vperm.xlu0 %4247, %v4244
        %v4249 = vpop.permute.xlu0 %4248
        %4252 = vset.pattern.permute.xlu0 0
        %4253 = vperm.xlu0 %4252, %v4245
        %v4254 = vpop.permute.xlu0 %4253
        %v4256 = vadd.f32 %v4208, %v4249
        %v4257 = vadd.f32 %v4209, %v4249
        %v4258 = vadd.f32 %v4210, %v4249
        %v4259 = vadd.f32 %v4211, %v4249
        %v4260 = vadd.f32 %v4212, %v4249
        %v4261 = vadd.f32 %v4213, %v4249
        %v4262 = vadd.f32 %v4214, %v4249
        %v4263 = vadd.f32 %v4215, %v4249
        %v4264 = vadd.f32 %v4216, %v4249
        %v4265 = vadd.f32 %v4217, %v4249
        %v4266 = vadd.f32 %v4218, %v4249
        %v4267 = vadd.f32 %v4219, %v4249
        %v4268 = vadd.f32 %v4220, %v4249
        %v4269 = vadd.f32 %v4221, %v4249
        %v4270 = vadd.f32 %v4222, %v4249
        %v4271 = vadd.f32 %v4223, %v4249
        %v4272 = vadd.f32 %v4224, %v4249
        %v4273 = vadd.f32 %v4225, %v4249
        %v4274 = vadd.f32 %v4226, %v4254
        %v4275 = vadd.f32 %v4227, %v4254
        %v4276 = vadd.f32 %v4228, %v4254
        %v4277 = vadd.f32 %v4229, %v4254
        %v4278 = vadd.f32 %v4230, %v4254
        %v4279 = vadd.f32 %v4231, %v4254
        %v4280 = vadd.f32 %v4232, %v4254
        %v4281 = vadd.f32 %v4233, %v4254
        %v4282 = vadd.f32 %v4234, %v4254
        %v4283 = vadd.f32 %v4235, %v4254
        %v4284 = vadd.f32 %v4236, %v4254
        %v4285 = vadd.f32 %v4237, %v4254
        %v4286 = vadd.f32 %v4238, %v4254
        %v4287 = vadd.f32 %v4239, %v4254
        %v4288 = vadd.f32 %v4240, %v4254
        %v4289 = vadd.f32 %v4241, %v4254
        %v4290 = vadd.f32 %v4242, %v4254
        %v4291 = vadd.f32 %v4243, %v4254
        %v4292 = vadd.f32 %v4256, %v4274
        %v4293 = vrot.slane %v4292, 4
        %v4294 = vadd.f32 %v4292, %v4293
        %v4295 = vrot.slane %v4294, 2
        %v4296 = vadd.f32 %v4294, %v4295
        %v4297 = vrot.slane %v4296, 1
        %v4298 = vadd.f32 %v4296, %v4297
        %v4299 = vadd.f32 %v4257, %v4275
        %v4300 = vrot.slane %v4299, 4
        %v4301 = vadd.f32 %v4299, %v4300
        %v4302 = vrot.slane %v4301, 2
        %v4303 = vadd.f32 %v4301, %v4302
        %v4304 = vrot.slane %v4303, 1
        %v4305 = vadd.f32 %v4303, %v4304
        %v4306 = vadd.f32 %v4258, %v4276
        %v4307 = vrot.slane %v4306, 4
        %v4308 = vadd.f32 %v4306, %v4307
        %v4309 = vrot.slane %v4308, 2
        %v4310 = vadd.f32 %v4308, %v4309
        %v4311 = vrot.slane %v4310, 1
        %v4312 = vadd.f32 %v4310, %v4311
        %v4313 = vadd.f32 %v4259, %v4277
        %v4314 = vrot.slane %v4313, 4
        %v4315 = vadd.f32 %v4313, %v4314
        %v4316 = vrot.slane %v4315, 2
        %v4317 = vadd.f32 %v4315, %v4316
        %v4318 = vrot.slane %v4317, 1
        %v4319 = vadd.f32 %v4317, %v4318
        %v4320 = vadd.f32 %v4260, %v4278
        %v4321 = vrot.slane %v4320, 4
        %v4322 = vadd.f32 %v4320, %v4321
        %v4323 = vrot.slane %v4322, 2
        %v4324 = vadd.f32 %v4322, %v4323
        %v4325 = vrot.slane %v4324, 1
        %v4326 = vadd.f32 %v4324, %v4325
        %v4327 = vadd.f32 %v4261, %v4279
        %v4328 = vrot.slane %v4327, 4
        %v4329 = vadd.f32 %v4327, %v4328
        %v4330 = vrot.slane %v4329, 2
        %v4331 = vadd.f32 %v4329, %v4330
        %v4332 = vrot.slane %v4331, 1
        %v4333 = vadd.f32 %v4331, %v4332
        %v4334 = vadd.f32 %v4262, %v4280
        %v4335 = vrot.slane %v4334, 4
        %v4336 = vadd.f32 %v4334, %v4335
        %v4337 = vrot.slane %v4336, 2
        %v4338 = vadd.f32 %v4336, %v4337
        %v4339 = vrot.slane %v4338, 1
        %v4340 = vadd.f32 %v4338, %v4339
        %v4341 = vadd.f32 %v4263, %v4281
        %v4342 = vrot.slane %v4341, 4
        %v4343 = vadd.f32 %v4341, %v4342
        %v4344 = vrot.slane %v4343, 2
        %v4345 = vadd.f32 %v4343, %v4344
        %v4346 = vrot.slane %v4345, 1
        %v4347 = vadd.f32 %v4345, %v4346
        %v4348 = vadd.f32 %v4264, %v4282
        %v4349 = vrot.slane %v4348, 4
        %v4350 = vadd.f32 %v4348, %v4349
        %v4351 = vrot.slane %v4350, 2
        %v4352 = vadd.f32 %v4350, %v4351
        %v4353 = vrot.slane %v4352, 1
        %v4354 = vadd.f32 %v4352, %v4353
        %v4355 = vadd.f32 %v4265, %v4283
        %v4356 = vrot.slane %v4355, 4
        %v4357 = vadd.f32 %v4355, %v4356
        %v4358 = vrot.slane %v4357, 2
        %v4359 = vadd.f32 %v4357, %v4358
        %v4360 = vrot.slane %v4359, 1
        %v4361 = vadd.f32 %v4359, %v4360
        %v4362 = vadd.f32 %v4266, %v4284
        %v4363 = vrot.slane %v4362, 4
        %v4364 = vadd.f32 %v4362, %v4363
        %v4365 = vrot.slane %v4364, 2
        %v4366 = vadd.f32 %v4364, %v4365
        %v4367 = vrot.slane %v4366, 1
        %v4368 = vadd.f32 %v4366, %v4367
        %v4369 = vadd.f32 %v4267, %v4285
        %v4370 = vrot.slane %v4369, 4
        %v4371 = vadd.f32 %v4369, %v4370
        %v4372 = vrot.slane %v4371, 2
        %v4373 = vadd.f32 %v4371, %v4372
        %v4374 = vrot.slane %v4373, 1
        %v4375 = vadd.f32 %v4373, %v4374
        %v4376 = vadd.f32 %v4268, %v4286
        %v4377 = vrot.slane %v4376, 4
        %v4378 = vadd.f32 %v4376, %v4377
        %v4379 = vrot.slane %v4378, 2
        %v4380 = vadd.f32 %v4378, %v4379
        %v4381 = vrot.slane %v4380, 1
        %v4382 = vadd.f32 %v4380, %v4381
        %v4383 = vadd.f32 %v4269, %v4287
        %v4384 = vrot.slane %v4383, 4
        %v4385 = vadd.f32 %v4383, %v4384
        %v4386 = vrot.slane %v4385, 2
        %v4387 = vadd.f32 %v4385, %v4386
        %v4388 = vrot.slane %v4387, 1
        %v4389 = vadd.f32 %v4387, %v4388
        %v4390 = vadd.f32 %v4270, %v4288
        %v4391 = vrot.slane %v4390, 4
        %v4392 = vadd.f32 %v4390, %v4391
        %v4393 = vrot.slane %v4392, 2
        %v4394 = vadd.f32 %v4392, %v4393
        %v4395 = vrot.slane %v4394, 1
        %v4396 = vadd.f32 %v4394, %v4395
        %v4397 = vadd.f32 %v4271, %v4289
        %v4398 = vrot.slane %v4397, 4
        %v4399 = vadd.f32 %v4397, %v4398
        %v4400 = vrot.slane %v4399, 2
        %v4401 = vadd.f32 %v4399, %v4400
        %v4402 = vrot.slane %v4401, 1
        %v4403 = vadd.f32 %v4401, %v4402
        %v4404 = vadd.f32 %v4272, %v4290
        %v4405 = vrot.slane %v4404, 4
        %v4406 = vadd.f32 %v4404, %v4405
        %v4407 = vrot.slane %v4406, 2
        %v4408 = vadd.f32 %v4406, %v4407
        %v4409 = vrot.slane %v4408, 1
        %v4410 = vadd.f32 %v4408, %v4409
        %v4411 = vadd.f32 %v4273, %v4291
        %v4412 = vrot.slane %v4411, 4
        %v4413 = vadd.f32 %v4411, %v4412
        %v4414 = vrot.slane %v4413, 2
        %v4415 = vadd.f32 %v4413, %v4414
        %v4416 = vrot.slane %v4415, 1
        %v4417 = vadd.f32 %v4415, %v4416
        %v4418 = vrcp.pop 16.0
        %v4419 = vmul.f32 16.0, %v4418
        %v4420 = vsub.f32 1.0, %v4419
        %v4421 = vmul.f32 %v4418, %v4420
        %v4422 = vadd.f32 %v4418, %v4421
        %vm4423 = vweird.f32 %v4418
        %v4424 = vsel %vm4423, %v4418, %v4422
        %v4425 = vmul.f32 %v4298, %v4424
        %v4426 = vmul.f32 %v4305, %v4424
        %v4427 = vmul.f32 %v4312, %v4424
        %v4428 = vmul.f32 %v4319, %v4424
        %v4429 = vmul.f32 %v4326, %v4424
        %v4430 = vmul.f32 %v4333, %v4424
        %v4431 = vmul.f32 %v4340, %v4424
        %v4432 = vmul.f32 %v4347, %v4424
        %v4433 = vmul.f32 %v4354, %v4424
        %v4434 = vmul.f32 %v4361, %v4424
        %v4435 = vmul.f32 %v4368, %v4424
        %v4436 = vmul.f32 %v4375, %v4424
        %v4437 = vmul.f32 %v4382, %v4424
        %v4438 = vmul.f32 %v4389, %v4424
        %v4439 = vmul.f32 %v4396, %v4424
        %v4440 = vmul.f32 %v4403, %v4424
        %v4441 = vmul.f32 %v4410, %v4424
        %v4442 = vmul.f32 %v4417, %v4424
        %v4443 = vsub.f32 %v4256, %v4425
        %v4444 = vsub.f32 %v4257, %v4426
        %v4445 = vsub.f32 %v4258, %v4427
        %v4446 = vsub.f32 %v4259, %v4428
        %v4447 = vsub.f32 %v4260, %v4429
        %v4448 = vsub.f32 %v4261, %v4430
        %v4449 = vsub.f32 %v4262, %v4431
        %v4450 = vsub.f32 %v4263, %v4432
        %v4451 = vsub.f32 %v4264, %v4433
        %v4452 = vsub.f32 %v4265, %v4434
        %v4453 = vsub.f32 %v4266, %v4435
        %v4454 = vsub.f32 %v4267, %v4436
        %v4455 = vsub.f32 %v4268, %v4437
        %v4456 = vsub.f32 %v4269, %v4438
        %v4457 = vsub.f32 %v4270, %v4439
        %v4458 = vsub.f32 %v4271, %v4440
        %v4459 = vsub.f32 %v4272, %v4441
        %v4460 = vsub.f32 %v4273, %v4442
        %v4461 = vsub.f32 %v4274, %v4425
        %v4462 = vsub.f32 %v4275, %v4426
        %v4463 = vsub.f32 %v4276, %v4427
        %v4464 = vsub.f32 %v4277, %v4428
        %v4465 = vsub.f32 %v4278, %v4429
        %v4466 = vsub.f32 %v4279, %v4430
        %v4467 = vsub.f32 %v4280, %v4431
        %v4468 = vsub.f32 %v4281, %v4432
        %v4469 = vsub.f32 %v4282, %v4433
        %v4470 = vsub.f32 %v4283, %v4434
        %v4471 = vsub.f32 %v4284, %v4435
        %v4472 = vsub.f32 %v4285, %v4436
        %v4473 = vsub.f32 %v4286, %v4437
        %v4474 = vsub.f32 %v4287, %v4438
        %v4475 = vsub.f32 %v4288, %v4439
        %v4476 = vsub.f32 %v4289, %v4440
        %v4477 = vsub.f32 %v4290, %v4441
        %v4478 = vsub.f32 %v4291, %v4442
        %v4479 = vmul.f32 %v4443, %v4443
        %v4480 = vmul.f32 %v4444, %v4444
        %v4481 = vmul.f32 %v4445, %v4445
        %v4482 = vmul.f32 %v4446, %v4446
        %v4483 = vmul.f32 %v4447, %v4447
        %v4484 = vmul.f32 %v4448, %v4448
        %v4485 = vmul.f32 %v4449, %v4449
        %v4486 = vmul.f32 %v4450, %v4450
        %v4487 = vmul.f32 %v4451, %v4451
        %v4488 = vmul.f32 %v4452, %v4452
        %v4489 = vmul.f32 %v4453, %v4453
        %v4490 = vmul.f32 %v4454, %v4454
        %v4491 = vmul.f32 %v4455, %v4455
        %v4492 = vmul.f32 %v4456, %v4456
        %v4493 = vmul.f32 %v4457, %v4457
        %v4494 = vmul.f32 %v4458, %v4458
        %v4495 = vmul.f32 %v4459, %v4459
        %v4496 = vmul.f32 %v4460, %v4460
        %v4497 = vmul.f32 %v4461, %v4461
        %v4498 = vmul.f32 %v4462, %v4462
        %v4499 = vmul.f32 %v4463, %v4463
        %v4500 = vmul.f32 %v4464, %v4464
        %v4501 = vmul.f32 %v4465, %v4465
        %v4502 = vmul.f32 %v4466, %v4466
        %v4503 = vmul.f32 %v4467, %v4467
        %v4504 = vmul.f32 %v4468, %v4468
        %v4505 = vmul.f32 %v4469, %v4469
        %v4506 = vmul.f32 %v4470, %v4470
        %v4507 = vmul.f32 %v4471, %v4471
        %v4508 = vmul.f32 %v4472, %v4472
        %v4509 = vmul.f32 %v4473, %v4473
        %v4510 = vmul.f32 %v4474, %v4474
        %v4511 = vmul.f32 %v4475, %v4475
        %v4512 = vmul.f32 %v4476, %v4476
        %v4513 = vmul.f32 %v4477, %v4477
        %v4514 = vmul.f32 %v4478, %v4478
        %v4515 = vadd.f32 %v4479, %v4497
        %v4516 = vrot.slane %v4515, 4
        %v4517 = vadd.f32 %v4515, %v4516
        %v4518 = vrot.slane %v4517, 2
        %v4519 = vadd.f32 %v4517, %v4518
        %v4520 = vrot.slane %v4519, 1
        %v4521 = vadd.f32 %v4519, %v4520
        %v4522 = vadd.f32 %v4480, %v4498
        %v4523 = vrot.slane %v4522, 4
        %v4524 = vadd.f32 %v4522, %v4523
        %v4525 = vrot.slane %v4524, 2
        %v4526 = vadd.f32 %v4524, %v4525
        %v4527 = vrot.slane %v4526, 1
        %v4528 = vadd.f32 %v4526, %v4527
        %v4529 = vadd.f32 %v4481, %v4499
        %v4530 = vrot.slane %v4529, 4
        %v4531 = vadd.f32 %v4529, %v4530
        %v4532 = vrot.slane %v4531, 2
        %v4533 = vadd.f32 %v4531, %v4532
        %v4534 = vrot.slane %v4533, 1
        %v4535 = vadd.f32 %v4533, %v4534
        %v4536 = vadd.f32 %v4482, %v4500
        %v4537 = vrot.slane %v4536, 4
        %v4538 = vadd.f32 %v4536, %v4537
        %v4539 = vrot.slane %v4538, 2
        %v4540 = vadd.f32 %v4538, %v4539
        %v4541 = vrot.slane %v4540, 1
        %v4542 = vadd.f32 %v4540, %v4541
        %v4543 = vadd.f32 %v4483, %v4501
        %v4544 = vrot.slane %v4543, 4
        %v4545 = vadd.f32 %v4543, %v4544
        %v4546 = vrot.slane %v4545, 2
        %v4547 = vadd.f32 %v4545, %v4546
        %v4548 = vrot.slane %v4547, 1
        %v4549 = vadd.f32 %v4547, %v4548
        %v4550 = vadd.f32 %v4484, %v4502
        %v4551 = vrot.slane %v4550, 4
        %v4552 = vadd.f32 %v4550, %v4551
        %v4553 = vrot.slane %v4552, 2
        %v4554 = vadd.f32 %v4552, %v4553
        %v4555 = vrot.slane %v4554, 1
        %v4556 = vadd.f32 %v4554, %v4555
        %v4557 = vadd.f32 %v4485, %v4503
        %v4558 = vrot.slane %v4557, 4
        %v4559 = vadd.f32 %v4557, %v4558
        %v4560 = vrot.slane %v4559, 2
        %v4561 = vadd.f32 %v4559, %v4560
        %v4562 = vrot.slane %v4561, 1
        %v4563 = vadd.f32 %v4561, %v4562
        %v4564 = vadd.f32 %v4486, %v4504
        %v4565 = vrot.slane %v4564, 4
        %v4566 = vadd.f32 %v4564, %v4565
        %v4567 = vrot.slane %v4566, 2
        %v4568 = vadd.f32 %v4566, %v4567
        %v4569 = vrot.slane %v4568, 1
        %v4570 = vadd.f32 %v4568, %v4569
        %v4571 = vadd.f32 %v4487, %v4505
        %v4572 = vrot.slane %v4571, 4
        %v4573 = vadd.f32 %v4571, %v4572
        %v4574 = vrot.slane %v4573, 2
        %v4575 = vadd.f32 %v4573, %v4574
        %v4576 = vrot.slane %v4575, 1
        %v4577 = vadd.f32 %v4575, %v4576
        %v4578 = vadd.f32 %v4488, %v4506
        %v4579 = vrot.slane %v4578, 4
        %v4580 = vadd.f32 %v4578, %v4579
        %v4581 = vrot.slane %v4580, 2
        %v4582 = vadd.f32 %v4580, %v4581
        %v4583 = vrot.slane %v4582, 1
        %v4584 = vadd.f32 %v4582, %v4583
        %v4585 = vadd.f32 %v4489, %v4507
        %v4586 = vrot.slane %v4585, 4
        %v4587 = vadd.f32 %v4585, %v4586
        %v4588 = vrot.slane %v4587, 2
        %v4589 = vadd.f32 %v4587, %v4588
        %v4590 = vrot.slane %v4589, 1
        %v4591 = vadd.f32 %v4589, %v4590
        %v4592 = vadd.f32 %v4490, %v4508
        %v4593 = vrot.slane %v4592, 4
        %v4594 = vadd.f32 %v4592, %v4593
        %v4595 = vrot.slane %v4594, 2
        %v4596 = vadd.f32 %v4594, %v4595
        %v4597 = vrot.slane %v4596, 1
        %v4598 = vadd.f32 %v4596, %v4597
        %v4599 = vadd.f32 %v4491, %v4509
        %v4600 = vrot.slane %v4599, 4
        %v4601 = vadd.f32 %v4599, %v4600
        %v4602 = vrot.slane %v4601, 2
        %v4603 = vadd.f32 %v4601, %v4602
        %v4604 = vrot.slane %v4603, 1
        %v4605 = vadd.f32 %v4603, %v4604
        %v4606 = vadd.f32 %v4492, %v4510
        %v4607 = vrot.slane %v4606, 4
        %v4608 = vadd.f32 %v4606, %v4607
        %v4609 = vrot.slane %v4608, 2
        %v4610 = vadd.f32 %v4608, %v4609
        %v4611 = vrot.slane %v4610, 1
        %v4612 = vadd.f32 %v4610, %v4611
        %v4613 = vadd.f32 %v4493, %v4511
        %v4614 = vrot.slane %v4613, 4
        %v4615 = vadd.f32 %v4613, %v4614
        %v4616 = vrot.slane %v4615, 2
        %v4617 = vadd.f32 %v4615, %v4616
        %v4618 = vrot.slane %v4617, 1
        %v4619 = vadd.f32 %v4617, %v4618
        %v4620 = vadd.f32 %v4494, %v4512
        %v4621 = vrot.slane %v4620, 4
        %v4622 = vadd.f32 %v4620, %v4621
        %v4623 = vrot.slane %v4622, 2
        %v4624 = vadd.f32 %v4622, %v4623
        %v4625 = vrot.slane %v4624, 1
        %v4626 = vadd.f32 %v4624, %v4625
        %v4627 = vadd.f32 %v4495, %v4513
        %v4628 = vrot.slane %v4627, 4
        %v4629 = vadd.f32 %v4627, %v4628
        %v4630 = vrot.slane %v4629, 2
        %v4631 = vadd.f32 %v4629, %v4630
        %v4632 = vrot.slane %v4631, 1
        %v4633 = vadd.f32 %v4631, %v4632
        %v4634 = vadd.f32 %v4496, %v4514
        %v4635 = vrot.slane %v4634, 4
        %v4636 = vadd.f32 %v4634, %v4635
        %v4637 = vrot.slane %v4636, 2
        %v4638 = vadd.f32 %v4636, %v4637
        %v4639 = vrot.slane %v4638, 1
        %v4640 = vadd.f32 %v4638, %v4639
        %v4641 = vmul.f32 %v4521, %v4424
        %v4642 = vmul.f32 %v4528, %v4424
        %v4643 = vmul.f32 %v4535, %v4424
        %v4644 = vmul.f32 %v4542, %v4424
        %v4645 = vmul.f32 %v4549, %v4424
        %v4646 = vmul.f32 %v4556, %v4424
        %v4647 = vmul.f32 %v4563, %v4424
        %v4648 = vmul.f32 %v4570, %v4424
        %v4649 = vmul.f32 %v4577, %v4424
        %v4650 = vmul.f32 %v4584, %v4424
        %v4651 = vmul.f32 %v4591, %v4424
        %v4652 = vmul.f32 %v4598, %v4424
        %v4653 = vmul.f32 %v4605, %v4424
        %v4654 = vmul.f32 %v4612, %v4424
        %v4655 = vmul.f32 %v4619, %v4424
        %v4656 = vmul.f32 %v4626, %v4424
        %v4657 = vmul.f32 %v4633, %v4424
        %v4658 = vmul.f32 %v4640, %v4424
        %v4659 = vadd.f32 %v4641, 1e-05
        %v4660 = vadd.f32 %v4642, 1e-05
        %v4661 = vadd.f32 %v4643, 1e-05
        %v4662 = vadd.f32 %v4644, 1e-05
        %v4663 = vadd.f32 %v4645, 1e-05
        %v4664 = vadd.f32 %v4646, 1e-05
        %v4665 = vadd.f32 %v4647, 1e-05
        %v4666 = vadd.f32 %v4648, 1e-05
        %v4667 = vadd.f32 %v4649, 1e-05
        %v4668 = vadd.f32 %v4650, 1e-05
        %v4669 = vadd.f32 %v4651, 1e-05
        %v4670 = vadd.f32 %v4652, 1e-05
        %v4671 = vadd.f32 %v4653, 1e-05
        %v4672 = vadd.f32 %v4654, 1e-05
        %v4673 = vadd.f32 %v4655, 1e-05
        %v4674 = vadd.f32 %v4656, 1e-05
        %v4675 = vadd.f32 %v4657, 1e-05
        %v4676 = vadd.f32 %v4658, 1e-05
        %v4677 = vrsqrt.pop %v4659
        %v4678 = vmul.f32 %v4677, %v4659
        %v4679 = vmul.f32 %v4678, %v4677
        %v4680 = vmul.f32 0.5, %v4679
        %v4681 = vsub.f32 1.5, %v4680
        %v4682 = vmul.f32 %v4677, %v4681
        %vm4683 = vweird.f32 %v4659
        %vm4684 = vweird.f32 %v4677
        %vm4685 = vmor %vm4683, %vm4684
        %v4686 = vsel %vm4685, %v4677, %v4682
        %v4687 = vrsqrt.pop %v4660
        %v4688 = vmul.f32 %v4687, %v4660
        %v4689 = vmul.f32 %v4688, %v4687
        %v4690 = vmul.f32 0.5, %v4689
        %v4691 = vsub.f32 1.5, %v4690
        %v4692 = vmul.f32 %v4687, %v4691
        %vm4693 = vweird.f32 %v4660
        %vm4694 = vweird.f32 %v4687
        %vm4695 = vmor %vm4693, %vm4694
        %v4696 = vsel %vm4695, %v4687, %v4692
        %v4697 = vrsqrt.pop %v4661
        %v4698 = vmul.f32 %v4697, %v4661
        %v4699 = vmul.f32 %v4698, %v4697
        %v4700 = vmul.f32 0.5, %v4699
        %v4701 = vsub.f32 1.5, %v4700
        %v4702 = vmul.f32 %v4697, %v4701
        %vm4703 = vweird.f32 %v4661
        %vm4704 = vweird.f32 %v4697
        %vm4705 = vmor %vm4703, %vm4704
        %v4706 = vsel %vm4705, %v4697, %v4702
        %v4707 = vrsqrt.pop %v4662
        %v4708 = vmul.f32 %v4707, %v4662
        %v4709 = vmul.f32 %v4708, %v4707
        %v4710 = vmul.f32 0.5, %v4709
        %v4711 = vsub.f32 1.5, %v4710
        %v4712 = vmul.f32 %v4707, %v4711
        %vm4713 = vweird.f32 %v4662
        %vm4714 = vweird.f32 %v4707
        %vm4715 = vmor %vm4713, %vm4714
        %v4716 = vsel %vm4715, %v4707, %v4712
        %v4717 = vrsqrt.pop %v4663
        %v4718 = vmul.f32 %v4717, %v4663
        %v4719 = vmul.f32 %v4718, %v4717
        %v4720 = vmul.f32 0.5, %v4719
        %v4721 = vsub.f32 1.5, %v4720
        %v4722 = vmul.f32 %v4717, %v4721
        %vm4723 = vweird.f32 %v4663
        %vm4724 = vweird.f32 %v4717
        %vm4725 = vmor %vm4723, %vm4724
        %v4726 = vsel %vm4725, %v4717, %v4722
        %v4727 = vrsqrt.pop %v4664
        %v4728 = vmul.f32 %v4727, %v4664
        %v4729 = vmul.f32 %v4728, %v4727
        %v4730 = vmul.f32 0.5, %v4729
        %v4731 = vsub.f32 1.5, %v4730
        %v4732 = vmul.f32 %v4727, %v4731
        %vm4733 = vweird.f32 %v4664
        %vm4734 = vweird.f32 %v4727
        %vm4735 = vmor %vm4733, %vm4734
        %v4736 = vsel %vm4735, %v4727, %v4732
        %v4737 = vrsqrt.pop %v4665
        %v4738 = vmul.f32 %v4737, %v4665
        %v4739 = vmul.f32 %v4738, %v4737
        %v4740 = vmul.f32 0.5, %v4739
        %v4741 = vsub.f32 1.5, %v4740
        %v4742 = vmul.f32 %v4737, %v4741
        %vm4743 = vweird.f32 %v4665
        %vm4744 = vweird.f32 %v4737
        %vm4745 = vmor %vm4743, %vm4744
        %v4746 = vsel %vm4745, %v4737, %v4742
        %v4747 = vrsqrt.pop %v4666
        %v4748 = vmul.f32 %v4747, %v4666
        %v4749 = vmul.f32 %v4748, %v4747
        %v4750 = vmul.f32 0.5, %v4749
        %v4751 = vsub.f32 1.5, %v4750
        %v4752 = vmul.f32 %v4747, %v4751
        %vm4753 = vweird.f32 %v4666
        %vm4754 = vweird.f32 %v4747
        %vm4755 = vmor %vm4753, %vm4754
        %v4756 = vsel %vm4755, %v4747, %v4752
        %v4757 = vrsqrt.pop %v4667
        %v4758 = vmul.f32 %v4757, %v4667
        %v4759 = vmul.f32 %v4758, %v4757
        %v4760 = vmul.f32 0.5, %v4759
        %v4761 = vsub.f32 1.5, %v4760
        %v4762 = vmul.f32 %v4757, %v4761
        %vm4763 = vweird.f32 %v4667
        %vm4764 = vweird.f32 %v4757
        %vm4765 = vmor %vm4763, %vm4764
        %v4766 = vsel %vm4765, %v4757, %v4762
        %v4767 = vrsqrt.pop %v4668
        %v4768 = vmul.f32 %v4767, %v4668
        %v4769 = vmul.f32 %v4768, %v4767
        %v4770 = vmul.f32 0.5, %v4769
        %v4771 = vsub.f32 1.5, %v4770
        %v4772 = vmul.f32 %v4767, %v4771
        %vm4773 = vweird.f32 %v4668
        %vm4774 = vweird.f32 %v4767
        %vm4775 = vmor %vm4773, %vm4774
        %v4776 = vsel %vm4775, %v4767, %v4772
        %v4777 = vrsqrt.pop %v4669
        %v4778 = vmul.f32 %v4777, %v4669
        %v4779 = vmul.f32 %v4778, %v4777
        %v4780 = vmul.f32 0.5, %v4779
        %v4781 = vsub.f32 1.5, %v4780
        %v4782 = vmul.f32 %v4777, %v4781
        %vm4783 = vweird.f32 %v4669
        %vm4784 = vweird.f32 %v4777
        %vm4785 = vmor %vm4783, %vm4784
        %v4786 = vsel %vm4785, %v4777, %v4782
        %v4787 = vrsqrt.pop %v4670
        %v4788 = vmul.f32 %v4787, %v4670
        %v4789 = vmul.f32 %v4788, %v4787
        %v4790 = vmul.f32 0.5, %v4789
        %v4791 = vsub.f32 1.5, %v4790
        %v4792 = vmul.f32 %v4787, %v4791
        %vm4793 = vweird.f32 %v4670
        %vm4794 = vweird.f32 %v4787
        %vm4795 = vmor %vm4793, %vm4794
        %v4796 = vsel %vm4795, %v4787, %v4792
        %v4797 = vrsqrt.pop %v4671
        %v4798 = vmul.f32 %v4797, %v4671
        %v4799 = vmul.f32 %v4798, %v4797
        %v4800 = vmul.f32 0.5, %v4799
        %v4801 = vsub.f32 1.5, %v4800
        %v4802 = vmul.f32 %v4797, %v4801
        %vm4803 = vweird.f32 %v4671
        %vm4804 = vweird.f32 %v4797
        %vm4805 = vmor %vm4803, %vm4804
        %v4806 = vsel %vm4805, %v4797, %v4802
        %v4807 = vrsqrt.pop %v4672
        %v4808 = vmul.f32 %v4807, %v4672
        %v4809 = vmul.f32 %v4808, %v4807
        %v4810 = vmul.f32 0.5, %v4809
        %v4811 = vsub.f32 1.5, %v4810
        %v4812 = vmul.f32 %v4807, %v4811
        %vm4813 = vweird.f32 %v4672
        %vm4814 = vweird.f32 %v4807
        %vm4815 = vmor %vm4813, %vm4814
        %v4816 = vsel %vm4815, %v4807, %v4812
        %v4817 = vrsqrt.pop %v4673
        %v4818 = vmul.f32 %v4817, %v4673
        %v4819 = vmul.f32 %v4818, %v4817
        %v4820 = vmul.f32 0.5, %v4819
        %v4821 = vsub.f32 1.5, %v4820
        %v4822 = vmul.f32 %v4817, %v4821
        %vm4823 = vweird.f32 %v4673
        %vm4824 = vweird.f32 %v4817
        %vm4825 = vmor %vm4823, %vm4824
        %v4826 = vsel %vm4825, %v4817, %v4822
        %v4827 = vrsqrt.pop %v4674
        %v4828 = vmul.f32 %v4827, %v4674
        %v4829 = vmul.f32 %v4828, %v4827
        %v4830 = vmul.f32 0.5, %v4829
        %v4831 = vsub.f32 1.5, %v4830
        %v4832 = vmul.f32 %v4827, %v4831
        %vm4833 = vweird.f32 %v4674
        %vm4834 = vweird.f32 %v4827
        %vm4835 = vmor %vm4833, %vm4834
        %v4836 = vsel %vm4835, %v4827, %v4832
        %v4837 = vrsqrt.pop %v4675
        %v4838 = vmul.f32 %v4837, %v4675
        %v4839 = vmul.f32 %v4838, %v4837
        %v4840 = vmul.f32 0.5, %v4839
        %v4841 = vsub.f32 1.5, %v4840
        %v4842 = vmul.f32 %v4837, %v4841
        %vm4843 = vweird.f32 %v4675
        %vm4844 = vweird.f32 %v4837
        %vm4845 = vmor %vm4843, %vm4844
        %v4846 = vsel %vm4845, %v4837, %v4842
        %v4847 = vrsqrt.pop %v4676
        %v4848 = vmul.f32 %v4847, %v4676
        %v4849 = vmul.f32 %v4848, %v4847
        %v4850 = vmul.f32 0.5, %v4849
        %v4851 = vsub.f32 1.5, %v4850
        %v4852 = vmul.f32 %v4847, %v4851
        %vm4853 = vweird.f32 %v4676
        %vm4854 = vweird.f32 %v4847
        %vm4855 = vmor %vm4853, %vm4854
        %v4856 = vsel %vm4855, %v4847, %v4852
        %v4857 = vmul.f32 %v4443, %v4686
        %v4858 = vmul.f32 %v4444, %v4696
        %v4859 = vmul.f32 %v4445, %v4706
        %v4860 = vmul.f32 %v4446, %v4716
        %v4861 = vmul.f32 %v4447, %v4726
        %v4862 = vmul.f32 %v4448, %v4736
        %v4863 = vmul.f32 %v4449, %v4746
        %v4864 = vmul.f32 %v4450, %v4756
        %v4865 = vmul.f32 %v4451, %v4766
        %v4866 = vmul.f32 %v4452, %v4776
        %v4867 = vmul.f32 %v4453, %v4786
        %v4868 = vmul.f32 %v4454, %v4796
        %v4869 = vmul.f32 %v4455, %v4806
        %v4870 = vmul.f32 %v4456, %v4816
        %v4871 = vmul.f32 %v4457, %v4826
        %v4872 = vmul.f32 %v4458, %v4836
        %v4873 = vmul.f32 %v4459, %v4846
        %v4874 = vmul.f32 %v4460, %v4856
        %v4875 = vmul.f32 %v4461, %v4686
        %v4876 = vmul.f32 %v4462, %v4696
        %v4877 = vmul.f32 %v4463, %v4706
        %v4878 = vmul.f32 %v4464, %v4716
        %v4879 = vmul.f32 %v4465, %v4726
        %v4880 = vmul.f32 %v4466, %v4736
        %v4881 = vmul.f32 %v4467, %v4746
        %v4882 = vmul.f32 %v4468, %v4756
        %v4883 = vmul.f32 %v4469, %v4766
        %v4884 = vmul.f32 %v4470, %v4776
        %v4885 = vmul.f32 %v4471, %v4786
        %v4886 = vmul.f32 %v4472, %v4796
        %v4887 = vmul.f32 %v4473, %v4806
        %v4888 = vmul.f32 %v4474, %v4816
        %v4889 = vmul.f32 %v4475, %v4826
        %v4890 = vmul.f32 %v4476, %v4836
        %v4891 = vmul.f32 %v4477, %v4846
        %v4892 = vmul.f32 %v4478, %v4856
        %v4893 = vld [vmem:[%s12] sm:$0xff]
        %v4894 = vld [vmem:[%s12 + $0x8] sm:$0xff]
        %4896 = vset.pattern.permute.xlu0 0
        %4897 = vperm.xlu0 %4896, %v4893
        %v4898 = vpop.permute.xlu0 %4897
        %4901 = vset.pattern.permute.xlu0 0
        %4902 = vperm.xlu0 %4901, %v4894
        %v4903 = vpop.permute.xlu0 %4902
        %v4905 = vmul.f32 %v4857, %v4898
        %v4906 = vmul.f32 %v4858, %v4898
        %v4907 = vmul.f32 %v4859, %v4898
        %v4908 = vmul.f32 %v4860, %v4898
        %v4909 = vmul.f32 %v4861, %v4898
        %v4910 = vmul.f32 %v4862, %v4898
        %v4911 = vmul.f32 %v4863, %v4898
        %v4912 = vmul.f32 %v4864, %v4898
        %v4913 = vmul.f32 %v4865, %v4898
        %v4914 = vmul.f32 %v4866, %v4898
        %v4915 = vmul.f32 %v4867, %v4898
        %v4916 = vmul.f32 %v4868, %v4898
        %v4917 = vmul.f32 %v4869, %v4898
        %v4918 = vmul.f32 %v4870, %v4898
        %v4919 = vmul.f32 %v4871, %v4898
        %v4920 = vmul.f32 %v4872, %v4898
        %v4921 = vmul.f32 %v4873, %v4898
        %v4922 = vmul.f32 %v4874, %v4898
        %v4923 = vmul.f32 %v4875, %v4903
        %v4924 = vmul.f32 %v4876, %v4903
        %v4925 = vmul.f32 %v4877, %v4903
        %v4926 = vmul.f32 %v4878, %v4903
        %v4927 = vmul.f32 %v4879, %v4903
        %v4928 = vmul.f32 %v4880, %v4903
        %v4929 = vmul.f32 %v4881, %v4903
        %v4930 = vmul.f32 %v4882, %v4903
        %v4931 = vmul.f32 %v4883, %v4903
        %v4932 = vmul.f32 %v4884, %v4903
        %v4933 = vmul.f32 %v4885, %v4903
        %v4934 = vmul.f32 %v4886, %v4903
        %v4935 = vmul.f32 %v4887, %v4903
        %v4936 = vmul.f32 %v4888, %v4903
        %v4937 = vmul.f32 %v4889, %v4903
        %v4938 = vmul.f32 %v4890, %v4903
        %v4939 = vmul.f32 %v4891, %v4903
        %v4940 = vmul.f32 %v4892, %v4903
        %v4941 = vld [vmem:[%s13] sm:$0xff]
        %v4942 = vld [vmem:[%s13 + $0x8] sm:$0xff]
        %4944 = vset.pattern.permute.xlu0 0
        %4945 = vperm.xlu0 %4944, %v4941
        %v4946 = vpop.permute.xlu0 %4945
        %4949 = vset.pattern.permute.xlu0 0
        %4950 = vperm.xlu0 %4949, %v4942
        %v4951 = vpop.permute.xlu0 %4950
        %v4953 = vadd.f32 %v4905, %v4946
        %v4954 = vadd.f32 %v4906, %v4946
        %v4955 = vadd.f32 %v4907, %v4946
        %v4956 = vadd.f32 %v4908, %v4946
        %v4957 = vadd.f32 %v4909, %v4946
        %v4958 = vadd.f32 %v4910, %v4946
        %v4959 = vadd.f32 %v4911, %v4946
        %v4960 = vadd.f32 %v4912, %v4946
        %v4961 = vadd.f32 %v4913, %v4946
        %v4962 = vadd.f32 %v4914, %v4946
        %v4963 = vadd.f32 %v4915, %v4946
        %v4964 = vadd.f32 %v4916, %v4946
        %v4965 = vadd.f32 %v4917, %v4946
        %v4966 = vadd.f32 %v4918, %v4946
        %v4967 = vadd.f32 %v4919, %v4946
        %v4968 = vadd.f32 %v4920, %v4946
        %v4969 = vadd.f32 %v4921, %v4946
        %v4970 = vadd.f32 %v4922, %v4946
        %v4971 = vadd.f32 %v4923, %v4951
        %v4972 = vadd.f32 %v4924, %v4951
        %v4973 = vadd.f32 %v4925, %v4951
        %v4974 = vadd.f32 %v4926, %v4951
        %v4975 = vadd.f32 %v4927, %v4951
        %v4976 = vadd.f32 %v4928, %v4951
        %v4977 = vadd.f32 %v4929, %v4951
        %v4978 = vadd.f32 %v4930, %v4951
        %v4979 = vadd.f32 %v4931, %v4951
        %v4980 = vadd.f32 %v4932, %v4951
        %v4981 = vadd.f32 %v4933, %v4951
        %v4982 = vadd.f32 %v4934, %v4951
        %v4983 = vadd.f32 %v4935, %v4951
        %v4984 = vadd.f32 %v4936, %v4951
        %v4985 = vadd.f32 %v4937, %v4951
        %v4986 = vadd.f32 %v4938, %v4951
        %v4987 = vadd.f32 %v4939, %v4951
        %v4988 = vadd.f32 %v4940, %v4951
        %v4989 = vld [vmem:[%s14] sm:$0xff]
        %v4990 = vld [vmem:[%s14 + $0x8] sm:$0xff]
        %v4991 = vld [vmem:[%s15] sm:$0xff]
        %v4992 = vld [vmem:[%s15 + $0x8] sm:$0xff]
        %4994 = vset.pattern.permute.xlu0 0
        %4995 = vperm.xlu0 %4994, %v4991
        %v4996 = vpop.permute.xlu0 %4995
        %4999 = vset.pattern.permute.xlu0 0
        %5000 = vperm.xlu0 %4999, %v4992
        %v5001 = vpop.permute.xlu0 %5000
        %v5004 = vsel %vm1225, %v4989, 0
        %v5007 = vsel %vm1225, %v4990, 0
        %5009 = vmatpush.msra.mxu0 0.0
        %5010 = vmatpush.msra.mxu0 0.0
        %5011 = vmatpush.msra.mxu0 0.0
        %5012 = vmatpush.msra.mxu0 0.0
        %5013 = vmatpush.msra.mxu0 0.0
        %5014 = vmatpush.msra.mxu0 0.0
        %5015 = vmatpush.msra.mxu0 0.0
        %5016 = vmatpush.msra.mxu0 0.0
        %5017 = vmatpush.msra.mxu0 0.0
        %5018 = vmatpush.msra.mxu0 0.0
        %5019 = vmatpush.msra.mxu0 0.0
        %5020 = vmatpush.msra.mxu0 0.0
        %5021 = vmatpush.msra.mxu0 0.0
        %5022 = vmatpush.msra.mxu0 0.0
        %5023 = vmatpush.msra.mxu0 %v4971
        %5024 = vmatpush.msra.mxu0 %v4953
        %5025 = vmatmul.f32.gmra.mxu0 %v5004
        %v5026 = vpop.f32.mrf.mxu0
        %v5027 = vadd.f32 %v4996, %v5026
        %5028 = vmatmul.f32.gmra.mxu0 %v5007
        %v5029 = vpop.f32.mrf.mxu0
        %v5030 = vadd.f32 %v5001, %v5029
        %5031 = vdwg.mxu0
        %5032 = vmatpush.msra.mxu0 0.0
        %5033 = vmatpush.msra.mxu0 0.0
        %5034 = vmatpush.msra.mxu0 0.0
        %5035 = vmatpush.msra.mxu0 0.0
        %5036 = vmatpush.msra.mxu0 0.0
        %5037 = vmatpush.msra.mxu0 0.0
        %5038 = vmatpush.msra.mxu0 0.0
        %5039 = vmatpush.msra.mxu0 0.0
        %5040 = vmatpush.msra.mxu0 0.0
        %5041 = vmatpush.msra.mxu0 0.0
        %5042 = vmatpush.msra.mxu0 0.0
        %5043 = vmatpush.msra.mxu0 0.0
        %5044 = vmatpush.msra.mxu0 0.0
        %5045 = vmatpush.msra.mxu0 0.0
        %5046 = vmatpush.msra.mxu0 %v4972
        %5047 = vmatpush.msra.mxu0 %v4954
        %5048 = vmatmul.f32.gmra.mxu0 %v5004
        %v5049 = vpop.f32.mrf.mxu0
        %v5050 = vadd.f32 %v4996, %v5049
        %5051 = vmatmul.f32.gmra.mxu0 %v5007
        %v5052 = vpop.f32.mrf.mxu0
        %v5053 = vadd.f32 %v5001, %v5052
        %5054 = vdwg.mxu0
        %5055 = vmatpush.msra.mxu0 0.0
        %5056 = vmatpush.msra.mxu0 0.0
        %5057 = vmatpush.msra.mxu0 0.0
        %5058 = vmatpush.msra.mxu0 0.0
        %5059 = vmatpush.msra.mxu0 0.0
        %5060 = vmatpush.msra.mxu0 0.0
        %5061 = vmatpush.msra.mxu0 0.0
        %5062 = vmatpush.msra.mxu0 0.0
        %5063 = vmatpush.msra.mxu0 0.0
        %5064 = vmatpush.msra.mxu0 0.0
        %5065 = vmatpush.msra.mxu0 0.0
        %5066 = vmatpush.msra.mxu0 0.0
        %5067 = vmatpush.msra.mxu0 0.0
        %5068 = vmatpush.msra.mxu0 0.0
        %5069 = vmatpush.msra.mxu0 %v4973
        %5070 = vmatpush.msra.mxu0 %v4955
        %5071 = vmatmul.f32.gmra.mxu0 %v5004
        %v5072 = vpop.f32.mrf.mxu0
        %v5073 = vadd.f32 %v4996, %v5072
        %5074 = vmatmul.f32.gmra.mxu0 %v5007
        %v5075 = vpop.f32.mrf.mxu0
        %v5076 = vadd.f32 %v5001, %v5075
        %5077 = vdwg.mxu0
        %5078 = vmatpush.msra.mxu0 0.0
        %5079 = vmatpush.msra.mxu0 0.0
        %5080 = vmatpush.msra.mxu0 0.0
        %5081 = vmatpush.msra.mxu0 0.0
        %5082 = vmatpush.msra.mxu0 0.0
        %5083 = vmatpush.msra.mxu0 0.0
        %5084 = vmatpush.msra.mxu0 0.0
        %5085 = vmatpush.msra.mxu0 0.0
        %5086 = vmatpush.msra.mxu0 0.0
        %5087 = vmatpush.msra.mxu0 0.0
        %5088 = vmatpush.msra.mxu0 0.0
        %5089 = vmatpush.msra.mxu0 0.0
        %5090 = vmatpush.msra.mxu0 0.0
        %5091 = vmatpush.msra.mxu0 0.0
        %5092 = vmatpush.msra.mxu0 %v4974
        %5093 = vmatpush.msra.mxu0 %v4956
        %5094 = vmatmul.f32.gmra.mxu0 %v5004
        %v5095 = vpop.f32.mrf.mxu0
        %v5096 = vadd.f32 %v4996, %v5095
        %5097 = vmatmul.f32.gmra.mxu0 %v5007
        %v5098 = vpop.f32.mrf.mxu0
        %v5099 = vadd.f32 %v5001, %v5098
        %5100 = vdwg.mxu0
        %5101 = vmatpush.msra.mxu0 0.0
        %5102 = vmatpush.msra.mxu0 0.0
        %5103 = vmatpush.msra.mxu0 0.0
        %5104 = vmatpush.msra.mxu0 0.0
        %5105 = vmatpush.msra.mxu0 0.0
        %5106 = vmatpush.msra.mxu0 0.0
        %5107 = vmatpush.msra.mxu0 0.0
        %5108 = vmatpush.msra.mxu0 0.0
        %5109 = vmatpush.msra.mxu0 0.0
        %5110 = vmatpush.msra.mxu0 0.0
        %5111 = vmatpush.msra.mxu0 0.0
        %5112 = vmatpush.msra.mxu0 0.0
        %5113 = vmatpush.msra.mxu0 0.0
        %5114 = vmatpush.msra.mxu0 0.0
        %5115 = vmatpush.msra.mxu0 %v4975
        %5116 = vmatpush.msra.mxu0 %v4957
        %5117 = vmatmul.f32.gmra.mxu0 %v5004
        %v5118 = vpop.f32.mrf.mxu0
        %v5119 = vadd.f32 %v4996, %v5118
        %5120 = vmatmul.f32.gmra.mxu0 %v5007
        %v5121 = vpop.f32.mrf.mxu0
        %v5122 = vadd.f32 %v5001, %v5121
        %5123 = vdwg.mxu0
        %5124 = vmatpush.msra.mxu0 0.0
        %5125 = vmatpush.msra.mxu0 0.0
        %5126 = vmatpush.msra.mxu0 0.0
        %5127 = vmatpush.msra.mxu0 0.0
        %5128 = vmatpush.msra.mxu0 0.0
        %5129 = vmatpush.msra.mxu0 0.0
        %5130 = vmatpush.msra.mxu0 0.0
        %5131 = vmatpush.msra.mxu0 0.0
        %5132 = vmatpush.msra.mxu0 0.0
        %5133 = vmatpush.msra.mxu0 0.0
        %5134 = vmatpush.msra.mxu0 0.0
        %5135 = vmatpush.msra.mxu0 0.0
        %5136 = vmatpush.msra.mxu0 0.0
        %5137 = vmatpush.msra.mxu0 0.0
        %5138 = vmatpush.msra.mxu0 %v4976
        %5139 = vmatpush.msra.mxu0 %v4958
        %5140 = vmatmul.f32.gmra.mxu0 %v5004
        %v5141 = vpop.f32.mrf.mxu0
        %v5142 = vadd.f32 %v4996, %v5141
        %5143 = vmatmul.f32.gmra.mxu0 %v5007
        %v5144 = vpop.f32.mrf.mxu0
        %v5145 = vadd.f32 %v5001, %v5144
        %5146 = vdwg.mxu0
        %5147 = vmatpush.msra.mxu0 0.0
        %5148 = vmatpush.msra.mxu0 0.0
        %5149 = vmatpush.msra.mxu0 0.0
        %5150 = vmatpush.msra.mxu0 0.0
        %5151 = vmatpush.msra.mxu0 0.0
        %5152 = vmatpush.msra.mxu0 0.0
        %5153 = vmatpush.msra.mxu0 0.0
        %5154 = vmatpush.msra.mxu0 0.0
        %5155 = vmatpush.msra.mxu0 0.0
        %5156 = vmatpush.msra.mxu0 0.0
        %5157 = vmatpush.msra.mxu0 0.0
        %5158 = vmatpush.msra.mxu0 0.0
        %5159 = vmatpush.msra.mxu0 0.0
        %5160 = vmatpush.msra.mxu0 0.0
        %5161 = vmatpush.msra.mxu0 %v4977
        %5162 = vmatpush.msra.mxu0 %v4959
        %5163 = vmatmul.f32.gmra.mxu0 %v5004
        %v5164 = vpop.f32.mrf.mxu0
        %v5165 = vadd.f32 %v4996, %v5164
        %5166 = vmatmul.f32.gmra.mxu0 %v5007
        %v5167 = vpop.f32.mrf.mxu0
        %v5168 = vadd.f32 %v5001, %v5167
        %5169 = vdwg.mxu0
        %5170 = vmatpush.msra.mxu0 0.0
        %5171 = vmatpush.msra.mxu0 0.0
        %5172 = vmatpush.msra.mxu0 0.0
        %5173 = vmatpush.msra.mxu0 0.0
        %5174 = vmatpush.msra.mxu0 0.0
        %5175 = vmatpush.msra.mxu0 0.0
        %5176 = vmatpush.msra.mxu0 0.0
        %5177 = vmatpush.msra.mxu0 0.0
        %5178 = vmatpush.msra.mxu0 0.0
        %5179 = vmatpush.msra.mxu0 0.0
        %5180 = vmatpush.msra.mxu0 0.0
        %5181 = vmatpush.msra.mxu0 0.0
        %5182 = vmatpush.msra.mxu0 0.0
        %5183 = vmatpush.msra.mxu0 0.0
        %5184 = vmatpush.msra.mxu0 %v4978
        %5185 = vmatpush.msra.mxu0 %v4960
        %5186 = vmatmul.f32.gmra.mxu0 %v5004
        %v5187 = vpop.f32.mrf.mxu0
        %v5188 = vadd.f32 %v4996, %v5187
        %5189 = vmatmul.f32.gmra.mxu0 %v5007
        %v5190 = vpop.f32.mrf.mxu0
        %v5191 = vadd.f32 %v5001, %v5190
        %5192 = vdwg.mxu0
        %5193 = vmatpush.msra.mxu0 0.0
        %5194 = vmatpush.msra.mxu0 0.0
        %5195 = vmatpush.msra.mxu0 0.0
        %5196 = vmatpush.msra.mxu0 0.0
        %5197 = vmatpush.msra.mxu0 0.0
        %5198 = vmatpush.msra.mxu0 0.0
        %5199 = vmatpush.msra.mxu0 0.0
        %5200 = vmatpush.msra.mxu0 0.0
        %5201 = vmatpush.msra.mxu0 0.0
        %5202 = vmatpush.msra.mxu0 0.0
        %5203 = vmatpush.msra.mxu0 0.0
        %5204 = vmatpush.msra.mxu0 0.0
        %5205 = vmatpush.msra.mxu0 0.0
        %5206 = vmatpush.msra.mxu0 0.0
        %5207 = vmatpush.msra.mxu0 %v4979
        %5208 = vmatpush.msra.mxu0 %v4961
        %5209 = vmatmul.f32.gmra.mxu0 %v5004
        %v5210 = vpop.f32.mrf.mxu0
        %v5211 = vadd.f32 %v4996, %v5210
        %5212 = vmatmul.f32.gmra.mxu0 %v5007
        %v5213 = vpop.f32.mrf.mxu0
        %v5214 = vadd.f32 %v5001, %v5213
        %5215 = vdwg.mxu0
        %5216 = vmatpush.msra.mxu0 0.0
        %5217 = vmatpush.msra.mxu0 0.0
        %5218 = vmatpush.msra.mxu0 0.0
        %5219 = vmatpush.msra.mxu0 0.0
        %5220 = vmatpush.msra.mxu0 0.0
        %5221 = vmatpush.msra.mxu0 0.0
        %5222 = vmatpush.msra.mxu0 0.0
        %5223 = vmatpush.msra.mxu0 0.0
        %5224 = vmatpush.msra.mxu0 0.0
        %5225 = vmatpush.msra.mxu0 0.0
        %5226 = vmatpush.msra.mxu0 0.0
        %5227 = vmatpush.msra.mxu0 0.0
        %5228 = vmatpush.msra.mxu0 0.0
        %5229 = vmatpush.msra.mxu0 0.0
        %5230 = vmatpush.msra.mxu0 %v4980
        %5231 = vmatpush.msra.mxu0 %v4962
        %5232 = vmatmul.f32.gmra.mxu0 %v5004
        %v5233 = vpop.f32.mrf.mxu0
        %v5234 = vadd.f32 %v4996, %v5233
        %5235 = vmatmul.f32.gmra.mxu0 %v5007
        %v5236 = vpop.f32.mrf.mxu0
        %v5237 = vadd.f32 %v5001, %v5236
        %5238 = vdwg.mxu0
        %5239 = vmatpush.msra.mxu0 0.0
        %5240 = vmatpush.msra.mxu0 0.0
        %5241 = vmatpush.msra.mxu0 0.0
        %5242 = vmatpush.msra.mxu0 0.0
        %5243 = vmatpush.msra.mxu0 0.0
        %5244 = vmatpush.msra.mxu0 0.0
        %5245 = vmatpush.msra.mxu0 0.0
        %5246 = vmatpush.msra.mxu0 0.0
        %5247 = vmatpush.msra.mxu0 0.0
        %5248 = vmatpush.msra.mxu0 0.0
        %5249 = vmatpush.msra.mxu0 0.0
        %5250 = vmatpush.msra.mxu0 0.0
        %5251 = vmatpush.msra.mxu0 0.0
        %5252 = vmatpush.msra.mxu0 0.0
        %5253 = vmatpush.msra.mxu0 %v4981
        %5254 = vmatpush.msra.mxu0 %v4963
        %5255 = vmatmul.f32.gmra.mxu0 %v5004
        %v5256 = vpop.f32.mrf.mxu0
        %v5257 = vadd.f32 %v4996, %v5256
        %5258 = vmatmul.f32.gmra.mxu0 %v5007
        %v5259 = vpop.f32.mrf.mxu0
        %v5260 = vadd.f32 %v5001, %v5259
        %5261 = vdwg.mxu0
        %5262 = vmatpush.msra.mxu0 0.0
        %5263 = vmatpush.msra.mxu0 0.0
        %5264 = vmatpush.msra.mxu0 0.0
        %5265 = vmatpush.msra.mxu0 0.0
        %5266 = vmatpush.msra.mxu0 0.0
        %5267 = vmatpush.msra.mxu0 0.0
        %5268 = vmatpush.msra.mxu0 0.0
        %5269 = vmatpush.msra.mxu0 0.0
        %5270 = vmatpush.msra.mxu0 0.0
        %5271 = vmatpush.msra.mxu0 0.0
        %5272 = vmatpush.msra.mxu0 0.0
        %5273 = vmatpush.msra.mxu0 0.0
        %5274 = vmatpush.msra.mxu0 0.0
        %5275 = vmatpush.msra.mxu0 0.0
        %5276 = vmatpush.msra.mxu0 %v4982
        %5277 = vmatpush.msra.mxu0 %v4964
        %5278 = vmatmul.f32.gmra.mxu0 %v5004
        %v5279 = vpop.f32.mrf.mxu0
        %v5280 = vadd.f32 %v4996, %v5279
        %5281 = vmatmul.f32.gmra.mxu0 %v5007
        %v5282 = vpop.f32.mrf.mxu0
        %v5283 = vadd.f32 %v5001, %v5282
        %5284 = vdwg.mxu0
        %5285 = vmatpush.msra.mxu0 0.0
        %5286 = vmatpush.msra.mxu0 0.0
        %5287 = vmatpush.msra.mxu0 0.0
        %5288 = vmatpush.msra.mxu0 0.0
        %5289 = vmatpush.msra.mxu0 0.0
        %5290 = vmatpush.msra.mxu0 0.0
        %5291 = vmatpush.msra.mxu0 0.0
        %5292 = vmatpush.msra.mxu0 0.0
        %5293 = vmatpush.msra.mxu0 0.0
        %5294 = vmatpush.msra.mxu0 0.0
        %5295 = vmatpush.msra.mxu0 0.0
        %5296 = vmatpush.msra.mxu0 0.0
        %5297 = vmatpush.msra.mxu0 0.0
        %5298 = vmatpush.msra.mxu0 0.0
        %5299 = vmatpush.msra.mxu0 %v4983
        %5300 = vmatpush.msra.mxu0 %v4965
        %5301 = vmatmul.f32.gmra.mxu0 %v5004
        %v5302 = vpop.f32.mrf.mxu0
        %v5303 = vadd.f32 %v4996, %v5302
        %5304 = vmatmul.f32.gmra.mxu0 %v5007
        %v5305 = vpop.f32.mrf.mxu0
        %v5306 = vadd.f32 %v5001, %v5305
        %5307 = vdwg.mxu0
        %5308 = vmatpush.msra.mxu0 0.0
        %5309 = vmatpush.msra.mxu0 0.0
        %5310 = vmatpush.msra.mxu0 0.0
        %5311 = vmatpush.msra.mxu0 0.0
        %5312 = vmatpush.msra.mxu0 0.0
        %5313 = vmatpush.msra.mxu0 0.0
        %5314 = vmatpush.msra.mxu0 0.0
        %5315 = vmatpush.msra.mxu0 0.0
        %5316 = vmatpush.msra.mxu0 0.0
        %5317 = vmatpush.msra.mxu0 0.0
        %5318 = vmatpush.msra.mxu0 0.0
        %5319 = vmatpush.msra.mxu0 0.0
        %5320 = vmatpush.msra.mxu0 0.0
        %5321 = vmatpush.msra.mxu0 0.0
        %5322 = vmatpush.msra.mxu0 %v4984
        %5323 = vmatpush.msra.mxu0 %v4966
        %5324 = vmatmul.f32.gmra.mxu0 %v5004
        %v5325 = vpop.f32.mrf.mxu0
        %v5326 = vadd.f32 %v4996, %v5325
        %5327 = vmatmul.f32.gmra.mxu0 %v5007
        %v5328 = vpop.f32.mrf.mxu0
        %v5329 = vadd.f32 %v5001, %v5328
        %5330 = vdwg.mxu0
        %5331 = vmatpush.msra.mxu0 0.0
        %5332 = vmatpush.msra.mxu0 0.0
        %5333 = vmatpush.msra.mxu0 0.0
        %5334 = vmatpush.msra.mxu0 0.0
        %5335 = vmatpush.msra.mxu0 0.0
        %5336 = vmatpush.msra.mxu0 0.0
        %5337 = vmatpush.msra.mxu0 0.0
        %5338 = vmatpush.msra.mxu0 0.0
        %5339 = vmatpush.msra.mxu0 0.0
        %5340 = vmatpush.msra.mxu0 0.0
        %5341 = vmatpush.msra.mxu0 0.0
        %5342 = vmatpush.msra.mxu0 0.0
        %5343 = vmatpush.msra.mxu0 0.0
        %5344 = vmatpush.msra.mxu0 0.0
        %5345 = vmatpush.msra.mxu0 %v4985
        %5346 = vmatpush.msra.mxu0 %v4967
        %5347 = vmatmul.f32.gmra.mxu0 %v5004
        %v5348 = vpop.f32.mrf.mxu0
        %v5349 = vadd.f32 %v4996, %v5348
        %5350 = vmatmul.f32.gmra.mxu0 %v5007
        %v5351 = vpop.f32.mrf.mxu0
        %v5352 = vadd.f32 %v5001, %v5351
        %5353 = vdwg.mxu0
        %5354 = vmatpush.msra.mxu0 0.0
        %5355 = vmatpush.msra.mxu0 0.0
        %5356 = vmatpush.msra.mxu0 0.0
        %5357 = vmatpush.msra.mxu0 0.0
        %5358 = vmatpush.msra.mxu0 0.0
        %5359 = vmatpush.msra.mxu0 0.0
        %5360 = vmatpush.msra.mxu0 0.0
        %5361 = vmatpush.msra.mxu0 0.0
        %5362 = vmatpush.msra.mxu0 0.0
        %5363 = vmatpush.msra.mxu0 0.0
        %5364 = vmatpush.msra.mxu0 0.0
        %5365 = vmatpush.msra.mxu0 0.0
        %5366 = vmatpush.msra.mxu0 0.0
        %5367 = vmatpush.msra.mxu0 0.0
        %5368 = vmatpush.msra.mxu0 %v4986
        %5369 = vmatpush.msra.mxu0 %v4968
        %5370 = vmatmul.f32.gmra.mxu0 %v5004
        %v5371 = vpop.f32.mrf.mxu0
        %v5372 = vadd.f32 %v4996, %v5371
        %5373 = vmatmul.f32.gmra.mxu0 %v5007
        %v5374 = vpop.f32.mrf.mxu0
        %v5375 = vadd.f32 %v5001, %v5374
        %5376 = vdwg.mxu0
        %5377 = vmatpush.msra.mxu0 0.0
        %5378 = vmatpush.msra.mxu0 0.0
        %5379 = vmatpush.msra.mxu0 0.0
        %5380 = vmatpush.msra.mxu0 0.0
        %5381 = vmatpush.msra.mxu0 0.0
        %5382 = vmatpush.msra.mxu0 0.0
        %5383 = vmatpush.msra.mxu0 0.0
        %5384 = vmatpush.msra.mxu0 0.0
        %5385 = vmatpush.msra.mxu0 0.0
        %5386 = vmatpush.msra.mxu0 0.0
        %5387 = vmatpush.msra.mxu0 0.0
        %5388 = vmatpush.msra.mxu0 0.0
        %5389 = vmatpush.msra.mxu0 0.0
        %5390 = vmatpush.msra.mxu0 0.0
        %5391 = vmatpush.msra.mxu0 %v4987
        %5392 = vmatpush.msra.mxu0 %v4969
        %5393 = vmatmul.f32.gmra.mxu0 %v5004
        %v5394 = vpop.f32.mrf.mxu0
        %v5395 = vadd.f32 %v4996, %v5394
        %5396 = vmatmul.f32.gmra.mxu0 %v5007
        %v5397 = vpop.f32.mrf.mxu0
        %v5398 = vadd.f32 %v5001, %v5397
        %5399 = vdwg.mxu0
        %5400 = vmatpush.msra.mxu0 0.0
        %5401 = vmatpush.msra.mxu0 0.0
        %5402 = vmatpush.msra.mxu0 0.0
        %5403 = vmatpush.msra.mxu0 0.0
        %5404 = vmatpush.msra.mxu0 0.0
        %5405 = vmatpush.msra.mxu0 0.0
        %5406 = vmatpush.msra.mxu0 0.0
        %5407 = vmatpush.msra.mxu0 0.0
        %5408 = vmatpush.msra.mxu0 0.0
        %5409 = vmatpush.msra.mxu0 0.0
        %5410 = vmatpush.msra.mxu0 0.0
        %5411 = vmatpush.msra.mxu0 0.0
        %5412 = vmatpush.msra.mxu0 0.0
        %5413 = vmatpush.msra.mxu0 0.0
        %5414 = vmatpush.msra.mxu0 %v4988
        %5415 = vmatpush.msra.mxu0 %v4970
        %5416 = vmatmul.f32.gmra.mxu0 %v5004
        %v5417 = vpop.f32.mrf.mxu0
        %v5418 = vadd.f32 %v4996, %v5417
        %5419 = vmatmul.f32.gmra.mxu0 %v5007
        %v5420 = vpop.f32.mrf.mxu0
        %v5421 = vadd.f32 %v5001, %v5420
        %5422 = vdwg.mxu0
        %v5423 = vmax.f32 %v5027, 0.0
        %v5424 = vmax.f32 %v5050, 0.0
        %v5425 = vmax.f32 %v5073, 0.0
        %v5426 = vmax.f32 %v5096, 0.0
        %v5427 = vmax.f32 %v5119, 0.0
        %v5428 = vmax.f32 %v5142, 0.0
        %v5429 = vmax.f32 %v5165, 0.0
        %v5430 = vmax.f32 %v5188, 0.0
        %v5431 = vmax.f32 %v5211, 0.0
        %v5432 = vmax.f32 %v5234, 0.0
        %v5433 = vmax.f32 %v5257, 0.0
        %v5434 = vmax.f32 %v5280, 0.0
        %v5435 = vmax.f32 %v5303, 0.0
        %v5436 = vmax.f32 %v5326, 0.0
        %v5437 = vmax.f32 %v5349, 0.0
        %v5438 = vmax.f32 %v5372, 0.0
        %v5439 = vmax.f32 %v5395, 0.0
        %v5440 = vmax.f32 %v5418, 0.0
        %v5441 = vmax.f32 %v5030, 0.0
        %v5442 = vmax.f32 %v5053, 0.0
        %v5443 = vmax.f32 %v5076, 0.0
        %v5444 = vmax.f32 %v5099, 0.0
        %v5445 = vmax.f32 %v5122, 0.0
        %v5446 = vmax.f32 %v5145, 0.0
        %v5447 = vmax.f32 %v5168, 0.0
        %v5448 = vmax.f32 %v5191, 0.0
        %v5449 = vmax.f32 %v5214, 0.0
        %v5450 = vmax.f32 %v5237, 0.0
        %v5451 = vmax.f32 %v5260, 0.0
        %v5452 = vmax.f32 %v5283, 0.0
        %v5453 = vmax.f32 %v5306, 0.0
        %v5454 = vmax.f32 %v5329, 0.0
        %v5455 = vmax.f32 %v5352, 0.0
        %v5456 = vmax.f32 %v5375, 0.0
        %v5457 = vmax.f32 %v5398, 0.0
        %v5458 = vmax.f32 %v5421, 0.0
        %v5459 = vld [vmem:[%s16] sm:$0xff]
        %v5460 = vld [vmem:[%s16 + $0x8] sm:$0xff]
        %v5461 = vld [vmem:[%s17] sm:$0xff]
        %v5462 = vld [vmem:[%s17 + $0x8] sm:$0xff]
        %5464 = vset.pattern.permute.xlu0 0
        %5465 = vperm.xlu0 %5464, %v5461
        %v5466 = vpop.permute.xlu0 %5465
        %5469 = vset.pattern.permute.xlu0 0
        %5470 = vperm.xlu0 %5469, %v5462
        %v5471 = vpop.permute.xlu0 %5470
        %v5474 = vsel %vm1225, %v5459, 0
        %v5477 = vsel %vm1225, %v5460, 0
        %5479 = vmatpush.msra.mxu0 0.0
        %5480 = vmatpush.msra.mxu0 0.0
        %5481 = vmatpush.msra.mxu0 0.0
        %5482 = vmatpush.msra.mxu0 0.0
        %5483 = vmatpush.msra.mxu0 0.0
        %5484 = vmatpush.msra.mxu0 0.0
        %5485 = vmatpush.msra.mxu0 0.0
        %5486 = vmatpush.msra.mxu0 0.0
        %5487 = vmatpush.msra.mxu0 0.0
        %5488 = vmatpush.msra.mxu0 0.0
        %5489 = vmatpush.msra.mxu0 0.0
        %5490 = vmatpush.msra.mxu0 0.0
        %5491 = vmatpush.msra.mxu0 0.0
        %5492 = vmatpush.msra.mxu0 0.0
        %5493 = vmatpush.msra.mxu0 %v5441
        %5494 = vmatpush.msra.mxu0 %v5423
        %5495 = vmatmul.f32.gmra.mxu0 %v5474
        %v5496 = vpop.f32.mrf.mxu0
        %v5497 = vadd.f32 %v5466, %v5496
        %5498 = vmatmul.f32.gmra.mxu0 %v5477
        %v5499 = vpop.f32.mrf.mxu0
        %v5500 = vadd.f32 %v5471, %v5499
        %5501 = vdwg.mxu0
        %5502 = vmatpush.msra.mxu0 0.0
        %5503 = vmatpush.msra.mxu0 0.0
        %5504 = vmatpush.msra.mxu0 0.0
        %5505 = vmatpush.msra.mxu0 0.0
        %5506 = vmatpush.msra.mxu0 0.0
        %5507 = vmatpush.msra.mxu0 0.0
        %5508 = vmatpush.msra.mxu0 0.0
        %5509 = vmatpush.msra.mxu0 0.0
        %5510 = vmatpush.msra.mxu0 0.0
        %5511 = vmatpush.msra.mxu0 0.0
        %5512 = vmatpush.msra.mxu0 0.0
        %5513 = vmatpush.msra.mxu0 0.0
        %5514 = vmatpush.msra.mxu0 0.0
        %5515 = vmatpush.msra.mxu0 0.0
        %5516 = vmatpush.msra.mxu0 %v5442
        %5517 = vmatpush.msra.mxu0 %v5424
        %5518 = vmatmul.f32.gmra.mxu0 %v5474
        %v5519 = vpop.f32.mrf.mxu0
        %v5520 = vadd.f32 %v5466, %v5519
        %5521 = vmatmul.f32.gmra.mxu0 %v5477
        %v5522 = vpop.f32.mrf.mxu0
        %v5523 = vadd.f32 %v5471, %v5522
        %5524 = vdwg.mxu0
        %5525 = vmatpush.msra.mxu0 0.0
        %5526 = vmatpush.msra.mxu0 0.0
        %5527 = vmatpush.msra.mxu0 0.0
        %5528 = vmatpush.msra.mxu0 0.0
        %5529 = vmatpush.msra.mxu0 0.0
        %5530 = vmatpush.msra.mxu0 0.0
        %5531 = vmatpush.msra.mxu0 0.0
        %5532 = vmatpush.msra.mxu0 0.0
        %5533 = vmatpush.msra.mxu0 0.0
        %5534 = vmatpush.msra.mxu0 0.0
        %5535 = vmatpush.msra.mxu0 0.0
        %5536 = vmatpush.msra.mxu0 0.0
        %5537 = vmatpush.msra.mxu0 0.0
        %5538 = vmatpush.msra.mxu0 0.0
        %5539 = vmatpush.msra.mxu0 %v5443
        %5540 = vmatpush.msra.mxu0 %v5425
        %5541 = vmatmul.f32.gmra.mxu0 %v5474
        %v5542 = vpop.f32.mrf.mxu0
        %v5543 = vadd.f32 %v5466, %v5542
        %5544 = vmatmul.f32.gmra.mxu0 %v5477
        %v5545 = vpop.f32.mrf.mxu0
        %v5546 = vadd.f32 %v5471, %v5545
        %5547 = vdwg.mxu0
        %5548 = vmatpush.msra.mxu0 0.0
        %5549 = vmatpush.msra.mxu0 0.0
        %5550 = vmatpush.msra.mxu0 0.0
        %5551 = vmatpush.msra.mxu0 0.0
        %5552 = vmatpush.msra.mxu0 0.0
        %5553 = vmatpush.msra.mxu0 0.0
        %5554 = vmatpush.msra.mxu0 0.0
        %5555 = vmatpush.msra.mxu0 0.0
        %5556 = vmatpush.msra.mxu0 0.0
        %5557 = vmatpush.msra.mxu0 0.0
        %5558 = vmatpush.msra.mxu0 0.0
        %5559 = vmatpush.msra.mxu0 0.0
        %5560 = vmatpush.msra.mxu0 0.0
        %5561 = vmatpush.msra.mxu0 0.0
        %5562 = vmatpush.msra.mxu0 %v5444
        %5563 = vmatpush.msra.mxu0 %v5426
        %5564 = vmatmul.f32.gmra.mxu0 %v5474
        %v5565 = vpop.f32.mrf.mxu0
        %v5566 = vadd.f32 %v5466, %v5565
        %5567 = vmatmul.f32.gmra.mxu0 %v5477
        %v5568 = vpop.f32.mrf.mxu0
        %v5569 = vadd.f32 %v5471, %v5568
        %5570 = vdwg.mxu0
        %5571 = vmatpush.msra.mxu0 0.0
        %5572 = vmatpush.msra.mxu0 0.0
        %5573 = vmatpush.msra.mxu0 0.0
        %5574 = vmatpush.msra.mxu0 0.0
        %5575 = vmatpush.msra.mxu0 0.0
        %5576 = vmatpush.msra.mxu0 0.0
        %5577 = vmatpush.msra.mxu0 0.0
        %5578 = vmatpush.msra.mxu0 0.0
        %5579 = vmatpush.msra.mxu0 0.0
        %5580 = vmatpush.msra.mxu0 0.0
        %5581 = vmatpush.msra.mxu0 0.0
        %5582 = vmatpush.msra.mxu0 0.0
        %5583 = vmatpush.msra.mxu0 0.0
        %5584 = vmatpush.msra.mxu0 0.0
        %5585 = vmatpush.msra.mxu0 %v5445
        %5586 = vmatpush.msra.mxu0 %v5427
        %5587 = vmatmul.f32.gmra.mxu0 %v5474
        %v5588 = vpop.f32.mrf.mxu0
        %v5589 = vadd.f32 %v5466, %v5588
        %5590 = vmatmul.f32.gmra.mxu0 %v5477
        %v5591 = vpop.f32.mrf.mxu0
        %v5592 = vadd.f32 %v5471, %v5591
        %5593 = vdwg.mxu0
        %5594 = vmatpush.msra.mxu0 0.0
        %5595 = vmatpush.msra.mxu0 0.0
        %5596 = vmatpush.msra.mxu0 0.0
        %5597 = vmatpush.msra.mxu0 0.0
        %5598 = vmatpush.msra.mxu0 0.0
        %5599 = vmatpush.msra.mxu0 0.0
        %5600 = vmatpush.msra.mxu0 0.0
        %5601 = vmatpush.msra.mxu0 0.0
        %5602 = vmatpush.msra.mxu0 0.0
        %5603 = vmatpush.msra.mxu0 0.0
        %5604 = vmatpush.msra.mxu0 0.0
        %5605 = vmatpush.msra.mxu0 0.0
        %5606 = vmatpush.msra.mxu0 0.0
        %5607 = vmatpush.msra.mxu0 0.0
        %5608 = vmatpush.msra.mxu0 %v5446
        %5609 = vmatpush.msra.mxu0 %v5428
        %5610 = vmatmul.f32.gmra.mxu0 %v5474
        %v5611 = vpop.f32.mrf.mxu0
        %v5612 = vadd.f32 %v5466, %v5611
        %5613 = vmatmul.f32.gmra.mxu0 %v5477
        %v5614 = vpop.f32.mrf.mxu0
        %v5615 = vadd.f32 %v5471, %v5614
        %5616 = vdwg.mxu0
        %5617 = vmatpush.msra.mxu0 0.0
        %5618 = vmatpush.msra.mxu0 0.0
        %5619 = vmatpush.msra.mxu0 0.0
        %5620 = vmatpush.msra.mxu0 0.0
        %5621 = vmatpush.msra.mxu0 0.0
        %5622 = vmatpush.msra.mxu0 0.0
        %5623 = vmatpush.msra.mxu0 0.0
        %5624 = vmatpush.msra.mxu0 0.0
        %5625 = vmatpush.msra.mxu0 0.0
        %5626 = vmatpush.msra.mxu0 0.0
        %5627 = vmatpush.msra.mxu0 0.0
        %5628 = vmatpush.msra.mxu0 0.0
        %5629 = vmatpush.msra.mxu0 0.0
        %5630 = vmatpush.msra.mxu0 0.0
        %5631 = vmatpush.msra.mxu0 %v5447
        %5632 = vmatpush.msra.mxu0 %v5429
        %5633 = vmatmul.f32.gmra.mxu0 %v5474
        %v5634 = vpop.f32.mrf.mxu0
        %v5635 = vadd.f32 %v5466, %v5634
        %5636 = vmatmul.f32.gmra.mxu0 %v5477
        %v5637 = vpop.f32.mrf.mxu0
        %v5638 = vadd.f32 %v5471, %v5637
        %5639 = vdwg.mxu0
        %5640 = vmatpush.msra.mxu0 0.0
        %5641 = vmatpush.msra.mxu0 0.0
        %5642 = vmatpush.msra.mxu0 0.0
        %5643 = vmatpush.msra.mxu0 0.0
        %5644 = vmatpush.msra.mxu0 0.0
        %5645 = vmatpush.msra.mxu0 0.0
        %5646 = vmatpush.msra.mxu0 0.0
        %5647 = vmatpush.msra.mxu0 0.0
        %5648 = vmatpush.msra.mxu0 0.0
        %5649 = vmatpush.msra.mxu0 0.0
        %5650 = vmatpush.msra.mxu0 0.0
        %5651 = vmatpush.msra.mxu0 0.0
        %5652 = vmatpush.msra.mxu0 0.0
        %5653 = vmatpush.msra.mxu0 0.0
        %5654 = vmatpush.msra.mxu0 %v5448
        %5655 = vmatpush.msra.mxu0 %v5430
        %5656 = vmatmul.f32.gmra.mxu0 %v5474
        %v5657 = vpop.f32.mrf.mxu0
        %v5658 = vadd.f32 %v5466, %v5657
        %5659 = vmatmul.f32.gmra.mxu0 %v5477
        %v5660 = vpop.f32.mrf.mxu0
        %v5661 = vadd.f32 %v5471, %v5660
        %5662 = vdwg.mxu0
        %5663 = vmatpush.msra.mxu0 0.0
        %5664 = vmatpush.msra.mxu0 0.0
        %5665 = vmatpush.msra.mxu0 0.0
        %5666 = vmatpush.msra.mxu0 0.0
        %5667 = vmatpush.msra.mxu0 0.0
        %5668 = vmatpush.msra.mxu0 0.0
        %5669 = vmatpush.msra.mxu0 0.0
        %5670 = vmatpush.msra.mxu0 0.0
        %5671 = vmatpush.msra.mxu0 0.0
        %5672 = vmatpush.msra.mxu0 0.0
        %5673 = vmatpush.msra.mxu0 0.0
        %5674 = vmatpush.msra.mxu0 0.0
        %5675 = vmatpush.msra.mxu0 0.0
        %5676 = vmatpush.msra.mxu0 0.0
        %5677 = vmatpush.msra.mxu0 %v5449
        %5678 = vmatpush.msra.mxu0 %v5431
        %5679 = vmatmul.f32.gmra.mxu0 %v5474
        %v5680 = vpop.f32.mrf.mxu0
        %v5681 = vadd.f32 %v5466, %v5680
        %5682 = vmatmul.f32.gmra.mxu0 %v5477
        %v5683 = vpop.f32.mrf.mxu0
        %v5684 = vadd.f32 %v5471, %v5683
        %5685 = vdwg.mxu0
        %5686 = vmatpush.msra.mxu0 0.0
        %5687 = vmatpush.msra.mxu0 0.0
        %5688 = vmatpush.msra.mxu0 0.0
        %5689 = vmatpush.msra.mxu0 0.0
        %5690 = vmatpush.msra.mxu0 0.0
        %5691 = vmatpush.msra.mxu0 0.0
        %5692 = vmatpush.msra.mxu0 0.0
        %5693 = vmatpush.msra.mxu0 0.0
        %5694 = vmatpush.msra.mxu0 0.0
        %5695 = vmatpush.msra.mxu0 0.0
        %5696 = vmatpush.msra.mxu0 0.0
        %5697 = vmatpush.msra.mxu0 0.0
        %5698 = vmatpush.msra.mxu0 0.0
        %5699 = vmatpush.msra.mxu0 0.0
        %5700 = vmatpush.msra.mxu0 %v5450
        %5701 = vmatpush.msra.mxu0 %v5432
        %5702 = vmatmul.f32.gmra.mxu0 %v5474
        %v5703 = vpop.f32.mrf.mxu0
        %v5704 = vadd.f32 %v5466, %v5703
        %5705 = vmatmul.f32.gmra.mxu0 %v5477
        %v5706 = vpop.f32.mrf.mxu0
        %v5707 = vadd.f32 %v5471, %v5706
        %5708 = vdwg.mxu0
        %5709 = vmatpush.msra.mxu0 0.0
        %5710 = vmatpush.msra.mxu0 0.0
        %5711 = vmatpush.msra.mxu0 0.0
        %5712 = vmatpush.msra.mxu0 0.0
        %5713 = vmatpush.msra.mxu0 0.0
        %5714 = vmatpush.msra.mxu0 0.0
        %5715 = vmatpush.msra.mxu0 0.0
        %5716 = vmatpush.msra.mxu0 0.0
        %5717 = vmatpush.msra.mxu0 0.0
        %5718 = vmatpush.msra.mxu0 0.0
        %5719 = vmatpush.msra.mxu0 0.0
        %5720 = vmatpush.msra.mxu0 0.0
        %5721 = vmatpush.msra.mxu0 0.0
        %5722 = vmatpush.msra.mxu0 0.0
        %5723 = vmatpush.msra.mxu0 %v5451
        %5724 = vmatpush.msra.mxu0 %v5433
        %5725 = vmatmul.f32.gmra.mxu0 %v5474
        %v5726 = vpop.f32.mrf.mxu0
        %v5727 = vadd.f32 %v5466, %v5726
        %5728 = vmatmul.f32.gmra.mxu0 %v5477
        %v5729 = vpop.f32.mrf.mxu0
        %v5730 = vadd.f32 %v5471, %v5729
        %5731 = vdwg.mxu0
        %5732 = vmatpush.msra.mxu0 0.0
        %5733 = vmatpush.msra.mxu0 0.0
        %5734 = vmatpush.msra.mxu0 0.0
        %5735 = vmatpush.msra.mxu0 0.0
        %5736 = vmatpush.msra.mxu0 0.0
        %5737 = vmatpush.msra.mxu0 0.0
        %5738 = vmatpush.msra.mxu0 0.0
        %5739 = vmatpush.msra.mxu0 0.0
        %5740 = vmatpush.msra.mxu0 0.0
        %5741 = vmatpush.msra.mxu0 0.0
        %5742 = vmatpush.msra.mxu0 0.0
        %5743 = vmatpush.msra.mxu0 0.0
        %5744 = vmatpush.msra.mxu0 0.0
        %5745 = vmatpush.msra.mxu0 0.0
        %5746 = vmatpush.msra.mxu0 %v5452
        %5747 = vmatpush.msra.mxu0 %v5434
        %5748 = vmatmul.f32.gmra.mxu0 %v5474
        %v5749 = vpop.f32.mrf.mxu0
        %v5750 = vadd.f32 %v5466, %v5749
        %5751 = vmatmul.f32.gmra.mxu0 %v5477
        %v5752 = vpop.f32.mrf.mxu0
        %v5753 = vadd.f32 %v5471, %v5752
        %5754 = vdwg.mxu0
        %5755 = vmatpush.msra.mxu0 0.0
        %5756 = vmatpush.msra.mxu0 0.0
        %5757 = vmatpush.msra.mxu0 0.0
        %5758 = vmatpush.msra.mxu0 0.0
        %5759 = vmatpush.msra.mxu0 0.0
        %5760 = vmatpush.msra.mxu0 0.0
        %5761 = vmatpush.msra.mxu0 0.0
        %5762 = vmatpush.msra.mxu0 0.0
        %5763 = vmatpush.msra.mxu0 0.0
        %5764 = vmatpush.msra.mxu0 0.0
        %5765 = vmatpush.msra.mxu0 0.0
        %5766 = vmatpush.msra.mxu0 0.0
        %5767 = vmatpush.msra.mxu0 0.0
        %5768 = vmatpush.msra.mxu0 0.0
        %5769 = vmatpush.msra.mxu0 %v5453
        %5770 = vmatpush.msra.mxu0 %v5435
        %5771 = vmatmul.f32.gmra.mxu0 %v5474
        %v5772 = vpop.f32.mrf.mxu0
        %v5773 = vadd.f32 %v5466, %v5772
        %5774 = vmatmul.f32.gmra.mxu0 %v5477
        %v5775 = vpop.f32.mrf.mxu0
        %v5776 = vadd.f32 %v5471, %v5775
        %5777 = vdwg.mxu0
        %5778 = vmatpush.msra.mxu0 0.0
        %5779 = vmatpush.msra.mxu0 0.0
        %5780 = vmatpush.msra.mxu0 0.0
        %5781 = vmatpush.msra.mxu0 0.0
        %5782 = vmatpush.msra.mxu0 0.0
        %5783 = vmatpush.msra.mxu0 0.0
        %5784 = vmatpush.msra.mxu0 0.0
        %5785 = vmatpush.msra.mxu0 0.0
        %5786 = vmatpush.msra.mxu0 0.0
        %5787 = vmatpush.msra.mxu0 0.0
        %5788 = vmatpush.msra.mxu0 0.0
        %5789 = vmatpush.msra.mxu0 0.0
        %5790 = vmatpush.msra.mxu0 0.0
        %5791 = vmatpush.msra.mxu0 0.0
        %5792 = vmatpush.msra.mxu0 %v5454
        %5793 = vmatpush.msra.mxu0 %v5436
        %5794 = vmatmul.f32.gmra.mxu0 %v5474
        %v5795 = vpop.f32.mrf.mxu0
        %v5796 = vadd.f32 %v5466, %v5795
        %5797 = vmatmul.f32.gmra.mxu0 %v5477
        %v5798 = vpop.f32.mrf.mxu0
        %v5799 = vadd.f32 %v5471, %v5798
        %5800 = vdwg.mxu0
        %5801 = vmatpush.msra.mxu0 0.0
        %5802 = vmatpush.msra.mxu0 0.0
        %5803 = vmatpush.msra.mxu0 0.0
        %5804 = vmatpush.msra.mxu0 0.0
        %5805 = vmatpush.msra.mxu0 0.0
        %5806 = vmatpush.msra.mxu0 0.0
        %5807 = vmatpush.msra.mxu0 0.0
        %5808 = vmatpush.msra.mxu0 0.0
        %5809 = vmatpush.msra.mxu0 0.0
        %5810 = vmatpush.msra.mxu0 0.0
        %5811 = vmatpush.msra.mxu0 0.0
        %5812 = vmatpush.msra.mxu0 0.0
        %5813 = vmatpush.msra.mxu0 0.0
        %5814 = vmatpush.msra.mxu0 0.0
        %5815 = vmatpush.msra.mxu0 %v5455
        %5816 = vmatpush.msra.mxu0 %v5437
        %5817 = vmatmul.f32.gmra.mxu0 %v5474
        %v5818 = vpop.f32.mrf.mxu0
        %v5819 = vadd.f32 %v5466, %v5818
        %5820 = vmatmul.f32.gmra.mxu0 %v5477
        %v5821 = vpop.f32.mrf.mxu0
        %v5822 = vadd.f32 %v5471, %v5821
        %5823 = vdwg.mxu0
        %5824 = vmatpush.msra.mxu0 0.0
        %5825 = vmatpush.msra.mxu0 0.0
        %5826 = vmatpush.msra.mxu0 0.0
        %5827 = vmatpush.msra.mxu0 0.0
        %5828 = vmatpush.msra.mxu0 0.0
        %5829 = vmatpush.msra.mxu0 0.0
        %5830 = vmatpush.msra.mxu0 0.0
        %5831 = vmatpush.msra.mxu0 0.0
        %5832 = vmatpush.msra.mxu0 0.0
        %5833 = vmatpush.msra.mxu0 0.0
        %5834 = vmatpush.msra.mxu0 0.0
        %5835 = vmatpush.msra.mxu0 0.0
        %5836 = vmatpush.msra.mxu0 0.0
        %5837 = vmatpush.msra.mxu0 0.0
        %5838 = vmatpush.msra.mxu0 %v5456
        %5839 = vmatpush.msra.mxu0 %v5438
        %5840 = vmatmul.f32.gmra.mxu0 %v5474
        %v5841 = vpop.f32.mrf.mxu0
        %v5842 = vadd.f32 %v5466, %v5841
        %5843 = vmatmul.f32.gmra.mxu0 %v5477
        %v5844 = vpop.f32.mrf.mxu0
        %v5845 = vadd.f32 %v5471, %v5844
        %5846 = vdwg.mxu0
        %5847 = vmatpush.msra.mxu0 0.0
        %5848 = vmatpush.msra.mxu0 0.0
        %5849 = vmatpush.msra.mxu0 0.0
        %5850 = vmatpush.msra.mxu0 0.0
        %5851 = vmatpush.msra.mxu0 0.0
        %5852 = vmatpush.msra.mxu0 0.0
        %5853 = vmatpush.msra.mxu0 0.0
        %5854 = vmatpush.msra.mxu0 0.0
        %5855 = vmatpush.msra.mxu0 0.0
        %5856 = vmatpush.msra.mxu0 0.0
        %5857 = vmatpush.msra.mxu0 0.0
        %5858 = vmatpush.msra.mxu0 0.0
        %5859 = vmatpush.msra.mxu0 0.0
        %5860 = vmatpush.msra.mxu0 0.0
        %5861 = vmatpush.msra.mxu0 %v5457
        %5862 = vmatpush.msra.mxu0 %v5439
        %5863 = vmatmul.f32.gmra.mxu0 %v5474
        %v5864 = vpop.f32.mrf.mxu0
        %v5865 = vadd.f32 %v5466, %v5864
        %5866 = vmatmul.f32.gmra.mxu0 %v5477
        %v5867 = vpop.f32.mrf.mxu0
        %v5868 = vadd.f32 %v5471, %v5867
        %5869 = vdwg.mxu0
        %5870 = vmatpush.msra.mxu0 0.0
        %5871 = vmatpush.msra.mxu0 0.0
        %5872 = vmatpush.msra.mxu0 0.0
        %5873 = vmatpush.msra.mxu0 0.0
        %5874 = vmatpush.msra.mxu0 0.0
        %5875 = vmatpush.msra.mxu0 0.0
        %5876 = vmatpush.msra.mxu0 0.0
        %5877 = vmatpush.msra.mxu0 0.0
        %5878 = vmatpush.msra.mxu0 0.0
        %5879 = vmatpush.msra.mxu0 0.0
        %5880 = vmatpush.msra.mxu0 0.0
        %5881 = vmatpush.msra.mxu0 0.0
        %5882 = vmatpush.msra.mxu0 0.0
        %5883 = vmatpush.msra.mxu0 0.0
        %5884 = vmatpush.msra.mxu0 %v5458
        %5885 = vmatpush.msra.mxu0 %v5440
        %5886 = vmatmul.f32.gmra.mxu0 %v5474
        %v5887 = vpop.f32.mrf.mxu0
        %v5888 = vadd.f32 %v5466, %v5887
        %5889 = vmatmul.f32.gmra.mxu0 %v5477
        %v5890 = vpop.f32.mrf.mxu0
        %v5891 = vadd.f32 %v5471, %v5890
        %5892 = vdwg.mxu0
        %v5893 = vadd.f32 %v4256, %v5497
        %v5894 = vadd.f32 %v4257, %v5520
        %v5895 = vadd.f32 %v4258, %v5543
        %v5896 = vadd.f32 %v4259, %v5566
        %v5897 = vadd.f32 %v4260, %v5589
        %v5898 = vadd.f32 %v4261, %v5612
        %v5899 = vadd.f32 %v4262, %v5635
        %v5900 = vadd.f32 %v4263, %v5658
        %v5901 = vadd.f32 %v4264, %v5681
        %v5902 = vadd.f32 %v4265, %v5704
        %v5903 = vadd.f32 %v4266, %v5727
        %v5904 = vadd.f32 %v4267, %v5750
        %v5905 = vadd.f32 %v4268, %v5773
        %v5906 = vadd.f32 %v4269, %v5796
        %v5907 = vadd.f32 %v4270, %v5819
        %v5908 = vadd.f32 %v4271, %v5842
        %v5909 = vadd.f32 %v4272, %v5865
        %v5910 = vadd.f32 %v4273, %v5888
        %v5911 = vadd.f32 %v4274, %v5500
        %v5912 = vadd.f32 %v4275, %v5523
        %v5913 = vadd.f32 %v4276, %v5546
        %v5914 = vadd.f32 %v4277, %v5569
        %v5915 = vadd.f32 %v4278, %v5592
        %v5916 = vadd.f32 %v4279, %v5615
        %v5917 = vadd.f32 %v4280, %v5638
        %v5918 = vadd.f32 %v4281, %v5661
        %v5919 = vadd.f32 %v4282, %v5684
        %v5920 = vadd.f32 %v4283, %v5707
        %v5921 = vadd.f32 %v4284, %v5730
        %v5922 = vadd.f32 %v4285, %v5753
        %v5923 = vadd.f32 %v4286, %v5776
        %v5924 = vadd.f32 %v4287, %v5799
        %v5925 = vadd.f32 %v4288, %v5822
        %v5926 = vadd.f32 %v4289, %v5845
        %v5927 = vadd.f32 %v4290, %v5868
        %v5928 = vadd.f32 %v4291, %v5891
        %v5929 = vld [vmem:[%s18] sm:$0xff]
        %v5930 = vld [vmem:[%s18 + $0x8] sm:$0xff]
        %v5931 = vld [vmem:[%s18 + $0x10] sm:$0xff]
        %v5932 = vld [vmem:[%s18 + $0x18] sm:$0xff]
        %v5933 = vld [vmem:[%s18 + $0x20] sm:$0xff]
        %v5934 = vld [vmem:[%s18 + $0x28] sm:$0xff]
        %v5935 = vld [vmem:[%s18 + $0x30] sm:$0xff]
        %v5936 = vld [vmem:[%s18 + $0x38] sm:$0xff]
        %v5937 = vld [vmem:[%s19] sm:$0xff]
        %v5938 = vld [vmem:[%s19 + $0x8] sm:$0xff]
        %v5939 = vld [vmem:[%s19 + $0x10] sm:$0xff]
        %v5940 = vld [vmem:[%s19 + $0x18] sm:$0xff]
        %5942 = vset.pattern.permute.xlu0 0
        %5943 = vperm.xlu0 %5942, %v5937
        %v5944 = vpop.permute.xlu0 %5943
        %5947 = vset.pattern.permute.xlu0 0
        %5948 = vperm.xlu0 %5947, %v5938
        %v5949 = vpop.permute.xlu0 %5948
        %5952 = vset.pattern.permute.xlu0 0
        %5953 = vperm.xlu0 %5952, %v5939
        %v5954 = vpop.permute.xlu0 %5953
        %5957 = vset.pattern.permute.xlu0 0
        %5958 = vperm.xlu0 %5957, %v5940
        %v5959 = vpop.permute.xlu0 %5958
        %v5962 = vsel %vm1225, %v5930, 0
        %v5965 = vsel %vm1225, %v5932, 0
        %v5968 = vsel %vm1225, %v5934, 0
        %v5971 = vsel %vm1225, %v5936, 0
        %5973 = vmatpush.msra.mxu0 %v5925
        %5974 = vmatpush.msra.mxu0 %v5907
        %5975 = vmatpush.msra.mxu0 %v5923
        %5976 = vmatpush.msra.mxu0 %v5905
        %5977 = vmatpush.msra.mxu0 %v5921
        %5978 = vmatpush.msra.mxu0 %v5903
        %5979 = vmatpush.msra.mxu0 %v5919
        %5980 = vmatpush.msra.mxu0 %v5901
        %5981 = vmatpush.msra.mxu0 %v5917
        %5982 = vmatpush.msra.mxu0 %v5899
        %5983 = vmatpush.msra.mxu0 %v5915
        %5984 = vmatpush.msra.mxu0 %v5897
        %5985 = vmatpush.msra.mxu0 %v5913
        %5986 = vmatpush.msra.mxu0 %v5895
        %5987 = vmatpush.msra.mxu0 %v5911
        %5988 = vmatpush.msra.mxu0 %v5893
        %5989 = vmatmul.f32.gmra.mxu0 %v5929
        %v5990 = vpop.f32.mrf.mxu0
        %v5991 = vadd.f32 %v5944, %v5990
        %5992 = vmatmul.f32.gmra.mxu0 %v5931
        %v5993 = vpop.f32.mrf.mxu0
        %v5994 = vadd.f32 %v5949, %v5993
        %5995 = vmatmul.f32.gmra.mxu0 %v5933
        %v5996 = vpop.f32.mrf.mxu0
        %v5997 = vadd.f32 %v5954, %v5996
        %5998 = vmatmul.f32.gmra.mxu0 %v5935
        %v5999 = vpop.f32.mrf.mxu0
        %v6000 = vadd.f32 %v5959, %v5999
        %6001 = vdwg.mxu0
        %6002 = vmatpush.msra.mxu0 0.0
        %6003 = vmatpush.msra.mxu0 0.0
        %6004 = vmatpush.msra.mxu0 0.0
        %6005 = vmatpush.msra.mxu0 0.0
        %6006 = vmatpush.msra.mxu0 0.0
        %6007 = vmatpush.msra.mxu0 0.0
        %6008 = vmatpush.msra.mxu0 0.0
        %6009 = vmatpush.msra.mxu0 0.0
        %6010 = vmatpush.msra.mxu0 0.0
        %6011 = vmatpush.msra.mxu0 0.0
        %6012 = vmatpush.msra.mxu0 0.0
        %6013 = vmatpush.msra.mxu0 0.0
        %6014 = vmatpush.msra.mxu0 0.0
        %6015 = vmatpush.msra.mxu0 0.0
        %6016 = vmatpush.msra.mxu0 %v5927
        %6017 = vmatpush.msra.mxu0 %v5909
        %6018 = vmatmul.f32.gmra.mxu0 %v5962
        %v6019 = vpop.f32.mrf.mxu0
        %v6020 = vadd.f32 %v5991, %v6019
        %6021 = vmatmul.f32.gmra.mxu0 %v5965
        %v6022 = vpop.f32.mrf.mxu0
        %v6023 = vadd.f32 %v5994, %v6022
        %6024 = vmatmul.f32.gmra.mxu0 %v5968
        %v6025 = vpop.f32.mrf.mxu0
        %v6026 = vadd.f32 %v5997, %v6025
        %6027 = vmatmul.f32.gmra.mxu0 %v5971
        %v6028 = vpop.f32.mrf.mxu0
        %v6029 = vadd.f32 %v6000, %v6028
        %6030 = vdwg.mxu0
        %6031 = vmatpush.msra.mxu0 %v5926
        %6032 = vmatpush.msra.mxu0 %v5908
        %6033 = vmatpush.msra.mxu0 %v5924
        %6034 = vmatpush.msra.mxu0 %v5906
        %6035 = vmatpush.msra.mxu0 %v5922
        %6036 = vmatpush.msra.mxu0 %v5904
        %6037 = vmatpush.msra.mxu0 %v5920
        %6038 = vmatpush.msra.mxu0 %v5902
        %6039 = vmatpush.msra.mxu0 %v5918
        %6040 = vmatpush.msra.mxu0 %v5900
        %6041 = vmatpush.msra.mxu0 %v5916
        %6042 = vmatpush.msra.mxu0 %v5898
        %6043 = vmatpush.msra.mxu0 %v5914
        %6044 = vmatpush.msra.mxu0 %v5896
        %6045 = vmatpush.msra.mxu0 %v5912
        %6046 = vmatpush.msra.mxu0 %v5894
        %6047 = vmatmul.f32.gmra.mxu0 %v5929
        %v6048 = vpop.f32.mrf.mxu0
        %v6049 = vadd.f32 %v5944, %v6048
        %6050 = vmatmul.f32.gmra.mxu0 %v5931
        %v6051 = vpop.f32.mrf.mxu0
        %v6052 = vadd.f32 %v5949, %v6051
        %6053 = vmatmul.f32.gmra.mxu0 %v5933
        %v6054 = vpop.f32.mrf.mxu0
        %v6055 = vadd.f32 %v5954, %v6054
        %6056 = vmatmul.f32.gmra.mxu0 %v5935
        %v6057 = vpop.f32.mrf.mxu0
        %v6058 = vadd.f32 %v5959, %v6057
        %6059 = vdwg.mxu0
        %6060 = vmatpush.msra.mxu0 0.0
        %6061 = vmatpush.msra.mxu0 0.0
        %6062 = vmatpush.msra.mxu0 0.0
        %6063 = vmatpush.msra.mxu0 0.0
        %6064 = vmatpush.msra.mxu0 0.0
        %6065 = vmatpush.msra.mxu0 0.0
        %6066 = vmatpush.msra.mxu0 0.0
        %6067 = vmatpush.msra.mxu0 0.0
        %6068 = vmatpush.msra.mxu0 0.0
        %6069 = vmatpush.msra.mxu0 0.0
        %6070 = vmatpush.msra.mxu0 0.0
        %6071 = vmatpush.msra.mxu0 0.0
        %6072 = vmatpush.msra.mxu0 0.0
        %6073 = vmatpush.msra.mxu0 0.0
        %6074 = vmatpush.msra.mxu0 %v5928
        %6075 = vmatpush.msra.mxu0 %v5910
        %6076 = vmatmul.f32.gmra.mxu0 %v5962
        %v6077 = vpop.f32.mrf.mxu0
        %v6078 = vadd.f32 %v6049, %v6077
        %6079 = vmatmul.f32.gmra.mxu0 %v5965
        %v6080 = vpop.f32.mrf.mxu0
        %v6081 = vadd.f32 %v6052, %v6080
        %6082 = vmatmul.f32.gmra.mxu0 %v5968
        %v6083 = vpop.f32.mrf.mxu0
        %v6084 = vadd.f32 %v6055, %v6083
        %6085 = vmatmul.f32.gmra.mxu0 %v5971
        %v6086 = vpop.f32.mrf.mxu0
        %v6087 = vadd.f32 %v6058, %v6086
        %6088 = vdwg.mxu0
        %v6089 = vadd.f32 %v6020, %v628
        %v6090 = vadd.f32 %v6078, %v629
        %v6091 = vadd.f32 %v6023, %v630
        %v6092 = vadd.f32 %v6081, %v631
        %v6093 = vadd.f32 %v6026, %v632
        %v6094 = vadd.f32 %v6084, %v633
        %v6095 = vadd.f32 %v6029, %v634
        %v6096 = vadd.f32 %v6087, %v635
        %6097 = vst [vmem:[%s622] sm:$0xff] %v6089
        %6098 = vst [vmem:[%s622 + $0x8] sm:$0xff] %v6090
        %6099 = vst [vmem:[%s622 + $0x10] sm:$0xff] %v6091
        %6100 = vst [vmem:[%s622 + $0x18] sm:$0xff] %v6092
        %6101 = vst [vmem:[%s622 + $0x20] sm:$0xff] %v6093
        %6102 = vst [vmem:[%s622 + $0x28] sm:$0xff] %v6094
        %6103 = vst [vmem:[%s622 + $0x30] sm:$0xff] %v6095
        %6104 = vst [vmem:[%s622 + $0x38] sm:$0xff] %v6096
        %s6105 = sand.u32 %s467, 1
        %s6106 = scalar_lea.sflag [#allocation3], %s6105
        %s6107 = sand.u32 %s467, 1
        %s6108 = smul.addr %s6107, 64
        %s6109 = scalar_lea.vmem [#allocation2], %s6108
        // Predicated region
        $region101: #{tpu_custom_call.1} parent=99 // pred_check
          %p6110 = pneg %p477
        $region102: #{tpu_custom_call.1} parent=99 // pred_check_branch
          %6112 = sbr.rel (%p6110) target = $region104
        $region103: #{tpu_custom_call.1} parent=99 // pred_region
          %6114 = vsyncadd %s6106, 0
          %s6115 = smul.addr %s34, 8
          %s6116 = smul.addr %s6115, 8
          %s6117 = scalar_lea.hbm %s20, %s6116
          %s6118 = sshll.u32 %s6109, 4
          %s6119 = int_to_ptr.vmem [resolvable:$true] %s6118
          %s6120 = sshll.u32 %s6117, 4
          %s6121 = int_to_ptr.hbm [resolvable:$true] %s6120
          %6126 = dma.vmem_to_hbm [thread:$0]  %s6119, 1024, %s6121, %s6106, 256, 256, 16
        $region104: #{tpu_custom_call.1} parent=99 // pred_fallthru
          _
      $region100: #{tpu_custom_call.1} parent=5 // pred_fallthru
        _
      %p6127 = scmp.le.s32.totalorder 2, %s29
      // Predicated region
      $region105: #{tpu_custom_call.1} parent=5 // pred_check
        %p6128 = pneg %p6127
      $region106: #{tpu_custom_call.1} parent=5 // pred_check_branch
        %6130 = sbr.rel (%p6128) target = $region108
      $region107: #{tpu_custom_call.1} parent=5 // pred_region
        %s6131 = ssub.s32 %s29, 2
        // Predicated region
        $region109: #{tpu_custom_call.1} parent=107 // pred_check
          %p6132 = pneg %p483
        $region110: #{tpu_custom_call.1} parent=107 // pred_check_branch
          %6134 = sbr.rel (%p6132) target = $region112
        $region111: #{tpu_custom_call.1} parent=107 // pred_region
          %s6135 = sand.u32 %s468, 1
          %s6136 = scalar_lea.sflag [#allocation3], %s6135
          %s6137 = sand.u32 %s468, 1
          %s6138 = smul.addr %s6137, 64
          %s6139 = scalar_lea.vmem [#allocation2], %s6138
          %6141 = dma.done %s6136, 1024
        $region112: #{tpu_custom_call.1} parent=107 // pred_fallthru
          _
      $region108: #{tpu_custom_call.1} parent=5 // pred_fallthru
        _
    $region6: #{tpu_custom_call.1} parent=1 // loop_footer
      %s33 = sadd.s32 1, %s29
    $region7: #{tpu_custom_call.1} parent=1 // loop_footer_branch
      %28 = sbr.rel target = $region3
    $region8: #{tpu_custom_call.1} parent=1 // loop_exit
      _
    %6142 = vsyncpa [#allocation3], 1
    %s6143 = scalar_lea.sflag [#allocation3], 1
    %6144 = vsyncpa %s6143, 1

</llo_original>
